<compile_context>
chip_gen: v5e
topology: v5e:2x2
jax: 0.10.0
libtpu: 0.0.40
codegen_flags: <defaults>
</compile_context>

<pallas_src>
import functools

import jax
import jax.numpy as jnp
from jax.experimental import pallas as pl
from jax.experimental.pallas import tpu as pltpu


def _round_up(x, m):
    return -(-x // m) * m


# ----------------------------- Pallas kernel --------------------------------
def _make_kernel(td, hd, H, ks, dilation):
    def kernel(x_ref, xh_ref, w_ref, b_ref, o_ref):
        # x_ref : (td, Hp, kin)       bf16  main dp slices  [j*td, j*td+td)
        # xh_ref: (hd, Hp, kin)       bf16  D-halo slices   [j*td+td, j*td+td+hd)
        # w_ref : (ks*ks, kin, nout)  bf16  banded weights (BN scale folded in)
        # b_ref : (1, nout)           f32   BN bias
        # o_ref : (td, H, nout)       bf16  dense valid output rows
        bias = b_ref[...]
        nout = o_ref.shape[-1]
        # Static unroll over the td output d-slices: each accumulator is only
        # (H, nout) f32 (a few vregs), so unrolling keeps all slice offsets
        # static without creating register pressure.
        for dl in range(td):
            acc = jnp.zeros((H, nout), jnp.float32)
            for kd in range(ks):
                dd = dl + kd * dilation
                src, di = (x_ref, dd) if dd < td else (xh_ref, dd - td)
                for kh in range(ks):
                    h0 = kh * dilation
                    xt = src[di, h0:h0 + H, :]                 # (H, kin) bf16
                    acc = acc + jnp.dot(xt, w_ref[kd * ks + kh],
                                        preferred_element_type=jnp.float32)
            o_ref[dl] = jnp.maximum(acc + bias, 0.0).astype(o_ref.dtype)

    return kernel


def fused_conv_bn_relu(x4, w_banded, bias_row, *, D_pad, td, hd, H, ks, dilation):
    N, Dp_pad, Hp, kin = x4.shape
    T, _, nout = w_banded.shape
    nj = D_pad // td
    kernel = _make_kernel(td, hd, H, ks, dilation)

    flops = 2 * N * D_pad * H * T * kin * nout
    bytes_accessed = (N * nj * (td + hd) * Hp * kin * 2    # bf16 activation reads
                      + T * kin * nout * 2                 # bf16 weights (once)
                      + nout * 4                           # f32 bias
                      + N * D_pad * H * nout * 2)          # bf16 output writeback

    # NOTE: at these sizes everything fits the default scoped-VMEM budget; for
    # production channel counts raise vmem_limit_bytes and tile nout.
    return pl.pallas_call(
        kernel,
        out_shape=jax.ShapeDtypeStruct((N, D_pad, H, nout), jnp.bfloat16),
        grid=(N, nj),
        in_specs=[
            # main d-slices of the padded volume
            pl.BlockSpec((None, td, Hp, kin), lambda n, j: (n, j, 0, 0)),
            # D-halo: the (ks-1)*dil slices directly past the main block
            pl.BlockSpec((None, hd, Hp, kin),
                         lambda n, j: (n, (j + 1) * (td // hd), 0, 0)),
            # banded weights + bias: constant index maps -> fetched once, resident
            pl.BlockSpec((T, kin, nout), lambda n, j: (0, 0, 0)),
            pl.BlockSpec((1, nout), lambda n, j: (0, 0)),
        ],
        out_specs=pl.BlockSpec((None, td, H, nout), lambda n, j: (n, j, 0, 0)),
        compiler_params=pltpu.CompilerParams(
            dimension_semantics=("parallel", "parallel")),
        cost_estimate=pl.CostEstimate(flops=flops, transcendentals=0,
                                      bytes_accessed=bytes_accessed),
    )(x4, x4, w_banded, bias_row)


# ------------------------------ glue (JAX) -----------------------------------
def basic_convolution_block(x_ndhwc, weight, gamma, beta, run_mean, run_var,
                            *, ks=3, dilation=1, eps=1e-5, target_rows=128):
    """Dense-equivalent forward of BasicConvolutionBlock (stride=1), NDHWC in/out (bf16 out)."""
    N, D, H, W, Cin = x_ndhwc.shape
    Cout = weight.shape[-1]
    assert ks % 2 == 1, "odd kernel size assumed (symmetric 'same' padding)"
    p = dilation * (ks - 1) // 2
    Hp, Wp = H + 2 * p, W + 2 * p

    # ---- tiling parameters ---------------------------------------------------
    hd = max((ks - 1) * dilation, 1)            # D-halo depth (slices past the block)
    td_cap = max(1, -(-target_rows // H))       # ~target_rows output rows per step
    td = max(hd, (min(td_cap, max(D, 1)) // hd) * hd)   # multiple of hd
    for t in range(td, hd - 1, -hd):            # prefer td | D (no overhang, no slice)
        if D % t == 0:
            td = t
            break
    D_pad = _round_up(D, td)
    Dp_pad = D_pad + max(2 * p, hd)

    # ---- lane-dense sizes ------------------------------------------------------
    kin_raw, nout_raw = Wp * Cin, W * Cout
    kin, nout = _round_up(kin_raw, 128), _round_up(nout_raw, 128)

    # ---- fold BatchNorm, build banded per-(kd,kh) weights ----------------------
    # B[t, (w + kw*dil)*Cin + ci, w*Cout + co] = (weight*scale)[kd, kh, kw, ci, co]
    scale = gamma / jnp.sqrt(run_var + eps)
    bias = beta - run_mean * scale
    w_scaled = weight * scale                                     # (ks,ks,ks,Cin,Cout)
    E = jnp.stack([jnp.eye(Wp, W, k=-kw * dilation, dtype=w_scaled.dtype)
                   for kw in range(ks)])                          # (ks, Wp, W)
    ws2 = w_scaled.reshape(ks * ks, ks, Cin, Cout)
    w_banded = jnp.einsum('kpw,tkio->tpiwo', E, ws2).reshape(ks * ks, kin_raw, nout_raw)
    w_banded = jnp.pad(w_banded, ((0, 0), (0, kin - kin_raw),
                                  (0, nout - nout_raw))).astype(jnp.bfloat16)
    bias_row = jnp.pad(jnp.tile(bias, W),
                       (0, nout - nout_raw)).reshape(1, nout).astype(jnp.float32)

    # ---- pad activations once, in bf16, directly to the lane-dense layout -------
    xb = x_ndhwc.astype(jnp.bfloat16)
    d_extra = Dp_pad - (D + 2 * p)
    lane_pad = kin - kin_raw
    if lane_pad % Cin == 0:
        # fold the lane padding into the W spatial pad -> a single jnp.pad
        xp = jnp.pad(xb, ((0, 0), (p, p + d_extra), (p, p),
                          (p, p + lane_pad // Cin), (0, 0)))
        x4 = xp.reshape(N, Dp_pad, Hp, kin)
    else:
        xp = jnp.pad(xb, ((0, 0), (p, p + d_extra), (p, p), (p, p), (0, 0)))
        x4 = jnp.pad(xp.reshape(N, Dp_pad, Hp, kin_raw),
                     ((0, 0), (0, 0), (0, 0), (0, lane_pad)))

    y = fused_conv_bn_relu(x4, w_banded, bias_row, D_pad=D_pad, td=td, hd=hd,
                           H=H, ks=ks, dilation=dilation)
    # Output is already dense over valid (d, h) rows; these are no-ops for
    # divisible shapes (the test case) and cheap slices otherwise.
    if nout != nout_raw:
        y = y[..., :nout_raw]
    y = y.reshape(N, D_pad, H, W, Cout)
    if D_pad != D:
        y = y[:, :D]
    return y                                                      # (N, D, H, W, Cout) bf16


# -------------------------------- reference ----------------------------------
def reference_forward(x_ndhwc, weight, gamma, beta, run_mean, run_var,
                      *, dilation=1, eps=1e-5):
    ks = weight.shape[0]
    p = dilation * (ks - 1) // 2
    scale = gamma / jnp.sqrt(run_var + eps)
    bias = beta - run_mean * scale
    # Match the kernel's bf16 operand rounding (accumulation stays f32).
    xb = x_ndhwc.astype(jnp.bfloat16).astype(jnp.float32)
    wb = (weight * scale).astype(jnp.bfloat16).astype(jnp.float32)
    y = jax.lax.conv_general_dilated(
        xb, wb, window_strides=(1, 1, 1),
        padding=[(p, p)] * 3,
        rhs_dilation=(dilation,) * 3,
        dimension_numbers=("NDHWC", "DHWIO", "NDHWC"),
        precision=jax.lax.Precision.HIGHEST)
    return jnp.maximum(y + bias, 0.0)


# ---------------------------------- main --------------------------------------
if __name__ == "__main__":
    key = jax.random.PRNGKey(0)
    k_x, k_w, k_g, k_b, k_m, k_v = jax.random.split(key, 6)

    # Small shapes consistent with the module: inc=4, outc=8, ks=3, stride=1.
    N, Cin, Cout, D, H, W, ks, dil = 2, 4, 8, 16, 16, 16, 3, 1

    x = jax.random.normal(k_x, (N, D, H, W, Cin), dtype=jnp.float32)      # NDHWC
    weight = jax.random.normal(k_w, (ks, ks, ks, Cin, Cout),
                               dtype=jnp.float32) * 0.1                   # DHWIO
    gamma = 1.0 + 0.1 * jax.random.normal(k_g, (Cout,), dtype=jnp.float32)
    beta = 0.1 * jax.random.normal(k_b, (Cout,), dtype=jnp.float32)
    run_mean = 0.05 * jax.random.normal(k_m, (Cout,), dtype=jnp.float32)
    run_var = jnp.abs(1.0 + 0.1 * jax.random.normal(k_v, (Cout,),
                                                    dtype=jnp.float32))

    fwd = jax.jit(functools.partial(basic_convolution_block, ks=ks, dilation=dil))
    out = jax.block_until_ready(fwd(x, weight, gamma, beta, run_mean, run_var))

    ref = jax.block_until_ready(
        reference_forward(x, weight, gamma, beta, run_mean, run_var, dilation=dil))

    assert out.shape == (N, D, H, W, Cout), out.shape
    assert out.dtype == jnp.bfloat16, out.dtype
    out_f32 = out.astype(jnp.float32)
    max_err = float(jnp.max(jnp.abs(out_f32 - ref)))
    # bf16 output rounding bounds the error (~0.4% relative).
    assert jnp.allclose(out_f32, ref, atol=3e-2, rtol=3e-2), max_err
    print("KERNEL_OK")
</pallas_src>

<mosaic_0001>
module attributes {stable_mosaic.version = 11 : i64} {
  func.func @kernel(%arg0: i32, %arg1: i32, %arg2: memref<1x8x18x128xbf16, #tpu.memory_space<vmem>>, %arg3: memref<1x2x18x128xbf16, #tpu.memory_space<vmem>>, %arg4: memref<9x128x128xbf16, #tpu.memory_space<vmem>>, %arg5: memref<1x128xf32, #tpu.memory_space<vmem>>, %arg6: memref<1x8x16x128xbf16, #tpu.memory_space<vmem>>) attributes {dimension_semantics = [#tpu.dimension_semantics<parallel>, #tpu.dimension_semantics<parallel>], iteration_bounds = array<i64: 2, 2>, scalar_prefetch = 0 : i64, scratch_operands = 0 : i64, tpu.core_type = #tpu.core_type<tc>, window_params = [{transform_indices = @transform_0, window_bounds = array<i64: 1, 8, 18, 128>}, {transform_indices = @transform_1, window_bounds = array<i64: 1, 2, 18, 128>}, {pipeline_mode = #tpu.pipeline_mode<synchronous>, transform_indices = @transform_2, window_bounds = array<i64: 9, 128, 128>}, {pipeline_mode = #tpu.pipeline_mode<synchronous>, transform_indices = @transform_3, window_bounds = array<i64: 1, 128>}, {transform_indices = @transform_4, window_bounds = array<i64: 1, 8, 16, 128>}]} {
    %c0 = arith.constant 0 : index
    %c0_0 = arith.constant 0 : index
    %0 = vector.load %arg5[%c0, %c0_0] : memref<1x128xf32, #tpu.memory_space<vmem>>, vector<1x128xf32>
    %cst = arith.constant 0.000000e+00 : f32
    %1 = vector.broadcast %cst : f32 to vector<16x128xf32>
    %c0_1 = arith.constant 0 : index
    %c0_2 = arith.constant 0 : index
    %c0_3 = arith.constant 0 : index
    %c0_4 = arith.constant 0 : index
    %2 = vector.load %arg2[%c0_1, %c0_2, %c0_3, %c0_4] : memref<1x8x18x128xbf16, #tpu.memory_space<vmem>>, vector<1x1x16x128xbf16>
    %3 = vector.shape_cast %2 : vector<1x1x16x128xbf16> to vector<16x128xbf16>
    %c0_5 = arith.constant 0 : index
    %c0_6 = arith.constant 0 : index
    %c0_7 = arith.constant 0 : index
    %4 = vector.load %arg4[%c0_5, %c0_6, %c0_7] : memref<9x128x128xbf16, #tpu.memory_space<vmem>>, vector<1x128x128xbf16>
    %5 = vector.shape_cast %4 : vector<1x128x128xbf16> to vector<128x128xbf16>
    %cst_8 = arith.constant dense<0.000000e+00> : vector<16x128xf32>
    %6 = tpu.matmul %3, %5, %cst_8 {dimension_numbers = #tpu.dot_dimension_numbers<[1], [0], [0], [1], [0, 0, 1, 1], [], []>} : vector<16x128xbf16>, vector<128x128xbf16>, vector<16x128xf32> -> vector<16x128xf32>
    %7 = arith.addf %1, %6 : vector<16x128xf32>
    %c0_9 = arith.constant 0 : index
    %c0_10 = arith.constant 0 : index
    %c1 = arith.constant 1 : index
    %c0_11 = arith.constant 0 : index
    %8 = vector.load %arg2[%c0_9, %c0_10, %c1, %c0_11] : memref<1x8x18x128xbf16, #tpu.memory_space<vmem>>, vector<1x1x16x128xbf16>
    %9 = vector.shape_cast %8 : vector<1x1x16x128xbf16> to vector<16x128xbf16>
    %c1_12 = arith.constant 1 : index
    %c0_13 = arith.constant 0 : index
    %c0_14 = arith.constant 0 : index
    %10 = vector.load %arg4[%c1_12, %c0_13, %c0_14] : memref<9x128x128xbf16, #tpu.memory_space<vmem>>, vector<1x128x128xbf16>
    %11 = vector.shape_cast %10 : vector<1x128x128xbf16> to vector<128x128xbf16>
    %cst_15 = arith.constant dense<0.000000e+00> : vector<16x128xf32>
    %12 = tpu.matmul %9, %11, %cst_15 {dimension_numbers = #tpu.dot_dimension_numbers<[1], [0], [0], [1], [0, 0, 1, 1], [], []>} : vector<16x128xbf16>, vector<128x128xbf16>, vector<16x128xf32> -> vector<16x128xf32>
    %13 = arith.addf %7, %12 : vector<16x128xf32>
    %c0_16 = arith.constant 0 : index
    %c0_17 = arith.constant 0 : index
    %c2 = arith.constant 2 : index
    %c0_18 = arith.constant 0 : index
    %14 = vector.load %arg2[%c0_16, %c0_17, %c2, %c0_18] : memref<1x8x18x128xbf16, #tpu.memory_space<vmem>>, vector<1x1x16x128xbf16>
    %15 = vector.shape_cast %14 : vector<1x1x16x128xbf16> to vector<16x128xbf16>
    %c2_19 = arith.constant 2 : index
    %c0_20 = arith.constant 0 : index
    %c0_21 = arith.constant 0 : index
    %16 = vector.load %arg4[%c2_19, %c0_20, %c0_21] : memref<9x128x128xbf16, #tpu.memory_space<vmem>>, vector<1x128x128xbf16>
    %17 = vector.shape_cast %16 : vector<1x128x128xbf16> to vector<128x128xbf16>
    %cst_22 = arith.constant dense<0.000000e+00> : vector<16x128xf32>
    %18 = tpu.matmul %15, %17, %cst_22 {dimension_numbers = #tpu.dot_dimension_numbers<[1], [0], [0], [1], [0, 0, 1, 1], [], []>} : vector<16x128xbf16>, vector<128x128xbf16>, vector<16x128xf32> -> vector<16x128xf32>
    %19 = arith.addf %13, %18 : vector<16x128xf32>
    %c0_23 = arith.constant 0 : index
    %c1_24 = arith.constant 1 : index
    %c0_25 = arith.constant 0 : index
    %c0_26 = arith.constant 0 : index
    %20 = vector.load %arg2[%c0_23, %c1_24, %c0_25, %c0_26] : memref<1x8x18x128xbf16, #tpu.memory_space<vmem>>, vector<1x1x16x128xbf16>
    %21 = vector.shape_cast %20 : vector<1x1x16x128xbf16> to vector<16x128xbf16>
    %c3 = arith.constant 3 : index
    %c0_27 = arith.constant 0 : index
    %c0_28 = arith.constant 0 : index
    %22 = vector.load %arg4[%c3, %c0_27, %c0_28] : memref<9x128x128xbf16, #tpu.memory_space<vmem>>, vector<1x128x128xbf16>
    %23 = vector.shape_cast %22 : vector<1x128x128xbf16> to vector<128x128xbf16>
    %cst_29 = arith.constant dense<0.000000e+00> : vector<16x128xf32>
    %24 = tpu.matmul %21, %23, %cst_29 {dimension_numbers = #tpu.dot_dimension_numbers<[1], [0], [0], [1], [0, 0, 1, 1], [], []>} : vector<16x128xbf16>, vector<128x128xbf16>, vector<16x128xf32> -> vector<16x128xf32>
    %25 = arith.addf %19, %24 : vector<16x128xf32>
    %c0_30 = arith.constant 0 : index
    %c1_31 = arith.constant 1 : index
    %c1_32 = arith.constant 1 : index
    %c0_33 = arith.constant 0 : index
    %26 = vector.load %arg2[%c0_30, %c1_31, %c1_32, %c0_33] : memref<1x8x18x128xbf16, #tpu.memory_space<vmem>>, vector<1x1x16x128xbf16>
    %27 = vector.shape_cast %26 : vector<1x1x16x128xbf16> to vector<16x128xbf16>
    %c4 = arith.constant 4 : index
    %c0_34 = arith.constant 0 : index
    %c0_35 = arith.constant 0 : index
    %28 = vector.load %arg4[%c4, %c0_34, %c0_35] : memref<9x128x128xbf16, #tpu.memory_space<vmem>>, vector<1x128x128xbf16>
    %29 = vector.shape_cast %28 : vector<1x128x128xbf16> to vector<128x128xbf16>
    %cst_36 = arith.constant dense<0.000000e+00> : vector<16x128xf32>
    %30 = tpu.matmul %27, %29, %cst_36 {dimension_numbers = #tpu.dot_dimension_numbers<[1], [0], [0], [1], [0, 0, 1, 1], [], []>} : vector<16x128xbf16>, vector<128x128xbf16>, vector<16x128xf32> -> vector<16x128xf32>
    %31 = arith.addf %25, %30 : vector<16x128xf32>
    %c0_37 = arith.constant 0 : index
    %c1_38 = arith.constant 1 : index
    %c2_39 = arith.constant 2 : index
    %c0_40 = arith.constant 0 : index
    %32 = vector.load %arg2[%c0_37, %c1_38, %c2_39, %c0_40] : memref<1x8x18x128xbf16, #tpu.memory_space<vmem>>, vector<1x1x16x128xbf16>
    %33 = vector.shape_cast %32 : vector<1x1x16x128xbf16> to vector<16x128xbf16>
    %c5 = arith.constant 5 : index
    %c0_41 = arith.constant 0 : index
    %c0_42 = arith.constant 0 : index
    %34 = vector.load %arg4[%c5, %c0_41, %c0_42] : memref<9x128x128xbf16, #tpu.memory_space<vmem>>, vector<1x128x128xbf16>
    %35 = vector.shape_cast %34 : vector<1x128x128xbf16> to vector<128x128xbf16>
    %cst_43 = arith.constant dense<0.000000e+00> : vector<16x128xf32>
    %36 = tpu.matmul %33, %35, %cst_43 {dimension_numbers = #tpu.dot_dimension_numbers<[1], [0], [0], [1], [0, 0, 1, 1], [], []>} : vector<16x128xbf16>, vector<128x128xbf16>, vector<16x128xf32> -> vector<16x128xf32>
    %37 = arith.addf %31, %36 : vector<16x128xf32>
    %c0_44 = arith.constant 0 : index
    %c2_45 = arith.constant 2 : index
    %c0_46 = arith.constant 0 : index
    %c0_47 = arith.constant 0 : index
    %38 = vector.load %arg2[%c0_44, %c2_45, %c0_46, %c0_47] : memref<1x8x18x128xbf16, #tpu.memory_space<vmem>>, vector<1x1x16x128xbf16>
    %39 = vector.shape_cast %38 : vector<1x1x16x128xbf16> to vector<16x128xbf16>
    %c6 = arith.constant 6 : index
    %c0_48 = arith.constant 0 : index
    %c0_49 = arith.constant 0 : index
    %40 = vector.load %arg4[%c6, %c0_48, %c0_49] : memref<9x128x128xbf16, #tpu.memory_space<vmem>>, vector<1x128x128xbf16>
    %41 = vector.shape_cast %40 : vector<1x128x128xbf16> to vector<128x128xbf16>
    %cst_50 = arith.constant dense<0.000000e+00> : vector<16x128xf32>
    %42 = tpu.matmul %39, %41, %cst_50 {dimension_numbers = #tpu.dot_dimension_numbers<[1], [0], [0], [1], [0, 0, 1, 1], [], []>} : vector<16x128xbf16>, vector<128x128xbf16>, vector<16x128xf32> -> vector<16x128xf32>
    %43 = arith.addf %37, %42 : vector<16x128xf32>
    %c0_51 = arith.constant 0 : index
    %c2_52 = arith.constant 2 : index
    %c1_53 = arith.constant 1 : index
    %c0_54 = arith.constant 0 : index
    %44 = vector.load %arg2[%c0_51, %c2_52, %c1_53, %c0_54] : memref<1x8x18x128xbf16, #tpu.memory_space<vmem>>, vector<1x1x16x128xbf16>
    %45 = vector.shape_cast %44 : vector<1x1x16x128xbf16> to vector<16x128xbf16>
    %c7 = arith.constant 7 : index
    %c0_55 = arith.constant 0 : index
    %c0_56 = arith.constant 0 : index
    %46 = vector.load %arg4[%c7, %c0_55, %c0_56] : memref<9x128x128xbf16, #tpu.memory_space<vmem>>, vector<1x128x128xbf16>
    %47 = vector.shape_cast %46 : vector<1x128x128xbf16> to vector<128x128xbf16>
    %cst_57 = arith.constant dense<0.000000e+00> : vector<16x128xf32>
    %48 = tpu.matmul %45, %47, %cst_57 {dimension_numbers = #tpu.dot_dimension_numbers<[1], [0], [0], [1], [0, 0, 1, 1], [], []>} : vector<16x128xbf16>, vector<128x128xbf16>, vector<16x128xf32> -> vector<16x128xf32>
    %49 = arith.addf %43, %48 : vector<16x128xf32>
    %c0_58 = arith.constant 0 : index
    %c2_59 = arith.constant 2 : index
    %c2_60 = arith.constant 2 : index
    %c0_61 = arith.constant 0 : index
    %50 = vector.load %arg2[%c0_58, %c2_59, %c2_60, %c0_61] : memref<1x8x18x128xbf16, #tpu.memory_space<vmem>>, vector<1x1x16x128xbf16>
    %51 = vector.shape_cast %50 : vector<1x1x16x128xbf16> to vector<16x128xbf16>
    %c8 = arith.constant 8 : index
    %c0_62 = arith.constant 0 : index
    %c0_63 = arith.constant 0 : index
    %52 = vector.load %arg4[%c8, %c0_62, %c0_63] : memref<9x128x128xbf16, #tpu.memory_space<vmem>>, vector<1x128x128xbf16>
    %53 = vector.shape_cast %52 : vector<1x128x128xbf16> to vector<128x128xbf16>
    %cst_64 = arith.constant dense<0.000000e+00> : vector<16x128xf32>
    %54 = tpu.matmul %51, %53, %cst_64 {dimension_numbers = #tpu.dot_dimension_numbers<[1], [0], [0], [1], [0, 0, 1, 1], [], []>} : vector<16x128xbf16>, vector<128x128xbf16>, vector<16x128xf32> -> vector<16x128xf32>
    %55 = arith.addf %49, %54 : vector<16x128xf32>
    %56 = vector.broadcast %0 : vector<1x128xf32> to vector<16x128xf32>
    %57 = arith.addf %55, %56 : vector<16x128xf32>
    %cst_65 = arith.constant 0.000000e+00 : f32
    %58 = vector.broadcast %cst_65 : f32 to vector<16x128xf32>
    %59 = arith.maximumf %57, %58 : vector<16x128xf32>
    %60 = arith.truncf %59 : vector<16x128xf32> to vector<16x128xbf16>
    %c0_66 = arith.constant 0 : index
    %c0_67 = arith.constant 0 : index
    %c0_68 = arith.constant 0 : index
    %c0_69 = arith.constant 0 : index
    %61 = vector.load %arg6[%c0_66, %c0_67, %c0_68, %c0_69] : memref<1x8x16x128xbf16, #tpu.memory_space<vmem>>, vector<1x1x16x128xbf16>
    %62 = vector.shape_cast %61 : vector<1x1x16x128xbf16> to vector<16x128xbf16>
    %63 = vector.shape_cast %60 : vector<16x128xbf16> to vector<1x1x16x128xbf16>
    tpu.vector_store %arg6[%c0_66, %c0_67, %c0_68, %c0_69], %63 {strides = array<i32>} : memref<1x8x16x128xbf16, #tpu.memory_space<vmem>>, vector<1x1x16x128xbf16>,
    %cst_70 = arith.constant 0.000000e+00 : f32
    %64 = vector.broadcast %cst_70 : f32 to vector<16x128xf32>
    %c0_71 = arith.constant 0 : index
    %c1_72 = arith.constant 1 : index
    %c0_73 = arith.constant 0 : index
    %c0_74 = arith.constant 0 : index
    %65 = vector.load %arg2[%c0_71, %c1_72, %c0_73, %c0_74] : memref<1x8x18x128xbf16, #tpu.memory_space<vmem>>, vector<1x1x16x128xbf16>
    %66 = vector.shape_cast %65 : vector<1x1x16x128xbf16> to vector<16x128xbf16>
    %c0_75 = arith.constant 0 : index
    %c0_76 = arith.constant 0 : index
    %c0_77 = arith.constant 0 : index
    %67 = vector.load %arg4[%c0_75, %c0_76, %c0_77] : memref<9x128x128xbf16, #tpu.memory_space<vmem>>, vector<1x128x128xbf16>
    %68 = vector.shape_cast %67 : vector<1x128x128xbf16> to vector<128x128xbf16>
    %cst_78 = arith.constant dense<0.000000e+00> : vector<16x128xf32>
    %69 = tpu.matmul %66, %68, %cst_78 {dimension_numbers = #tpu.dot_dimension_numbers<[1], [0], [0], [1], [0, 0, 1, 1], [], []>} : vector<16x128xbf16>, vector<128x128xbf16>, vector<16x128xf32> -> vector<16x128xf32>
    %70 = arith.addf %64, %69 : vector<16x128xf32>
    %c0_79 = arith.constant 0 : index
    %c1_80 = arith.constant 1 : index
    %c1_81 = arith.constant 1 : index
    %c0_82 = arith.constant 0 : index
    %71 = vector.load %arg2[%c0_79, %c1_80, %c1_81, %c0_82] : memref<1x8x18x128xbf16, #tpu.memory_space<vmem>>, vector<1x1x16x128xbf16>
    %72 = vector.shape_cast %71 : vector<1x1x16x128xbf16> to vector<16x128xbf16>
    %c1_83 = arith.constant 1 : index
    %c0_84 = arith.constant 0 : index
    %c0_85 = arith.constant 0 : index
    %73 = vector.load %arg4[%c1_83, %c0_84, %c0_85] : memref<9x128x128xbf16, #tpu.memory_space<vmem>>, vector<1x128x128xbf16>
    %74 = vector.shape_cast %73 : vector<1x128x128xbf16> to vector<128x128xbf16>
    %cst_86 = arith.constant dense<0.000000e+00> : vector<16x128xf32>
    %75 = tpu.matmul %72, %74, %cst_86 {dimension_numbers = #tpu.dot_dimension_numbers<[1], [0], [0], [1], [0, 0, 1, 1], [], []>} : vector<16x128xbf16>, vector<128x128xbf16>, vector<16x128xf32> -> vector<16x128xf32>
    %76 = arith.addf %70, %75 : vector<16x128xf32>
    %c0_87 = arith.constant 0 : index
    %c1_88 = arith.constant 1 : index
    %c2_89 = arith.constant 2 : index
    %c0_90 = arith.constant 0 : index
    %77 = vector.load %arg2[%c0_87, %c1_88, %c2_89, %c0_90] : memref<1x8x18x128xbf16, #tpu.memory_space<vmem>>, vector<1x1x16x128xbf16>
    %78 = vector.shape_cast %77 : vector<1x1x16x128xbf16> to vector<16x128xbf16>
    %c2_91 = arith.constant 2 : index
    %c0_92 = arith.constant 0 : index
    %c0_93 = arith.constant 0 : index
    %79 = vector.load %arg4[%c2_91, %c0_92, %c0_93] : memref<9x128x128xbf16, #tpu.memory_space<vmem>>, vector<1x128x128xbf16>
    %80 = vector.shape_cast %79 : vector<1x128x128xbf16> to vector<128x128xbf16>
    %cst_94 = arith.constant dense<0.000000e+00> : vector<16x128xf32>
    %81 = tpu.matmul %78, %80, %cst_94 {dimension_numbers = #tpu.dot_dimension_numbers<[1], [0], [0], [1], [0, 0, 1, 1], [], []>} : vector<16x128xbf16>, vector<128x128xbf16>, vector<16x128xf32> -> vector<16x128xf32>
    %82 = arith.addf %76, %81 : vector<16x128xf32>
    %c0_95 = arith.constant 0 : index
    %c2_96 = arith.constant 2 : index
    %c0_97 = arith.constant 0 : index
    %c0_98 = arith.constant 0 : index
    %83 = vector.load %arg2[%c0_95, %c2_96, %c0_97, %c0_98] : memref<1x8x18x128xbf16, #tpu.memory_space<vmem>>, vector<1x1x16x128xbf16>
    %84 = vector.shape_cast %83 : vector<1x1x16x128xbf16> to vector<16x128xbf16>
    %c3_99 = arith.constant 3 : index
    %c0_100 = arith.constant 0 : index
    %c0_101 = arith.constant 0 : index
    %85 = vector.load %arg4[%c3_99, %c0_100, %c0_101] : memref<9x128x128xbf16, #tpu.memory_space<vmem>>, vector<1x128x128xbf16>
    %86 = vector.shape_cast %85 : vector<1x128x128xbf16> to vector<128x128xbf16>
    %cst_102 = arith.constant dense<0.000000e+00> : vector<16x128xf32>
    %87 = tpu.matmul %84, %86, %cst_102 {dimension_numbers = #tpu.dot_dimension_numbers<[1], [0], [0], [1], [0, 0, 1, 1], [], []>} : vector<16x128xbf16>, vector<128x128xbf16>, vector<16x128xf32> -> vector<16x128xf32>
    %88 = arith.addf %82, %87 : vector<16x128xf32>
    %c0_103 = arith.constant 0 : index
    %c2_104 = arith.constant 2 : index
    %c1_105 = arith.constant 1 : index
    %c0_106 = arith.constant 0 : index
    %89 = vector.load %arg2[%c0_103, %c2_104, %c1_105, %c0_106] : memref<1x8x18x128xbf16, #tpu.memory_space<vmem>>, vector<1x1x16x128xbf16>
    %90 = vector.shape_cast %89 : vector<1x1x16x128xbf16> to vector<16x128xbf16>
    %c4_107 = arith.constant 4 : index
    %c0_108 = arith.constant 0 : index
    %c0_109 = arith.constant 0 : index
    %91 = vector.load %arg4[%c4_107, %c0_108, %c0_109] : memref<9x128x128xbf16, #tpu.memory_space<vmem>>, vector<1x128x128xbf16>
    %92 = vector.shape_cast %91 : vector<1x128x128xbf16> to vector<128x128xbf16>
    %cst_110 = arith.constant dense<0.000000e+00> : vector<16x128xf32>
    %93 = tpu.matmul %90, %92, %cst_110 {dimension_numbers = #tpu.dot_dimension_numbers<[1], [0], [0], [1], [0, 0, 1, 1], [], []>} : vector<16x128xbf16>, vector<128x128xbf16>, vector<16x128xf32> -> vector<16x128xf32>
    %94 = arith.addf %88, %93 : vector<16x128xf32>
    %c0_111 = arith.constant 0 : index
    %c2_112 = arith.constant 2 : index
    %c2_113 = arith.constant 2 : index
    %c0_114 = arith.constant 0 : index
    %95 = vector.load %arg2[%c0_111, %c2_112, %c2_113, %c0_114] : memref<1x8x18x128xbf16, #tpu.memory_space<vmem>>, vector<1x1x16x128xbf16>
    %96 = vector.shape_cast %95 : vector<1x1x16x128xbf16> to vector<16x128xbf16>
    %c5_115 = arith.constant 5 : index
    %c0_116 = arith.constant 0 : index
    %c0_117 = arith.constant 0 : index
    %97 = vector.load %arg4[%c5_115, %c0_116, %c0_117] : memref<9x128x128xbf16, #tpu.memory_space<vmem>>, vector<1x128x128xbf16>
    %98 = vector.shape_cast %97 : vector<1x128x128xbf16> to vector<128x128xbf16>
    %cst_118 = arith.constant dense<0.000000e+00> : vector<16x128xf32>
    %99 = tpu.matmul %96, %98, %cst_118 {dimension_numbers = #tpu.dot_dimension_numbers<[1], [0], [0], [1], [0, 0, 1, 1], [], []>} : vector<16x128xbf16>, vector<128x128xbf16>, vector<16x128xf32> -> vector<16x128xf32>
    %100 = arith.addf %94, %99 : vector<16x128xf32>
    %c0_119 = arith.constant 0 : index
    %c3_120 = arith.constant 3 : index
    %c0_121 = arith.constant 0 : index
    %c0_122 = arith.constant 0 : index
    %101 = vector.load %arg2[%c0_119, %c3_120, %c0_121, %c0_122] : memref<1x8x18x128xbf16, #tpu.memory_space<vmem>>, vector<1x1x16x128xbf16>
    %102 = vector.shape_cast %101 : vector<1x1x16x128xbf16> to vector<16x128xbf16>
    %c6_123 = arith.constant 6 : index
    %c0_124 = arith.constant 0 : index
    %c0_125 = arith.constant 0 : index
    %103 = vector.load %arg4[%c6_123, %c0_124, %c0_125] : memref<9x128x128xbf16, #tpu.memory_space<vmem>>, vector<1x128x128xbf16>
    %104 = vector.shape_cast %103 : vector<1x128x128xbf16> to vector<128x128xbf16>
    %cst_126 = arith.constant dense<0.000000e+00> : vector<16x128xf32>
    %105 = tpu.matmul %102, %104, %cst_126 {dimension_numbers = #tpu.dot_dimension_numbers<[1], [0], [0], [1], [0, 0, 1, 1], [], []>} : vector<16x128xbf16>, vector<128x128xbf16>, vector<16x128xf32> -> vector<16x128xf32>
    %106 = arith.addf %100, %105 : vector<16x128xf32>
    %c0_127 = arith.constant 0 : index
    %c3_128 = arith.constant 3 : index
    %c1_129 = arith.constant 1 : index
    %c0_130 = arith.constant 0 : index
    %107 = vector.load %arg2[%c0_127, %c3_128, %c1_129, %c0_130] : memref<1x8x18x128xbf16, #tpu.memory_space<vmem>>, vector<1x1x16x128xbf16>
    %108 = vector.shape_cast %107 : vector<1x1x16x128xbf16> to vector<16x128xbf16>
    %c7_131 = arith.constant 7 : index
    %c0_132 = arith.constant 0 : index
    %c0_133 = arith.constant 0 : index
    %109 = vector.load %arg4[%c7_131, %c0_132, %c0_133] : memref<9x128x128xbf16, #tpu.memory_space<vmem>>, vector<1x128x128xbf16>
    %110 = vector.shape_cast %109 : vector<1x128x128xbf16> to vector<128x128xbf16>
    %cst_134 = arith.constant dense<0.000000e+00> : vector<16x128xf32>
    %111 = tpu.matmul %108, %110, %cst_134 {dimension_numbers = #tpu.dot_dimension_numbers<[1], [0], [0], [1], [0, 0, 1, 1], [], []>} : vector<16x128xbf16>, vector<128x128xbf16>, vector<16x128xf32> -> vector<16x128xf32>
    %112 = arith.addf %106, %111 : vector<16x128xf32>
    %c0_135 = arith.constant 0 : index
    %c3_136 = arith.constant 3 : index
    %c2_137 = arith.constant 2 : index
    %c0_138 = arith.constant 0 : index
    %113 = vector.load %arg2[%c0_135, %c3_136, %c2_137, %c0_138] : memref<1x8x18x128xbf16, #tpu.memory_space<vmem>>, vector<1x1x16x128xbf16>
    %114 = vector.shape_cast %113 : vector<1x1x16x128xbf16> to vector<16x128xbf16>
    %c8_139 = arith.constant 8 : index
    %c0_140 = arith.constant 0 : index
    %c0_141 = arith.constant 0 : index
    %115 = vector.load %arg4[%c8_139, %c0_140, %c0_141] : memref<9x128x128xbf16, #tpu.memory_space<vmem>>, vector<1x128x128xbf16>
    %116 = vector.shape_cast %115 : vector<1x128x128xbf16> to vector<128x128xbf16>
    %cst_142 = arith.constant dense<0.000000e+00> : vector<16x128xf32>
    %117 = tpu.matmul %114, %116, %cst_142 {dimension_numbers = #tpu.dot_dimension_numbers<[1], [0], [0], [1], [0, 0, 1, 1], [], []>} : vector<16x128xbf16>, vector<128x128xbf16>, vector<16x128xf32> -> vector<16x128xf32>
    %118 = arith.addf %112, %117 : vector<16x128xf32>
    %119 = vector.broadcast %0 : vector<1x128xf32> to vector<16x128xf32>
    %120 = arith.addf %118, %119 : vector<16x128xf32>
    %cst_143 = arith.constant 0.000000e+00 : f32
    %121 = vector.broadcast %cst_143 : f32 to vector<16x128xf32>
    %122 = arith.maximumf %120, %121 : vector<16x128xf32>
    %123 = arith.truncf %122 : vector<16x128xf32> to vector<16x128xbf16>
    %c0_144 = arith.constant 0 : index
    %c1_145 = arith.constant 1 : index
    %c0_146 = arith.constant 0 : index
    %c0_147 = arith.constant 0 : index
    %124 = vector.load %arg6[%c0_144, %c1_145, %c0_146, %c0_147] : memref<1x8x16x128xbf16, #tpu.memory_space<vmem>>, vector<1x1x16x128xbf16>
    %125 = vector.shape_cast %124 : vector<1x1x16x128xbf16> to vector<16x128xbf16>
    %126 = vector.shape_cast %123 : vector<16x128xbf16> to vector<1x1x16x128xbf16>
    tpu.vector_store %arg6[%c0_144, %c1_145, %c0_146, %c0_147], %126 {strides = array<i32>} : memref<1x8x16x128xbf16, #tpu.memory_space<vmem>>, vector<1x1x16x128xbf16>,
    %cst_148 = arith.constant 0.000000e+00 : f32
    %127 = vector.broadcast %cst_148 : f32 to vector<16x128xf32>
    %c0_149 = arith.constant 0 : index
    %c2_150 = arith.constant 2 : index
    %c0_151 = arith.constant 0 : index
    %c0_152 = arith.constant 0 : index
    %128 = vector.load %arg2[%c0_149, %c2_150, %c0_151, %c0_152] : memref<1x8x18x128xbf16, #tpu.memory_space<vmem>>, vector<1x1x16x128xbf16>
    %129 = vector.shape_cast %128 : vector<1x1x16x128xbf16> to vector<16x128xbf16>
    %c0_153 = arith.constant 0 : index
    %c0_154 = arith.constant 0 : index
    %c0_155 = arith.constant 0 : index
    %130 = vector.load %arg4[%c0_153, %c0_154, %c0_155] : memref<9x128x128xbf16, #tpu.memory_space<vmem>>, vector<1x128x128xbf16>
    %131 = vector.shape_cast %130 : vector<1x128x128xbf16> to vector<128x128xbf16>
    %cst_156 = arith.constant dense<0.000000e+00> : vector<16x128xf32>
    %132 = tpu.matmul %129, %131, %cst_156 {dimension_numbers = #tpu.dot_dimension_numbers<[1], [0], [0], [1], [0, 0, 1, 1], [], []>} : vector<16x128xbf16>, vector<128x128xbf16>, vector<16x128xf32> -> vector<16x128xf32>
    %133 = arith.addf %127, %132 : vector<16x128xf32>
    %c0_157 = arith.constant 0 : index
    %c2_158 = arith.constant 2 : index
    %c1_159 = arith.constant 1 : index
    %c0_160 = arith.constant 0 : index
    %134 = vector.load %arg2[%c0_157, %c2_158, %c1_159, %c0_160] : memref<1x8x18x128xbf16, #tpu.memory_space<vmem>>, vector<1x1x16x128xbf16>
    %135 = vector.shape_cast %134 : vector<1x1x16x128xbf16> to vector<16x128xbf16>
    %c1_161 = arith.constant 1 : index
    %c0_162 = arith.constant 0 : index
    %c0_163 = arith.constant 0 : index
    %136 = vector.load %arg4[%c1_161, %c0_162, %c0_163] : memref<9x128x128xbf16, #tpu.memory_space<vmem>>, vector<1x128x128xbf16>
    %137 = vector.shape_cast %136 : vector<1x128x128xbf16> to vector<128x128xbf16>
    %cst_164 = arith.constant dense<0.000000e+00> : vector<16x128xf32>
    %138 = tpu.matmul %135, %137, %cst_164 {dimension_numbers = #tpu.dot_dimension_numbers<[1], [0], [0], [1], [0, 0, 1, 1], [], []>} : vector<16x128xbf16>, vector<128x128xbf16>, vector<16x128xf32> -> vector<16x128xf32>
    %139 = arith.addf %133, %138 : vector<16x128xf32>
    %c0_165 = arith.constant 0 : index
    %c2_166 = arith.constant 2 : index
    %c2_167 = arith.constant 2 : index
    %c0_168 = arith.constant 0 : index
    %140 = vector.load %arg2[%c0_165, %c2_166, %c2_167, %c0_168] : memref<1x8x18x128xbf16, #tpu.memory_space<vmem>>, vector<1x1x16x128xbf16>
    %141 = vector.shape_cast %140 : vector<1x1x16x128xbf16> to vector<16x128xbf16>
    %c2_169 = arith.constant 2 : index
    %c0_170 = arith.constant 0 : index
    %c0_171 = arith.constant 0 : index
    %142 = vector.load %arg4[%c2_169, %c0_170, %c0_171] : memref<9x128x128xbf16, #tpu.memory_space<vmem>>, vector<1x128x128xbf16>
    %143 = vector.shape_cast %142 : vector<1x128x128xbf16> to vector<128x128xbf16>
    %cst_172 = arith.constant dense<0.000000e+00> : vector<16x128xf32>
    %144 = tpu.matmul %141, %143, %cst_172 {dimension_numbers = #tpu.dot_dimension_numbers<[1], [0], [0], [1], [0, 0, 1, 1], [], []>} : vector<16x128xbf16>, vector<128x128xbf16>, vector<16x128xf32> -> vector<16x128xf32>
    %145 = arith.addf %139, %144 : vector<16x128xf32>
    %c0_173 = arith.constant 0 : index
    %c3_174 = arith.constant 3 : index
    %c0_175 = arith.constant 0 : index
    %c0_176 = arith.constant 0 : index
    %146 = vector.load %arg2[%c0_173, %c3_174, %c0_175, %c0_176] : memref<1x8x18x128xbf16, #tpu.memory_space<vmem>>, vector<1x1x16x128xbf16>
    %147 = vector.shape_cast %146 : vector<1x1x16x128xbf16> to vector<16x128xbf16>
    %c3_177 = arith.constant 3 : index
    %c0_178 = arith.constant 0 : index
    %c0_179 = arith.constant 0 : index
    %148 = vector.load %arg4[%c3_177, %c0_178, %c0_179] : memref<9x128x128xbf16, #tpu.memory_space<vmem>>, vector<1x128x128xbf16>
    %149 = vector.shape_cast %148 : vector<1x128x128xbf16> to vector<128x128xbf16>
    %cst_180 = arith.constant dense<0.000000e+00> : vector<16x128xf32>
    %150 = tpu.matmul %147, %149, %cst_180 {dimension_numbers = #tpu.dot_dimension_numbers<[1], [0], [0], [1], [0, 0, 1, 1], [], []>} : vector<16x128xbf16>, vector<128x128xbf16>, vector<16x128xf32> -> vector<16x128xf32>
    %151 = arith.addf %145, %150 : vector<16x128xf32>
    %c0_181 = arith.constant 0 : index
    %c3_182 = arith.constant 3 : index
    %c1_183 = arith.constant 1 : index
    %c0_184 = arith.constant 0 : index
    %152 = vector.load %arg2[%c0_181, %c3_182, %c1_183, %c0_184] : memref<1x8x18x128xbf16, #tpu.memory_space<vmem>>, vector<1x1x16x128xbf16>
    %153 = vector.shape_cast %152 : vector<1x1x16x128xbf16> to vector<16x128xbf16>
    %c4_185 = arith.constant 4 : index
    %c0_186 = arith.constant 0 : index
    %c0_187 = arith.constant 0 : index
    %154 = vector.load %arg4[%c4_185, %c0_186, %c0_187] : memref<9x128x128xbf16, #tpu.memory_space<vmem>>, vector<1x128x128xbf16>
    %155 = vector.shape_cast %154 : vector<1x128x128xbf16> to vector<128x128xbf16>
    %cst_188 = arith.constant dense<0.000000e+00> : vector<16x128xf32>
    %156 = tpu.matmul %153, %155, %cst_188 {dimension_numbers = #tpu.dot_dimension_numbers<[1], [0], [0], [1], [0, 0, 1, 1], [], []>} : vector<16x128xbf16>, vector<128x128xbf16>, vector<16x128xf32> -> vector<16x128xf32>
    %157 = arith.addf %151, %156 : vector<16x128xf32>
    %c0_189 = arith.constant 0 : index
    %c3_190 = arith.constant 3 : index
    %c2_191 = arith.constant 2 : index
    %c0_192 = arith.constant 0 : index
    %158 = vector.load %arg2[%c0_189, %c3_190, %c2_191, %c0_192] : memref<1x8x18x128xbf16, #tpu.memory_space<vmem>>, vector<1x1x16x128xbf16>
    %159 = vector.shape_cast %158 : vector<1x1x16x128xbf16> to vector<16x128xbf16>
    %c5_193 = arith.constant 5 : index
    %c0_194 = arith.constant 0 : index
    %c0_195 = arith.constant 0 : index
    %160 = vector.load %arg4[%c5_193, %c0_194, %c0_195] : memref<9x128x128xbf16, #tpu.memory_space<vmem>>, vector<1x128x128xbf16>
    %161 = vector.shape_cast %160 : vector<1x128x128xbf16> to vector<128x128xbf16>
    %cst_196 = arith.constant dense<0.000000e+00> : vector<16x128xf32>
    %162 = tpu.matmul %159, %161, %cst_196 {dimension_numbers = #tpu.dot_dimension_numbers<[1], [0], [0], [1], [0, 0, 1, 1], [], []>} : vector<16x128xbf16>, vector<128x128xbf16>, vector<16x128xf32> -> vector<16x128xf32>
    %163 = arith.addf %157, %162 : vector<16x128xf32>
    %c0_197 = arith.constant 0 : index
    %c4_198 = arith.constant 4 : index
    %c0_199 = arith.constant 0 : index
    %c0_200 = arith.constant 0 : index
    %164 = vector.load %arg2[%c0_197, %c4_198, %c0_199, %c0_200] : memref<1x8x18x128xbf16, #tpu.memory_space<vmem>>, vector<1x1x16x128xbf16>
    %165 = vector.shape_cast %164 : vector<1x1x16x128xbf16> to vector<16x128xbf16>
    %c6_201 = arith.constant 6 : index
    %c0_202 = arith.constant 0 : index
    %c0_203 = arith.constant 0 : index
    %166 = vector.load %arg4[%c6_201, %c0_202, %c0_203] : memref<9x128x128xbf16, #tpu.memory_space<vmem>>, vector<1x128x128xbf16>
    %167 = vector.shape_cast %166 : vector<1x128x128xbf16> to vector<128x128xbf16>
    %cst_204 = arith.constant dense<0.000000e+00> : vector<16x128xf32>
    %168 = tpu.matmul %165, %167, %cst_204 {dimension_numbers = #tpu.dot_dimension_numbers<[1], [0], [0], [1], [0, 0, 1, 1], [], []>} : vector<16x128xbf16>, vector<128x128xbf16>, vector<16x128xf32> -> vector<16x128xf32>
    %169 = arith.addf %163, %168 : vector<16x128xf32>
    %c0_205 = arith.constant 0 : index
    %c4_206 = arith.constant 4 : index
    %c1_207 = arith.constant 1 : index
    %c0_208 = arith.constant 0 : index
    %170 = vector.load %arg2[%c0_205, %c4_206, %c1_207, %c0_208] : memref<1x8x18x128xbf16, #tpu.memory_space<vmem>>, vector<1x1x16x128xbf16>
    %171 = vector.shape_cast %170 : vector<1x1x16x128xbf16> to vector<16x128xbf16>
    %c7_209 = arith.constant 7 : index
    %c0_210 = arith.constant 0 : index
    %c0_211 = arith.constant 0 : index
    %172 = vector.load %arg4[%c7_209, %c0_210, %c0_211] : memref<9x128x128xbf16, #tpu.memory_space<vmem>>, vector<1x128x128xbf16>
    %173 = vector.shape_cast %172 : vector<1x128x128xbf16> to vector<128x128xbf16>
    %cst_212 = arith.constant dense<0.000000e+00> : vector<16x128xf32>
    %174 = tpu.matmul %171, %173, %cst_212 {dimension_numbers = #tpu.dot_dimension_numbers<[1], [0], [0], [1], [0, 0, 1, 1], [], []>} : vector<16x128xbf16>, vector<128x128xbf16>, vector<16x128xf32> -> vector<16x128xf32>
    %175 = arith.addf %169, %174 : vector<16x128xf32>
    %c0_213 = arith.constant 0 : index
    %c4_214 = arith.constant 4 : index
    %c2_215 = arith.constant 2 : index
    %c0_216 = arith.constant 0 : index
    %176 = vector.load %arg2[%c0_213, %c4_214, %c2_215, %c0_216] : memref<1x8x18x128xbf16, #tpu.memory_space<vmem>>, vector<1x1x16x128xbf16>
    %177 = vector.shape_cast %176 : vector<1x1x16x128xbf16> to vector<16x128xbf16>
    %c8_217 = arith.constant 8 : index
    %c0_218 = arith.constant 0 : index
    %c0_219 = arith.constant 0 : index
    %178 = vector.load %arg4[%c8_217, %c0_218, %c0_219] : memref<9x128x128xbf16, #tpu.memory_space<vmem>>, vector<1x128x128xbf16>
    %179 = vector.shape_cast %178 : vector<1x128x128xbf16> to vector<128x128xbf16>
    %cst_220 = arith.constant dense<0.000000e+00> : vector<16x128xf32>
    %180 = tpu.matmul %177, %179, %cst_220 {dimension_numbers = #tpu.dot_dimension_numbers<[1], [0], [0], [1], [0, 0, 1, 1], [], []>} : vector<16x128xbf16>, vector<128x128xbf16>, vector<16x128xf32> -> vector<16x128xf32>
    %181 = arith.addf %175, %180 : vector<16x128xf32>
    %182 = vector.broadcast %0 : vector<1x128xf32> to vector<16x128xf32>
    %183 = arith.addf %181, %182 : vector<16x128xf32>
    %cst_221 = arith.constant 0.000000e+00 : f32
    %184 = vector.broadcast %cst_221 : f32 to vector<16x128xf32>
    %185 = arith.maximumf %183, %184 : vector<16x128xf32>
    %186 = arith.truncf %185 : vector<16x128xf32> to vector<16x128xbf16>
    %c0_222 = arith.constant 0 : index
    %c2_223 = arith.constant 2 : index
    %c0_224 = arith.constant 0 : index
    %c0_225 = arith.constant 0 : index
    %187 = vector.load %arg6[%c0_222, %c2_223, %c0_224, %c0_225] : memref<1x8x16x128xbf16, #tpu.memory_space<vmem>>, vector<1x1x16x128xbf16>
    %188 = vector.shape_cast %187 : vector<1x1x16x128xbf16> to vector<16x128xbf16>
    %189 = vector.shape_cast %186 : vector<16x128xbf16> to vector<1x1x16x128xbf16>
    tpu.vector_store %arg6[%c0_222, %c2_223, %c0_224, %c0_225], %189 {strides = array<i32>} : memref<1x8x16x128xbf16, #tpu.memory_space<vmem>>, vector<1x1x16x128xbf16>,
    %cst_226 = arith.constant 0.000000e+00 : f32
    %190 = vector.broadcast %cst_226 : f32 to vector<16x128xf32>
    %c0_227 = arith.constant 0 : index
    %c3_228 = arith.constant 3 : index
    %c0_229 = arith.constant 0 : index
    %c0_230 = arith.constant 0 : index
    %191 = vector.load %arg2[%c0_227, %c3_228, %c0_229, %c0_230] : memref<1x8x18x128xbf16, #tpu.memory_space<vmem>>, vector<1x1x16x128xbf16>
    %192 = vector.shape_cast %191 : vector<1x1x16x128xbf16> to vector<16x128xbf16>
    %c0_231 = arith.constant 0 : index
    %c0_232 = arith.constant 0 : index
    %c0_233 = arith.constant 0 : index
    %193 = vector.load %arg4[%c0_231, %c0_232, %c0_233] : memref<9x128x128xbf16, #tpu.memory_space<vmem>>, vector<1x128x128xbf16>
    %194 = vector.shape_cast %193 : vector<1x128x128xbf16> to vector<128x128xbf16>
    %cst_234 = arith.constant dense<0.000000e+00> : vector<16x128xf32>
    %195 = tpu.matmul %192, %194, %cst_234 {dimension_numbers = #tpu.dot_dimension_numbers<[1], [0], [0], [1], [0, 0, 1, 1], [], []>} : vector<16x128xbf16>, vector<128x128xbf16>, vector<16x128xf32> -> vector<16x128xf32>
    %196 = arith.addf %190, %195 : vector<16x128xf32>
    %c0_235 = arith.constant 0 : index
    %c3_236 = arith.constant 3 : index
    %c1_237 = arith.constant 1 : index
    %c0_238 = arith.constant 0 : index
    %197 = vector.load %arg2[%c0_235, %c3_236, %c1_237, %c0_238] : memref<1x8x18x128xbf16, #tpu.memory_space<vmem>>, vector<1x1x16x128xbf16>
    %198 = vector.shape_cast %197 : vector<1x1x16x128xbf16> to vector<16x128xbf16>
    %c1_239 = arith.constant 1 : index
    %c0_240 = arith.constant 0 : index
    %c0_241 = arith.constant 0 : index
    %199 = vector.load %arg4[%c1_239, %c0_240, %c0_241] : memref<9x128x128xbf16, #tpu.memory_space<vmem>>, vector<1x128x128xbf16>
    %200 = vector.shape_cast %199 : vector<1x128x128xbf16> to vector<128x128xbf16>
    %cst_242 = arith.constant dense<0.000000e+00> : vector<16x128xf32>
    %201 = tpu.matmul %198, %200, %cst_242 {dimension_numbers = #tpu.dot_dimension_numbers<[1], [0], [0], [1], [0, 0, 1, 1], [], []>} : vector<16x128xbf16>, vector<128x128xbf16>, vector<16x128xf32> -> vector<16x128xf32>
    %202 = arith.addf %196, %201 : vector<16x128xf32>
    %c0_243 = arith.constant 0 : index
    %c3_244 = arith.constant 3 : index
    %c2_245 = arith.constant 2 : index
    %c0_246 = arith.constant 0 : index
    %203 = vector.load %arg2[%c0_243, %c3_244, %c2_245, %c0_246] : memref<1x8x18x128xbf16, #tpu.memory_space<vmem>>, vector<1x1x16x128xbf16>
    %204 = vector.shape_cast %203 : vector<1x1x16x128xbf16> to vector<16x128xbf16>
    %c2_247 = arith.constant 2 : index
    %c0_248 = arith.constant 0 : index
    %c0_249 = arith.constant 0 : index
    %205 = vector.load %arg4[%c2_247, %c0_248, %c0_249] : memref<9x128x128xbf16, #tpu.memory_space<vmem>>, vector<1x128x128xbf16>
    %206 = vector.shape_cast %205 : vector<1x128x128xbf16> to vector<128x128xbf16>
    %cst_250 = arith.constant dense<0.000000e+00> : vector<16x128xf32>
    %207 = tpu.matmul %204, %206, %cst_250 {dimension_numbers = #tpu.dot_dimension_numbers<[1], [0], [0], [1], [0, 0, 1, 1], [], []>} : vector<16x128xbf16>, vector<128x128xbf16>, vector<16x128xf32> -> vector<16x128xf32>
    %208 = arith.addf %202, %207 : vector<16x128xf32>
    %c0_251 = arith.constant 0 : index
    %c4_252 = arith.constant 4 : index
    %c0_253 = arith.constant 0 : index
    %c0_254 = arith.constant 0 : index
    %209 = vector.load %arg2[%c0_251, %c4_252, %c0_253, %c0_254] : memref<1x8x18x128xbf16, #tpu.memory_space<vmem>>, vector<1x1x16x128xbf16>
    %210 = vector.shape_cast %209 : vector<1x1x16x128xbf16> to vector<16x128xbf16>
    %c3_255 = arith.constant 3 : index
    %c0_256 = arith.constant 0 : index
    %c0_257 = arith.constant 0 : index
    %211 = vector.load %arg4[%c3_255, %c0_256, %c0_257] : memref<9x128x128xbf16, #tpu.memory_space<vmem>>, vector<1x128x128xbf16>
    %212 = vector.shape_cast %211 : vector<1x128x128xbf16> to vector<128x128xbf16>
    %cst_258 = arith.constant dense<0.000000e+00> : vector<16x128xf32>
    %213 = tpu.matmul %210, %212, %cst_258 {dimension_numbers = #tpu.dot_dimension_numbers<[1], [0], [0], [1], [0, 0, 1, 1], [], []>} : vector<16x128xbf16>, vector<128x128xbf16>, vector<16x128xf32> -> vector<16x128xf32>
    %214 = arith.addf %208, %213 : vector<16x128xf32>
    %c0_259 = arith.constant 0 : index
    %c4_260 = arith.constant 4 : index
    %c1_261 = arith.constant 1 : index
    %c0_262 = arith.constant 0 : index
    %215 = vector.load %arg2[%c0_259, %c4_260, %c1_261, %c0_262] : memref<1x8x18x128xbf16, #tpu.memory_space<vmem>>, vector<1x1x16x128xbf16>
    %216 = vector.shape_cast %215 : vector<1x1x16x128xbf16> to vector<16x128xbf16>
    %c4_263 = arith.constant 4 : index
    %c0_264 = arith.constant 0 : index
    %c0_265 = arith.constant 0 : index
    %217 = vector.load %arg4[%c4_263, %c0_264, %c0_265] : memref<9x128x128xbf16, #tpu.memory_space<vmem>>, vector<1x128x128xbf16>
    %218 = vector.shape_cast %217 : vector<1x128x128xbf16> to vector<128x128xbf16>
    %cst_266 = arith.constant dense<0.000000e+00> : vector<16x128xf32>
    %219 = tpu.matmul %216, %218, %cst_266 {dimension_numbers = #tpu.dot_dimension_numbers<[1], [0], [0], [1], [0, 0, 1, 1], [], []>} : vector<16x128xbf16>, vector<128x128xbf16>, vector<16x128xf32> -> vector<16x128xf32>
    %220 = arith.addf %214, %219 : vector<16x128xf32>
    %c0_267 = arith.constant 0 : index
    %c4_268 = arith.constant 4 : index
    %c2_269 = arith.constant 2 : index
    %c0_270 = arith.constant 0 : index
    %221 = vector.load %arg2[%c0_267, %c4_268, %c2_269, %c0_270] : memref<1x8x18x128xbf16, #tpu.memory_space<vmem>>, vector<1x1x16x128xbf16>
    %222 = vector.shape_cast %221 : vector<1x1x16x128xbf16> to vector<16x128xbf16>
    %c5_271 = arith.constant 5 : index
    %c0_272 = arith.constant 0 : index
    %c0_273 = arith.constant 0 : index
    %223 = vector.load %arg4[%c5_271, %c0_272, %c0_273] : memref<9x128x128xbf16, #tpu.memory_space<vmem>>, vector<1x128x128xbf16>
    %224 = vector.shape_cast %223 : vector<1x128x128xbf16> to vector<128x128xbf16>
    %cst_274 = arith.constant dense<0.000000e+00> : vector<16x128xf32>
    %225 = tpu.matmul %222, %224, %cst_274 {dimension_numbers = #tpu.dot_dimension_numbers<[1], [0], [0], [1], [0, 0, 1, 1], [], []>} : vector<16x128xbf16>, vector<128x128xbf16>, vector<16x128xf32> -> vector<16x128xf32>
    %226 = arith.addf %220, %225 : vector<16x128xf32>
    %c0_275 = arith.constant 0 : index
    %c5_276 = arith.constant 5 : index
    %c0_277 = arith.constant 0 : index
    %c0_278 = arith.constant 0 : index
    %227 = vector.load %arg2[%c0_275, %c5_276, %c0_277, %c0_278] : memref<1x8x18x128xbf16, #tpu.memory_space<vmem>>, vector<1x1x16x128xbf16>
    %228 = vector.shape_cast %227 : vector<1x1x16x128xbf16> to vector<16x128xbf16>
    %c6_279 = arith.constant 6 : index
    %c0_280 = arith.constant 0 : index
    %c0_281 = arith.constant 0 : index
    %229 = vector.load %arg4[%c6_279, %c0_280, %c0_281] : memref<9x128x128xbf16, #tpu.memory_space<vmem>>, vector<1x128x128xbf16>
    %230 = vector.shape_cast %229 : vector<1x128x128xbf16> to vector<128x128xbf16>
    %cst_282 = arith.constant dense<0.000000e+00> : vector<16x128xf32>
    %231 = tpu.matmul %228, %230, %cst_282 {dimension_numbers = #tpu.dot_dimension_numbers<[1], [0], [0], [1], [0, 0, 1, 1], [], []>} : vector<16x128xbf16>, vector<128x128xbf16>, vector<16x128xf32> -> vector<16x128xf32>
    %232 = arith.addf %226, %231 : vector<16x128xf32>
    %c0_283 = arith.constant 0 : index
    %c5_284 = arith.constant 5 : index
    %c1_285 = arith.constant 1 : index
    %c0_286 = arith.constant 0 : index
    %233 = vector.load %arg2[%c0_283, %c5_284, %c1_285, %c0_286] : memref<1x8x18x128xbf16, #tpu.memory_space<vmem>>, vector<1x1x16x128xbf16>
    %234 = vector.shape_cast %233 : vector<1x1x16x128xbf16> to vector<16x128xbf16>
    %c7_287 = arith.constant 7 : index
    %c0_288 = arith.constant 0 : index
    %c0_289 = arith.constant 0 : index
    %235 = vector.load %arg4[%c7_287, %c0_288, %c0_289] : memref<9x128x128xbf16, #tpu.memory_space<vmem>>, vector<1x128x128xbf16>
    %236 = vector.shape_cast %235 : vector<1x128x128xbf16> to vector<128x128xbf16>
    %cst_290 = arith.constant dense<0.000000e+00> : vector<16x128xf32>
    %237 = tpu.matmul %234, %236, %cst_290 {dimension_numbers = #tpu.dot_dimension_numbers<[1], [0], [0], [1], [0, 0, 1, 1], [], []>} : vector<16x128xbf16>, vector<128x128xbf16>, vector<16x128xf32> -> vector<16x128xf32>
    %238 = arith.addf %232, %237 : vector<16x128xf32>
    %c0_291 = arith.constant 0 : index
    %c5_292 = arith.constant 5 : index
    %c2_293 = arith.constant 2 : index
    %c0_294 = arith.constant 0 : index
    %239 = vector.load %arg2[%c0_291, %c5_292, %c2_293, %c0_294] : memref<1x8x18x128xbf16, #tpu.memory_space<vmem>>, vector<1x1x16x128xbf16>
    %240 = vector.shape_cast %239 : vector<1x1x16x128xbf16> to vector<16x128xbf16>
    %c8_295 = arith.constant 8 : index
    %c0_296 = arith.constant 0 : index
    %c0_297 = arith.constant 0 : index
    %241 = vector.load %arg4[%c8_295, %c0_296, %c0_297] : memref<9x128x128xbf16, #tpu.memory_space<vmem>>, vector<1x128x128xbf16>
    %242 = vector.shape_cast %241 : vector<1x128x128xbf16> to vector<128x128xbf16>
    %cst_298 = arith.constant dense<0.000000e+00> : vector<16x128xf32>
    %243 = tpu.matmul %240, %242, %cst_298 {dimension_numbers = #tpu.dot_dimension_numbers<[1], [0], [0], [1], [0, 0, 1, 1], [], []>} : vector<16x128xbf16>, vector<128x128xbf16>, vector<16x128xf32> -> vector<16x128xf32>
    %244 = arith.addf %238, %243 : vector<16x128xf32>
    %245 = vector.broadcast %0 : vector<1x128xf32> to vector<16x128xf32>
    %246 = arith.addf %244, %245 : vector<16x128xf32>
    %cst_299 = arith.constant 0.000000e+00 : f32
    %247 = vector.broadcast %cst_299 : f32 to vector<16x128xf32>
    %248 = arith.maximumf %246, %247 : vector<16x128xf32>
    %249 = arith.truncf %248 : vector<16x128xf32> to vector<16x128xbf16>
    %c0_300 = arith.constant 0 : index
    %c3_301 = arith.constant 3 : index
    %c0_302 = arith.constant 0 : index
    %c0_303 = arith.constant 0 : index
    %250 = vector.load %arg6[%c0_300, %c3_301, %c0_302, %c0_303] : memref<1x8x16x128xbf16, #tpu.memory_space<vmem>>, vector<1x1x16x128xbf16>
    %251 = vector.shape_cast %250 : vector<1x1x16x128xbf16> to vector<16x128xbf16>
    %252 = vector.shape_cast %249 : vector<16x128xbf16> to vector<1x1x16x128xbf16>
    tpu.vector_store %arg6[%c0_300, %c3_301, %c0_302, %c0_303], %252 {strides = array<i32>} : memref<1x8x16x128xbf16, #tpu.memory_space<vmem>>, vector<1x1x16x128xbf16>,
    %cst_304 = arith.constant 0.000000e+00 : f32
    %253 = vector.broadcast %cst_304 : f32 to vector<16x128xf32>
    %c0_305 = arith.constant 0 : index
    %c4_306 = arith.constant 4 : index
    %c0_307 = arith.constant 0 : index
    %c0_308 = arith.constant 0 : index
    %254 = vector.load %arg2[%c0_305, %c4_306, %c0_307, %c0_308] : memref<1x8x18x128xbf16, #tpu.memory_space<vmem>>, vector<1x1x16x128xbf16>
    %255 = vector.shape_cast %254 : vector<1x1x16x128xbf16> to vector<16x128xbf16>
    %c0_309 = arith.constant 0 : index
    %c0_310 = arith.constant 0 : index
    %c0_311 = arith.constant 0 : index
    %256 = vector.load %arg4[%c0_309, %c0_310, %c0_311] : memref<9x128x128xbf16, #tpu.memory_space<vmem>>, vector<1x128x128xbf16>
    %257 = vector.shape_cast %256 : vector<1x128x128xbf16> to vector<128x128xbf16>
    %cst_312 = arith.constant dense<0.000000e+00> : vector<16x128xf32>
    %258 = tpu.matmul %255, %257, %cst_312 {dimension_numbers = #tpu.dot_dimension_numbers<[1], [0], [0], [1], [0, 0, 1, 1], [], []>} : vector<16x128xbf16>, vector<128x128xbf16>, vector<16x128xf32> -> vector<16x128xf32>
    %259 = arith.addf %253, %258 : vector<16x128xf32>
    %c0_313 = arith.constant 0 : index
    %c4_314 = arith.constant 4 : index
    %c1_315 = arith.constant 1 : index
    %c0_316 = arith.constant 0 : index
    %260 = vector.load %arg2[%c0_313, %c4_314, %c1_315, %c0_316] : memref<1x8x18x128xbf16, #tpu.memory_space<vmem>>, vector<1x1x16x128xbf16>
    %261 = vector.shape_cast %260 : vector<1x1x16x128xbf16> to vector<16x128xbf16>
    %c1_317 = arith.constant 1 : index
    %c0_318 = arith.constant 0 : index
    %c0_319 = arith.constant 0 : index
    %262 = vector.load %arg4[%c1_317, %c0_318, %c0_319] : memref<9x128x128xbf16, #tpu.memory_space<vmem>>, vector<1x128x128xbf16>
    %263 = vector.shape_cast %262 : vector<1x128x128xbf16> to vector<128x128xbf16>
    %cst_320 = arith.constant dense<0.000000e+00> : vector<16x128xf32>
    %264 = tpu.matmul %261, %263, %cst_320 {dimension_numbers = #tpu.dot_dimension_numbers<[1], [0], [0], [1], [0, 0, 1, 1], [], []>} : vector<16x128xbf16>, vector<128x128xbf16>, vector<16x128xf32> -> vector<16x128xf32>
    %265 = arith.addf %259, %264 : vector<16x128xf32>
    %c0_321 = arith.constant 0 : index
    %c4_322 = arith.constant 4 : index
    %c2_323 = arith.constant 2 : index
    %c0_324 = arith.constant 0 : index
    %266 = vector.load %arg2[%c0_321, %c4_322, %c2_323, %c0_324] : memref<1x8x18x128xbf16, #tpu.memory_space<vmem>>, vector<1x1x16x128xbf16>
    %267 = vector.shape_cast %266 : vector<1x1x16x128xbf16> to vector<16x128xbf16>
    %c2_325 = arith.constant 2 : index
    %c0_326 = arith.constant 0 : index
    %c0_327 = arith.constant 0 : index
    %268 = vector.load %arg4[%c2_325, %c0_326, %c0_327] : memref<9x128x128xbf16, #tpu.memory_space<vmem>>, vector<1x128x128xbf16>
    %269 = vector.shape_cast %268 : vector<1x128x128xbf16> to vector<128x128xbf16>
    %cst_328 = arith.constant dense<0.000000e+00> : vector<16x128xf32>
    %270 = tpu.matmul %267, %269, %cst_328 {dimension_numbers = #tpu.dot_dimension_numbers<[1], [0], [0], [1], [0, 0, 1, 1], [], []>} : vector<16x128xbf16>, vector<128x128xbf16>, vector<16x128xf32> -> vector<16x128xf32>
    %271 = arith.addf %265, %270 : vector<16x128xf32>
    %c0_329 = arith.constant 0 : index
    %c5_330 = arith.constant 5 : index
    %c0_331 = arith.constant 0 : index
    %c0_332 = arith.constant 0 : index
    %272 = vector.load %arg2[%c0_329, %c5_330, %c0_331, %c0_332] : memref<1x8x18x128xbf16, #tpu.memory_space<vmem>>, vector<1x1x16x128xbf16>
    %273 = vector.shape_cast %272 : vector<1x1x16x128xbf16> to vector<16x128xbf16>
    %c3_333 = arith.constant 3 : index
    %c0_334 = arith.constant 0 : index
    %c0_335 = arith.constant 0 : index
    %274 = vector.load %arg4[%c3_333, %c0_334, %c0_335] : memref<9x128x128xbf16, #tpu.memory_space<vmem>>, vector<1x128x128xbf16>
    %275 = vector.shape_cast %274 : vector<1x128x128xbf16> to vector<128x128xbf16>
    %cst_336 = arith.constant dense<0.000000e+00> : vector<16x128xf32>
    %276 = tpu.matmul %273, %275, %cst_336 {dimension_numbers = #tpu.dot_dimension_numbers<[1], [0], [0], [1], [0, 0, 1, 1], [], []>} : vector<16x128xbf16>, vector<128x128xbf16>, vector<16x128xf32> -> vector<16x128xf32>
    %277 = arith.addf %271, %276 : vector<16x128xf32>
    %c0_337 = arith.constant 0 : index
    %c5_338 = arith.constant 5 : index
    %c1_339 = arith.constant 1 : index
    %c0_340 = arith.constant 0 : index
    %278 = vector.load %arg2[%c0_337, %c5_338, %c1_339, %c0_340] : memref<1x8x18x128xbf16, #tpu.memory_space<vmem>>, vector<1x1x16x128xbf16>
    %279 = vector.shape_cast %278 : vector<1x1x16x128xbf16> to vector<16x128xbf16>
    %c4_341 = arith.constant 4 : index
    %c0_342 = arith.constant 0 : index
    %c0_343 = arith.constant 0 : index
    %280 = vector.load %arg4[%c4_341, %c0_342, %c0_343] : memref<9x128x128xbf16, #tpu.memory_space<vmem>>, vector<1x128x128xbf16>
    %281 = vector.shape_cast %280 : vector<1x128x128xbf16> to vector<128x128xbf16>
    %cst_344 = arith.constant dense<0.000000e+00> : vector<16x128xf32>
    %282 = tpu.matmul %279, %281, %cst_344 {dimension_numbers = #tpu.dot_dimension_numbers<[1], [0], [0], [1], [0, 0, 1, 1], [], []>} : vector<16x128xbf16>, vector<128x128xbf16>, vector<16x128xf32> -> vector<16x128xf32>
    %283 = arith.addf %277, %282 : vector<16x128xf32>
    %c0_345 = arith.constant 0 : index
    %c5_346 = arith.constant 5 : index
    %c2_347 = arith.constant 2 : index
    %c0_348 = arith.constant 0 : index
    %284 = vector.load %arg2[%c0_345, %c5_346, %c2_347, %c0_348] : memref<1x8x18x128xbf16, #tpu.memory_space<vmem>>, vector<1x1x16x128xbf16>
    %285 = vector.shape_cast %284 : vector<1x1x16x128xbf16> to vector<16x128xbf16>
    %c5_349 = arith.constant 5 : index
    %c0_350 = arith.constant 0 : index
    %c0_351 = arith.constant 0 : index
    %286 = vector.load %arg4[%c5_349, %c0_350, %c0_351] : memref<9x128x128xbf16, #tpu.memory_space<vmem>>, vector<1x128x128xbf16>
    %287 = vector.shape_cast %286 : vector<1x128x128xbf16> to vector<128x128xbf16>
    %cst_352 = arith.constant dense<0.000000e+00> : vector<16x128xf32>
    %288 = tpu.matmul %285, %287, %cst_352 {dimension_numbers = #tpu.dot_dimension_numbers<[1], [0], [0], [1], [0, 0, 1, 1], [], []>} : vector<16x128xbf16>, vector<128x128xbf16>, vector<16x128xf32> -> vector<16x128xf32>
    %289 = arith.addf %283, %288 : vector<16x128xf32>
    %c0_353 = arith.constant 0 : index
    %c6_354 = arith.constant 6 : index
    %c0_355 = arith.constant 0 : index
    %c0_356 = arith.constant 0 : index
    %290 = vector.load %arg2[%c0_353, %c6_354, %c0_355, %c0_356] : memref<1x8x18x128xbf16, #tpu.memory_space<vmem>>, vector<1x1x16x128xbf16>
    %291 = vector.shape_cast %290 : vector<1x1x16x128xbf16> to vector<16x128xbf16>
    %c6_357 = arith.constant 6 : index
    %c0_358 = arith.constant 0 : index
    %c0_359 = arith.constant 0 : index
    %292 = vector.load %arg4[%c6_357, %c0_358, %c0_359] : memref<9x128x128xbf16, #tpu.memory_space<vmem>>, vector<1x128x128xbf16>
    %293 = vector.shape_cast %292 : vector<1x128x128xbf16> to vector<128x128xbf16>
    %cst_360 = arith.constant dense<0.000000e+00> : vector<16x128xf32>
    %294 = tpu.matmul %291, %293, %cst_360 {dimension_numbers = #tpu.dot_dimension_numbers<[1], [0], [0], [1], [0, 0, 1, 1], [], []>} : vector<16x128xbf16>, vector<128x128xbf16>, vector<16x128xf32> -> vector<16x128xf32>
    %295 = arith.addf %289, %294 : vector<16x128xf32>
    %c0_361 = arith.constant 0 : index
    %c6_362 = arith.constant 6 : index
    %c1_363 = arith.constant 1 : index
    %c0_364 = arith.constant 0 : index
    %296 = vector.load %arg2[%c0_361, %c6_362, %c1_363, %c0_364] : memref<1x8x18x128xbf16, #tpu.memory_space<vmem>>, vector<1x1x16x128xbf16>
    %297 = vector.shape_cast %296 : vector<1x1x16x128xbf16> to vector<16x128xbf16>
    %c7_365 = arith.constant 7 : index
    %c0_366 = arith.constant 0 : index
    %c0_367 = arith.constant 0 : index
    %298 = vector.load %arg4[%c7_365, %c0_366, %c0_367] : memref<9x128x128xbf16, #tpu.memory_space<vmem>>, vector<1x128x128xbf16>
    %299 = vector.shape_cast %298 : vector<1x128x128xbf16> to vector<128x128xbf16>
    %cst_368 = arith.constant dense<0.000000e+00> : vector<16x128xf32>
    %300 = tpu.matmul %297, %299, %cst_368 {dimension_numbers = #tpu.dot_dimension_numbers<[1], [0], [0], [1], [0, 0, 1, 1], [], []>} : vector<16x128xbf16>, vector<128x128xbf16>, vector<16x128xf32> -> vector<16x128xf32>
    %301 = arith.addf %295, %300 : vector<16x128xf32>
    %c0_369 = arith.constant 0 : index
    %c6_370 = arith.constant 6 : index
    %c2_371 = arith.constant 2 : index
    %c0_372 = arith.constant 0 : index
    %302 = vector.load %arg2[%c0_369, %c6_370, %c2_371, %c0_372] : memref<1x8x18x128xbf16, #tpu.memory_space<vmem>>, vector<1x1x16x128xbf16>
    %303 = vector.shape_cast %302 : vector<1x1x16x128xbf16> to vector<16x128xbf16>
    %c8_373 = arith.constant 8 : index
    %c0_374 = arith.constant 0 : index
    %c0_375 = arith.constant 0 : index
    %304 = vector.load %arg4[%c8_373, %c0_374, %c0_375] : memref<9x128x128xbf16, #tpu.memory_space<vmem>>, vector<1x128x128xbf16>
    %305 = vector.shape_cast %304 : vector<1x128x128xbf16> to vector<128x128xbf16>
    %cst_376 = arith.constant dense<0.000000e+00> : vector<16x128xf32>
    %306 = tpu.matmul %303, %305, %cst_376 {dimension_numbers = #tpu.dot_dimension_numbers<[1], [0], [0], [1], [0, 0, 1, 1], [], []>} : vector<16x128xbf16>, vector<128x128xbf16>, vector<16x128xf32> -> vector<16x128xf32>
    %307 = arith.addf %301, %306 : vector<16x128xf32>
    %308 = vector.broadcast %0 : vector<1x128xf32> to vector<16x128xf32>
    %309 = arith.addf %307, %308 : vector<16x128xf32>
    %cst_377 = arith.constant 0.000000e+00 : f32
    %310 = vector.broadcast %cst_377 : f32 to vector<16x128xf32>
    %311 = arith.maximumf %309, %310 : vector<16x128xf32>
    %312 = arith.truncf %311 : vector<16x128xf32> to vector<16x128xbf16>
    %c0_378 = arith.constant 0 : index
    %c4_379 = arith.constant 4 : index
    %c0_380 = arith.constant 0 : index
    %c0_381 = arith.constant 0 : index
    %313 = vector.load %arg6[%c0_378, %c4_379, %c0_380, %c0_381] : memref<1x8x16x128xbf16, #tpu.memory_space<vmem>>, vector<1x1x16x128xbf16>
    %314 = vector.shape_cast %313 : vector<1x1x16x128xbf16> to vector<16x128xbf16>
    %315 = vector.shape_cast %312 : vector<16x128xbf16> to vector<1x1x16x128xbf16>
    tpu.vector_store %arg6[%c0_378, %c4_379, %c0_380, %c0_381], %315 {strides = array<i32>} : memref<1x8x16x128xbf16, #tpu.memory_space<vmem>>, vector<1x1x16x128xbf16>,
    %cst_382 = arith.constant 0.000000e+00 : f32
    %316 = vector.broadcast %cst_382 : f32 to vector<16x128xf32>
    %c0_383 = arith.constant 0 : index
    %c5_384 = arith.constant 5 : index
    %c0_385 = arith.constant 0 : index
    %c0_386 = arith.constant 0 : index
    %317 = vector.load %arg2[%c0_383, %c5_384, %c0_385, %c0_386] : memref<1x8x18x128xbf16, #tpu.memory_space<vmem>>, vector<1x1x16x128xbf16>
    %318 = vector.shape_cast %317 : vector<1x1x16x128xbf16> to vector<16x128xbf16>
    %c0_387 = arith.constant 0 : index
    %c0_388 = arith.constant 0 : index
    %c0_389 = arith.constant 0 : index
    %319 = vector.load %arg4[%c0_387, %c0_388, %c0_389] : memref<9x128x128xbf16, #tpu.memory_space<vmem>>, vector<1x128x128xbf16>
    %320 = vector.shape_cast %319 : vector<1x128x128xbf16> to vector<128x128xbf16>
    %cst_390 = arith.constant dense<0.000000e+00> : vector<16x128xf32>
    %321 = tpu.matmul %318, %320, %cst_390 {dimension_numbers = #tpu.dot_dimension_numbers<[1], [0], [0], [1], [0, 0, 1, 1], [], []>} : vector<16x128xbf16>, vector<128x128xbf16>, vector<16x128xf32> -> vector<16x128xf32>
    %322 = arith.addf %316, %321 : vector<16x128xf32>
    %c0_391 = arith.constant 0 : index
    %c5_392 = arith.constant 5 : index
    %c1_393 = arith.constant 1 : index
    %c0_394 = arith.constant 0 : index
    %323 = vector.load %arg2[%c0_391, %c5_392, %c1_393, %c0_394] : memref<1x8x18x128xbf16, #tpu.memory_space<vmem>>, vector<1x1x16x128xbf16>
    %324 = vector.shape_cast %323 : vector<1x1x16x128xbf16> to vector<16x128xbf16>
    %c1_395 = arith.constant 1 : index
    %c0_396 = arith.constant 0 : index
    %c0_397 = arith.constant 0 : index
    %325 = vector.load %arg4[%c1_395, %c0_396, %c0_397] : memref<9x128x128xbf16, #tpu.memory_space<vmem>>, vector<1x128x128xbf16>
    %326 = vector.shape_cast %325 : vector<1x128x128xbf16> to vector<128x128xbf16>
    %cst_398 = arith.constant dense<0.000000e+00> : vector<16x128xf32>
    %327 = tpu.matmul %324, %326, %cst_398 {dimension_numbers = #tpu.dot_dimension_numbers<[1], [0], [0], [1], [0, 0, 1, 1], [], []>} : vector<16x128xbf16>, vector<128x128xbf16>, vector<16x128xf32> -> vector<16x128xf32>
    %328 = arith.addf %322, %327 : vector<16x128xf32>
    %c0_399 = arith.constant 0 : index
    %c5_400 = arith.constant 5 : index
    %c2_401 = arith.constant 2 : index
    %c0_402 = arith.constant 0 : index
    %329 = vector.load %arg2[%c0_399, %c5_400, %c2_401, %c0_402] : memref<1x8x18x128xbf16, #tpu.memory_space<vmem>>, vector<1x1x16x128xbf16>
    %330 = vector.shape_cast %329 : vector<1x1x16x128xbf16> to vector<16x128xbf16>
    %c2_403 = arith.constant 2 : index
    %c0_404 = arith.constant 0 : index
    %c0_405 = arith.constant 0 : index
    %331 = vector.load %arg4[%c2_403, %c0_404, %c0_405] : memref<9x128x128xbf16, #tpu.memory_space<vmem>>, vector<1x128x128xbf16>
    %332 = vector.shape_cast %331 : vector<1x128x128xbf16> to vector<128x128xbf16>
    %cst_406 = arith.constant dense<0.000000e+00> : vector<16x128xf32>
    %333 = tpu.matmul %330, %332, %cst_406 {dimension_numbers = #tpu.dot_dimension_numbers<[1], [0], [0], [1], [0, 0, 1, 1], [], []>} : vector<16x128xbf16>, vector<128x128xbf16>, vector<16x128xf32> -> vector<16x128xf32>
    %334 = arith.addf %328, %333 : vector<16x128xf32>
    %c0_407 = arith.constant 0 : index
    %c6_408 = arith.constant 6 : index
    %c0_409 = arith.constant 0 : index
    %c0_410 = arith.constant 0 : index
    %335 = vector.load %arg2[%c0_407, %c6_408, %c0_409, %c0_410] : memref<1x8x18x128xbf16, #tpu.memory_space<vmem>>, vector<1x1x16x128xbf16>
    %336 = vector.shape_cast %335 : vector<1x1x16x128xbf16> to vector<16x128xbf16>
    %c3_411 = arith.constant 3 : index
    %c0_412 = arith.constant 0 : index
    %c0_413 = arith.constant 0 : index
    %337 = vector.load %arg4[%c3_411, %c0_412, %c0_413] : memref<9x128x128xbf16, #tpu.memory_space<vmem>>, vector<1x128x128xbf16>
    %338 = vector.shape_cast %337 : vector<1x128x128xbf16> to vector<128x128xbf16>
    %cst_414 = arith.constant dense<0.000000e+00> : vector<16x128xf32>
    %339 = tpu.matmul %336, %338, %cst_414 {dimension_numbers = #tpu.dot_dimension_numbers<[1], [0], [0], [1], [0, 0, 1, 1], [], []>} : vector<16x128xbf16>, vector<128x128xbf16>, vector<16x128xf32> -> vector<16x128xf32>
    %340 = arith.addf %334, %339 : vector<16x128xf32>
    %c0_415 = arith.constant 0 : index
    %c6_416 = arith.constant 6 : index
    %c1_417 = arith.constant 1 : index
    %c0_418 = arith.constant 0 : index
    %341 = vector.load %arg2[%c0_415, %c6_416, %c1_417, %c0_418] : memref<1x8x18x128xbf16, #tpu.memory_space<vmem>>, vector<1x1x16x128xbf16>
    %342 = vector.shape_cast %341 : vector<1x1x16x128xbf16> to vector<16x128xbf16>
    %c4_419 = arith.constant 4 : index
    %c0_420 = arith.constant 0 : index
    %c0_421 = arith.constant 0 : index
    %343 = vector.load %arg4[%c4_419, %c0_420, %c0_421] : memref<9x128x128xbf16, #tpu.memory_space<vmem>>, vector<1x128x128xbf16>
    %344 = vector.shape_cast %343 : vector<1x128x128xbf16> to vector<128x128xbf16>
    %cst_422 = arith.constant dense<0.000000e+00> : vector<16x128xf32>
    %345 = tpu.matmul %342, %344, %cst_422 {dimension_numbers = #tpu.dot_dimension_numbers<[1], [0], [0], [1], [0, 0, 1, 1], [], []>} : vector<16x128xbf16>, vector<128x128xbf16>, vector<16x128xf32> -> vector<16x128xf32>
    %346 = arith.addf %340, %345 : vector<16x128xf32>
    %c0_423 = arith.constant 0 : index
    %c6_424 = arith.constant 6 : index
    %c2_425 = arith.constant 2 : index
    %c0_426 = arith.constant 0 : index
    %347 = vector.load %arg2[%c0_423, %c6_424, %c2_425, %c0_426] : memref<1x8x18x128xbf16, #tpu.memory_space<vmem>>, vector<1x1x16x128xbf16>
    %348 = vector.shape_cast %347 : vector<1x1x16x128xbf16> to vector<16x128xbf16>
    %c5_427 = arith.constant 5 : index
    %c0_428 = arith.constant 0 : index
    %c0_429 = arith.constant 0 : index
    %349 = vector.load %arg4[%c5_427, %c0_428, %c0_429] : memref<9x128x128xbf16, #tpu.memory_space<vmem>>, vector<1x128x128xbf16>
    %350 = vector.shape_cast %349 : vector<1x128x128xbf16> to vector<128x128xbf16>
    %cst_430 = arith.constant dense<0.000000e+00> : vector<16x128xf32>
    %351 = tpu.matmul %348, %350, %cst_430 {dimension_numbers = #tpu.dot_dimension_numbers<[1], [0], [0], [1], [0, 0, 1, 1], [], []>} : vector<16x128xbf16>, vector<128x128xbf16>, vector<16x128xf32> -> vector<16x128xf32>
    %352 = arith.addf %346, %351 : vector<16x128xf32>
    %c0_431 = arith.constant 0 : index
    %c7_432 = arith.constant 7 : index
    %c0_433 = arith.constant 0 : index
    %c0_434 = arith.constant 0 : index
    %353 = vector.load %arg2[%c0_431, %c7_432, %c0_433, %c0_434] : memref<1x8x18x128xbf16, #tpu.memory_space<vmem>>, vector<1x1x16x128xbf16>
    %354 = vector.shape_cast %353 : vector<1x1x16x128xbf16> to vector<16x128xbf16>
    %c6_435 = arith.constant 6 : index
    %c0_436 = arith.constant 0 : index
    %c0_437 = arith.constant 0 : index
    %355 = vector.load %arg4[%c6_435, %c0_436, %c0_437] : memref<9x128x128xbf16, #tpu.memory_space<vmem>>, vector<1x128x128xbf16>
    %356 = vector.shape_cast %355 : vector<1x128x128xbf16> to vector<128x128xbf16>
    %cst_438 = arith.constant dense<0.000000e+00> : vector<16x128xf32>
    %357 = tpu.matmul %354, %356, %cst_438 {dimension_numbers = #tpu.dot_dimension_numbers<[1], [0], [0], [1], [0, 0, 1, 1], [], []>} : vector<16x128xbf16>, vector<128x128xbf16>, vector<16x128xf32> -> vector<16x128xf32>
    %358 = arith.addf %352, %357 : vector<16x128xf32>
    %c0_439 = arith.constant 0 : index
    %c7_440 = arith.constant 7 : index
    %c1_441 = arith.constant 1 : index
    %c0_442 = arith.constant 0 : index
    %359 = vector.load %arg2[%c0_439, %c7_440, %c1_441, %c0_442] : memref<1x8x18x128xbf16, #tpu.memory_space<vmem>>, vector<1x1x16x128xbf16>
    %360 = vector.shape_cast %359 : vector<1x1x16x128xbf16> to vector<16x128xbf16>
    %c7_443 = arith.constant 7 : index
    %c0_444 = arith.constant 0 : index
    %c0_445 = arith.constant 0 : index
    %361 = vector.load %arg4[%c7_443, %c0_444, %c0_445] : memref<9x128x128xbf16, #tpu.memory_space<vmem>>, vector<1x128x128xbf16>
    %362 = vector.shape_cast %361 : vector<1x128x128xbf16> to vector<128x128xbf16>
    %cst_446 = arith.constant dense<0.000000e+00> : vector<16x128xf32>
    %363 = tpu.matmul %360, %362, %cst_446 {dimension_numbers = #tpu.dot_dimension_numbers<[1], [0], [0], [1], [0, 0, 1, 1], [], []>} : vector<16x128xbf16>, vector<128x128xbf16>, vector<16x128xf32> -> vector<16x128xf32>
    %364 = arith.addf %358, %363 : vector<16x128xf32>
    %c0_447 = arith.constant 0 : index
    %c7_448 = arith.constant 7 : index
    %c2_449 = arith.constant 2 : index
    %c0_450 = arith.constant 0 : index
    %365 = vector.load %arg2[%c0_447, %c7_448, %c2_449, %c0_450] : memref<1x8x18x128xbf16, #tpu.memory_space<vmem>>, vector<1x1x16x128xbf16>
    %366 = vector.shape_cast %365 : vector<1x1x16x128xbf16> to vector<16x128xbf16>
    %c8_451 = arith.constant 8 : index
    %c0_452 = arith.constant 0 : index
    %c0_453 = arith.constant 0 : index
    %367 = vector.load %arg4[%c8_451, %c0_452, %c0_453] : memref<9x128x128xbf16, #tpu.memory_space<vmem>>, vector<1x128x128xbf16>
    %368 = vector.shape_cast %367 : vector<1x128x128xbf16> to vector<128x128xbf16>
    %cst_454 = arith.constant dense<0.000000e+00> : vector<16x128xf32>
    %369 = tpu.matmul %366, %368, %cst_454 {dimension_numbers = #tpu.dot_dimension_numbers<[1], [0], [0], [1], [0, 0, 1, 1], [], []>} : vector<16x128xbf16>, vector<128x128xbf16>, vector<16x128xf32> -> vector<16x128xf32>
    %370 = arith.addf %364, %369 : vector<16x128xf32>
    %371 = vector.broadcast %0 : vector<1x128xf32> to vector<16x128xf32>
    %372 = arith.addf %370, %371 : vector<16x128xf32>
    %cst_455 = arith.constant 0.000000e+00 : f32
    %373 = vector.broadcast %cst_455 : f32 to vector<16x128xf32>
    %374 = arith.maximumf %372, %373 : vector<16x128xf32>
    %375 = arith.truncf %374 : vector<16x128xf32> to vector<16x128xbf16>
    %c0_456 = arith.constant 0 : index
    %c5_457 = arith.constant 5 : index
    %c0_458 = arith.constant 0 : index
    %c0_459 = arith.constant 0 : index
    %376 = vector.load %arg6[%c0_456, %c5_457, %c0_458, %c0_459] : memref<1x8x16x128xbf16, #tpu.memory_space<vmem>>, vector<1x1x16x128xbf16>
    %377 = vector.shape_cast %376 : vector<1x1x16x128xbf16> to vector<16x128xbf16>
    %378 = vector.shape_cast %375 : vector<16x128xbf16> to vector<1x1x16x128xbf16>
    tpu.vector_store %arg6[%c0_456, %c5_457, %c0_458, %c0_459], %378 {strides = array<i32>} : memref<1x8x16x128xbf16, #tpu.memory_space<vmem>>, vector<1x1x16x128xbf16>,
    %cst_460 = arith.constant 0.000000e+00 : f32
    %379 = vector.broadcast %cst_460 : f32 to vector<16x128xf32>
    %c0_461 = arith.constant 0 : index
    %c6_462 = arith.constant 6 : index
    %c0_463 = arith.constant 0 : index
    %c0_464 = arith.constant 0 : index
    %380 = vector.load %arg2[%c0_461, %c6_462, %c0_463, %c0_464] : memref<1x8x18x128xbf16, #tpu.memory_space<vmem>>, vector<1x1x16x128xbf16>
    %381 = vector.shape_cast %380 : vector<1x1x16x128xbf16> to vector<16x128xbf16>
    %c0_465 = arith.constant 0 : index
    %c0_466 = arith.constant 0 : index
    %c0_467 = arith.constant 0 : index
    %382 = vector.load %arg4[%c0_465, %c0_466, %c0_467] : memref<9x128x128xbf16, #tpu.memory_space<vmem>>, vector<1x128x128xbf16>
    %383 = vector.shape_cast %382 : vector<1x128x128xbf16> to vector<128x128xbf16>
    %cst_468 = arith.constant dense<0.000000e+00> : vector<16x128xf32>
    %384 = tpu.matmul %381, %383, %cst_468 {dimension_numbers = #tpu.dot_dimension_numbers<[1], [0], [0], [1], [0, 0, 1, 1], [], []>} : vector<16x128xbf16>, vector<128x128xbf16>, vector<16x128xf32> -> vector<16x128xf32>
    %385 = arith.addf %379, %384 : vector<16x128xf32>
    %c0_469 = arith.constant 0 : index
    %c6_470 = arith.constant 6 : index
    %c1_471 = arith.constant 1 : index
    %c0_472 = arith.constant 0 : index
    %386 = vector.load %arg2[%c0_469, %c6_470, %c1_471, %c0_472] : memref<1x8x18x128xbf16, #tpu.memory_space<vmem>>, vector<1x1x16x128xbf16>
    %387 = vector.shape_cast %386 : vector<1x1x16x128xbf16> to vector<16x128xbf16>
    %c1_473 = arith.constant 1 : index
    %c0_474 = arith.constant 0 : index
    %c0_475 = arith.constant 0 : index
    %388 = vector.load %arg4[%c1_473, %c0_474, %c0_475] : memref<9x128x128xbf16, #tpu.memory_space<vmem>>, vector<1x128x128xbf16>
    %389 = vector.shape_cast %388 : vector<1x128x128xbf16> to vector<128x128xbf16>
    %cst_476 = arith.constant dense<0.000000e+00> : vector<16x128xf32>
    %390 = tpu.matmul %387, %389, %cst_476 {dimension_numbers = #tpu.dot_dimension_numbers<[1], [0], [0], [1], [0, 0, 1, 1], [], []>} : vector<16x128xbf16>, vector<128x128xbf16>, vector<16x128xf32> -> vector<16x128xf32>
    %391 = arith.addf %385, %390 : vector<16x128xf32>
    %c0_477 = arith.constant 0 : index
    %c6_478 = arith.constant 6 : index
    %c2_479 = arith.constant 2 : index
    %c0_480 = arith.constant 0 : index
    %392 = vector.load %arg2[%c0_477, %c6_478, %c2_479, %c0_480] : memref<1x8x18x128xbf16, #tpu.memory_space<vmem>>, vector<1x1x16x128xbf16>
    %393 = vector.shape_cast %392 : vector<1x1x16x128xbf16> to vector<16x128xbf16>
    %c2_481 = arith.constant 2 : index
    %c0_482 = arith.constant 0 : index
    %c0_483 = arith.constant 0 : index
    %394 = vector.load %arg4[%c2_481, %c0_482, %c0_483] : memref<9x128x128xbf16, #tpu.memory_space<vmem>>, vector<1x128x128xbf16>
    %395 = vector.shape_cast %394 : vector<1x128x128xbf16> to vector<128x128xbf16>
    %cst_484 = arith.constant dense<0.000000e+00> : vector<16x128xf32>
    %396 = tpu.matmul %393, %395, %cst_484 {dimension_numbers = #tpu.dot_dimension_numbers<[1], [0], [0], [1], [0, 0, 1, 1], [], []>} : vector<16x128xbf16>, vector<128x128xbf16>, vector<16x128xf32> -> vector<16x128xf32>
    %397 = arith.addf %391, %396 : vector<16x128xf32>
    %c0_485 = arith.constant 0 : index
    %c7_486 = arith.constant 7 : index
    %c0_487 = arith.constant 0 : index
    %c0_488 = arith.constant 0 : index
    %398 = vector.load %arg2[%c0_485, %c7_486, %c0_487, %c0_488] : memref<1x8x18x128xbf16, #tpu.memory_space<vmem>>, vector<1x1x16x128xbf16>
    %399 = vector.shape_cast %398 : vector<1x1x16x128xbf16> to vector<16x128xbf16>
    %c3_489 = arith.constant 3 : index
    %c0_490 = arith.constant 0 : index
    %c0_491 = arith.constant 0 : index
    %400 = vector.load %arg4[%c3_489, %c0_490, %c0_491] : memref<9x128x128xbf16, #tpu.memory_space<vmem>>, vector<1x128x128xbf16>
    %401 = vector.shape_cast %400 : vector<1x128x128xbf16> to vector<128x128xbf16>
    %cst_492 = arith.constant dense<0.000000e+00> : vector<16x128xf32>
    %402 = tpu.matmul %399, %401, %cst_492 {dimension_numbers = #tpu.dot_dimension_numbers<[1], [0], [0], [1], [0, 0, 1, 1], [], []>} : vector<16x128xbf16>, vector<128x128xbf16>, vector<16x128xf32> -> vector<16x128xf32>
    %403 = arith.addf %397, %402 : vector<16x128xf32>
    %c0_493 = arith.constant 0 : index
    %c7_494 = arith.constant 7 : index
    %c1_495 = arith.constant 1 : index
    %c0_496 = arith.constant 0 : index
    %404 = vector.load %arg2[%c0_493, %c7_494, %c1_495, %c0_496] : memref<1x8x18x128xbf16, #tpu.memory_space<vmem>>, vector<1x1x16x128xbf16>
    %405 = vector.shape_cast %404 : vector<1x1x16x128xbf16> to vector<16x128xbf16>
    %c4_497 = arith.constant 4 : index
    %c0_498 = arith.constant 0 : index
    %c0_499 = arith.constant 0 : index
    %406 = vector.load %arg4[%c4_497, %c0_498, %c0_499] : memref<9x128x128xbf16, #tpu.memory_space<vmem>>, vector<1x128x128xbf16>
    %407 = vector.shape_cast %406 : vector<1x128x128xbf16> to vector<128x128xbf16>
    %cst_500 = arith.constant dense<0.000000e+00> : vector<16x128xf32>
    %408 = tpu.matmul %405, %407, %cst_500 {dimension_numbers = #tpu.dot_dimension_numbers<[1], [0], [0], [1], [0, 0, 1, 1], [], []>} : vector<16x128xbf16>, vector<128x128xbf16>, vector<16x128xf32> -> vector<16x128xf32>
    %409 = arith.addf %403, %408 : vector<16x128xf32>
    %c0_501 = arith.constant 0 : index
    %c7_502 = arith.constant 7 : index
    %c2_503 = arith.constant 2 : index
    %c0_504 = arith.constant 0 : index
    %410 = vector.load %arg2[%c0_501, %c7_502, %c2_503, %c0_504] : memref<1x8x18x128xbf16, #tpu.memory_space<vmem>>, vector<1x1x16x128xbf16>
    %411 = vector.shape_cast %410 : vector<1x1x16x128xbf16> to vector<16x128xbf16>
    %c5_505 = arith.constant 5 : index
    %c0_506 = arith.constant 0 : index
    %c0_507 = arith.constant 0 : index
    %412 = vector.load %arg4[%c5_505, %c0_506, %c0_507] : memref<9x128x128xbf16, #tpu.memory_space<vmem>>, vector<1x128x128xbf16>
    %413 = vector.shape_cast %412 : vector<1x128x128xbf16> to vector<128x128xbf16>
    %cst_508 = arith.constant dense<0.000000e+00> : vector<16x128xf32>
    %414 = tpu.matmul %411, %413, %cst_508 {dimension_numbers = #tpu.dot_dimension_numbers<[1], [0], [0], [1], [0, 0, 1, 1], [], []>} : vector<16x128xbf16>, vector<128x128xbf16>, vector<16x128xf32> -> vector<16x128xf32>
    %415 = arith.addf %409, %414 : vector<16x128xf32>
    %c0_509 = arith.constant 0 : index
    %c0_510 = arith.constant 0 : index
    %c0_511 = arith.constant 0 : index
    %c0_512 = arith.constant 0 : index
    %416 = vector.load %arg3[%c0_509, %c0_510, %c0_511, %c0_512] : memref<1x2x18x128xbf16, #tpu.memory_space<vmem>>, vector<1x1x16x128xbf16>
    %417 = vector.shape_cast %416 : vector<1x1x16x128xbf16> to vector<16x128xbf16>
    %c6_513 = arith.constant 6 : index
    %c0_514 = arith.constant 0 : index
    %c0_515 = arith.constant 0 : index
    %418 = vector.load %arg4[%c6_513, %c0_514, %c0_515] : memref<9x128x128xbf16, #tpu.memory_space<vmem>>, vector<1x128x128xbf16>
    %419 = vector.shape_cast %418 : vector<1x128x128xbf16> to vector<128x128xbf16>
    %cst_516 = arith.constant dense<0.000000e+00> : vector<16x128xf32>
    %420 = tpu.matmul %417, %419, %cst_516 {dimension_numbers = #tpu.dot_dimension_numbers<[1], [0], [0], [1], [0, 0, 1, 1], [], []>} : vector<16x128xbf16>, vector<128x128xbf16>, vector<16x128xf32> -> vector<16x128xf32>
    %421 = arith.addf %415, %420 : vector<16x128xf32>
    %c0_517 = arith.constant 0 : index
    %c0_518 = arith.constant 0 : index
    %c1_519 = arith.constant 1 : index
    %c0_520 = arith.constant 0 : index
    %422 = vector.load %arg3[%c0_517, %c0_518, %c1_519, %c0_520] : memref<1x2x18x128xbf16, #tpu.memory_space<vmem>>, vector<1x1x16x128xbf16>
    %423 = vector.shape_cast %422 : vector<1x1x16x128xbf16> to vector<16x128xbf16>
    %c7_521 = arith.constant 7 : index
    %c0_522 = arith.constant 0 : index
    %c0_523 = arith.constant 0 : index
    %424 = vector.load %arg4[%c7_521, %c0_522, %c0_523] : memref<9x128x128xbf16, #tpu.memory_space<vmem>>, vector<1x128x128xbf16>
    %425 = vector.shape_cast %424 : vector<1x128x128xbf16> to vector<128x128xbf16>
    %cst_524 = arith.constant dense<0.000000e+00> : vector<16x128xf32>
    %426 = tpu.matmul %423, %425, %cst_524 {dimension_numbers = #tpu.dot_dimension_numbers<[1], [0], [0], [1], [0, 0, 1, 1], [], []>} : vector<16x128xbf16>, vector<128x128xbf16>, vector<16x128xf32> -> vector<16x128xf32>
    %427 = arith.addf %421, %426 : vector<16x128xf32>
    %c0_525 = arith.constant 0 : index
    %c0_526 = arith.constant 0 : index
    %c2_527 = arith.constant 2 : index
    %c0_528 = arith.constant 0 : index
    %428 = vector.load %arg3[%c0_525, %c0_526, %c2_527, %c0_528] : memref<1x2x18x128xbf16, #tpu.memory_space<vmem>>, vector<1x1x16x128xbf16>
    %429 = vector.shape_cast %428 : vector<1x1x16x128xbf16> to vector<16x128xbf16>
    %c8_529 = arith.constant 8 : index
    %c0_530 = arith.constant 0 : index
    %c0_531 = arith.constant 0 : index
    %430 = vector.load %arg4[%c8_529, %c0_530, %c0_531] : memref<9x128x128xbf16, #tpu.memory_space<vmem>>, vector<1x128x128xbf16>
    %431 = vector.shape_cast %430 : vector<1x128x128xbf16> to vector<128x128xbf16>
    %cst_532 = arith.constant dense<0.000000e+00> : vector<16x128xf32>
    %432 = tpu.matmul %429, %431, %cst_532 {dimension_numbers = #tpu.dot_dimension_numbers<[1], [0], [0], [1], [0, 0, 1, 1], [], []>} : vector<16x128xbf16>, vector<128x128xbf16>, vector<16x128xf32> -> vector<16x128xf32>
    %433 = arith.addf %427, %432 : vector<16x128xf32>
    %434 = vector.broadcast %0 : vector<1x128xf32> to vector<16x128xf32>
    %435 = arith.addf %433, %434 : vector<16x128xf32>
    %cst_533 = arith.constant 0.000000e+00 : f32
    %436 = vector.broadcast %cst_533 : f32 to vector<16x128xf32>
    %437 = arith.maximumf %435, %436 : vector<16x128xf32>
    %438 = arith.truncf %437 : vector<16x128xf32> to vector<16x128xbf16>
    %c0_534 = arith.constant 0 : index
    %c6_535 = arith.constant 6 : index
    %c0_536 = arith.constant 0 : index
    %c0_537 = arith.constant 0 : index
    %439 = vector.load %arg6[%c0_534, %c6_535, %c0_536, %c0_537] : memref<1x8x16x128xbf16, #tpu.memory_space<vmem>>, vector<1x1x16x128xbf16>
    %440 = vector.shape_cast %439 : vector<1x1x16x128xbf16> to vector<16x128xbf16>
    %441 = vector.shape_cast %438 : vector<16x128xbf16> to vector<1x1x16x128xbf16>
    tpu.vector_store %arg6[%c0_534, %c6_535, %c0_536, %c0_537], %441 {strides = array<i32>} : memref<1x8x16x128xbf16, #tpu.memory_space<vmem>>, vector<1x1x16x128xbf16>,
    %cst_538 = arith.constant 0.000000e+00 : f32
    %442 = vector.broadcast %cst_538 : f32 to vector<16x128xf32>
    %c0_539 = arith.constant 0 : index
    %c7_540 = arith.constant 7 : index
    %c0_541 = arith.constant 0 : index
    %c0_542 = arith.constant 0 : index
    %443 = vector.load %arg2[%c0_539, %c7_540, %c0_541, %c0_542] : memref<1x8x18x128xbf16, #tpu.memory_space<vmem>>, vector<1x1x16x128xbf16>
    %444 = vector.shape_cast %443 : vector<1x1x16x128xbf16> to vector<16x128xbf16>
    %c0_543 = arith.constant 0 : index
    %c0_544 = arith.constant 0 : index
    %c0_545 = arith.constant 0 : index
    %445 = vector.load %arg4[%c0_543, %c0_544, %c0_545] : memref<9x128x128xbf16, #tpu.memory_space<vmem>>, vector<1x128x128xbf16>
    %446 = vector.shape_cast %445 : vector<1x128x128xbf16> to vector<128x128xbf16>
    %cst_546 = arith.constant dense<0.000000e+00> : vector<16x128xf32>
    %447 = tpu.matmul %444, %446, %cst_546 {dimension_numbers = #tpu.dot_dimension_numbers<[1], [0], [0], [1], [0, 0, 1, 1], [], []>} : vector<16x128xbf16>, vector<128x128xbf16>, vector<16x128xf32> -> vector<16x128xf32>
    %448 = arith.addf %442, %447 : vector<16x128xf32>
    %c0_547 = arith.constant 0 : index
    %c7_548 = arith.constant 7 : index
    %c1_549 = arith.constant 1 : index
    %c0_550 = arith.constant 0 : index
    %449 = vector.load %arg2[%c0_547, %c7_548, %c1_549, %c0_550] : memref<1x8x18x128xbf16, #tpu.memory_space<vmem>>, vector<1x1x16x128xbf16>
    %450 = vector.shape_cast %449 : vector<1x1x16x128xbf16> to vector<16x128xbf16>
    %c1_551 = arith.constant 1 : index
    %c0_552 = arith.constant 0 : index
    %c0_553 = arith.constant 0 : index
    %451 = vector.load %arg4[%c1_551, %c0_552, %c0_553] : memref<9x128x128xbf16, #tpu.memory_space<vmem>>, vector<1x128x128xbf16>
    %452 = vector.shape_cast %451 : vector<1x128x128xbf16> to vector<128x128xbf16>
    %cst_554 = arith.constant dense<0.000000e+00> : vector<16x128xf32>
    %453 = tpu.matmul %450, %452, %cst_554 {dimension_numbers = #tpu.dot_dimension_numbers<[1], [0], [0], [1], [0, 0, 1, 1], [], []>} : vector<16x128xbf16>, vector<128x128xbf16>, vector<16x128xf32> -> vector<16x128xf32>
    %454 = arith.addf %448, %453 : vector<16x128xf32>
    %c0_555 = arith.constant 0 : index
    %c7_556 = arith.constant 7 : index
    %c2_557 = arith.constant 2 : index
    %c0_558 = arith.constant 0 : index
    %455 = vector.load %arg2[%c0_555, %c7_556, %c2_557, %c0_558] : memref<1x8x18x128xbf16, #tpu.memory_space<vmem>>, vector<1x1x16x128xbf16>
    %456 = vector.shape_cast %455 : vector<1x1x16x128xbf16> to vector<16x128xbf16>
    %c2_559 = arith.constant 2 : index
    %c0_560 = arith.constant 0 : index
    %c0_561 = arith.constant 0 : index
    %457 = vector.load %arg4[%c2_559, %c0_560, %c0_561] : memref<9x128x128xbf16, #tpu.memory_space<vmem>>, vector<1x128x128xbf16>
    %458 = vector.shape_cast %457 : vector<1x128x128xbf16> to vector<128x128xbf16>
    %cst_562 = arith.constant dense<0.000000e+00> : vector<16x128xf32>
    %459 = tpu.matmul %456, %458, %cst_562 {dimension_numbers = #tpu.dot_dimension_numbers<[1], [0], [0], [1], [0, 0, 1, 1], [], []>} : vector<16x128xbf16>, vector<128x128xbf16>, vector<16x128xf32> -> vector<16x128xf32>
    %460 = arith.addf %454, %459 : vector<16x128xf32>
    %c0_563 = arith.constant 0 : index
    %c0_564 = arith.constant 0 : index
    %c0_565 = arith.constant 0 : index
    %c0_566 = arith.constant 0 : index
    %461 = vector.load %arg3[%c0_563, %c0_564, %c0_565, %c0_566] : memref<1x2x18x128xbf16, #tpu.memory_space<vmem>>, vector<1x1x16x128xbf16>
    %462 = vector.shape_cast %461 : vector<1x1x16x128xbf16> to vector<16x128xbf16>
    %c3_567 = arith.constant 3 : index
    %c0_568 = arith.constant 0 : index
    %c0_569 = arith.constant 0 : index
    %463 = vector.load %arg4[%c3_567, %c0_568, %c0_569] : memref<9x128x128xbf16, #tpu.memory_space<vmem>>, vector<1x128x128xbf16>
    %464 = vector.shape_cast %463 : vector<1x128x128xbf16> to vector<128x128xbf16>
    %cst_570 = arith.constant dense<0.000000e+00> : vector<16x128xf32>
    %465 = tpu.matmul %462, %464, %cst_570 {dimension_numbers = #tpu.dot_dimension_numbers<[1], [0], [0], [1], [0, 0, 1, 1], [], []>} : vector<16x128xbf16>, vector<128x128xbf16>, vector<16x128xf32> -> vector<16x128xf32>
    %466 = arith.addf %460, %465 : vector<16x128xf32>
    %c0_571 = arith.constant 0 : index
    %c0_572 = arith.constant 0 : index
    %c1_573 = arith.constant 1 : index
    %c0_574 = arith.constant 0 : index
    %467 = vector.load %arg3[%c0_571, %c0_572, %c1_573, %c0_574] : memref<1x2x18x128xbf16, #tpu.memory_space<vmem>>, vector<1x1x16x128xbf16>
    %468 = vector.shape_cast %467 : vector<1x1x16x128xbf16> to vector<16x128xbf16>
    %c4_575 = arith.constant 4 : index
    %c0_576 = arith.constant 0 : index
    %c0_577 = arith.constant 0 : index
    %469 = vector.load %arg4[%c4_575, %c0_576, %c0_577] : memref<9x128x128xbf16, #tpu.memory_space<vmem>>, vector<1x128x128xbf16>
    %470 = vector.shape_cast %469 : vector<1x128x128xbf16> to vector<128x128xbf16>
    %cst_578 = arith.constant dense<0.000000e+00> : vector<16x128xf32>
    %471 = tpu.matmul %468, %470, %cst_578 {dimension_numbers = #tpu.dot_dimension_numbers<[1], [0], [0], [1], [0, 0, 1, 1], [], []>} : vector<16x128xbf16>, vector<128x128xbf16>, vector<16x128xf32> -> vector<16x128xf32>
    %472 = arith.addf %466, %471 : vector<16x128xf32>
    %c0_579 = arith.constant 0 : index
    %c0_580 = arith.constant 0 : index
    %c2_581 = arith.constant 2 : index
    %c0_582 = arith.constant 0 : index
    %473 = vector.load %arg3[%c0_579, %c0_580, %c2_581, %c0_582] : memref<1x2x18x128xbf16, #tpu.memory_space<vmem>>, vector<1x1x16x128xbf16>
    %474 = vector.shape_cast %473 : vector<1x1x16x128xbf16> to vector<16x128xbf16>
    %c5_583 = arith.constant 5 : index
    %c0_584 = arith.constant 0 : index
    %c0_585 = arith.constant 0 : index
    %475 = vector.load %arg4[%c5_583, %c0_584, %c0_585] : memref<9x128x128xbf16, #tpu.memory_space<vmem>>, vector<1x128x128xbf16>
    %476 = vector.shape_cast %475 : vector<1x128x128xbf16> to vector<128x128xbf16>
    %cst_586 = arith.constant dense<0.000000e+00> : vector<16x128xf32>
    %477 = tpu.matmul %474, %476, %cst_586 {dimension_numbers = #tpu.dot_dimension_numbers<[1], [0], [0], [1], [0, 0, 1, 1], [], []>} : vector<16x128xbf16>, vector<128x128xbf16>, vector<16x128xf32> -> vector<16x128xf32>
    %478 = arith.addf %472, %477 : vector<16x128xf32>
    %c0_587 = arith.constant 0 : index
    %c1_588 = arith.constant 1 : index
    %c0_589 = arith.constant 0 : index
    %c0_590 = arith.constant 0 : index
    %479 = vector.load %arg3[%c0_587, %c1_588, %c0_589, %c0_590] : memref<1x2x18x128xbf16, #tpu.memory_space<vmem>>, vector<1x1x16x128xbf16>
    %480 = vector.shape_cast %479 : vector<1x1x16x128xbf16> to vector<16x128xbf16>
    %c6_591 = arith.constant 6 : index
    %c0_592 = arith.constant 0 : index
    %c0_593 = arith.constant 0 : index
    %481 = vector.load %arg4[%c6_591, %c0_592, %c0_593] : memref<9x128x128xbf16, #tpu.memory_space<vmem>>, vector<1x128x128xbf16>
    %482 = vector.shape_cast %481 : vector<1x128x128xbf16> to vector<128x128xbf16>
    %cst_594 = arith.constant dense<0.000000e+00> : vector<16x128xf32>
    %483 = tpu.matmul %480, %482, %cst_594 {dimension_numbers = #tpu.dot_dimension_numbers<[1], [0], [0], [1], [0, 0, 1, 1], [], []>} : vector<16x128xbf16>, vector<128x128xbf16>, vector<16x128xf32> -> vector<16x128xf32>
    %484 = arith.addf %478, %483 : vector<16x128xf32>
    %c0_595 = arith.constant 0 : index
    %c1_596 = arith.constant 1 : index
    %c1_597 = arith.constant 1 : index
    %c0_598 = arith.constant 0 : index
    %485 = vector.load %arg3[%c0_595, %c1_596, %c1_597, %c0_598] : memref<1x2x18x128xbf16, #tpu.memory_space<vmem>>, vector<1x1x16x128xbf16>
    %486 = vector.shape_cast %485 : vector<1x1x16x128xbf16> to vector<16x128xbf16>
    %c7_599 = arith.constant 7 : index
    %c0_600 = arith.constant 0 : index
    %c0_601 = arith.constant 0 : index
    %487 = vector.load %arg4[%c7_599, %c0_600, %c0_601] : memref<9x128x128xbf16, #tpu.memory_space<vmem>>, vector<1x128x128xbf16>
    %488 = vector.shape_cast %487 : vector<1x128x128xbf16> to vector<128x128xbf16>
    %cst_602 = arith.constant dense<0.000000e+00> : vector<16x128xf32>
    %489 = tpu.matmul %486, %488, %cst_602 {dimension_numbers = #tpu.dot_dimension_numbers<[1], [0], [0], [1], [0, 0, 1, 1], [], []>} : vector<16x128xbf16>, vector<128x128xbf16>, vector<16x128xf32> -> vector<16x128xf32>
    %490 = arith.addf %484, %489 : vector<16x128xf32>
    %c0_603 = arith.constant 0 : index
    %c1_604 = arith.constant 1 : index
    %c2_605 = arith.constant 2 : index
    %c0_606 = arith.constant 0 : index
    %491 = vector.load %arg3[%c0_603, %c1_604, %c2_605, %c0_606] : memref<1x2x18x128xbf16, #tpu.memory_space<vmem>>, vector<1x1x16x128xbf16>
    %492 = vector.shape_cast %491 : vector<1x1x16x128xbf16> to vector<16x128xbf16>
    %c8_607 = arith.constant 8 : index
    %c0_608 = arith.constant 0 : index
    %c0_609 = arith.constant 0 : index
    %493 = vector.load %arg4[%c8_607, %c0_608, %c0_609] : memref<9x128x128xbf16, #tpu.memory_space<vmem>>, vector<1x128x128xbf16>
    %494 = vector.shape_cast %493 : vector<1x128x128xbf16> to vector<128x128xbf16>
    %cst_610 = arith.constant dense<0.000000e+00> : vector<16x128xf32>
    %495 = tpu.matmul %492, %494, %cst_610 {dimension_numbers = #tpu.dot_dimension_numbers<[1], [0], [0], [1], [0, 0, 1, 1], [], []>} : vector<16x128xbf16>, vector<128x128xbf16>, vector<16x128xf32> -> vector<16x128xf32>
    %496 = arith.addf %490, %495 : vector<16x128xf32>
    %497 = vector.broadcast %0 : vector<1x128xf32> to vector<16x128xf32>
    %498 = arith.addf %496, %497 : vector<16x128xf32>
    %cst_611 = arith.constant 0.000000e+00 : f32
    %499 = vector.broadcast %cst_611 : f32 to vector<16x128xf32>
    %500 = arith.maximumf %498, %499 : vector<16x128xf32>
    %501 = arith.truncf %500 : vector<16x128xf32> to vector<16x128xbf16>
    %c0_612 = arith.constant 0 : index
    %c7_613 = arith.constant 7 : index
    %c0_614 = arith.constant 0 : index
    %c0_615 = arith.constant 0 : index
    %502 = vector.load %arg6[%c0_612, %c7_613, %c0_614, %c0_615] : memref<1x8x16x128xbf16, #tpu.memory_space<vmem>>, vector<1x1x16x128xbf16>
    %503 = vector.shape_cast %502 : vector<1x1x16x128xbf16> to vector<16x128xbf16>
    %504 = vector.shape_cast %501 : vector<16x128xbf16> to vector<1x1x16x128xbf16>
    tpu.vector_store %arg6[%c0_612, %c7_613, %c0_614, %c0_615], %504 {strides = array<i32>} : memref<1x8x16x128xbf16, #tpu.memory_space<vmem>>, vector<1x1x16x128xbf16>,
    return
  }
  func.func @transform_0(%arg0: i32, %arg1: i32) -> (i32, i32, i32, i32) {
    %c0_i32 = arith.constant 0 : i32
    %c0_i32_0 = arith.constant 0 : i32
    %c0_i32_1 = arith.constant 0 : i32
    return %arg0, %arg1, %c0_i32, %c0_i32_0 : i32, i32, i32, i32
  }
  func.func @transform_1(%arg0: i32, %arg1: i32) -> (i32, i32, i32, i32) {
    %c1_i32 = arith.constant 1 : i32
    %0 = arith.addi %arg1, %c1_i32 : i32
    %c4_i32 = arith.constant 4 : i32
    %1 = arith.muli %0, %c4_i32 : i32
    %c0_i32 = arith.constant 0 : i32
    %c0_i32_0 = arith.constant 0 : i32
    %c0_i32_1 = arith.constant 0 : i32
    return %arg0, %1, %c0_i32, %c0_i32_0 : i32, i32, i32, i32
  }
  func.func @transform_2(%arg0: i32, %arg1: i32) -> (i32, i32, i32) {
    %c0_i32 = arith.constant 0 : i32
    %c0_i32_0 = arith.constant 0 : i32
    %c0_i32_1 = arith.constant 0 : i32
    %c0_i32_2 = arith.constant 0 : i32
    return %c0_i32, %c0_i32_0, %c0_i32_1 : i32, i32, i32
  }
  func.func @transform_3(%arg0: i32, %arg1: i32) -> (i32, i32) {
    %c0_i32 = arith.constant 0 : i32
    %c0_i32_0 = arith.constant 0 : i32
    %c0_i32_1 = arith.constant 0 : i32
    return %c0_i32, %c0_i32_0 : i32, i32
  }
  func.func @transform_4(%arg0: i32, %arg1: i32) -> (i32, i32, i32, i32) {
    %c0_i32 = arith.constant 0 : i32
    %c0_i32_0 = arith.constant 0 : i32
    %c0_i32_1 = arith.constant 0 : i32
    return %arg0, %arg1, %c0_i32, %c0_i32_0 : i32, i32, i32, i32
  }
}

</mosaic_0001>

<llo_original>
// kernel: tile.8
$region0: #{tile.8}
  #allocation0 [shape = 's32[1]{0}', space=sflag, size = 0x4, scoped, tag = 'scoped memory for tile.8']
  %s0 = inlined_call_operand.vmem [shape: f32[8], index: 0, kind: input, shape index: {}]
  %s1 = inlined_call_operand.vmem [shape: f32[16,8], index: 1, kind: output, shape index: {}]
  // Predicated region
  $region2: #{tile.8} parent=0 // pred_check
    _
  $region3: #{tile.8} parent=0 // pred_check_branch
    %3 = sbr.rel (0) target = $region5
  $region4: #{tile.8} parent=0 // pred_region
    _
  $region5: #{tile.8} parent=0 // pred_fallthru
    _
  %v4 = vld [vmem:[%s0] ss:$0 sm:$0xff]
  %5 = vst [vmem:[%s1] sm:$0xff] %v4
  %s6 = scalar_lea.vmem %s1, 8
  %7 = vst [vmem:[%s6] sm:$0xff] %v4

// kernel: basic_convolution_block.1
$region0: #{basic_convolution_block.1}
  #allocation0 [shape = 'u32[]', space=smem, size = 0x4, offset = 0x4, fixed_abs, tag = 'smem constant byte address 0x4 - core index']
  #allocation1 [shape = 'u32[72,128]{1,0:T(1,128)}', space=vmem, size = 0x9000, scoped, tag = 'internal scratch']
  %s0 = inlined_call_operand.vmem [shape: bf16[2,18,18,128], index: 0, kind: input, shape index: {}, may-alias: {0,1}]
  %s1 = inlined_call_operand.vmem [shape: bf16[2,18,18,128], index: 1, kind: input, shape index: {}, may-alias: {0,1}]
  %s2 = inlined_call_operand.vmem [shape: bf16[9,128,128], index: 2, kind: input, shape index: {}]
  %s3 = inlined_call_operand.vmem [shape: f32[1,128], index: 3, kind: input, shape index: {}]
  %s4 = inlined_call_operand.vmem [shape: bf16[2,16,16,128], index: 4, kind: output, shape index: {}]
  %s5 = sld [smem:[#allocation0]]
  $region49: #{basic_convolution_block.1} parent=0
    _
  %s7 = ssub.s32 1, %s5
  %s8 = scalar_select 0, %s7, %s5
  loop: start=0, step=1, limit=6
  $region2: #{basic_convolution_block.1} parent=0 // loop_pre_header
    _
  $region3: #{basic_convolution_block.1} parent=0 // loop_header
    %s10 = sphi 0, %s14
    %p11 = scmp.ge.s32.totalorder %s10, 6
    %s17 = sphi 0, %s29
    %s18 = sphi 0, %s25
    %s19 = sphi 0, %s17
    %s20 = sphi 0, %s18
    %s21 = sphi 0, %s19
    %s22 = sphi 0, %s20
    %s34 = sphi 0, %s36
    %s37 = sphi 0, %s34
    %s38 = sphi 0, %s37
    %s54 = sphi 0, %s38
    %s66 = sphi 0, %s68
    %s69 = sphi 0, %s66
    %s70 = sphi 0, %s69
    %s86 = sphi 0, %s70
    %s90 = sphi 0, %s90
    %s92 = sphi 0, %s90
    %s93 = sphi 0, %s92
    %s107 = sphi 0, %s93
    %s111 = sphi 0, %s111
    %s113 = sphi 0, %s111
    %s114 = sphi 0, %s113
    %s128 = sphi 0, %s114
    %s136 = sphi 0, %s138
    %s139 = sphi 0, %s136
    %s140 = sphi 0, %s139
    %s156 = sphi 0, %s140
  $region4: #{basic_convolution_block.1} parent=0 // loop_header_branch
    %13 = sbr.rel (%p11) target = $region8
  $region5: #{basic_convolution_block.1} parent=0 // loop_body
    %s15 = ssub.s32 %s10, 1
    %s16 = ssub.s32 %s10, 2
    %s23 = sadd.s32 1, %s18
    %p24 = scmp.ge.s32.totalorder %s23, 2
    %s25 = scalar_select %p24, 0, %s23
    %s26 = sadd.s32 1, %s17
    %s27 = scalar_select %p24, %s26, %s17
    %p28 = scmp.ge.s32.totalorder %s27, 2
    %s29 = scalar_select %p28, 0, %s27
    %s30 = ssub.s32 %s17, %s29
    %s31 = ssub.s32 %s18, %s25
    %s32 = sor.u32 %s30, %s31
    %p33 = scmp.eq.s32.totalorder %s32, 0
    %s35 = sadd.s32 %s34, 1
    %s36 = scalar_select %p33, %s34, %s35
    %p39 = pneg %p33
    %p40 = scmp.eq.s32.totalorder %s10, 3
    %p41 = por %p39, %p40
    %p42 = scmp.ne.s32.totalorder %s34, %s37
    %p43 = scmp.eq.s32.totalorder %s10, 0
    %p44 = por %p42, %p43
    %p45 = scmp.ne.s32.totalorder %s34, %s37
    %p46 = scmp.eq.s32.totalorder %s15, 3
    %p47 = por %p45, %p46
    %p48 = scmp.ne.s32.totalorder %s37, %s38
    %p49 = scmp.eq.s32.totalorder %s15, 0
    %p50 = por %p48, %p49
    %p51 = scmp.ne.s32.totalorder %s37, %s38
    %p52 = scmp.eq.s32.totalorder %s16, 3
    %p53 = por %p51, %p52
    %p55 = scmp.ne.s32.totalorder %s38, %s54
    %p56 = scmp.eq.s32.totalorder %s16, 0
    %p57 = por %p55, %p56
    %s58 = sadd.s32 %s18, 1
    %s59 = smul.u32 %s58, 4
    %s60 = sadd.s32 %s25, 1
    %s61 = smul.u32 %s60, 4
    %s62 = ssub.s32 %s17, %s29
    %s63 = ssub.s32 %s59, %s61
    %s64 = sor.u32 %s62, %s63
    %p65 = scmp.eq.s32.totalorder %s64, 0
    %s67 = sadd.s32 %s66, 1
    %s68 = scalar_select %p65, %s66, %s67
    %p71 = pneg %p65
    %p72 = scmp.eq.s32.totalorder %s10, 3
    %p73 = por %p71, %p72
    %p74 = scmp.ne.s32.totalorder %s66, %s69
    %p75 = scmp.eq.s32.totalorder %s10, 0
    %p76 = por %p74, %p75
    %p77 = scmp.ne.s32.totalorder %s66, %s69
    %p78 = scmp.eq.s32.totalorder %s15, 3
    %p79 = por %p77, %p78
    %p80 = scmp.ne.s32.totalorder %s69, %s70
    %p81 = scmp.eq.s32.totalorder %s15, 0
    %p82 = por %p80, %p81
    %p83 = scmp.ne.s32.totalorder %s69, %s70
    %p84 = scmp.eq.s32.totalorder %s16, 3
    %p85 = por %p83, %p84
    %p87 = scmp.ne.s32.totalorder %s70, %s86
    %p88 = scmp.eq.s32.totalorder %s16, 0
    %p89 = por %p87, %p88
    %s91 = sadd.s32 %s90, 1
    %p94 = scmp.eq.s32.totalorder %s10, 3
    %p95 = scmp.ne.s32.totalorder %s90, %s92
    %p96 = scmp.eq.s32.totalorder %s10, 0
    %p97 = por %p95, %p96
    %p98 = scmp.ne.s32.totalorder %s90, %s92
    %p99 = scmp.eq.s32.totalorder %s15, 3
    %p100 = por %p98, %p99
    %p101 = scmp.ne.s32.totalorder %s92, %s93
    %p102 = scmp.eq.s32.totalorder %s15, 0
    %p103 = por %p101, %p102
    %p104 = scmp.ne.s32.totalorder %s92, %s93
    %p105 = scmp.eq.s32.totalorder %s16, 3
    %p106 = por %p104, %p105
    %p108 = scmp.ne.s32.totalorder %s93, %s107
    %p109 = scmp.eq.s32.totalorder %s16, 0
    %p110 = por %p108, %p109
    %s112 = sadd.s32 %s111, 1
    %p115 = scmp.eq.s32.totalorder %s10, 3
    %p116 = scmp.ne.s32.totalorder %s111, %s113
    %p117 = scmp.eq.s32.totalorder %s10, 0
    %p118 = por %p116, %p117
    %p119 = scmp.ne.s32.totalorder %s111, %s113
    %p120 = scmp.eq.s32.totalorder %s15, 3
    %p121 = por %p119, %p120
    %p122 = scmp.ne.s32.totalorder %s113, %s114
    %p123 = scmp.eq.s32.totalorder %s15, 0
    %p124 = por %p122, %p123
    %p125 = scmp.ne.s32.totalorder %s113, %s114
    %p126 = scmp.eq.s32.totalorder %s16, 3
    %p127 = por %p125, %p126
    %p129 = scmp.ne.s32.totalorder %s114, %s128
    %p130 = scmp.eq.s32.totalorder %s16, 0
    %p131 = por %p129, %p130
    %s132 = ssub.s32 %s17, %s29
    %s133 = ssub.s32 %s18, %s25
    %s134 = sor.u32 %s132, %s133
    %p135 = scmp.eq.s32.totalorder %s134, 0
    %s137 = sadd.s32 %s136, 1
    %s138 = scalar_select %p135, %s136, %s137
    %p141 = pneg %p135
    %p142 = scmp.eq.s32.totalorder %s10, 3
    %p143 = por %p141, %p142
    %p144 = scmp.ne.s32.totalorder %s136, %s139
    %p145 = scmp.eq.s32.totalorder %s10, 0
    %p146 = por %p144, %p145
    %p147 = scmp.ne.s32.totalorder %s136, %s139
    %p148 = scmp.eq.s32.totalorder %s15, 3
    %p149 = por %p147, %p148
    %p150 = scmp.ne.s32.totalorder %s139, %s140
    %p151 = scmp.eq.s32.totalorder %s15, 0
    %p152 = por %p150, %p151
    %p153 = scmp.ne.s32.totalorder %s139, %s140
    %p154 = scmp.eq.s32.totalorder %s16, 3
    %p155 = por %p153, %p154
    %p157 = scmp.ne.s32.totalorder %s140, %s156
    %p158 = scmp.eq.s32.totalorder %s16, 0
    %p159 = por %p157, %p158
    %p160 = scmp.le.s32.totalorder 1, %s10
    %p161 = scmp.lt.s32.totalorder %s10, 5
    %p162 = pnand %p160, %p161
    %p163 = pneg %p162
    // Predicated region
    $region9: #{basic_convolution_block.1} parent=5 // pred_check
      _
    $region10: #{basic_convolution_block.1} parent=5 // pred_check_branch
      %165 = sbr.rel (%p162) target = $region12
    $region11: #{basic_convolution_block.1} parent=5 // pred_region
      %s166 = ssub.s32 %s10, 1
      // Predicated region
      $region13: #{basic_convolution_block.1} parent=11 // pred_check
        %p167 = pneg %p103
      $region14: #{basic_convolution_block.1} parent=11 // pred_check_branch
        %169 = sbr.rel (%p167) target = $region16
      $region15: #{basic_convolution_block.1} parent=11 // pred_region
        _
      $region16: #{basic_convolution_block.1} parent=11 // pred_fallthru
        _
      // Predicated region
      $region17: #{basic_convolution_block.1} parent=11 // pred_check
        %p170 = pneg %p124
      $region18: #{basic_convolution_block.1} parent=11 // pred_check_branch
        %172 = sbr.rel (%p170) target = $region20
      $region19: #{basic_convolution_block.1} parent=11 // pred_region
        _
      $region20: #{basic_convolution_block.1} parent=11 // pred_fallthru
        _
    $region12: #{basic_convolution_block.1} parent=5 // pred_fallthru
      _
    %p173 = scmp.lt.s32.totalorder %s10, 4
    // Predicated region
    $region21: #{basic_convolution_block.1} parent=5 // pred_check
      %p174 = pneg %p173
    $region22: #{basic_convolution_block.1} parent=5 // pred_check_branch
      %176 = sbr.rel (%p174) target = $region24
    $region23: #{basic_convolution_block.1} parent=5 // pred_region
      // Predicated region
      $region25: #{basic_convolution_block.1} parent=23 // pred_check
        %p177 = pneg %p44
      $region26: #{basic_convolution_block.1} parent=23 // pred_check_branch
        %179 = sbr.rel (%p177) target = $region28
      $region27: #{basic_convolution_block.1} parent=23 // pred_region
        %s180 = smul.u32 8, %s18
        %s181 = ssub.s32 18, %s180
        %p182 = scmp.lt.s32.totalorder %s181, 8
        %s183 = scalar_select %p182, %s181, 8
        %s184 = smul.u32 4, %s183
        %s185 = smul.u32 %s184, 3
        %p186 = scmp.lt.s32.totalorder %s17, 1
        %s187 = scalar_select %p186, %s17, 1
        %p188 = scmp.lt.s32.totalorder %s180, 17
        %s189 = scalar_select %p188, %s180, 17
        %s190 = smul.addr %s189, 3
        %s191 = smul.addr %s187, 54
        %s192 = sadd.s32 %s190, %s191
        %s193 = smul.addr %s192, 4
        %s194 = scalar_lea.vmem %s0, %s193
        %s195 = smul.u32 8, %s18
        %s196 = ssub.s32 18, %s195
        %p197 = scmp.lt.s32.totalorder %s196, 8
        %s198 = scalar_select %p197, %s196, 8
        %s199 = smul.u32 4, %s198
        %s200 = smul.u32 %s199, 3
      $region28: #{basic_convolution_block.1} parent=23 // pred_fallthru
        _
      // Predicated region
      $region29: #{basic_convolution_block.1} parent=23 // pred_check
        %p201 = pneg %p76
      $region30: #{basic_convolution_block.1} parent=23 // pred_check_branch
        %203 = sbr.rel (%p201) target = $region32
      $region31: #{basic_convolution_block.1} parent=23 // pred_region
        %s204 = sadd.s32 %s18, 1
        %s205 = smul.u32 %s204, 4
        %s206 = smul.u32 2, %s205
        %p207 = scmp.lt.s32.totalorder %s17, 1
        %s208 = scalar_select %p207, %s17, 1
        %p209 = scmp.lt.s32.totalorder %s206, 17
        %s210 = scalar_select %p209, %s206, 17
        %s211 = smul.addr %s210, 3
        %s212 = smul.addr %s208, 54
        %s213 = sadd.s32 %s211, %s212
        %s214 = smul.addr %s213, 4
        %s215 = scalar_lea.vmem %s1, %s214
        %s216 = sadd.s32 %s18, 1
        %s217 = smul.u32 %s216, 4
        %s218 = smul.u32 2, %s217
      $region32: #{basic_convolution_block.1} parent=23 // pred_fallthru
        _
    $region24: #{basic_convolution_block.1} parent=5 // pred_fallthru
      _
    %p219 = scmp.le.s32.totalorder 1, %s10
    %p220 = scmp.lt.s32.totalorder %s10, 5
    %p221 = pnand %p219, %p220
    %p222 = pneg %p221
    // Predicated region
    $region33: #{basic_convolution_block.1} parent=5 // pred_check
      _
    $region34: #{basic_convolution_block.1} parent=5 // pred_check_branch
      %224 = sbr.rel (%p221) target = $region36
    $region35: #{basic_convolution_block.1} parent=5 // pred_region
      %s225 = ssub.s32 %s10, 1
      %s226 = smul.u32 8, %s20
      %s227 = ssub.s32 18, %s226
      %p228 = scmp.lt.s32.totalorder %s227, 8
      %s229 = scalar_select %p228, %s227, 8
      %s230 = smul.u32 4, %s229
      %s231 = smul.u32 %s230, 3
      %p232 = scmp.lt.s32.totalorder %s19, 1
      %s233 = scalar_select %p232, %s19, 1
      %p234 = scmp.lt.s32.totalorder %s226, 17
      %s235 = scalar_select %p234, %s226, 17
      %s236 = smul.addr %s235, 3
      %s237 = smul.addr %s233, 54
      %s238 = sadd.s32 %s236, %s237
      %s239 = smul.addr %s238, 4
      %s240 = scalar_lea.vmem %s0, %s239
      %p241 = pneg %p50
      %p242 = pneg %p47
      %s243 = sadd.s32 %s20, 1
      %s244 = smul.u32 %s243, 4
      %s245 = smul.u32 2, %s244
      %p246 = scmp.lt.s32.totalorder %s19, 1
      %s247 = scalar_select %p246, %s19, 1
      %p248 = scmp.lt.s32.totalorder %s245, 17
      %s249 = scalar_select %p248, %s245, 17
      %s250 = smul.addr %s249, 3
      %s251 = smul.addr %s247, 54
      %s252 = sadd.s32 %s250, %s251
      %s253 = smul.addr %s252, 4
      %s254 = scalar_lea.vmem %s1, %s253
      %p255 = pneg %p82
      %p256 = pneg %p79
      %p257 = pneg %p103
      %p258 = pneg %p100
      %p259 = pneg %p124
      %p260 = pneg %p121
      %p261 = pneg %p152
      %p262 = pneg %p149
      %s263 = smul.u32 8, %s20
      %p264 = scmp.lt.s32.totalorder %s19, 1
      %s265 = scalar_select %p264, %s19, 1
      %p266 = scmp.lt.s32.totalorder %s263, 15
      %s267 = scalar_select %p266, %s263, 15
      %s268 = smul.addr %s267, 2
      %s269 = smul.addr %s265, 32
      %s270 = sadd.s32 %s268, %s269
      %s271 = smul.addr %s270, 4
      %s272 = scalar_lea.vmem %s4, %s271
      %s273 = smul.u32 8, %s20
      %s274 = ssub.s32 18, %s273
      %p275 = scmp.lt.s32.totalorder %s274, 8
      %s276 = scalar_select %p275, %s274, 8
      %s277 = smul.u32 4, %s276
      %s278 = smul.u32 %s277, 3
      %p279 = scmp.lt.s32.totalorder %s19, 1
      %s280 = scalar_select %p279, %s19, 1
      %p281 = scmp.lt.s32.totalorder %s273, 17
      %s282 = scalar_select %p281, %s273, 17
      %s283 = smul.addr %s282, 3
      %s284 = smul.addr %s280, 54
      %s285 = sadd.s32 %s283, %s284
      %s286 = smul.addr %s285, 4
      %s287 = scalar_lea.vmem %s0, %s286
      %s288 = smul.u32 8, %s20
      %s289 = ssub.s32 18, %s288
      %p290 = scmp.lt.s32.totalorder %s289, 8
      %s291 = scalar_select %p290, %s289, 8
      %s292 = smul.u32 4, %s291
      %s293 = smul.u32 %s292, 3
      %s294 = sadd.s32 %s20, 1
      %s295 = smul.u32 %s294, 4
      %s296 = smul.u32 2, %s295
      %p297 = scmp.lt.s32.totalorder %s19, 1
      %s298 = scalar_select %p297, %s19, 1
      %p299 = scmp.lt.s32.totalorder %s296, 17
      %s300 = scalar_select %p299, %s296, 17
      %s301 = smul.addr %s300, 3
      %s302 = smul.addr %s298, 54
      %s303 = sadd.s32 %s301, %s302
      %s304 = smul.addr %s303, 4
      %s305 = scalar_lea.vmem %s1, %s304
      %s306 = sadd.s32 %s20, 1
      %s307 = smul.u32 %s306, 4
      %s308 = smul.u32 2, %s307
      %s309 = smul.u32 8, %s20
      %p310 = scmp.lt.s32.totalorder %s19, 1
      %s311 = scalar_select %p310, %s19, 1
      %p312 = scmp.lt.s32.totalorder %s309, 15
      %s313 = scalar_select %p312, %s309, 15
      %s314 = smul.addr %s313, 2
      %s315 = smul.addr %s311, 32
      %s316 = sadd.s32 %s314, %s315
      %s317 = smul.addr %s316, 4
      %s318 = scalar_lea.vmem %s4, %s317
      %s319 = smul.u32 8, %s20
      %v320 = vld [vmem:[%s3] sm:$0x1]
      %v321 = vld [vmem:[%s287] sm:$0xf]
      %v322 = vld [vmem:[%s287 + $0x4] sm:$0xf]
      %v323 = vld [vmem:[%s2] sm:$0xf]
      %v324 = vld [vmem:[%s2 + $0x4] sm:$0xf]
      %v325 = vld [vmem:[%s2 + $0x8] sm:$0xf]
      %v326 = vld [vmem:[%s2 + $0xc] sm:$0xf]
      %v327 = vld [vmem:[%s2 + $0x10] sm:$0xf]
      %v328 = vld [vmem:[%s2 + $0x14] sm:$0xf]
      %v329 = vld [vmem:[%s2 + $0x18] sm:$0xf]
      %v330 = vld [vmem:[%s2 + $0x1c] sm:$0xf]
      %v331 = vld [vmem:[%s2 + $0x20] sm:$0xf]
      %v332 = vld [vmem:[%s2 + $0x24] sm:$0xf]
      %v333 = vld [vmem:[%s2 + $0x28] sm:$0xf]
      %v334 = vld [vmem:[%s2 + $0x2c] sm:$0xf]
      %v335 = vld [vmem:[%s2 + $0x30] sm:$0xf]
      %v336 = vld [vmem:[%s2 + $0x34] sm:$0xf]
      %v337 = vld [vmem:[%s2 + $0x38] sm:$0xf]
      %v338 = vld [vmem:[%s2 + $0x3c] sm:$0xf]
      %v339 = vld [vmem:[%s287 + $0x8] sm:$0x1]
      %s340 = scalar_lea.vmem %s2, 64
      %v341 = vld [vmem:[%s340] sm:$0xf]
      %v342 = vld [vmem:[%s340 + $0x4] sm:$0xf]
      %v343 = vld [vmem:[%s340 + $0x8] sm:$0xf]
      %v344 = vld [vmem:[%s340 + $0xc] sm:$0xf]
      %v345 = vld [vmem:[%s340 + $0x10] sm:$0xf]
      %v346 = vld [vmem:[%s340 + $0x14] sm:$0xf]
      %v347 = vld [vmem:[%s340 + $0x18] sm:$0xf]
      %v348 = vld [vmem:[%s340 + $0x1c] sm:$0xf]
      %v349 = vld [vmem:[%s340 + $0x20] sm:$0xf]
      %v350 = vld [vmem:[%s340 + $0x24] sm:$0xf]
      %v351 = vld [vmem:[%s340 + $0x28] sm:$0xf]
      %v352 = vld [vmem:[%s340 + $0x2c] sm:$0xf]
      %v353 = vld [vmem:[%s340 + $0x30] sm:$0xf]
      %v354 = vld [vmem:[%s340 + $0x34] sm:$0xf]
      %v355 = vld [vmem:[%s340 + $0x38] sm:$0xf]
      %v356 = vld [vmem:[%s340 + $0x3c] sm:$0xf]
      %v360 = vunpack.c.l.b16 %v321
      %v361 = vunpack.c.l.b16 %v322
      %v362 = vunpack.c.l.b16 %v339
      %v363 = vpack.c.b16 %v361, %v360
      %v364 = vpack.c.b16 %v362, %v362
      %vm365 = vsmask.f32 7424
      %v367 = vshrl.u32 %v363, 16
      %v369 = vshll.u32 %v363, 16
      %v371 = vrot.slane %v369, 1
      %v372 = vor.u32 %v367, %v371
      %v374 = vshll.u32 %v364, 16
      %v376 = vrot.slane %v374, 1
      %v377 = vsel %vm365, %v372, %v376
      %v395 = vunpack.c.l.b16 %v341
      %v396 = vunpack.c.l.b16 %v342
      %v397 = vunpack.c.l.b16 %v343
      %v398 = vunpack.c.l.b16 %v344
      %v399 = vunpack.c.l.b16 %v345
      %v400 = vunpack.c.l.b16 %v346
      %v401 = vunpack.c.l.b16 %v347
      %v402 = vunpack.c.l.b16 %v348
      %v403 = vunpack.c.l.b16 %v349
      %v404 = vunpack.c.l.b16 %v350
      %v405 = vunpack.c.l.b16 %v351
      %v406 = vunpack.c.l.b16 %v352
      %v407 = vunpack.c.l.b16 %v353
      %v408 = vunpack.c.l.b16 %v354
      %v409 = vunpack.c.l.b16 %v355
      %v410 = vunpack.c.l.b16 %v356
      %v411 = vpack.c.b16 %v396, %v395
      %v412 = vpack.c.b16 %v398, %v397
      %v413 = vpack.c.b16 %v400, %v399
      %v414 = vpack.c.b16 %v402, %v401
      %v415 = vpack.c.b16 %v404, %v403
      %v416 = vpack.c.b16 %v406, %v405
      %v417 = vpack.c.b16 %v408, %v407
      %v418 = vpack.c.b16 %v410, %v409
      %427 = vmatpush.bf16.msra.mxu0 %v418
      %428 = vmatpush.bf16.msra.mxu0 %v417
      %429 = vmatpush.bf16.msra.mxu0 %v416
      %430 = vmatpush.bf16.msra.mxu0 %v415
      %431 = vmatpush.bf16.msra.mxu0 %v414
      %432 = vmatpush.bf16.msra.mxu0 %v413
      %433 = vmatpush.bf16.msra.mxu0 %v412
      %434 = vmatpush.bf16.msra.mxu0 %v411
      %435 = vmatmul.bf16.gmra.mxu0 %v377
      %v436 = vpop.f32.mrf.mxu0
      %v437 = vadd.f32 0.0, %v436
      %v438 = vpop.f32.mrf.mxu0
      %v439 = vadd.f32 0.0, %v438
      %440 = vdwg.mxu0
      %v458 = vunpack.c.l.b16 %v323
      %v459 = vunpack.c.l.b16 %v324
      %v460 = vunpack.c.l.b16 %v325
      %v461 = vunpack.c.l.b16 %v326
      %v462 = vunpack.c.l.b16 %v327
      %v463 = vunpack.c.l.b16 %v328
      %v464 = vunpack.c.l.b16 %v329
      %v465 = vunpack.c.l.b16 %v330
      %v466 = vunpack.c.l.b16 %v331
      %v467 = vunpack.c.l.b16 %v332
      %v468 = vunpack.c.l.b16 %v333
      %v469 = vunpack.c.l.b16 %v334
      %v470 = vunpack.c.l.b16 %v335
      %v471 = vunpack.c.l.b16 %v336
      %v472 = vunpack.c.l.b16 %v337
      %v473 = vunpack.c.l.b16 %v338
      %v474 = vpack.c.b16 %v459, %v458
      %v475 = vpack.c.b16 %v461, %v460
      %v476 = vpack.c.b16 %v463, %v462
      %v477 = vpack.c.b16 %v465, %v464
      %v478 = vpack.c.b16 %v467, %v466
      %v479 = vpack.c.b16 %v469, %v468
      %v480 = vpack.c.b16 %v471, %v470
      %v481 = vpack.c.b16 %v473, %v472
      %490 = vmatpush.bf16.msra.mxu0 %v481
      %491 = vmatpush.bf16.msra.mxu0 %v480
      %492 = vmatpush.bf16.msra.mxu0 %v479
      %493 = vmatpush.bf16.msra.mxu0 %v478
      %494 = vmatpush.bf16.msra.mxu0 %v477
      %495 = vmatpush.bf16.msra.mxu0 %v476
      %496 = vmatpush.bf16.msra.mxu0 %v475
      %497 = vmatpush.bf16.msra.mxu0 %v474
      %498 = vmatmul.bf16.gmra.mxu0 %v363
      %v499 = vpop.f32.mrf.mxu0
      %v500 = vadd.f32 %v437, %v499
      %v501 = vpop.f32.mrf.mxu0
      %v502 = vadd.f32 %v439, %v501
      %503 = vdwg.mxu0
      %v504 = vld [vmem:[%s287] sm:$0xe]
      %s505 = scalar_lea.vmem %s2, 128
      %v506 = vld [vmem:[%s505] sm:$0xf]
      %v507 = vld [vmem:[%s505 + $0x4] sm:$0xf]
      %v508 = vld [vmem:[%s505 + $0x8] sm:$0xf]
      %v509 = vld [vmem:[%s505 + $0xc] sm:$0xf]
      %v510 = vld [vmem:[%s505 + $0x10] sm:$0xf]
      %v511 = vld [vmem:[%s505 + $0x14] sm:$0xf]
      %v512 = vld [vmem:[%s505 + $0x18] sm:$0xf]
      %v513 = vld [vmem:[%s505 + $0x1c] sm:$0xf]
      %v514 = vld [vmem:[%s505 + $0x20] sm:$0xf]
      %v515 = vld [vmem:[%s505 + $0x24] sm:$0xf]
      %v516 = vld [vmem:[%s505 + $0x28] sm:$0xf]
      %v517 = vld [vmem:[%s505 + $0x2c] sm:$0xf]
      %v518 = vld [vmem:[%s505 + $0x30] sm:$0xf]
      %v519 = vld [vmem:[%s505 + $0x34] sm:$0xf]
      %v520 = vld [vmem:[%s505 + $0x38] sm:$0xf]
      %v521 = vld [vmem:[%s505 + $0x3c] sm:$0xf]
      %v523 = vunpack.c.l.b16 %v504
      %v524 = vpack.c.b16 %v361, %v523
      %vm525 = vcmask 1046528
      %v526 = vrot.slane %v524, 1
      %v527 = vrot.slane %v364, 1
      %v528 = vsel %vm525, %v526, %v527
      %v546 = vunpack.c.l.b16 %v506
      %v547 = vunpack.c.l.b16 %v507
      %v548 = vunpack.c.l.b16 %v508
      %v549 = vunpack.c.l.b16 %v509
      %v550 = vunpack.c.l.b16 %v510
      %v551 = vunpack.c.l.b16 %v511
      %v552 = vunpack.c.l.b16 %v512
      %v553 = vunpack.c.l.b16 %v513
      %v554 = vunpack.c.l.b16 %v514
      %v555 = vunpack.c.l.b16 %v515
      %v556 = vunpack.c.l.b16 %v516
      %v557 = vunpack.c.l.b16 %v517
      %v558 = vunpack.c.l.b16 %v518
      %v559 = vunpack.c.l.b16 %v519
      %v560 = vunpack.c.l.b16 %v520
      %v561 = vunpack.c.l.b16 %v521
      %v562 = vpack.c.b16 %v547, %v546
      %v563 = vpack.c.b16 %v549, %v548
      %v564 = vpack.c.b16 %v551, %v550
      %v565 = vpack.c.b16 %v553, %v552
      %v566 = vpack.c.b16 %v555, %v554
      %v567 = vpack.c.b16 %v557, %v556
      %v568 = vpack.c.b16 %v559, %v558
      %v569 = vpack.c.b16 %v561, %v560
      %578 = vmatpush.bf16.msra.mxu0 %v569
      %579 = vmatpush.bf16.msra.mxu0 %v568
      %580 = vmatpush.bf16.msra.mxu0 %v567
      %581 = vmatpush.bf16.msra.mxu0 %v566
      %582 = vmatpush.bf16.msra.mxu0 %v565
      %583 = vmatpush.bf16.msra.mxu0 %v564
      %584 = vmatpush.bf16.msra.mxu0 %v563
      %585 = vmatpush.bf16.msra.mxu0 %v562
      %586 = vmatmul.bf16.gmra.mxu0 %v528
      %v587 = vpop.f32.mrf.mxu0
      %v588 = vadd.f32 0.0, %v587
      %v589 = vpop.f32.mrf.mxu0
      %v590 = vadd.f32 0.0, %v589
      %591 = vdwg.mxu0
      %v592 = vadd.f32 %v500, %v588
      %v593 = vadd.f32 %v502, %v590
      %s594 = scalar_lea.vmem %s287, 12
      %v595 = vld [vmem:[%s594] sm:$0xf]
      %v596 = vld [vmem:[%s594 + $0x4] sm:$0xf]
      %s597 = scalar_lea.vmem %s2, 192
      %v598 = vld [vmem:[%s597] sm:$0xf]
      %v599 = vld [vmem:[%s597 + $0x4] sm:$0xf]
      %v600 = vld [vmem:[%s597 + $0x8] sm:$0xf]
      %v601 = vld [vmem:[%s597 + $0xc] sm:$0xf]
      %v602 = vld [vmem:[%s597 + $0x10] sm:$0xf]
      %v603 = vld [vmem:[%s597 + $0x14] sm:$0xf]
      %v604 = vld [vmem:[%s597 + $0x18] sm:$0xf]
      %v605 = vld [vmem:[%s597 + $0x1c] sm:$0xf]
      %v606 = vld [vmem:[%s597 + $0x20] sm:$0xf]
      %v607 = vld [vmem:[%s597 + $0x24] sm:$0xf]
      %v608 = vld [vmem:[%s597 + $0x28] sm:$0xf]
      %v609 = vld [vmem:[%s597 + $0x2c] sm:$0xf]
      %v610 = vld [vmem:[%s597 + $0x30] sm:$0xf]
      %v611 = vld [vmem:[%s597 + $0x34] sm:$0xf]
      %v612 = vld [vmem:[%s597 + $0x38] sm:$0xf]
      %v613 = vld [vmem:[%s597 + $0x3c] sm:$0xf]
      %v616 = vunpack.c.l.b16 %v595
      %v617 = vunpack.c.l.b16 %v596
      %v618 = vpack.c.b16 %v617, %v616
      %v636 = vunpack.c.l.b16 %v598
      %v637 = vunpack.c.l.b16 %v599
      %v638 = vunpack.c.l.b16 %v600
      %v639 = vunpack.c.l.b16 %v601
      %v640 = vunpack.c.l.b16 %v602
      %v641 = vunpack.c.l.b16 %v603
      %v642 = vunpack.c.l.b16 %v604
      %v643 = vunpack.c.l.b16 %v605
      %v644 = vunpack.c.l.b16 %v606
      %v645 = vunpack.c.l.b16 %v607
      %v646 = vunpack.c.l.b16 %v608
      %v647 = vunpack.c.l.b16 %v609
      %v648 = vunpack.c.l.b16 %v610
      %v649 = vunpack.c.l.b16 %v611
      %v650 = vunpack.c.l.b16 %v612
      %v651 = vunpack.c.l.b16 %v613
      %v652 = vpack.c.b16 %v637, %v636
      %v653 = vpack.c.b16 %v639, %v638
      %v654 = vpack.c.b16 %v641, %v640
      %v655 = vpack.c.b16 %v643, %v642
      %v656 = vpack.c.b16 %v645, %v644
      %v657 = vpack.c.b16 %v647, %v646
      %v658 = vpack.c.b16 %v649, %v648
      %v659 = vpack.c.b16 %v651, %v650
      %668 = vmatpush.bf16.msra.mxu0 %v659
      %669 = vmatpush.bf16.msra.mxu0 %v658
      %670 = vmatpush.bf16.msra.mxu0 %v657
      %671 = vmatpush.bf16.msra.mxu0 %v656
      %672 = vmatpush.bf16.msra.mxu0 %v655
      %673 = vmatpush.bf16.msra.mxu0 %v654
      %674 = vmatpush.bf16.msra.mxu0 %v653
      %675 = vmatpush.bf16.msra.mxu0 %v652
      %676 = vmatmul.bf16.gmra.mxu0 %v618
      %v677 = vpop.f32.mrf.mxu0
      %v678 = vadd.f32 0.0, %v677
      %v679 = vpop.f32.mrf.mxu0
      %v680 = vadd.f32 0.0, %v679
      %681 = vdwg.mxu0
      %v682 = vadd.f32 %v592, %v678
      %v683 = vadd.f32 %v593, %v680
      %v684 = vld [vmem:[%s594] sm:$0xf]
      %v685 = vld [vmem:[%s594 + $0x4] sm:$0xf]
      %v686 = vld [vmem:[%s594 + $0x8] sm:$0x1]
      %s687 = scalar_lea.vmem %s2, 256
      %v688 = vld [vmem:[%s687] sm:$0xf]
      %v689 = vld [vmem:[%s687 + $0x4] sm:$0xf]
      %v690 = vld [vmem:[%s687 + $0x8] sm:$0xf]
      %v691 = vld [vmem:[%s687 + $0xc] sm:$0xf]
      %v692 = vld [vmem:[%s687 + $0x10] sm:$0xf]
      %v693 = vld [vmem:[%s687 + $0x14] sm:$0xf]
      %v694 = vld [vmem:[%s687 + $0x18] sm:$0xf]
      %v695 = vld [vmem:[%s687 + $0x1c] sm:$0xf]
      %v696 = vld [vmem:[%s687 + $0x20] sm:$0xf]
      %v697 = vld [vmem:[%s687 + $0x24] sm:$0xf]
      %v698 = vld [vmem:[%s687 + $0x28] sm:$0xf]
      %v699 = vld [vmem:[%s687 + $0x2c] sm:$0xf]
      %v700 = vld [vmem:[%s687 + $0x30] sm:$0xf]
      %v701 = vld [vmem:[%s687 + $0x34] sm:$0xf]
      %v702 = vld [vmem:[%s687 + $0x38] sm:$0xf]
      %v703 = vld [vmem:[%s687 + $0x3c] sm:$0xf]
      %v707 = vunpack.c.l.b16 %v684
      %v708 = vunpack.c.l.b16 %v685
      %v709 = vunpack.c.l.b16 %v686
      %v710 = vpack.c.b16 %v708, %v707
      %v711 = vpack.c.b16 %v709, %v709
      %v713 = vshrl.u32 %v710, 16
      %v715 = vshll.u32 %v710, 16
      %v717 = vrot.slane %v715, 1
      %v718 = vor.u32 %v713, %v717
      %v720 = vshll.u32 %v711, 16
      %v722 = vrot.slane %v720, 1
      %v723 = vsel %vm365, %v718, %v722
      %v741 = vunpack.c.l.b16 %v688
      %v742 = vunpack.c.l.b16 %v689
      %v743 = vunpack.c.l.b16 %v690
      %v744 = vunpack.c.l.b16 %v691
      %v745 = vunpack.c.l.b16 %v692
      %v746 = vunpack.c.l.b16 %v693
      %v747 = vunpack.c.l.b16 %v694
      %v748 = vunpack.c.l.b16 %v695
      %v749 = vunpack.c.l.b16 %v696
      %v750 = vunpack.c.l.b16 %v697
      %v751 = vunpack.c.l.b16 %v698
      %v752 = vunpack.c.l.b16 %v699
      %v753 = vunpack.c.l.b16 %v700
      %v754 = vunpack.c.l.b16 %v701
      %v755 = vunpack.c.l.b16 %v702
      %v756 = vunpack.c.l.b16 %v703
      %v757 = vpack.c.b16 %v742, %v741
      %v758 = vpack.c.b16 %v744, %v743
      %v759 = vpack.c.b16 %v746, %v745
      %v760 = vpack.c.b16 %v748, %v747
      %v761 = vpack.c.b16 %v750, %v749
      %v762 = vpack.c.b16 %v752, %v751
      %v763 = vpack.c.b16 %v754, %v753
      %v764 = vpack.c.b16 %v756, %v755
      %773 = vmatpush.bf16.msra.mxu0 %v764
      %774 = vmatpush.bf16.msra.mxu0 %v763
      %775 = vmatpush.bf16.msra.mxu0 %v762
      %776 = vmatpush.bf16.msra.mxu0 %v761
      %777 = vmatpush.bf16.msra.mxu0 %v760
      %778 = vmatpush.bf16.msra.mxu0 %v759
      %779 = vmatpush.bf16.msra.mxu0 %v758
      %780 = vmatpush.bf16.msra.mxu0 %v757
      %781 = vmatmul.bf16.gmra.mxu0 %v723
      %v782 = vpop.f32.mrf.mxu0
      %v783 = vadd.f32 0.0, %v782
      %v784 = vpop.f32.mrf.mxu0
      %v785 = vadd.f32 0.0, %v784
      %786 = vdwg.mxu0
      %v787 = vadd.f32 %v682, %v783
      %v788 = vadd.f32 %v683, %v785
      %v789 = vld [vmem:[%s594] sm:$0xe]
      %s790 = scalar_lea.vmem %s2, 320
      %v791 = vld [vmem:[%s790] sm:$0xf]
      %v792 = vld [vmem:[%s790 + $0x4] sm:$0xf]
      %v793 = vld [vmem:[%s790 + $0x8] sm:$0xf]
      %v794 = vld [vmem:[%s790 + $0xc] sm:$0xf]
      %v795 = vld [vmem:[%s790 + $0x10] sm:$0xf]
      %v796 = vld [vmem:[%s790 + $0x14] sm:$0xf]
      %v797 = vld [vmem:[%s790 + $0x18] sm:$0xf]
      %v798 = vld [vmem:[%s790 + $0x1c] sm:$0xf]
      %v799 = vld [vmem:[%s790 + $0x20] sm:$0xf]
      %v800 = vld [vmem:[%s790 + $0x24] sm:$0xf]
      %v801 = vld [vmem:[%s790 + $0x28] sm:$0xf]
      %v802 = vld [vmem:[%s790 + $0x2c] sm:$0xf]
      %v803 = vld [vmem:[%s790 + $0x30] sm:$0xf]
      %v804 = vld [vmem:[%s790 + $0x34] sm:$0xf]
      %v805 = vld [vmem:[%s790 + $0x38] sm:$0xf]
      %v806 = vld [vmem:[%s790 + $0x3c] sm:$0xf]
      %v808 = vunpack.c.l.b16 %v789
      %v809 = vpack.c.b16 %v708, %v808
      %v810 = vrot.slane %v809, 1
      %v811 = vrot.slane %v711, 1
      %v812 = vsel %vm525, %v810, %v811
      %v830 = vunpack.c.l.b16 %v791
      %v831 = vunpack.c.l.b16 %v792
      %v832 = vunpack.c.l.b16 %v793
      %v833 = vunpack.c.l.b16 %v794
      %v834 = vunpack.c.l.b16 %v795
      %v835 = vunpack.c.l.b16 %v796
      %v836 = vunpack.c.l.b16 %v797
      %v837 = vunpack.c.l.b16 %v798
      %v838 = vunpack.c.l.b16 %v799
      %v839 = vunpack.c.l.b16 %v800
      %v840 = vunpack.c.l.b16 %v801
      %v841 = vunpack.c.l.b16 %v802
      %v842 = vunpack.c.l.b16 %v803
      %v843 = vunpack.c.l.b16 %v804
      %v844 = vunpack.c.l.b16 %v805
      %v845 = vunpack.c.l.b16 %v806
      %v846 = vpack.c.b16 %v831, %v830
      %v847 = vpack.c.b16 %v833, %v832
      %v848 = vpack.c.b16 %v835, %v834
      %v849 = vpack.c.b16 %v837, %v836
      %v850 = vpack.c.b16 %v839, %v838
      %v851 = vpack.c.b16 %v841, %v840
      %v852 = vpack.c.b16 %v843, %v842
      %v853 = vpack.c.b16 %v845, %v844
      %862 = vmatpush.bf16.msra.mxu0 %v853
      %863 = vmatpush.bf16.msra.mxu0 %v852
      %864 = vmatpush.bf16.msra.mxu0 %v851
      %865 = vmatpush.bf16.msra.mxu0 %v850
      %866 = vmatpush.bf16.msra.mxu0 %v849
      %867 = vmatpush.bf16.msra.mxu0 %v848
      %868 = vmatpush.bf16.msra.mxu0 %v847
      %869 = vmatpush.bf16.msra.mxu0 %v846
      %870 = vmatmul.bf16.gmra.mxu0 %v812
      %v871 = vpop.f32.mrf.mxu0
      %v872 = vadd.f32 0.0, %v871
      %v873 = vpop.f32.mrf.mxu0
      %v874 = vadd.f32 0.0, %v873
      %875 = vdwg.mxu0
      %v876 = vadd.f32 %v787, %v872
      %v877 = vadd.f32 %v788, %v874
      %s878 = scalar_lea.vmem %s287, 24
      %v879 = vld [vmem:[%s878] sm:$0xf]
      %v880 = vld [vmem:[%s878 + $0x4] sm:$0xf]
      %s881 = scalar_lea.vmem %s2, 384
      %v882 = vld [vmem:[%s881] sm:$0xf]
      %v883 = vld [vmem:[%s881 + $0x4] sm:$0xf]
      %v884 = vld [vmem:[%s881 + $0x8] sm:$0xf]
      %v885 = vld [vmem:[%s881 + $0xc] sm:$0xf]
      %v886 = vld [vmem:[%s881 + $0x10] sm:$0xf]
      %v887 = vld [vmem:[%s881 + $0x14] sm:$0xf]
      %v888 = vld [vmem:[%s881 + $0x18] sm:$0xf]
      %v889 = vld [vmem:[%s881 + $0x1c] sm:$0xf]
      %v890 = vld [vmem:[%s881 + $0x20] sm:$0xf]
      %v891 = vld [vmem:[%s881 + $0x24] sm:$0xf]
      %v892 = vld [vmem:[%s881 + $0x28] sm:$0xf]
      %v893 = vld [vmem:[%s881 + $0x2c] sm:$0xf]
      %v894 = vld [vmem:[%s881 + $0x30] sm:$0xf]
      %v895 = vld [vmem:[%s881 + $0x34] sm:$0xf]
      %v896 = vld [vmem:[%s881 + $0x38] sm:$0xf]
      %v897 = vld [vmem:[%s881 + $0x3c] sm:$0xf]
      %v900 = vunpack.c.l.b16 %v879
      %v901 = vunpack.c.l.b16 %v880
      %v902 = vpack.c.b16 %v901, %v900
      %v920 = vunpack.c.l.b16 %v882
      %v921 = vunpack.c.l.b16 %v883
      %v922 = vunpack.c.l.b16 %v884
      %v923 = vunpack.c.l.b16 %v885
      %v924 = vunpack.c.l.b16 %v886
      %v925 = vunpack.c.l.b16 %v887
      %v926 = vunpack.c.l.b16 %v888
      %v927 = vunpack.c.l.b16 %v889
      %v928 = vunpack.c.l.b16 %v890
      %v929 = vunpack.c.l.b16 %v891
      %v930 = vunpack.c.l.b16 %v892
      %v931 = vunpack.c.l.b16 %v893
      %v932 = vunpack.c.l.b16 %v894
      %v933 = vunpack.c.l.b16 %v895
      %v934 = vunpack.c.l.b16 %v896
      %v935 = vunpack.c.l.b16 %v897
      %v936 = vpack.c.b16 %v921, %v920
      %v937 = vpack.c.b16 %v923, %v922
      %v938 = vpack.c.b16 %v925, %v924
      %v939 = vpack.c.b16 %v927, %v926
      %v940 = vpack.c.b16 %v929, %v928
      %v941 = vpack.c.b16 %v931, %v930
      %v942 = vpack.c.b16 %v933, %v932
      %v943 = vpack.c.b16 %v935, %v934
      %952 = vmatpush.bf16.msra.mxu0 %v943
      %953 = vmatpush.bf16.msra.mxu0 %v942
      %954 = vmatpush.bf16.msra.mxu0 %v941
      %955 = vmatpush.bf16.msra.mxu0 %v940
      %956 = vmatpush.bf16.msra.mxu0 %v939
      %957 = vmatpush.bf16.msra.mxu0 %v938
      %958 = vmatpush.bf16.msra.mxu0 %v937
      %959 = vmatpush.bf16.msra.mxu0 %v936
      %960 = vmatmul.bf16.gmra.mxu0 %v902
      %v961 = vpop.f32.mrf.mxu0
      %v962 = vadd.f32 0.0, %v961
      %v963 = vpop.f32.mrf.mxu0
      %v964 = vadd.f32 0.0, %v963
      %965 = vdwg.mxu0
      %v966 = vadd.f32 %v876, %v962
      %v967 = vadd.f32 %v877, %v964
      %v968 = vld [vmem:[%s878] sm:$0xf]
      %v969 = vld [vmem:[%s878 + $0x4] sm:$0xf]
      %v970 = vld [vmem:[%s878 + $0x8] sm:$0x1]
      %s971 = scalar_lea.vmem %s2, 448
      %v972 = vld [vmem:[%s971] sm:$0xf]
      %v973 = vld [vmem:[%s971 + $0x4] sm:$0xf]
      %v974 = vld [vmem:[%s971 + $0x8] sm:$0xf]
      %v975 = vld [vmem:[%s971 + $0xc] sm:$0xf]
      %v976 = vld [vmem:[%s971 + $0x10] sm:$0xf]
      %v977 = vld [vmem:[%s971 + $0x14] sm:$0xf]
      %v978 = vld [vmem:[%s971 + $0x18] sm:$0xf]
      %v979 = vld [vmem:[%s971 + $0x1c] sm:$0xf]
      %v980 = vld [vmem:[%s971 + $0x20] sm:$0xf]
      %v981 = vld [vmem:[%s971 + $0x24] sm:$0xf]
      %v982 = vld [vmem:[%s971 + $0x28] sm:$0xf]
      %v983 = vld [vmem:[%s971 + $0x2c] sm:$0xf]
      %v984 = vld [vmem:[%s971 + $0x30] sm:$0xf]
      %v985 = vld [vmem:[%s971 + $0x34] sm:$0xf]
      %v986 = vld [vmem:[%s971 + $0x38] sm:$0xf]
      %v987 = vld [vmem:[%s971 + $0x3c] sm:$0xf]
      %v991 = vunpack.c.l.b16 %v968
      %v992 = vunpack.c.l.b16 %v969
      %v993 = vunpack.c.l.b16 %v970
      %v994 = vpack.c.b16 %v992, %v991
      %v995 = vpack.c.b16 %v993, %v993
      %v997 = vshrl.u32 %v994, 16
      %v999 = vshll.u32 %v994, 16
      %v1001 = vrot.slane %v999, 1
      %v1002 = vor.u32 %v997, %v1001
      %v1004 = vshll.u32 %v995, 16
      %v1006 = vrot.slane %v1004, 1
      %v1007 = vsel %vm365, %v1002, %v1006
      %v1025 = vunpack.c.l.b16 %v972
      %v1026 = vunpack.c.l.b16 %v973
      %v1027 = vunpack.c.l.b16 %v974
      %v1028 = vunpack.c.l.b16 %v975
      %v1029 = vunpack.c.l.b16 %v976
      %v1030 = vunpack.c.l.b16 %v977
      %v1031 = vunpack.c.l.b16 %v978
      %v1032 = vunpack.c.l.b16 %v979
      %v1033 = vunpack.c.l.b16 %v980
      %v1034 = vunpack.c.l.b16 %v981
      %v1035 = vunpack.c.l.b16 %v982
      %v1036 = vunpack.c.l.b16 %v983
      %v1037 = vunpack.c.l.b16 %v984
      %v1038 = vunpack.c.l.b16 %v985
      %v1039 = vunpack.c.l.b16 %v986
      %v1040 = vunpack.c.l.b16 %v987
      %v1041 = vpack.c.b16 %v1026, %v1025
      %v1042 = vpack.c.b16 %v1028, %v1027
      %v1043 = vpack.c.b16 %v1030, %v1029
      %v1044 = vpack.c.b16 %v1032, %v1031
      %v1045 = vpack.c.b16 %v1034, %v1033
      %v1046 = vpack.c.b16 %v1036, %v1035
      %v1047 = vpack.c.b16 %v1038, %v1037
      %v1048 = vpack.c.b16 %v1040, %v1039
      %1057 = vmatpush.bf16.msra.mxu0 %v1048
      %1058 = vmatpush.bf16.msra.mxu0 %v1047
      %1059 = vmatpush.bf16.msra.mxu0 %v1046
      %1060 = vmatpush.bf16.msra.mxu0 %v1045
      %1061 = vmatpush.bf16.msra.mxu0 %v1044
      %1062 = vmatpush.bf16.msra.mxu0 %v1043
      %1063 = vmatpush.bf16.msra.mxu0 %v1042
      %1064 = vmatpush.bf16.msra.mxu0 %v1041
      %1065 = vmatmul.bf16.gmra.mxu0 %v1007
      %v1066 = vpop.f32.mrf.mxu0
      %v1067 = vadd.f32 0.0, %v1066
      %v1068 = vpop.f32.mrf.mxu0
      %v1069 = vadd.f32 0.0, %v1068
      %1070 = vdwg.mxu0
      %v1071 = vadd.f32 %v966, %v1067
      %v1072 = vadd.f32 %v967, %v1069
      %v1073 = vld [vmem:[%s878] sm:$0xe]
      %s1074 = scalar_lea.vmem %s2, 512
      %v1075 = vld [vmem:[%s1074] sm:$0xf]
      %v1076 = vld [vmem:[%s1074 + $0x4] sm:$0xf]
      %v1077 = vld [vmem:[%s1074 + $0x8] sm:$0xf]
      %v1078 = vld [vmem:[%s1074 + $0xc] sm:$0xf]
      %v1079 = vld [vmem:[%s1074 + $0x10] sm:$0xf]
      %v1080 = vld [vmem:[%s1074 + $0x14] sm:$0xf]
      %v1081 = vld [vmem:[%s1074 + $0x18] sm:$0xf]
      %v1082 = vld [vmem:[%s1074 + $0x1c] sm:$0xf]
      %v1083 = vld [vmem:[%s1074 + $0x20] sm:$0xf]
      %v1084 = vld [vmem:[%s1074 + $0x24] sm:$0xf]
      %v1085 = vld [vmem:[%s1074 + $0x28] sm:$0xf]
      %v1086 = vld [vmem:[%s1074 + $0x2c] sm:$0xf]
      %v1087 = vld [vmem:[%s1074 + $0x30] sm:$0xf]
      %v1088 = vld [vmem:[%s1074 + $0x34] sm:$0xf]
      %v1089 = vld [vmem:[%s1074 + $0x38] sm:$0xf]
      %v1090 = vld [vmem:[%s1074 + $0x3c] sm:$0xf]
      %v1092 = vunpack.c.l.b16 %v1073
      %v1093 = vpack.c.b16 %v992, %v1092
      %v1094 = vrot.slane %v1093, 1
      %v1095 = vrot.slane %v995, 1
      %v1096 = vsel %vm525, %v1094, %v1095
      %v1114 = vunpack.c.l.b16 %v1075
      %v1115 = vunpack.c.l.b16 %v1076
      %v1116 = vunpack.c.l.b16 %v1077
      %v1117 = vunpack.c.l.b16 %v1078
      %v1118 = vunpack.c.l.b16 %v1079
      %v1119 = vunpack.c.l.b16 %v1080
      %v1120 = vunpack.c.l.b16 %v1081
      %v1121 = vunpack.c.l.b16 %v1082
      %v1122 = vunpack.c.l.b16 %v1083
      %v1123 = vunpack.c.l.b16 %v1084
      %v1124 = vunpack.c.l.b16 %v1085
      %v1125 = vunpack.c.l.b16 %v1086
      %v1126 = vunpack.c.l.b16 %v1087
      %v1127 = vunpack.c.l.b16 %v1088
      %v1128 = vunpack.c.l.b16 %v1089
      %v1129 = vunpack.c.l.b16 %v1090
      %v1130 = vpack.c.b16 %v1115, %v1114
      %v1131 = vpack.c.b16 %v1117, %v1116
      %v1132 = vpack.c.b16 %v1119, %v1118
      %v1133 = vpack.c.b16 %v1121, %v1120
      %v1134 = vpack.c.b16 %v1123, %v1122
      %v1135 = vpack.c.b16 %v1125, %v1124
      %v1136 = vpack.c.b16 %v1127, %v1126
      %v1137 = vpack.c.b16 %v1129, %v1128
      %1146 = vmatpush.bf16.msra.mxu0 %v1137
      %1147 = vmatpush.bf16.msra.mxu0 %v1136
      %1148 = vmatpush.bf16.msra.mxu0 %v1135
      %1149 = vmatpush.bf16.msra.mxu0 %v1134
      %1150 = vmatpush.bf16.msra.mxu0 %v1133
      %1151 = vmatpush.bf16.msra.mxu0 %v1132
      %1152 = vmatpush.bf16.msra.mxu0 %v1131
      %1153 = vmatpush.bf16.msra.mxu0 %v1130
      %1154 = vmatmul.bf16.gmra.mxu0 %v1096
      %v1155 = vpop.f32.mrf.mxu0
      %v1156 = vadd.f32 0.0, %v1155
      %v1157 = vpop.f32.mrf.mxu0
      %v1158 = vadd.f32 0.0, %v1157
      %1159 = vdwg.mxu0
      %v1160 = vadd.f32 %v1071, %v1156
      %v1161 = vadd.f32 %v1072, %v1158
      %v1163 = vperm.slane %v320, 0
      %v1165 = vadd.f32 %v1160, %v1163
      %v1166 = vadd.f32 %v1161, %v1163
      %v1167 = vmax.f32 %v1165, 0.0
      %v1168 = vmax.f32 %v1166, 0.0
      %v1169 = vpack.c.bf16 %v1167, %v1167
      %v1170 = vpack.c.bf16 %v1168, %v1168
      %1171 = vst [vmem:[%s318] sm:$0xf] %v1169
      %1172 = vst [vmem:[%s318 + $0x4] sm:$0xf] %v1170
      %v1173 = vld [vmem:[%s594] sm:$0xf]
      %v1174 = vld [vmem:[%s594 + $0x4] sm:$0xf]
      %v1175 = vld [vmem:[%s2] sm:$0xf]
      %v1176 = vld [vmem:[%s2 + $0x4] sm:$0xf]
      %v1177 = vld [vmem:[%s2 + $0x8] sm:$0xf]
      %v1178 = vld [vmem:[%s2 + $0xc] sm:$0xf]
      %v1179 = vld [vmem:[%s2 + $0x10] sm:$0xf]
      %v1180 = vld [vmem:[%s2 + $0x14] sm:$0xf]
      %v1181 = vld [vmem:[%s2 + $0x18] sm:$0xf]
      %v1182 = vld [vmem:[%s2 + $0x1c] sm:$0xf]
      %v1183 = vld [vmem:[%s2 + $0x20] sm:$0xf]
      %v1184 = vld [vmem:[%s2 + $0x24] sm:$0xf]
      %v1185 = vld [vmem:[%s2 + $0x28] sm:$0xf]
      %v1186 = vld [vmem:[%s2 + $0x2c] sm:$0xf]
      %v1187 = vld [vmem:[%s2 + $0x30] sm:$0xf]
      %v1188 = vld [vmem:[%s2 + $0x34] sm:$0xf]
      %v1189 = vld [vmem:[%s2 + $0x38] sm:$0xf]
      %v1190 = vld [vmem:[%s2 + $0x3c] sm:$0xf]
      %v1191 = vld [vmem:[%s594 + $0x8] sm:$0x1]
      %v1192 = vld [vmem:[%s340] sm:$0xf]
      %v1193 = vld [vmem:[%s340 + $0x4] sm:$0xf]
      %v1194 = vld [vmem:[%s340 + $0x8] sm:$0xf]
      %v1195 = vld [vmem:[%s340 + $0xc] sm:$0xf]
      %v1196 = vld [vmem:[%s340 + $0x10] sm:$0xf]
      %v1197 = vld [vmem:[%s340 + $0x14] sm:$0xf]
      %v1198 = vld [vmem:[%s340 + $0x18] sm:$0xf]
      %v1199 = vld [vmem:[%s340 + $0x1c] sm:$0xf]
      %v1200 = vld [vmem:[%s340 + $0x20] sm:$0xf]
      %v1201 = vld [vmem:[%s340 + $0x24] sm:$0xf]
      %v1202 = vld [vmem:[%s340 + $0x28] sm:$0xf]
      %v1203 = vld [vmem:[%s340 + $0x2c] sm:$0xf]
      %v1204 = vld [vmem:[%s340 + $0x30] sm:$0xf]
      %v1205 = vld [vmem:[%s340 + $0x34] sm:$0xf]
      %v1206 = vld [vmem:[%s340 + $0x38] sm:$0xf]
      %v1207 = vld [vmem:[%s340 + $0x3c] sm:$0xf]
      %v1211 = vunpack.c.l.b16 %v1173
      %v1212 = vunpack.c.l.b16 %v1174
      %v1213 = vunpack.c.l.b16 %v1191
      %v1214 = vpack.c.b16 %v1212, %v1211
      %v1215 = vpack.c.b16 %v1213, %v1213
      %v1217 = vshrl.u32 %v1214, 16
      %v1219 = vshll.u32 %v1214, 16
      %v1221 = vrot.slane %v1219, 1
      %v1222 = vor.u32 %v1217, %v1221
      %v1224 = vshll.u32 %v1215, 16
      %v1226 = vrot.slane %v1224, 1
      %v1227 = vsel %vm365, %v1222, %v1226
      %v1245 = vunpack.c.l.b16 %v1192
      %v1246 = vunpack.c.l.b16 %v1193
      %v1247 = vunpack.c.l.b16 %v1194
      %v1248 = vunpack.c.l.b16 %v1195
      %v1249 = vunpack.c.l.b16 %v1196
      %v1250 = vunpack.c.l.b16 %v1197
      %v1251 = vunpack.c.l.b16 %v1198
      %v1252 = vunpack.c.l.b16 %v1199
      %v1253 = vunpack.c.l.b16 %v1200
      %v1254 = vunpack.c.l.b16 %v1201
      %v1255 = vunpack.c.l.b16 %v1202
      %v1256 = vunpack.c.l.b16 %v1203
      %v1257 = vunpack.c.l.b16 %v1204
      %v1258 = vunpack.c.l.b16 %v1205
      %v1259 = vunpack.c.l.b16 %v1206
      %v1260 = vunpack.c.l.b16 %v1207
      %v1261 = vpack.c.b16 %v1246, %v1245
      %v1262 = vpack.c.b16 %v1248, %v1247
      %v1263 = vpack.c.b16 %v1250, %v1249
      %v1264 = vpack.c.b16 %v1252, %v1251
      %v1265 = vpack.c.b16 %v1254, %v1253
      %v1266 = vpack.c.b16 %v1256, %v1255
      %v1267 = vpack.c.b16 %v1258, %v1257
      %v1268 = vpack.c.b16 %v1260, %v1259
      %1277 = vmatpush.bf16.msra.mxu0 %v1268
      %1278 = vmatpush.bf16.msra.mxu0 %v1267
      %1279 = vmatpush.bf16.msra.mxu0 %v1266
      %1280 = vmatpush.bf16.msra.mxu0 %v1265
      %1281 = vmatpush.bf16.msra.mxu0 %v1264
      %1282 = vmatpush.bf16.msra.mxu0 %v1263
      %1283 = vmatpush.bf16.msra.mxu0 %v1262
      %1284 = vmatpush.bf16.msra.mxu0 %v1261
      %1285 = vmatmul.bf16.gmra.mxu0 %v1227
      %v1286 = vpop.f32.mrf.mxu0
      %v1287 = vadd.f32 0.0, %v1286
      %v1288 = vpop.f32.mrf.mxu0
      %v1289 = vadd.f32 0.0, %v1288
      %1290 = vdwg.mxu0
      %v1308 = vunpack.c.l.b16 %v1175
      %v1309 = vunpack.c.l.b16 %v1176
      %v1310 = vunpack.c.l.b16 %v1177
      %v1311 = vunpack.c.l.b16 %v1178
      %v1312 = vunpack.c.l.b16 %v1179
      %v1313 = vunpack.c.l.b16 %v1180
      %v1314 = vunpack.c.l.b16 %v1181
      %v1315 = vunpack.c.l.b16 %v1182
      %v1316 = vunpack.c.l.b16 %v1183
      %v1317 = vunpack.c.l.b16 %v1184
      %v1318 = vunpack.c.l.b16 %v1185
      %v1319 = vunpack.c.l.b16 %v1186
      %v1320 = vunpack.c.l.b16 %v1187
      %v1321 = vunpack.c.l.b16 %v1188
      %v1322 = vunpack.c.l.b16 %v1189
      %v1323 = vunpack.c.l.b16 %v1190
      %v1324 = vpack.c.b16 %v1309, %v1308
      %v1325 = vpack.c.b16 %v1311, %v1310
      %v1326 = vpack.c.b16 %v1313, %v1312
      %v1327 = vpack.c.b16 %v1315, %v1314
      %v1328 = vpack.c.b16 %v1317, %v1316
      %v1329 = vpack.c.b16 %v1319, %v1318
      %v1330 = vpack.c.b16 %v1321, %v1320
      %v1331 = vpack.c.b16 %v1323, %v1322
      %1340 = vmatpush.bf16.msra.mxu0 %v1331
      %1341 = vmatpush.bf16.msra.mxu0 %v1330
      %1342 = vmatpush.bf16.msra.mxu0 %v1329
      %1343 = vmatpush.bf16.msra.mxu0 %v1328
      %1344 = vmatpush.bf16.msra.mxu0 %v1327
      %1345 = vmatpush.bf16.msra.mxu0 %v1326
      %1346 = vmatpush.bf16.msra.mxu0 %v1325
      %1347 = vmatpush.bf16.msra.mxu0 %v1324
      %1348 = vmatmul.bf16.gmra.mxu0 %v1214
      %v1349 = vpop.f32.mrf.mxu0
      %v1350 = vadd.f32 %v1287, %v1349
      %v1351 = vpop.f32.mrf.mxu0
      %v1352 = vadd.f32 %v1289, %v1351
      %1353 = vdwg.mxu0
      %v1354 = vld [vmem:[%s594] sm:$0xe]
      %v1355 = vld [vmem:[%s505] sm:$0xf]
      %v1356 = vld [vmem:[%s505 + $0x4] sm:$0xf]
      %v1357 = vld [vmem:[%s505 + $0x8] sm:$0xf]
      %v1358 = vld [vmem:[%s505 + $0xc] sm:$0xf]
      %v1359 = vld [vmem:[%s505 + $0x10] sm:$0xf]
      %v1360 = vld [vmem:[%s505 + $0x14] sm:$0xf]
      %v1361 = vld [vmem:[%s505 + $0x18] sm:$0xf]
      %v1362 = vld [vmem:[%s505 + $0x1c] sm:$0xf]
      %v1363 = vld [vmem:[%s505 + $0x20] sm:$0xf]
      %v1364 = vld [vmem:[%s505 + $0x24] sm:$0xf]
      %v1365 = vld [vmem:[%s505 + $0x28] sm:$0xf]
      %v1366 = vld [vmem:[%s505 + $0x2c] sm:$0xf]
      %v1367 = vld [vmem:[%s505 + $0x30] sm:$0xf]
      %v1368 = vld [vmem:[%s505 + $0x34] sm:$0xf]
      %v1369 = vld [vmem:[%s505 + $0x38] sm:$0xf]
      %v1370 = vld [vmem:[%s505 + $0x3c] sm:$0xf]
      %v1372 = vunpack.c.l.b16 %v1354
      %v1373 = vpack.c.b16 %v1212, %v1372
      %v1374 = vrot.slane %v1373, 1
      %v1375 = vrot.slane %v1215, 1
      %v1376 = vsel %vm525, %v1374, %v1375
      %v1394 = vunpack.c.l.b16 %v1355
      %v1395 = vunpack.c.l.b16 %v1356
      %v1396 = vunpack.c.l.b16 %v1357
      %v1397 = vunpack.c.l.b16 %v1358
      %v1398 = vunpack.c.l.b16 %v1359
      %v1399 = vunpack.c.l.b16 %v1360
      %v1400 = vunpack.c.l.b16 %v1361
      %v1401 = vunpack.c.l.b16 %v1362
      %v1402 = vunpack.c.l.b16 %v1363
      %v1403 = vunpack.c.l.b16 %v1364
      %v1404 = vunpack.c.l.b16 %v1365
      %v1405 = vunpack.c.l.b16 %v1366
      %v1406 = vunpack.c.l.b16 %v1367
      %v1407 = vunpack.c.l.b16 %v1368
      %v1408 = vunpack.c.l.b16 %v1369
      %v1409 = vunpack.c.l.b16 %v1370
      %v1410 = vpack.c.b16 %v1395, %v1394
      %v1411 = vpack.c.b16 %v1397, %v1396
      %v1412 = vpack.c.b16 %v1399, %v1398
      %v1413 = vpack.c.b16 %v1401, %v1400
      %v1414 = vpack.c.b16 %v1403, %v1402
      %v1415 = vpack.c.b16 %v1405, %v1404
      %v1416 = vpack.c.b16 %v1407, %v1406
      %v1417 = vpack.c.b16 %v1409, %v1408
      %1426 = vmatpush.bf16.msra.mxu0 %v1417
      %1427 = vmatpush.bf16.msra.mxu0 %v1416
      %1428 = vmatpush.bf16.msra.mxu0 %v1415
      %1429 = vmatpush.bf16.msra.mxu0 %v1414
      %1430 = vmatpush.bf16.msra.mxu0 %v1413
      %1431 = vmatpush.bf16.msra.mxu0 %v1412
      %1432 = vmatpush.bf16.msra.mxu0 %v1411
      %1433 = vmatpush.bf16.msra.mxu0 %v1410
      %1434 = vmatmul.bf16.gmra.mxu0 %v1376
      %v1435 = vpop.f32.mrf.mxu0
      %v1436 = vadd.f32 0.0, %v1435
      %v1437 = vpop.f32.mrf.mxu0
      %v1438 = vadd.f32 0.0, %v1437
      %1439 = vdwg.mxu0
      %v1440 = vadd.f32 %v1350, %v1436
      %v1441 = vadd.f32 %v1352, %v1438
      %v1442 = vld [vmem:[%s878] sm:$0xf]
      %v1443 = vld [vmem:[%s878 + $0x4] sm:$0xf]
      %v1444 = vld [vmem:[%s597] sm:$0xf]
      %v1445 = vld [vmem:[%s597 + $0x4] sm:$0xf]
      %v1446 = vld [vmem:[%s597 + $0x8] sm:$0xf]
      %v1447 = vld [vmem:[%s597 + $0xc] sm:$0xf]
      %v1448 = vld [vmem:[%s597 + $0x10] sm:$0xf]
      %v1449 = vld [vmem:[%s597 + $0x14] sm:$0xf]
      %v1450 = vld [vmem:[%s597 + $0x18] sm:$0xf]
      %v1451 = vld [vmem:[%s597 + $0x1c] sm:$0xf]
      %v1452 = vld [vmem:[%s597 + $0x20] sm:$0xf]
      %v1453 = vld [vmem:[%s597 + $0x24] sm:$0xf]
      %v1454 = vld [vmem:[%s597 + $0x28] sm:$0xf]
      %v1455 = vld [vmem:[%s597 + $0x2c] sm:$0xf]
      %v1456 = vld [vmem:[%s597 + $0x30] sm:$0xf]
      %v1457 = vld [vmem:[%s597 + $0x34] sm:$0xf]
      %v1458 = vld [vmem:[%s597 + $0x38] sm:$0xf]
      %v1459 = vld [vmem:[%s597 + $0x3c] sm:$0xf]
      %v1462 = vunpack.c.l.b16 %v1442
      %v1463 = vunpack.c.l.b16 %v1443
      %v1464 = vpack.c.b16 %v1463, %v1462
      %v1482 = vunpack.c.l.b16 %v1444
      %v1483 = vunpack.c.l.b16 %v1445
      %v1484 = vunpack.c.l.b16 %v1446
      %v1485 = vunpack.c.l.b16 %v1447
      %v1486 = vunpack.c.l.b16 %v1448
      %v1487 = vunpack.c.l.b16 %v1449
      %v1488 = vunpack.c.l.b16 %v1450
      %v1489 = vunpack.c.l.b16 %v1451
      %v1490 = vunpack.c.l.b16 %v1452
      %v1491 = vunpack.c.l.b16 %v1453
      %v1492 = vunpack.c.l.b16 %v1454
      %v1493 = vunpack.c.l.b16 %v1455
      %v1494 = vunpack.c.l.b16 %v1456
      %v1495 = vunpack.c.l.b16 %v1457
      %v1496 = vunpack.c.l.b16 %v1458
      %v1497 = vunpack.c.l.b16 %v1459
      %v1498 = vpack.c.b16 %v1483, %v1482
      %v1499 = vpack.c.b16 %v1485, %v1484
      %v1500 = vpack.c.b16 %v1487, %v1486
      %v1501 = vpack.c.b16 %v1489, %v1488
      %v1502 = vpack.c.b16 %v1491, %v1490
      %v1503 = vpack.c.b16 %v1493, %v1492
      %v1504 = vpack.c.b16 %v1495, %v1494
      %v1505 = vpack.c.b16 %v1497, %v1496
      %1514 = vmatpush.bf16.msra.mxu0 %v1505
      %1515 = vmatpush.bf16.msra.mxu0 %v1504
      %1516 = vmatpush.bf16.msra.mxu0 %v1503
      %1517 = vmatpush.bf16.msra.mxu0 %v1502
      %1518 = vmatpush.bf16.msra.mxu0 %v1501
      %1519 = vmatpush.bf16.msra.mxu0 %v1500
      %1520 = vmatpush.bf16.msra.mxu0 %v1499
      %1521 = vmatpush.bf16.msra.mxu0 %v1498
      %1522 = vmatmul.bf16.gmra.mxu0 %v1464
      %v1523 = vpop.f32.mrf.mxu0
      %v1524 = vadd.f32 0.0, %v1523
      %v1525 = vpop.f32.mrf.mxu0
      %v1526 = vadd.f32 0.0, %v1525
      %1527 = vdwg.mxu0
      %v1528 = vadd.f32 %v1440, %v1524
      %v1529 = vadd.f32 %v1441, %v1526
      %v1530 = vld [vmem:[%s878] sm:$0xf]
      %v1531 = vld [vmem:[%s878 + $0x4] sm:$0xf]
      %v1532 = vld [vmem:[%s878 + $0x8] sm:$0x1]
      %v1533 = vld [vmem:[%s687] sm:$0xf]
      %v1534 = vld [vmem:[%s687 + $0x4] sm:$0xf]
      %v1535 = vld [vmem:[%s687 + $0x8] sm:$0xf]
      %v1536 = vld [vmem:[%s687 + $0xc] sm:$0xf]
      %v1537 = vld [vmem:[%s687 + $0x10] sm:$0xf]
      %v1538 = vld [vmem:[%s687 + $0x14] sm:$0xf]
      %v1539 = vld [vmem:[%s687 + $0x18] sm:$0xf]
      %v1540 = vld [vmem:[%s687 + $0x1c] sm:$0xf]
      %v1541 = vld [vmem:[%s687 + $0x20] sm:$0xf]
      %v1542 = vld [vmem:[%s687 + $0x24] sm:$0xf]
      %v1543 = vld [vmem:[%s687 + $0x28] sm:$0xf]
      %v1544 = vld [vmem:[%s687 + $0x2c] sm:$0xf]
      %v1545 = vld [vmem:[%s687 + $0x30] sm:$0xf]
      %v1546 = vld [vmem:[%s687 + $0x34] sm:$0xf]
      %v1547 = vld [vmem:[%s687 + $0x38] sm:$0xf]
      %v1548 = vld [vmem:[%s687 + $0x3c] sm:$0xf]
      %v1552 = vunpack.c.l.b16 %v1530
      %v1553 = vunpack.c.l.b16 %v1531
      %v1554 = vunpack.c.l.b16 %v1532
      %v1555 = vpack.c.b16 %v1553, %v1552
      %v1556 = vpack.c.b16 %v1554, %v1554
      %v1558 = vshrl.u32 %v1555, 16
      %v1560 = vshll.u32 %v1555, 16
      %v1562 = vrot.slane %v1560, 1
      %v1563 = vor.u32 %v1558, %v1562
      %v1565 = vshll.u32 %v1556, 16
      %v1567 = vrot.slane %v1565, 1
      %v1568 = vsel %vm365, %v1563, %v1567
      %v1586 = vunpack.c.l.b16 %v1533
      %v1587 = vunpack.c.l.b16 %v1534
      %v1588 = vunpack.c.l.b16 %v1535
      %v1589 = vunpack.c.l.b16 %v1536
      %v1590 = vunpack.c.l.b16 %v1537
      %v1591 = vunpack.c.l.b16 %v1538
      %v1592 = vunpack.c.l.b16 %v1539
      %v1593 = vunpack.c.l.b16 %v1540
      %v1594 = vunpack.c.l.b16 %v1541
      %v1595 = vunpack.c.l.b16 %v1542
      %v1596 = vunpack.c.l.b16 %v1543
      %v1597 = vunpack.c.l.b16 %v1544
      %v1598 = vunpack.c.l.b16 %v1545
      %v1599 = vunpack.c.l.b16 %v1546
      %v1600 = vunpack.c.l.b16 %v1547
      %v1601 = vunpack.c.l.b16 %v1548
      %v1602 = vpack.c.b16 %v1587, %v1586
      %v1603 = vpack.c.b16 %v1589, %v1588
      %v1604 = vpack.c.b16 %v1591, %v1590
      %v1605 = vpack.c.b16 %v1593, %v1592
      %v1606 = vpack.c.b16 %v1595, %v1594
      %v1607 = vpack.c.b16 %v1597, %v1596
      %v1608 = vpack.c.b16 %v1599, %v1598
      %v1609 = vpack.c.b16 %v1601, %v1600
      %1618 = vmatpush.bf16.msra.mxu0 %v1609
      %1619 = vmatpush.bf16.msra.mxu0 %v1608
      %1620 = vmatpush.bf16.msra.mxu0 %v1607
      %1621 = vmatpush.bf16.msra.mxu0 %v1606
      %1622 = vmatpush.bf16.msra.mxu0 %v1605
      %1623 = vmatpush.bf16.msra.mxu0 %v1604
      %1624 = vmatpush.bf16.msra.mxu0 %v1603
      %1625 = vmatpush.bf16.msra.mxu0 %v1602
      %1626 = vmatmul.bf16.gmra.mxu0 %v1568
      %v1627 = vpop.f32.mrf.mxu0
      %v1628 = vadd.f32 0.0, %v1627
      %v1629 = vpop.f32.mrf.mxu0
      %v1630 = vadd.f32 0.0, %v1629
      %1631 = vdwg.mxu0
      %v1632 = vadd.f32 %v1528, %v1628
      %v1633 = vadd.f32 %v1529, %v1630
      %v1634 = vld [vmem:[%s878] sm:$0xe]
      %v1635 = vld [vmem:[%s790] sm:$0xf]
      %v1636 = vld [vmem:[%s790 + $0x4] sm:$0xf]
      %v1637 = vld [vmem:[%s790 + $0x8] sm:$0xf]
      %v1638 = vld [vmem:[%s790 + $0xc] sm:$0xf]
      %v1639 = vld [vmem:[%s790 + $0x10] sm:$0xf]
      %v1640 = vld [vmem:[%s790 + $0x14] sm:$0xf]
      %v1641 = vld [vmem:[%s790 + $0x18] sm:$0xf]
      %v1642 = vld [vmem:[%s790 + $0x1c] sm:$0xf]
      %v1643 = vld [vmem:[%s790 + $0x20] sm:$0xf]
      %v1644 = vld [vmem:[%s790 + $0x24] sm:$0xf]
      %v1645 = vld [vmem:[%s790 + $0x28] sm:$0xf]
      %v1646 = vld [vmem:[%s790 + $0x2c] sm:$0xf]
      %v1647 = vld [vmem:[%s790 + $0x30] sm:$0xf]
      %v1648 = vld [vmem:[%s790 + $0x34] sm:$0xf]
      %v1649 = vld [vmem:[%s790 + $0x38] sm:$0xf]
      %v1650 = vld [vmem:[%s790 + $0x3c] sm:$0xf]
      %v1652 = vunpack.c.l.b16 %v1634
      %v1653 = vpack.c.b16 %v1553, %v1652
      %v1654 = vrot.slane %v1653, 1
      %v1655 = vrot.slane %v1556, 1
      %v1656 = vsel %vm525, %v1654, %v1655
      %v1674 = vunpack.c.l.b16 %v1635
      %v1675 = vunpack.c.l.b16 %v1636
      %v1676 = vunpack.c.l.b16 %v1637
      %v1677 = vunpack.c.l.b16 %v1638
      %v1678 = vunpack.c.l.b16 %v1639
      %v1679 = vunpack.c.l.b16 %v1640
      %v1680 = vunpack.c.l.b16 %v1641
      %v1681 = vunpack.c.l.b16 %v1642
      %v1682 = vunpack.c.l.b16 %v1643
      %v1683 = vunpack.c.l.b16 %v1644
      %v1684 = vunpack.c.l.b16 %v1645
      %v1685 = vunpack.c.l.b16 %v1646
      %v1686 = vunpack.c.l.b16 %v1647
      %v1687 = vunpack.c.l.b16 %v1648
      %v1688 = vunpack.c.l.b16 %v1649
      %v1689 = vunpack.c.l.b16 %v1650
      %v1690 = vpack.c.b16 %v1675, %v1674
      %v1691 = vpack.c.b16 %v1677, %v1676
      %v1692 = vpack.c.b16 %v1679, %v1678
      %v1693 = vpack.c.b16 %v1681, %v1680
      %v1694 = vpack.c.b16 %v1683, %v1682
      %v1695 = vpack.c.b16 %v1685, %v1684
      %v1696 = vpack.c.b16 %v1687, %v1686
      %v1697 = vpack.c.b16 %v1689, %v1688
      %1706 = vmatpush.bf16.msra.mxu0 %v1697
      %1707 = vmatpush.bf16.msra.mxu0 %v1696
      %1708 = vmatpush.bf16.msra.mxu0 %v1695
      %1709 = vmatpush.bf16.msra.mxu0 %v1694
      %1710 = vmatpush.bf16.msra.mxu0 %v1693
      %1711 = vmatpush.bf16.msra.mxu0 %v1692
      %1712 = vmatpush.bf16.msra.mxu0 %v1691
      %1713 = vmatpush.bf16.msra.mxu0 %v1690
      %1714 = vmatmul.bf16.gmra.mxu0 %v1656
      %v1715 = vpop.f32.mrf.mxu0
      %v1716 = vadd.f32 0.0, %v1715
      %v1717 = vpop.f32.mrf.mxu0
      %v1718 = vadd.f32 0.0, %v1717
      %1719 = vdwg.mxu0
      %v1720 = vadd.f32 %v1632, %v1716
      %v1721 = vadd.f32 %v1633, %v1718
      %s1722 = scalar_lea.vmem %s287, 36
      %v1723 = vld [vmem:[%s1722] sm:$0xf]
      %v1724 = vld [vmem:[%s1722 + $0x4] sm:$0xf]
      %v1725 = vld [vmem:[%s881] sm:$0xf]
      %v1726 = vld [vmem:[%s881 + $0x4] sm:$0xf]
      %v1727 = vld [vmem:[%s881 + $0x8] sm:$0xf]
      %v1728 = vld [vmem:[%s881 + $0xc] sm:$0xf]
      %v1729 = vld [vmem:[%s881 + $0x10] sm:$0xf]
      %v1730 = vld [vmem:[%s881 + $0x14] sm:$0xf]
      %v1731 = vld [vmem:[%s881 + $0x18] sm:$0xf]
      %v1732 = vld [vmem:[%s881 + $0x1c] sm:$0xf]
      %v1733 = vld [vmem:[%s881 + $0x20] sm:$0xf]
      %v1734 = vld [vmem:[%s881 + $0x24] sm:$0xf]
      %v1735 = vld [vmem:[%s881 + $0x28] sm:$0xf]
      %v1736 = vld [vmem:[%s881 + $0x2c] sm:$0xf]
      %v1737 = vld [vmem:[%s881 + $0x30] sm:$0xf]
      %v1738 = vld [vmem:[%s881 + $0x34] sm:$0xf]
      %v1739 = vld [vmem:[%s881 + $0x38] sm:$0xf]
      %v1740 = vld [vmem:[%s881 + $0x3c] sm:$0xf]
      %v1743 = vunpack.c.l.b16 %v1723
      %v1744 = vunpack.c.l.b16 %v1724
      %v1745 = vpack.c.b16 %v1744, %v1743
      %v1763 = vunpack.c.l.b16 %v1725
      %v1764 = vunpack.c.l.b16 %v1726
      %v1765 = vunpack.c.l.b16 %v1727
      %v1766 = vunpack.c.l.b16 %v1728
      %v1767 = vunpack.c.l.b16 %v1729
      %v1768 = vunpack.c.l.b16 %v1730
      %v1769 = vunpack.c.l.b16 %v1731
      %v1770 = vunpack.c.l.b16 %v1732
      %v1771 = vunpack.c.l.b16 %v1733
      %v1772 = vunpack.c.l.b16 %v1734
      %v1773 = vunpack.c.l.b16 %v1735
      %v1774 = vunpack.c.l.b16 %v1736
      %v1775 = vunpack.c.l.b16 %v1737
      %v1776 = vunpack.c.l.b16 %v1738
      %v1777 = vunpack.c.l.b16 %v1739
      %v1778 = vunpack.c.l.b16 %v1740
      %v1779 = vpack.c.b16 %v1764, %v1763
      %v1780 = vpack.c.b16 %v1766, %v1765
      %v1781 = vpack.c.b16 %v1768, %v1767
      %v1782 = vpack.c.b16 %v1770, %v1769
      %v1783 = vpack.c.b16 %v1772, %v1771
      %v1784 = vpack.c.b16 %v1774, %v1773
      %v1785 = vpack.c.b16 %v1776, %v1775
      %v1786 = vpack.c.b16 %v1778, %v1777
      %1795 = vmatpush.bf16.msra.mxu0 %v1786
      %1796 = vmatpush.bf16.msra.mxu0 %v1785
      %1797 = vmatpush.bf16.msra.mxu0 %v1784
      %1798 = vmatpush.bf16.msra.mxu0 %v1783
      %1799 = vmatpush.bf16.msra.mxu0 %v1782
      %1800 = vmatpush.bf16.msra.mxu0 %v1781
      %1801 = vmatpush.bf16.msra.mxu0 %v1780
      %1802 = vmatpush.bf16.msra.mxu0 %v1779
      %1803 = vmatmul.bf16.gmra.mxu0 %v1745
      %v1804 = vpop.f32.mrf.mxu0
      %v1805 = vadd.f32 0.0, %v1804
      %v1806 = vpop.f32.mrf.mxu0
      %v1807 = vadd.f32 0.0, %v1806
      %1808 = vdwg.mxu0
      %v1809 = vadd.f32 %v1720, %v1805
      %v1810 = vadd.f32 %v1721, %v1807
      %v1811 = vld [vmem:[%s1722] sm:$0xf]
      %v1812 = vld [vmem:[%s1722 + $0x4] sm:$0xf]
      %v1813 = vld [vmem:[%s1722 + $0x8] sm:$0x1]
      %v1814 = vld [vmem:[%s971] sm:$0xf]
      %v1815 = vld [vmem:[%s971 + $0x4] sm:$0xf]
      %v1816 = vld [vmem:[%s971 + $0x8] sm:$0xf]
      %v1817 = vld [vmem:[%s971 + $0xc] sm:$0xf]
      %v1818 = vld [vmem:[%s971 + $0x10] sm:$0xf]
      %v1819 = vld [vmem:[%s971 + $0x14] sm:$0xf]
      %v1820 = vld [vmem:[%s971 + $0x18] sm:$0xf]
      %v1821 = vld [vmem:[%s971 + $0x1c] sm:$0xf]
      %v1822 = vld [vmem:[%s971 + $0x20] sm:$0xf]
      %v1823 = vld [vmem:[%s971 + $0x24] sm:$0xf]
      %v1824 = vld [vmem:[%s971 + $0x28] sm:$0xf]
      %v1825 = vld [vmem:[%s971 + $0x2c] sm:$0xf]
      %v1826 = vld [vmem:[%s971 + $0x30] sm:$0xf]
      %v1827 = vld [vmem:[%s971 + $0x34] sm:$0xf]
      %v1828 = vld [vmem:[%s971 + $0x38] sm:$0xf]
      %v1829 = vld [vmem:[%s971 + $0x3c] sm:$0xf]
      %v1833 = vunpack.c.l.b16 %v1811
      %v1834 = vunpack.c.l.b16 %v1812
      %v1835 = vunpack.c.l.b16 %v1813
      %v1836 = vpack.c.b16 %v1834, %v1833
      %v1837 = vpack.c.b16 %v1835, %v1835
      %v1839 = vshrl.u32 %v1836, 16
      %v1841 = vshll.u32 %v1836, 16
      %v1843 = vrot.slane %v1841, 1
      %v1844 = vor.u32 %v1839, %v1843
      %v1846 = vshll.u32 %v1837, 16
      %v1848 = vrot.slane %v1846, 1
      %v1849 = vsel %vm365, %v1844, %v1848
      %v1867 = vunpack.c.l.b16 %v1814
      %v1868 = vunpack.c.l.b16 %v1815
      %v1869 = vunpack.c.l.b16 %v1816
      %v1870 = vunpack.c.l.b16 %v1817
      %v1871 = vunpack.c.l.b16 %v1818
      %v1872 = vunpack.c.l.b16 %v1819
      %v1873 = vunpack.c.l.b16 %v1820
      %v1874 = vunpack.c.l.b16 %v1821
      %v1875 = vunpack.c.l.b16 %v1822
      %v1876 = vunpack.c.l.b16 %v1823
      %v1877 = vunpack.c.l.b16 %v1824
      %v1878 = vunpack.c.l.b16 %v1825
      %v1879 = vunpack.c.l.b16 %v1826
      %v1880 = vunpack.c.l.b16 %v1827
      %v1881 = vunpack.c.l.b16 %v1828
      %v1882 = vunpack.c.l.b16 %v1829
      %v1883 = vpack.c.b16 %v1868, %v1867
      %v1884 = vpack.c.b16 %v1870, %v1869
      %v1885 = vpack.c.b16 %v1872, %v1871
      %v1886 = vpack.c.b16 %v1874, %v1873
      %v1887 = vpack.c.b16 %v1876, %v1875
      %v1888 = vpack.c.b16 %v1878, %v1877
      %v1889 = vpack.c.b16 %v1880, %v1879
      %v1890 = vpack.c.b16 %v1882, %v1881
      %1899 = vmatpush.bf16.msra.mxu0 %v1890
      %1900 = vmatpush.bf16.msra.mxu0 %v1889
      %1901 = vmatpush.bf16.msra.mxu0 %v1888
      %1902 = vmatpush.bf16.msra.mxu0 %v1887
      %1903 = vmatpush.bf16.msra.mxu0 %v1886
      %1904 = vmatpush.bf16.msra.mxu0 %v1885
      %1905 = vmatpush.bf16.msra.mxu0 %v1884
      %1906 = vmatpush.bf16.msra.mxu0 %v1883
      %1907 = vmatmul.bf16.gmra.mxu0 %v1849
      %v1908 = vpop.f32.mrf.mxu0
      %v1909 = vadd.f32 0.0, %v1908
      %v1910 = vpop.f32.mrf.mxu0
      %v1911 = vadd.f32 0.0, %v1910
      %1912 = vdwg.mxu0
      %v1913 = vadd.f32 %v1809, %v1909
      %v1914 = vadd.f32 %v1810, %v1911
      %v1915 = vld [vmem:[%s1722] sm:$0xe]
      %v1916 = vld [vmem:[%s1074] sm:$0xf]
      %v1917 = vld [vmem:[%s1074 + $0x4] sm:$0xf]
      %v1918 = vld [vmem:[%s1074 + $0x8] sm:$0xf]
      %v1919 = vld [vmem:[%s1074 + $0xc] sm:$0xf]
      %v1920 = vld [vmem:[%s1074 + $0x10] sm:$0xf]
      %v1921 = vld [vmem:[%s1074 + $0x14] sm:$0xf]
      %v1922 = vld [vmem:[%s1074 + $0x18] sm:$0xf]
      %v1923 = vld [vmem:[%s1074 + $0x1c] sm:$0xf]
      %v1924 = vld [vmem:[%s1074 + $0x20] sm:$0xf]
      %v1925 = vld [vmem:[%s1074 + $0x24] sm:$0xf]
      %v1926 = vld [vmem:[%s1074 + $0x28] sm:$0xf]
      %v1927 = vld [vmem:[%s1074 + $0x2c] sm:$0xf]
      %v1928 = vld [vmem:[%s1074 + $0x30] sm:$0xf]
      %v1929 = vld [vmem:[%s1074 + $0x34] sm:$0xf]
      %v1930 = vld [vmem:[%s1074 + $0x38] sm:$0xf]
      %v1931 = vld [vmem:[%s1074 + $0x3c] sm:$0xf]
      %v1933 = vunpack.c.l.b16 %v1915
      %v1934 = vpack.c.b16 %v1834, %v1933
      %v1935 = vrot.slane %v1934, 1
      %v1936 = vrot.slane %v1837, 1
      %v1937 = vsel %vm525, %v1935, %v1936
      %v1955 = vunpack.c.l.b16 %v1916
      %v1956 = vunpack.c.l.b16 %v1917
      %v1957 = vunpack.c.l.b16 %v1918
      %v1958 = vunpack.c.l.b16 %v1919
      %v1959 = vunpack.c.l.b16 %v1920
      %v1960 = vunpack.c.l.b16 %v1921
      %v1961 = vunpack.c.l.b16 %v1922
      %v1962 = vunpack.c.l.b16 %v1923
      %v1963 = vunpack.c.l.b16 %v1924
      %v1964 = vunpack.c.l.b16 %v1925
      %v1965 = vunpack.c.l.b16 %v1926
      %v1966 = vunpack.c.l.b16 %v1927
      %v1967 = vunpack.c.l.b16 %v1928
      %v1968 = vunpack.c.l.b16 %v1929
      %v1969 = vunpack.c.l.b16 %v1930
      %v1970 = vunpack.c.l.b16 %v1931
      %v1971 = vpack.c.b16 %v1956, %v1955
      %v1972 = vpack.c.b16 %v1958, %v1957
      %v1973 = vpack.c.b16 %v1960, %v1959
      %v1974 = vpack.c.b16 %v1962, %v1961
      %v1975 = vpack.c.b16 %v1964, %v1963
      %v1976 = vpack.c.b16 %v1966, %v1965
      %v1977 = vpack.c.b16 %v1968, %v1967
      %v1978 = vpack.c.b16 %v1970, %v1969
      %1987 = vmatpush.bf16.msra.mxu0 %v1978
      %1988 = vmatpush.bf16.msra.mxu0 %v1977
      %1989 = vmatpush.bf16.msra.mxu0 %v1976
      %1990 = vmatpush.bf16.msra.mxu0 %v1975
      %1991 = vmatpush.bf16.msra.mxu0 %v1974
      %1992 = vmatpush.bf16.msra.mxu0 %v1973
      %1993 = vmatpush.bf16.msra.mxu0 %v1972
      %1994 = vmatpush.bf16.msra.mxu0 %v1971
      %1995 = vmatmul.bf16.gmra.mxu0 %v1937
      %v1996 = vpop.f32.mrf.mxu0
      %v1997 = vadd.f32 0.0, %v1996
      %v1998 = vpop.f32.mrf.mxu0
      %v1999 = vadd.f32 0.0, %v1998
      %2000 = vdwg.mxu0
      %v2001 = vadd.f32 %v1913, %v1997
      %v2002 = vadd.f32 %v1914, %v1999
      %v2003 = vadd.f32 %v2001, %v1163
      %v2004 = vadd.f32 %v2002, %v1163
      %v2005 = vmax.f32 %v2003, 0.0
      %v2006 = vmax.f32 %v2004, 0.0
      %v2007 = vpack.c.bf16 %v2005, %v2005
      %v2008 = vpack.c.bf16 %v2006, %v2006
      %s2009 = scalar_lea.vmem %s318, 8
      %2010 = vst [vmem:[%s2009] sm:$0xf] %v2007
      %2011 = vst [vmem:[%s2009 + $0x4] sm:$0xf] %v2008
      %v2012 = vld [vmem:[%s878] sm:$0xf]
      %v2013 = vld [vmem:[%s878 + $0x4] sm:$0xf]
      %v2014 = vld [vmem:[%s2] sm:$0xf]
      %v2015 = vld [vmem:[%s2 + $0x4] sm:$0xf]
      %v2016 = vld [vmem:[%s2 + $0x8] sm:$0xf]
      %v2017 = vld [vmem:[%s2 + $0xc] sm:$0xf]
      %v2018 = vld [vmem:[%s2 + $0x10] sm:$0xf]
      %v2019 = vld [vmem:[%s2 + $0x14] sm:$0xf]
      %v2020 = vld [vmem:[%s2 + $0x18] sm:$0xf]
      %v2021 = vld [vmem:[%s2 + $0x1c] sm:$0xf]
      %v2022 = vld [vmem:[%s2 + $0x20] sm:$0xf]
      %v2023 = vld [vmem:[%s2 + $0x24] sm:$0xf]
      %v2024 = vld [vmem:[%s2 + $0x28] sm:$0xf]
      %v2025 = vld [vmem:[%s2 + $0x2c] sm:$0xf]
      %v2026 = vld [vmem:[%s2 + $0x30] sm:$0xf]
      %v2027 = vld [vmem:[%s2 + $0x34] sm:$0xf]
      %v2028 = vld [vmem:[%s2 + $0x38] sm:$0xf]
      %v2029 = vld [vmem:[%s2 + $0x3c] sm:$0xf]
      %v2030 = vld [vmem:[%s878 + $0x8] sm:$0x1]
      %v2031 = vld [vmem:[%s340] sm:$0xf]
      %v2032 = vld [vmem:[%s340 + $0x4] sm:$0xf]
      %v2033 = vld [vmem:[%s340 + $0x8] sm:$0xf]
      %v2034 = vld [vmem:[%s340 + $0xc] sm:$0xf]
      %v2035 = vld [vmem:[%s340 + $0x10] sm:$0xf]
      %v2036 = vld [vmem:[%s340 + $0x14] sm:$0xf]
      %v2037 = vld [vmem:[%s340 + $0x18] sm:$0xf]
      %v2038 = vld [vmem:[%s340 + $0x1c] sm:$0xf]
      %v2039 = vld [vmem:[%s340 + $0x20] sm:$0xf]
      %v2040 = vld [vmem:[%s340 + $0x24] sm:$0xf]
      %v2041 = vld [vmem:[%s340 + $0x28] sm:$0xf]
      %v2042 = vld [vmem:[%s340 + $0x2c] sm:$0xf]
      %v2043 = vld [vmem:[%s340 + $0x30] sm:$0xf]
      %v2044 = vld [vmem:[%s340 + $0x34] sm:$0xf]
      %v2045 = vld [vmem:[%s340 + $0x38] sm:$0xf]
      %v2046 = vld [vmem:[%s340 + $0x3c] sm:$0xf]
      %v2050 = vunpack.c.l.b16 %v2012
      %v2051 = vunpack.c.l.b16 %v2013
      %v2052 = vunpack.c.l.b16 %v2030
      %v2053 = vpack.c.b16 %v2051, %v2050
      %v2054 = vpack.c.b16 %v2052, %v2052
      %v2056 = vshrl.u32 %v2053, 16
      %v2058 = vshll.u32 %v2053, 16
      %v2060 = vrot.slane %v2058, 1
      %v2061 = vor.u32 %v2056, %v2060
      %v2063 = vshll.u32 %v2054, 16
      %v2065 = vrot.slane %v2063, 1
      %v2066 = vsel %vm365, %v2061, %v2065
      %v2084 = vunpack.c.l.b16 %v2031
      %v2085 = vunpack.c.l.b16 %v2032
      %v2086 = vunpack.c.l.b16 %v2033
      %v2087 = vunpack.c.l.b16 %v2034
      %v2088 = vunpack.c.l.b16 %v2035
      %v2089 = vunpack.c.l.b16 %v2036
      %v2090 = vunpack.c.l.b16 %v2037
      %v2091 = vunpack.c.l.b16 %v2038
      %v2092 = vunpack.c.l.b16 %v2039
      %v2093 = vunpack.c.l.b16 %v2040
      %v2094 = vunpack.c.l.b16 %v2041
      %v2095 = vunpack.c.l.b16 %v2042
      %v2096 = vunpack.c.l.b16 %v2043
      %v2097 = vunpack.c.l.b16 %v2044
      %v2098 = vunpack.c.l.b16 %v2045
      %v2099 = vunpack.c.l.b16 %v2046
      %v2100 = vpack.c.b16 %v2085, %v2084
      %v2101 = vpack.c.b16 %v2087, %v2086
      %v2102 = vpack.c.b16 %v2089, %v2088
      %v2103 = vpack.c.b16 %v2091, %v2090
      %v2104 = vpack.c.b16 %v2093, %v2092
      %v2105 = vpack.c.b16 %v2095, %v2094
      %v2106 = vpack.c.b16 %v2097, %v2096
      %v2107 = vpack.c.b16 %v2099, %v2098
      %2116 = vmatpush.bf16.msra.mxu0 %v2107
      %2117 = vmatpush.bf16.msra.mxu0 %v2106
      %2118 = vmatpush.bf16.msra.mxu0 %v2105
      %2119 = vmatpush.bf16.msra.mxu0 %v2104
      %2120 = vmatpush.bf16.msra.mxu0 %v2103
      %2121 = vmatpush.bf16.msra.mxu0 %v2102
      %2122 = vmatpush.bf16.msra.mxu0 %v2101
      %2123 = vmatpush.bf16.msra.mxu0 %v2100
      %2124 = vmatmul.bf16.gmra.mxu0 %v2066
      %v2125 = vpop.f32.mrf.mxu0
      %v2126 = vadd.f32 0.0, %v2125
      %v2127 = vpop.f32.mrf.mxu0
      %v2128 = vadd.f32 0.0, %v2127
      %2129 = vdwg.mxu0
      %v2147 = vunpack.c.l.b16 %v2014
      %v2148 = vunpack.c.l.b16 %v2015
      %v2149 = vunpack.c.l.b16 %v2016
      %v2150 = vunpack.c.l.b16 %v2017
      %v2151 = vunpack.c.l.b16 %v2018
      %v2152 = vunpack.c.l.b16 %v2019
      %v2153 = vunpack.c.l.b16 %v2020
      %v2154 = vunpack.c.l.b16 %v2021
      %v2155 = vunpack.c.l.b16 %v2022
      %v2156 = vunpack.c.l.b16 %v2023
      %v2157 = vunpack.c.l.b16 %v2024
      %v2158 = vunpack.c.l.b16 %v2025
      %v2159 = vunpack.c.l.b16 %v2026
      %v2160 = vunpack.c.l.b16 %v2027
      %v2161 = vunpack.c.l.b16 %v2028
      %v2162 = vunpack.c.l.b16 %v2029
      %v2163 = vpack.c.b16 %v2148, %v2147
      %v2164 = vpack.c.b16 %v2150, %v2149
      %v2165 = vpack.c.b16 %v2152, %v2151
      %v2166 = vpack.c.b16 %v2154, %v2153
      %v2167 = vpack.c.b16 %v2156, %v2155
      %v2168 = vpack.c.b16 %v2158, %v2157
      %v2169 = vpack.c.b16 %v2160, %v2159
      %v2170 = vpack.c.b16 %v2162, %v2161
      %2179 = vmatpush.bf16.msra.mxu0 %v2170
      %2180 = vmatpush.bf16.msra.mxu0 %v2169
      %2181 = vmatpush.bf16.msra.mxu0 %v2168
      %2182 = vmatpush.bf16.msra.mxu0 %v2167
      %2183 = vmatpush.bf16.msra.mxu0 %v2166
      %2184 = vmatpush.bf16.msra.mxu0 %v2165
      %2185 = vmatpush.bf16.msra.mxu0 %v2164
      %2186 = vmatpush.bf16.msra.mxu0 %v2163
      %2187 = vmatmul.bf16.gmra.mxu0 %v2053
      %v2188 = vpop.f32.mrf.mxu0
      %v2189 = vadd.f32 %v2126, %v2188
      %v2190 = vpop.f32.mrf.mxu0
      %v2191 = vadd.f32 %v2128, %v2190
      %2192 = vdwg.mxu0
      %v2193 = vld [vmem:[%s878] sm:$0xe]
      %v2194 = vld [vmem:[%s505] sm:$0xf]
      %v2195 = vld [vmem:[%s505 + $0x4] sm:$0xf]
      %v2196 = vld [vmem:[%s505 + $0x8] sm:$0xf]
      %v2197 = vld [vmem:[%s505 + $0xc] sm:$0xf]
      %v2198 = vld [vmem:[%s505 + $0x10] sm:$0xf]
      %v2199 = vld [vmem:[%s505 + $0x14] sm:$0xf]
      %v2200 = vld [vmem:[%s505 + $0x18] sm:$0xf]
      %v2201 = vld [vmem:[%s505 + $0x1c] sm:$0xf]
      %v2202 = vld [vmem:[%s505 + $0x20] sm:$0xf]
      %v2203 = vld [vmem:[%s505 + $0x24] sm:$0xf]
      %v2204 = vld [vmem:[%s505 + $0x28] sm:$0xf]
      %v2205 = vld [vmem:[%s505 + $0x2c] sm:$0xf]
      %v2206 = vld [vmem:[%s505 + $0x30] sm:$0xf]
      %v2207 = vld [vmem:[%s505 + $0x34] sm:$0xf]
      %v2208 = vld [vmem:[%s505 + $0x38] sm:$0xf]
      %v2209 = vld [vmem:[%s505 + $0x3c] sm:$0xf]
      %v2211 = vunpack.c.l.b16 %v2193
      %v2212 = vpack.c.b16 %v2051, %v2211
      %v2213 = vrot.slane %v2212, 1
      %v2214 = vrot.slane %v2054, 1
      %v2215 = vsel %vm525, %v2213, %v2214
      %v2233 = vunpack.c.l.b16 %v2194
      %v2234 = vunpack.c.l.b16 %v2195
      %v2235 = vunpack.c.l.b16 %v2196
      %v2236 = vunpack.c.l.b16 %v2197
      %v2237 = vunpack.c.l.b16 %v2198
      %v2238 = vunpack.c.l.b16 %v2199
      %v2239 = vunpack.c.l.b16 %v2200
      %v2240 = vunpack.c.l.b16 %v2201
      %v2241 = vunpack.c.l.b16 %v2202
      %v2242 = vunpack.c.l.b16 %v2203
      %v2243 = vunpack.c.l.b16 %v2204
      %v2244 = vunpack.c.l.b16 %v2205
      %v2245 = vunpack.c.l.b16 %v2206
      %v2246 = vunpack.c.l.b16 %v2207
      %v2247 = vunpack.c.l.b16 %v2208
      %v2248 = vunpack.c.l.b16 %v2209
      %v2249 = vpack.c.b16 %v2234, %v2233
      %v2250 = vpack.c.b16 %v2236, %v2235
      %v2251 = vpack.c.b16 %v2238, %v2237
      %v2252 = vpack.c.b16 %v2240, %v2239
      %v2253 = vpack.c.b16 %v2242, %v2241
      %v2254 = vpack.c.b16 %v2244, %v2243
      %v2255 = vpack.c.b16 %v2246, %v2245
      %v2256 = vpack.c.b16 %v2248, %v2247
      %2265 = vmatpush.bf16.msra.mxu0 %v2256
      %2266 = vmatpush.bf16.msra.mxu0 %v2255
      %2267 = vmatpush.bf16.msra.mxu0 %v2254
      %2268 = vmatpush.bf16.msra.mxu0 %v2253
      %2269 = vmatpush.bf16.msra.mxu0 %v2252
      %2270 = vmatpush.bf16.msra.mxu0 %v2251
      %2271 = vmatpush.bf16.msra.mxu0 %v2250
      %2272 = vmatpush.bf16.msra.mxu0 %v2249
      %2273 = vmatmul.bf16.gmra.mxu0 %v2215
      %v2274 = vpop.f32.mrf.mxu0
      %v2275 = vadd.f32 0.0, %v2274
      %v2276 = vpop.f32.mrf.mxu0
      %v2277 = vadd.f32 0.0, %v2276
      %2278 = vdwg.mxu0
      %v2279 = vadd.f32 %v2189, %v2275
      %v2280 = vadd.f32 %v2191, %v2277
      %v2281 = vld [vmem:[%s1722] sm:$0xf]
      %v2282 = vld [vmem:[%s1722 + $0x4] sm:$0xf]
      %v2283 = vld [vmem:[%s597] sm:$0xf]
      %v2284 = vld [vmem:[%s597 + $0x4] sm:$0xf]
      %v2285 = vld [vmem:[%s597 + $0x8] sm:$0xf]
      %v2286 = vld [vmem:[%s597 + $0xc] sm:$0xf]
      %v2287 = vld [vmem:[%s597 + $0x10] sm:$0xf]
      %v2288 = vld [vmem:[%s597 + $0x14] sm:$0xf]
      %v2289 = vld [vmem:[%s597 + $0x18] sm:$0xf]
      %v2290 = vld [vmem:[%s597 + $0x1c] sm:$0xf]
      %v2291 = vld [vmem:[%s597 + $0x20] sm:$0xf]
      %v2292 = vld [vmem:[%s597 + $0x24] sm:$0xf]
      %v2293 = vld [vmem:[%s597 + $0x28] sm:$0xf]
      %v2294 = vld [vmem:[%s597 + $0x2c] sm:$0xf]
      %v2295 = vld [vmem:[%s597 + $0x30] sm:$0xf]
      %v2296 = vld [vmem:[%s597 + $0x34] sm:$0xf]
      %v2297 = vld [vmem:[%s597 + $0x38] sm:$0xf]
      %v2298 = vld [vmem:[%s597 + $0x3c] sm:$0xf]
      %v2301 = vunpack.c.l.b16 %v2281
      %v2302 = vunpack.c.l.b16 %v2282
      %v2303 = vpack.c.b16 %v2302, %v2301
      %v2321 = vunpack.c.l.b16 %v2283
      %v2322 = vunpack.c.l.b16 %v2284
      %v2323 = vunpack.c.l.b16 %v2285
      %v2324 = vunpack.c.l.b16 %v2286
      %v2325 = vunpack.c.l.b16 %v2287
      %v2326 = vunpack.c.l.b16 %v2288
      %v2327 = vunpack.c.l.b16 %v2289
      %v2328 = vunpack.c.l.b16 %v2290
      %v2329 = vunpack.c.l.b16 %v2291
      %v2330 = vunpack.c.l.b16 %v2292
      %v2331 = vunpack.c.l.b16 %v2293
      %v2332 = vunpack.c.l.b16 %v2294
      %v2333 = vunpack.c.l.b16 %v2295
      %v2334 = vunpack.c.l.b16 %v2296
      %v2335 = vunpack.c.l.b16 %v2297
      %v2336 = vunpack.c.l.b16 %v2298
      %v2337 = vpack.c.b16 %v2322, %v2321
      %v2338 = vpack.c.b16 %v2324, %v2323
      %v2339 = vpack.c.b16 %v2326, %v2325
      %v2340 = vpack.c.b16 %v2328, %v2327
      %v2341 = vpack.c.b16 %v2330, %v2329
      %v2342 = vpack.c.b16 %v2332, %v2331
      %v2343 = vpack.c.b16 %v2334, %v2333
      %v2344 = vpack.c.b16 %v2336, %v2335
      %2353 = vmatpush.bf16.msra.mxu0 %v2344
      %2354 = vmatpush.bf16.msra.mxu0 %v2343
      %2355 = vmatpush.bf16.msra.mxu0 %v2342
      %2356 = vmatpush.bf16.msra.mxu0 %v2341
      %2357 = vmatpush.bf16.msra.mxu0 %v2340
      %2358 = vmatpush.bf16.msra.mxu0 %v2339
      %2359 = vmatpush.bf16.msra.mxu0 %v2338
      %2360 = vmatpush.bf16.msra.mxu0 %v2337
      %2361 = vmatmul.bf16.gmra.mxu0 %v2303
      %v2362 = vpop.f32.mrf.mxu0
      %v2363 = vadd.f32 0.0, %v2362
      %v2364 = vpop.f32.mrf.mxu0
      %v2365 = vadd.f32 0.0, %v2364
      %2366 = vdwg.mxu0
      %v2367 = vadd.f32 %v2279, %v2363
      %v2368 = vadd.f32 %v2280, %v2365
      %v2369 = vld [vmem:[%s1722] sm:$0xf]
      %v2370 = vld [vmem:[%s1722 + $0x4] sm:$0xf]
      %v2371 = vld [vmem:[%s1722 + $0x8] sm:$0x1]
      %v2372 = vld [vmem:[%s687] sm:$0xf]
      %v2373 = vld [vmem:[%s687 + $0x4] sm:$0xf]
      %v2374 = vld [vmem:[%s687 + $0x8] sm:$0xf]
      %v2375 = vld [vmem:[%s687 + $0xc] sm:$0xf]
      %v2376 = vld [vmem:[%s687 + $0x10] sm:$0xf]
      %v2377 = vld [vmem:[%s687 + $0x14] sm:$0xf]
      %v2378 = vld [vmem:[%s687 + $0x18] sm:$0xf]
      %v2379 = vld [vmem:[%s687 + $0x1c] sm:$0xf]
      %v2380 = vld [vmem:[%s687 + $0x20] sm:$0xf]
      %v2381 = vld [vmem:[%s687 + $0x24] sm:$0xf]
      %v2382 = vld [vmem:[%s687 + $0x28] sm:$0xf]
      %v2383 = vld [vmem:[%s687 + $0x2c] sm:$0xf]
      %v2384 = vld [vmem:[%s687 + $0x30] sm:$0xf]
      %v2385 = vld [vmem:[%s687 + $0x34] sm:$0xf]
      %v2386 = vld [vmem:[%s687 + $0x38] sm:$0xf]
      %v2387 = vld [vmem:[%s687 + $0x3c] sm:$0xf]
      %v2391 = vunpack.c.l.b16 %v2369
      %v2392 = vunpack.c.l.b16 %v2370
      %v2393 = vunpack.c.l.b16 %v2371
      %v2394 = vpack.c.b16 %v2392, %v2391
      %v2395 = vpack.c.b16 %v2393, %v2393
      %v2397 = vshrl.u32 %v2394, 16
      %v2399 = vshll.u32 %v2394, 16
      %v2401 = vrot.slane %v2399, 1
      %v2402 = vor.u32 %v2397, %v2401
      %v2404 = vshll.u32 %v2395, 16
      %v2406 = vrot.slane %v2404, 1
      %v2407 = vsel %vm365, %v2402, %v2406
      %v2425 = vunpack.c.l.b16 %v2372
      %v2426 = vunpack.c.l.b16 %v2373
      %v2427 = vunpack.c.l.b16 %v2374
      %v2428 = vunpack.c.l.b16 %v2375
      %v2429 = vunpack.c.l.b16 %v2376
      %v2430 = vunpack.c.l.b16 %v2377
      %v2431 = vunpack.c.l.b16 %v2378
      %v2432 = vunpack.c.l.b16 %v2379
      %v2433 = vunpack.c.l.b16 %v2380
      %v2434 = vunpack.c.l.b16 %v2381
      %v2435 = vunpack.c.l.b16 %v2382
      %v2436 = vunpack.c.l.b16 %v2383
      %v2437 = vunpack.c.l.b16 %v2384
      %v2438 = vunpack.c.l.b16 %v2385
      %v2439 = vunpack.c.l.b16 %v2386
      %v2440 = vunpack.c.l.b16 %v2387
      %v2441 = vpack.c.b16 %v2426, %v2425
      %v2442 = vpack.c.b16 %v2428, %v2427
      %v2443 = vpack.c.b16 %v2430, %v2429
      %v2444 = vpack.c.b16 %v2432, %v2431
      %v2445 = vpack.c.b16 %v2434, %v2433
      %v2446 = vpack.c.b16 %v2436, %v2435
      %v2447 = vpack.c.b16 %v2438, %v2437
      %v2448 = vpack.c.b16 %v2440, %v2439
      %2457 = vmatpush.bf16.msra.mxu0 %v2448
      %2458 = vmatpush.bf16.msra.mxu0 %v2447
      %2459 = vmatpush.bf16.msra.mxu0 %v2446
      %2460 = vmatpush.bf16.msra.mxu0 %v2445
      %2461 = vmatpush.bf16.msra.mxu0 %v2444
      %2462 = vmatpush.bf16.msra.mxu0 %v2443
      %2463 = vmatpush.bf16.msra.mxu0 %v2442
      %2464 = vmatpush.bf16.msra.mxu0 %v2441
      %2465 = vmatmul.bf16.gmra.mxu0 %v2407
      %v2466 = vpop.f32.mrf.mxu0
      %v2467 = vadd.f32 0.0, %v2466
      %v2468 = vpop.f32.mrf.mxu0
      %v2469 = vadd.f32 0.0, %v2468
      %2470 = vdwg.mxu0
      %v2471 = vadd.f32 %v2367, %v2467
      %v2472 = vadd.f32 %v2368, %v2469
      %v2473 = vld [vmem:[%s1722] sm:$0xe]
      %v2474 = vld [vmem:[%s790] sm:$0xf]
      %v2475 = vld [vmem:[%s790 + $0x4] sm:$0xf]
      %v2476 = vld [vmem:[%s790 + $0x8] sm:$0xf]
      %v2477 = vld [vmem:[%s790 + $0xc] sm:$0xf]
      %v2478 = vld [vmem:[%s790 + $0x10] sm:$0xf]
      %v2479 = vld [vmem:[%s790 + $0x14] sm:$0xf]
      %v2480 = vld [vmem:[%s790 + $0x18] sm:$0xf]
      %v2481 = vld [vmem:[%s790 + $0x1c] sm:$0xf]
      %v2482 = vld [vmem:[%s790 + $0x20] sm:$0xf]
      %v2483 = vld [vmem:[%s790 + $0x24] sm:$0xf]
      %v2484 = vld [vmem:[%s790 + $0x28] sm:$0xf]
      %v2485 = vld [vmem:[%s790 + $0x2c] sm:$0xf]
      %v2486 = vld [vmem:[%s790 + $0x30] sm:$0xf]
      %v2487 = vld [vmem:[%s790 + $0x34] sm:$0xf]
      %v2488 = vld [vmem:[%s790 + $0x38] sm:$0xf]
      %v2489 = vld [vmem:[%s790 + $0x3c] sm:$0xf]
      %v2491 = vunpack.c.l.b16 %v2473
      %v2492 = vpack.c.b16 %v2392, %v2491
      %v2493 = vrot.slane %v2492, 1
      %v2494 = vrot.slane %v2395, 1
      %v2495 = vsel %vm525, %v2493, %v2494
      %v2513 = vunpack.c.l.b16 %v2474
      %v2514 = vunpack.c.l.b16 %v2475
      %v2515 = vunpack.c.l.b16 %v2476
      %v2516 = vunpack.c.l.b16 %v2477
      %v2517 = vunpack.c.l.b16 %v2478
      %v2518 = vunpack.c.l.b16 %v2479
      %v2519 = vunpack.c.l.b16 %v2480
      %v2520 = vunpack.c.l.b16 %v2481
      %v2521 = vunpack.c.l.b16 %v2482
      %v2522 = vunpack.c.l.b16 %v2483
      %v2523 = vunpack.c.l.b16 %v2484
      %v2524 = vunpack.c.l.b16 %v2485
      %v2525 = vunpack.c.l.b16 %v2486
      %v2526 = vunpack.c.l.b16 %v2487
      %v2527 = vunpack.c.l.b16 %v2488
      %v2528 = vunpack.c.l.b16 %v2489
      %v2529 = vpack.c.b16 %v2514, %v2513
      %v2530 = vpack.c.b16 %v2516, %v2515
      %v2531 = vpack.c.b16 %v2518, %v2517
      %v2532 = vpack.c.b16 %v2520, %v2519
      %v2533 = vpack.c.b16 %v2522, %v2521
      %v2534 = vpack.c.b16 %v2524, %v2523
      %v2535 = vpack.c.b16 %v2526, %v2525
      %v2536 = vpack.c.b16 %v2528, %v2527
      %2545 = vmatpush.bf16.msra.mxu0 %v2536
      %2546 = vmatpush.bf16.msra.mxu0 %v2535
      %2547 = vmatpush.bf16.msra.mxu0 %v2534
      %2548 = vmatpush.bf16.msra.mxu0 %v2533
      %2549 = vmatpush.bf16.msra.mxu0 %v2532
      %2550 = vmatpush.bf16.msra.mxu0 %v2531
      %2551 = vmatpush.bf16.msra.mxu0 %v2530
      %2552 = vmatpush.bf16.msra.mxu0 %v2529
      %2553 = vmatmul.bf16.gmra.mxu0 %v2495
      %v2554 = vpop.f32.mrf.mxu0
      %v2555 = vadd.f32 0.0, %v2554
      %v2556 = vpop.f32.mrf.mxu0
      %v2557 = vadd.f32 0.0, %v2556
      %2558 = vdwg.mxu0
      %v2559 = vadd.f32 %v2471, %v2555
      %v2560 = vadd.f32 %v2472, %v2557
      %s2561 = scalar_lea.vmem %s287, 48
      %v2562 = vld [vmem:[%s2561] sm:$0xf]
      %v2563 = vld [vmem:[%s2561 + $0x4] sm:$0xf]
      %v2564 = vld [vmem:[%s881] sm:$0xf]
      %v2565 = vld [vmem:[%s881 + $0x4] sm:$0xf]
      %v2566 = vld [vmem:[%s881 + $0x8] sm:$0xf]
      %v2567 = vld [vmem:[%s881 + $0xc] sm:$0xf]
      %v2568 = vld [vmem:[%s881 + $0x10] sm:$0xf]
      %v2569 = vld [vmem:[%s881 + $0x14] sm:$0xf]
      %v2570 = vld [vmem:[%s881 + $0x18] sm:$0xf]
      %v2571 = vld [vmem:[%s881 + $0x1c] sm:$0xf]
      %v2572 = vld [vmem:[%s881 + $0x20] sm:$0xf]
      %v2573 = vld [vmem:[%s881 + $0x24] sm:$0xf]
      %v2574 = vld [vmem:[%s881 + $0x28] sm:$0xf]
      %v2575 = vld [vmem:[%s881 + $0x2c] sm:$0xf]
      %v2576 = vld [vmem:[%s881 + $0x30] sm:$0xf]
      %v2577 = vld [vmem:[%s881 + $0x34] sm:$0xf]
      %v2578 = vld [vmem:[%s881 + $0x38] sm:$0xf]
      %v2579 = vld [vmem:[%s881 + $0x3c] sm:$0xf]
      %v2582 = vunpack.c.l.b16 %v2562
      %v2583 = vunpack.c.l.b16 %v2563
      %v2584 = vpack.c.b16 %v2583, %v2582
      %v2602 = vunpack.c.l.b16 %v2564
      %v2603 = vunpack.c.l.b16 %v2565
      %v2604 = vunpack.c.l.b16 %v2566
      %v2605 = vunpack.c.l.b16 %v2567
      %v2606 = vunpack.c.l.b16 %v2568
      %v2607 = vunpack.c.l.b16 %v2569
      %v2608 = vunpack.c.l.b16 %v2570
      %v2609 = vunpack.c.l.b16 %v2571
      %v2610 = vunpack.c.l.b16 %v2572
      %v2611 = vunpack.c.l.b16 %v2573
      %v2612 = vunpack.c.l.b16 %v2574
      %v2613 = vunpack.c.l.b16 %v2575
      %v2614 = vunpack.c.l.b16 %v2576
      %v2615 = vunpack.c.l.b16 %v2577
      %v2616 = vunpack.c.l.b16 %v2578
      %v2617 = vunpack.c.l.b16 %v2579
      %v2618 = vpack.c.b16 %v2603, %v2602
      %v2619 = vpack.c.b16 %v2605, %v2604
      %v2620 = vpack.c.b16 %v2607, %v2606
      %v2621 = vpack.c.b16 %v2609, %v2608
      %v2622 = vpack.c.b16 %v2611, %v2610
      %v2623 = vpack.c.b16 %v2613, %v2612
      %v2624 = vpack.c.b16 %v2615, %v2614
      %v2625 = vpack.c.b16 %v2617, %v2616
      %2634 = vmatpush.bf16.msra.mxu0 %v2625
      %2635 = vmatpush.bf16.msra.mxu0 %v2624
      %2636 = vmatpush.bf16.msra.mxu0 %v2623
      %2637 = vmatpush.bf16.msra.mxu0 %v2622
      %2638 = vmatpush.bf16.msra.mxu0 %v2621
      %2639 = vmatpush.bf16.msra.mxu0 %v2620
      %2640 = vmatpush.bf16.msra.mxu0 %v2619
      %2641 = vmatpush.bf16.msra.mxu0 %v2618
      %2642 = vmatmul.bf16.gmra.mxu0 %v2584
      %v2643 = vpop.f32.mrf.mxu0
      %v2644 = vadd.f32 0.0, %v2643
      %v2645 = vpop.f32.mrf.mxu0
      %v2646 = vadd.f32 0.0, %v2645
      %2647 = vdwg.mxu0
      %v2648 = vadd.f32 %v2559, %v2644
      %v2649 = vadd.f32 %v2560, %v2646
      %v2650 = vld [vmem:[%s2561] sm:$0xf]
      %v2651 = vld [vmem:[%s2561 + $0x4] sm:$0xf]
      %v2652 = vld [vmem:[%s2561 + $0x8] sm:$0x1]
      %v2653 = vld [vmem:[%s971] sm:$0xf]
      %v2654 = vld [vmem:[%s971 + $0x4] sm:$0xf]
      %v2655 = vld [vmem:[%s971 + $0x8] sm:$0xf]
      %v2656 = vld [vmem:[%s971 + $0xc] sm:$0xf]
      %v2657 = vld [vmem:[%s971 + $0x10] sm:$0xf]
      %v2658 = vld [vmem:[%s971 + $0x14] sm:$0xf]
      %v2659 = vld [vmem:[%s971 + $0x18] sm:$0xf]
      %v2660 = vld [vmem:[%s971 + $0x1c] sm:$0xf]
      %v2661 = vld [vmem:[%s971 + $0x20] sm:$0xf]
      %v2662 = vld [vmem:[%s971 + $0x24] sm:$0xf]
      %v2663 = vld [vmem:[%s971 + $0x28] sm:$0xf]
      %v2664 = vld [vmem:[%s971 + $0x2c] sm:$0xf]
      %v2665 = vld [vmem:[%s971 + $0x30] sm:$0xf]
      %v2666 = vld [vmem:[%s971 + $0x34] sm:$0xf]
      %v2667 = vld [vmem:[%s971 + $0x38] sm:$0xf]
      %v2668 = vld [vmem:[%s971 + $0x3c] sm:$0xf]
      %v2672 = vunpack.c.l.b16 %v2650
      %v2673 = vunpack.c.l.b16 %v2651
      %v2674 = vunpack.c.l.b16 %v2652
      %v2675 = vpack.c.b16 %v2673, %v2672
      %v2676 = vpack.c.b16 %v2674, %v2674
      %v2678 = vshrl.u32 %v2675, 16
      %v2680 = vshll.u32 %v2675, 16
      %v2682 = vrot.slane %v2680, 1
      %v2683 = vor.u32 %v2678, %v2682
      %v2685 = vshll.u32 %v2676, 16
      %v2687 = vrot.slane %v2685, 1
      %v2688 = vsel %vm365, %v2683, %v2687
      %v2706 = vunpack.c.l.b16 %v2653
      %v2707 = vunpack.c.l.b16 %v2654
      %v2708 = vunpack.c.l.b16 %v2655
      %v2709 = vunpack.c.l.b16 %v2656
      %v2710 = vunpack.c.l.b16 %v2657
      %v2711 = vunpack.c.l.b16 %v2658
      %v2712 = vunpack.c.l.b16 %v2659
      %v2713 = vunpack.c.l.b16 %v2660
      %v2714 = vunpack.c.l.b16 %v2661
      %v2715 = vunpack.c.l.b16 %v2662
      %v2716 = vunpack.c.l.b16 %v2663
      %v2717 = vunpack.c.l.b16 %v2664
      %v2718 = vunpack.c.l.b16 %v2665
      %v2719 = vunpack.c.l.b16 %v2666
      %v2720 = vunpack.c.l.b16 %v2667
      %v2721 = vunpack.c.l.b16 %v2668
      %v2722 = vpack.c.b16 %v2707, %v2706
      %v2723 = vpack.c.b16 %v2709, %v2708
      %v2724 = vpack.c.b16 %v2711, %v2710
      %v2725 = vpack.c.b16 %v2713, %v2712
      %v2726 = vpack.c.b16 %v2715, %v2714
      %v2727 = vpack.c.b16 %v2717, %v2716
      %v2728 = vpack.c.b16 %v2719, %v2718
      %v2729 = vpack.c.b16 %v2721, %v2720
      %2738 = vmatpush.bf16.msra.mxu0 %v2729
      %2739 = vmatpush.bf16.msra.mxu0 %v2728
      %2740 = vmatpush.bf16.msra.mxu0 %v2727
      %2741 = vmatpush.bf16.msra.mxu0 %v2726
      %2742 = vmatpush.bf16.msra.mxu0 %v2725
      %2743 = vmatpush.bf16.msra.mxu0 %v2724
      %2744 = vmatpush.bf16.msra.mxu0 %v2723
      %2745 = vmatpush.bf16.msra.mxu0 %v2722
      %2746 = vmatmul.bf16.gmra.mxu0 %v2688
      %v2747 = vpop.f32.mrf.mxu0
      %v2748 = vadd.f32 0.0, %v2747
      %v2749 = vpop.f32.mrf.mxu0
      %v2750 = vadd.f32 0.0, %v2749
      %2751 = vdwg.mxu0
      %v2752 = vadd.f32 %v2648, %v2748
      %v2753 = vadd.f32 %v2649, %v2750
      %v2754 = vld [vmem:[%s2561] sm:$0xe]
      %v2755 = vld [vmem:[%s1074] sm:$0xf]
      %v2756 = vld [vmem:[%s1074 + $0x4] sm:$0xf]
      %v2757 = vld [vmem:[%s1074 + $0x8] sm:$0xf]
      %v2758 = vld [vmem:[%s1074 + $0xc] sm:$0xf]
      %v2759 = vld [vmem:[%s1074 + $0x10] sm:$0xf]
      %v2760 = vld [vmem:[%s1074 + $0x14] sm:$0xf]
      %v2761 = vld [vmem:[%s1074 + $0x18] sm:$0xf]
      %v2762 = vld [vmem:[%s1074 + $0x1c] sm:$0xf]
      %v2763 = vld [vmem:[%s1074 + $0x20] sm:$0xf]
      %v2764 = vld [vmem:[%s1074 + $0x24] sm:$0xf]
      %v2765 = vld [vmem:[%s1074 + $0x28] sm:$0xf]
      %v2766 = vld [vmem:[%s1074 + $0x2c] sm:$0xf]
      %v2767 = vld [vmem:[%s1074 + $0x30] sm:$0xf]
      %v2768 = vld [vmem:[%s1074 + $0x34] sm:$0xf]
      %v2769 = vld [vmem:[%s1074 + $0x38] sm:$0xf]
      %v2770 = vld [vmem:[%s1074 + $0x3c] sm:$0xf]
      %v2772 = vunpack.c.l.b16 %v2754
      %v2773 = vpack.c.b16 %v2673, %v2772
      %v2774 = vrot.slane %v2773, 1
      %v2775 = vrot.slane %v2676, 1
      %v2776 = vsel %vm525, %v2774, %v2775
      %v2794 = vunpack.c.l.b16 %v2755
      %v2795 = vunpack.c.l.b16 %v2756
      %v2796 = vunpack.c.l.b16 %v2757
      %v2797 = vunpack.c.l.b16 %v2758
      %v2798 = vunpack.c.l.b16 %v2759
      %v2799 = vunpack.c.l.b16 %v2760
      %v2800 = vunpack.c.l.b16 %v2761
      %v2801 = vunpack.c.l.b16 %v2762
      %v2802 = vunpack.c.l.b16 %v2763
      %v2803 = vunpack.c.l.b16 %v2764
      %v2804 = vunpack.c.l.b16 %v2765
      %v2805 = vunpack.c.l.b16 %v2766
      %v2806 = vunpack.c.l.b16 %v2767
      %v2807 = vunpack.c.l.b16 %v2768
      %v2808 = vunpack.c.l.b16 %v2769
      %v2809 = vunpack.c.l.b16 %v2770
      %v2810 = vpack.c.b16 %v2795, %v2794
      %v2811 = vpack.c.b16 %v2797, %v2796
      %v2812 = vpack.c.b16 %v2799, %v2798
      %v2813 = vpack.c.b16 %v2801, %v2800
      %v2814 = vpack.c.b16 %v2803, %v2802
      %v2815 = vpack.c.b16 %v2805, %v2804
      %v2816 = vpack.c.b16 %v2807, %v2806
      %v2817 = vpack.c.b16 %v2809, %v2808
      %2826 = vmatpush.bf16.msra.mxu0 %v2817
      %2827 = vmatpush.bf16.msra.mxu0 %v2816
      %2828 = vmatpush.bf16.msra.mxu0 %v2815
      %2829 = vmatpush.bf16.msra.mxu0 %v2814
      %2830 = vmatpush.bf16.msra.mxu0 %v2813
      %2831 = vmatpush.bf16.msra.mxu0 %v2812
      %2832 = vmatpush.bf16.msra.mxu0 %v2811
      %2833 = vmatpush.bf16.msra.mxu0 %v2810
      %2834 = vmatmul.bf16.gmra.mxu0 %v2776
      %v2835 = vpop.f32.mrf.mxu0
      %v2836 = vadd.f32 0.0, %v2835
      %v2837 = vpop.f32.mrf.mxu0
      %v2838 = vadd.f32 0.0, %v2837
      %2839 = vdwg.mxu0
      %v2840 = vadd.f32 %v2752, %v2836
      %v2841 = vadd.f32 %v2753, %v2838
      %v2842 = vadd.f32 %v2840, %v1163
      %v2843 = vadd.f32 %v2841, %v1163
      %v2844 = vmax.f32 %v2842, 0.0
      %v2845 = vmax.f32 %v2843, 0.0
      %v2846 = vpack.c.bf16 %v2844, %v2844
      %v2847 = vpack.c.bf16 %v2845, %v2845
      %s2848 = scalar_lea.vmem %s318, 16
      %2849 = vst [vmem:[%s2848] sm:$0xf] %v2846
      %2850 = vst [vmem:[%s2848 + $0x4] sm:$0xf] %v2847
      %v2851 = vld [vmem:[%s1722] sm:$0xf]
      %v2852 = vld [vmem:[%s1722 + $0x4] sm:$0xf]
      %v2853 = vld [vmem:[%s2] sm:$0xf]
      %v2854 = vld [vmem:[%s2 + $0x4] sm:$0xf]
      %v2855 = vld [vmem:[%s2 + $0x8] sm:$0xf]
      %v2856 = vld [vmem:[%s2 + $0xc] sm:$0xf]
      %v2857 = vld [vmem:[%s2 + $0x10] sm:$0xf]
      %v2858 = vld [vmem:[%s2 + $0x14] sm:$0xf]
      %v2859 = vld [vmem:[%s2 + $0x18] sm:$0xf]
      %v2860 = vld [vmem:[%s2 + $0x1c] sm:$0xf]
      %v2861 = vld [vmem:[%s2 + $0x20] sm:$0xf]
      %v2862 = vld [vmem:[%s2 + $0x24] sm:$0xf]
      %v2863 = vld [vmem:[%s2 + $0x28] sm:$0xf]
      %v2864 = vld [vmem:[%s2 + $0x2c] sm:$0xf]
      %v2865 = vld [vmem:[%s2 + $0x30] sm:$0xf]
      %v2866 = vld [vmem:[%s2 + $0x34] sm:$0xf]
      %v2867 = vld [vmem:[%s2 + $0x38] sm:$0xf]
      %v2868 = vld [vmem:[%s2 + $0x3c] sm:$0xf]
      %v2869 = vld [vmem:[%s1722 + $0x8] sm:$0x1]
      %v2870 = vld [vmem:[%s340] sm:$0xf]
      %v2871 = vld [vmem:[%s340 + $0x4] sm:$0xf]
      %v2872 = vld [vmem:[%s340 + $0x8] sm:$0xf]
      %v2873 = vld [vmem:[%s340 + $0xc] sm:$0xf]
      %v2874 = vld [vmem:[%s340 + $0x10] sm:$0xf]
      %v2875 = vld [vmem:[%s340 + $0x14] sm:$0xf]
      %v2876 = vld [vmem:[%s340 + $0x18] sm:$0xf]
      %v2877 = vld [vmem:[%s340 + $0x1c] sm:$0xf]
      %v2878 = vld [vmem:[%s340 + $0x20] sm:$0xf]
      %v2879 = vld [vmem:[%s340 + $0x24] sm:$0xf]
      %v2880 = vld [vmem:[%s340 + $0x28] sm:$0xf]
      %v2881 = vld [vmem:[%s340 + $0x2c] sm:$0xf]
      %v2882 = vld [vmem:[%s340 + $0x30] sm:$0xf]
      %v2883 = vld [vmem:[%s340 + $0x34] sm:$0xf]
      %v2884 = vld [vmem:[%s340 + $0x38] sm:$0xf]
      %v2885 = vld [vmem:[%s340 + $0x3c] sm:$0xf]
      %v2889 = vunpack.c.l.b16 %v2851
      %v2890 = vunpack.c.l.b16 %v2852
      %v2891 = vunpack.c.l.b16 %v2869
      %v2892 = vpack.c.b16 %v2890, %v2889
      %v2893 = vpack.c.b16 %v2891, %v2891
      %v2895 = vshrl.u32 %v2892, 16
      %v2897 = vshll.u32 %v2892, 16
      %v2899 = vrot.slane %v2897, 1
      %v2900 = vor.u32 %v2895, %v2899
      %v2902 = vshll.u32 %v2893, 16
      %v2904 = vrot.slane %v2902, 1
      %v2905 = vsel %vm365, %v2900, %v2904
      %v2923 = vunpack.c.l.b16 %v2870
      %v2924 = vunpack.c.l.b16 %v2871
      %v2925 = vunpack.c.l.b16 %v2872
      %v2926 = vunpack.c.l.b16 %v2873
      %v2927 = vunpack.c.l.b16 %v2874
      %v2928 = vunpack.c.l.b16 %v2875
      %v2929 = vunpack.c.l.b16 %v2876
      %v2930 = vunpack.c.l.b16 %v2877
      %v2931 = vunpack.c.l.b16 %v2878
      %v2932 = vunpack.c.l.b16 %v2879
      %v2933 = vunpack.c.l.b16 %v2880
      %v2934 = vunpack.c.l.b16 %v2881
      %v2935 = vunpack.c.l.b16 %v2882
      %v2936 = vunpack.c.l.b16 %v2883
      %v2937 = vunpack.c.l.b16 %v2884
      %v2938 = vunpack.c.l.b16 %v2885
      %v2939 = vpack.c.b16 %v2924, %v2923
      %v2940 = vpack.c.b16 %v2926, %v2925
      %v2941 = vpack.c.b16 %v2928, %v2927
      %v2942 = vpack.c.b16 %v2930, %v2929
      %v2943 = vpack.c.b16 %v2932, %v2931
      %v2944 = vpack.c.b16 %v2934, %v2933
      %v2945 = vpack.c.b16 %v2936, %v2935
      %v2946 = vpack.c.b16 %v2938, %v2937
      %2955 = vmatpush.bf16.msra.mxu0 %v2946
      %2956 = vmatpush.bf16.msra.mxu0 %v2945
      %2957 = vmatpush.bf16.msra.mxu0 %v2944
      %2958 = vmatpush.bf16.msra.mxu0 %v2943
      %2959 = vmatpush.bf16.msra.mxu0 %v2942
      %2960 = vmatpush.bf16.msra.mxu0 %v2941
      %2961 = vmatpush.bf16.msra.mxu0 %v2940
      %2962 = vmatpush.bf16.msra.mxu0 %v2939
      %2963 = vmatmul.bf16.gmra.mxu0 %v2905
      %v2964 = vpop.f32.mrf.mxu0
      %v2965 = vadd.f32 0.0, %v2964
      %v2966 = vpop.f32.mrf.mxu0
      %v2967 = vadd.f32 0.0, %v2966
      %2968 = vdwg.mxu0
      %v2986 = vunpack.c.l.b16 %v2853
      %v2987 = vunpack.c.l.b16 %v2854
      %v2988 = vunpack.c.l.b16 %v2855
      %v2989 = vunpack.c.l.b16 %v2856
      %v2990 = vunpack.c.l.b16 %v2857
      %v2991 = vunpack.c.l.b16 %v2858
      %v2992 = vunpack.c.l.b16 %v2859
      %v2993 = vunpack.c.l.b16 %v2860
      %v2994 = vunpack.c.l.b16 %v2861
      %v2995 = vunpack.c.l.b16 %v2862
      %v2996 = vunpack.c.l.b16 %v2863
      %v2997 = vunpack.c.l.b16 %v2864
      %v2998 = vunpack.c.l.b16 %v2865
      %v2999 = vunpack.c.l.b16 %v2866
      %v3000 = vunpack.c.l.b16 %v2867
      %v3001 = vunpack.c.l.b16 %v2868
      %v3002 = vpack.c.b16 %v2987, %v2986
      %v3003 = vpack.c.b16 %v2989, %v2988
      %v3004 = vpack.c.b16 %v2991, %v2990
      %v3005 = vpack.c.b16 %v2993, %v2992
      %v3006 = vpack.c.b16 %v2995, %v2994
      %v3007 = vpack.c.b16 %v2997, %v2996
      %v3008 = vpack.c.b16 %v2999, %v2998
      %v3009 = vpack.c.b16 %v3001, %v3000
      %3018 = vmatpush.bf16.msra.mxu0 %v3009
      %3019 = vmatpush.bf16.msra.mxu0 %v3008
      %3020 = vmatpush.bf16.msra.mxu0 %v3007
      %3021 = vmatpush.bf16.msra.mxu0 %v3006
      %3022 = vmatpush.bf16.msra.mxu0 %v3005
      %3023 = vmatpush.bf16.msra.mxu0 %v3004
      %3024 = vmatpush.bf16.msra.mxu0 %v3003
      %3025 = vmatpush.bf16.msra.mxu0 %v3002
      %3026 = vmatmul.bf16.gmra.mxu0 %v2892
      %v3027 = vpop.f32.mrf.mxu0
      %v3028 = vadd.f32 %v2965, %v3027
      %v3029 = vpop.f32.mrf.mxu0
      %v3030 = vadd.f32 %v2967, %v3029
      %3031 = vdwg.mxu0
      %v3032 = vld [vmem:[%s1722] sm:$0xe]
      %v3033 = vld [vmem:[%s505] sm:$0xf]
      %v3034 = vld [vmem:[%s505 + $0x4] sm:$0xf]
      %v3035 = vld [vmem:[%s505 + $0x8] sm:$0xf]
      %v3036 = vld [vmem:[%s505 + $0xc] sm:$0xf]
      %v3037 = vld [vmem:[%s505 + $0x10] sm:$0xf]
      %v3038 = vld [vmem:[%s505 + $0x14] sm:$0xf]
      %v3039 = vld [vmem:[%s505 + $0x18] sm:$0xf]
      %v3040 = vld [vmem:[%s505 + $0x1c] sm:$0xf]
      %v3041 = vld [vmem:[%s505 + $0x20] sm:$0xf]
      %v3042 = vld [vmem:[%s505 + $0x24] sm:$0xf]
      %v3043 = vld [vmem:[%s505 + $0x28] sm:$0xf]
      %v3044 = vld [vmem:[%s505 + $0x2c] sm:$0xf]
      %v3045 = vld [vmem:[%s505 + $0x30] sm:$0xf]
      %v3046 = vld [vmem:[%s505 + $0x34] sm:$0xf]
      %v3047 = vld [vmem:[%s505 + $0x38] sm:$0xf]
      %v3048 = vld [vmem:[%s505 + $0x3c] sm:$0xf]
      %v3050 = vunpack.c.l.b16 %v3032
      %v3051 = vpack.c.b16 %v2890, %v3050
      %v3052 = vrot.slane %v3051, 1
      %v3053 = vrot.slane %v2893, 1
      %v3054 = vsel %vm525, %v3052, %v3053
      %v3072 = vunpack.c.l.b16 %v3033
      %v3073 = vunpack.c.l.b16 %v3034
      %v3074 = vunpack.c.l.b16 %v3035
      %v3075 = vunpack.c.l.b16 %v3036
      %v3076 = vunpack.c.l.b16 %v3037
      %v3077 = vunpack.c.l.b16 %v3038
      %v3078 = vunpack.c.l.b16 %v3039
      %v3079 = vunpack.c.l.b16 %v3040
      %v3080 = vunpack.c.l.b16 %v3041
      %v3081 = vunpack.c.l.b16 %v3042
      %v3082 = vunpack.c.l.b16 %v3043
      %v3083 = vunpack.c.l.b16 %v3044
      %v3084 = vunpack.c.l.b16 %v3045
      %v3085 = vunpack.c.l.b16 %v3046
      %v3086 = vunpack.c.l.b16 %v3047
      %v3087 = vunpack.c.l.b16 %v3048
      %v3088 = vpack.c.b16 %v3073, %v3072
      %v3089 = vpack.c.b16 %v3075, %v3074
      %v3090 = vpack.c.b16 %v3077, %v3076
      %v3091 = vpack.c.b16 %v3079, %v3078
      %v3092 = vpack.c.b16 %v3081, %v3080
      %v3093 = vpack.c.b16 %v3083, %v3082
      %v3094 = vpack.c.b16 %v3085, %v3084
      %v3095 = vpack.c.b16 %v3087, %v3086
      %3104 = vmatpush.bf16.msra.mxu0 %v3095
      %3105 = vmatpush.bf16.msra.mxu0 %v3094
      %3106 = vmatpush.bf16.msra.mxu0 %v3093
      %3107 = vmatpush.bf16.msra.mxu0 %v3092
      %3108 = vmatpush.bf16.msra.mxu0 %v3091
      %3109 = vmatpush.bf16.msra.mxu0 %v3090
      %3110 = vmatpush.bf16.msra.mxu0 %v3089
      %3111 = vmatpush.bf16.msra.mxu0 %v3088
      %3112 = vmatmul.bf16.gmra.mxu0 %v3054
      %v3113 = vpop.f32.mrf.mxu0
      %v3114 = vadd.f32 0.0, %v3113
      %v3115 = vpop.f32.mrf.mxu0
      %v3116 = vadd.f32 0.0, %v3115
      %3117 = vdwg.mxu0
      %v3118 = vadd.f32 %v3028, %v3114
      %v3119 = vadd.f32 %v3030, %v3116
      %v3120 = vld [vmem:[%s2561] sm:$0xf]
      %v3121 = vld [vmem:[%s2561 + $0x4] sm:$0xf]
      %v3122 = vld [vmem:[%s597] sm:$0xf]
      %v3123 = vld [vmem:[%s597 + $0x4] sm:$0xf]
      %v3124 = vld [vmem:[%s597 + $0x8] sm:$0xf]
      %v3125 = vld [vmem:[%s597 + $0xc] sm:$0xf]
      %v3126 = vld [vmem:[%s597 + $0x10] sm:$0xf]
      %v3127 = vld [vmem:[%s597 + $0x14] sm:$0xf]
      %v3128 = vld [vmem:[%s597 + $0x18] sm:$0xf]
      %v3129 = vld [vmem:[%s597 + $0x1c] sm:$0xf]
      %v3130 = vld [vmem:[%s597 + $0x20] sm:$0xf]
      %v3131 = vld [vmem:[%s597 + $0x24] sm:$0xf]
      %v3132 = vld [vmem:[%s597 + $0x28] sm:$0xf]
      %v3133 = vld [vmem:[%s597 + $0x2c] sm:$0xf]
      %v3134 = vld [vmem:[%s597 + $0x30] sm:$0xf]
      %v3135 = vld [vmem:[%s597 + $0x34] sm:$0xf]
      %v3136 = vld [vmem:[%s597 + $0x38] sm:$0xf]
      %v3137 = vld [vmem:[%s597 + $0x3c] sm:$0xf]
      %v3140 = vunpack.c.l.b16 %v3120
      %v3141 = vunpack.c.l.b16 %v3121
      %v3142 = vpack.c.b16 %v3141, %v3140
      %v3160 = vunpack.c.l.b16 %v3122
      %v3161 = vunpack.c.l.b16 %v3123
      %v3162 = vunpack.c.l.b16 %v3124
      %v3163 = vunpack.c.l.b16 %v3125
      %v3164 = vunpack.c.l.b16 %v3126
      %v3165 = vunpack.c.l.b16 %v3127
      %v3166 = vunpack.c.l.b16 %v3128
      %v3167 = vunpack.c.l.b16 %v3129
      %v3168 = vunpack.c.l.b16 %v3130
      %v3169 = vunpack.c.l.b16 %v3131
      %v3170 = vunpack.c.l.b16 %v3132
      %v3171 = vunpack.c.l.b16 %v3133
      %v3172 = vunpack.c.l.b16 %v3134
      %v3173 = vunpack.c.l.b16 %v3135
      %v3174 = vunpack.c.l.b16 %v3136
      %v3175 = vunpack.c.l.b16 %v3137
      %v3176 = vpack.c.b16 %v3161, %v3160
      %v3177 = vpack.c.b16 %v3163, %v3162
      %v3178 = vpack.c.b16 %v3165, %v3164
      %v3179 = vpack.c.b16 %v3167, %v3166
      %v3180 = vpack.c.b16 %v3169, %v3168
      %v3181 = vpack.c.b16 %v3171, %v3170
      %v3182 = vpack.c.b16 %v3173, %v3172
      %v3183 = vpack.c.b16 %v3175, %v3174
      %3192 = vmatpush.bf16.msra.mxu0 %v3183
      %3193 = vmatpush.bf16.msra.mxu0 %v3182
      %3194 = vmatpush.bf16.msra.mxu0 %v3181
      %3195 = vmatpush.bf16.msra.mxu0 %v3180
      %3196 = vmatpush.bf16.msra.mxu0 %v3179
      %3197 = vmatpush.bf16.msra.mxu0 %v3178
      %3198 = vmatpush.bf16.msra.mxu0 %v3177
      %3199 = vmatpush.bf16.msra.mxu0 %v3176
      %3200 = vmatmul.bf16.gmra.mxu0 %v3142
      %v3201 = vpop.f32.mrf.mxu0
      %v3202 = vadd.f32 0.0, %v3201
      %v3203 = vpop.f32.mrf.mxu0
      %v3204 = vadd.f32 0.0, %v3203
      %3205 = vdwg.mxu0
      %v3206 = vadd.f32 %v3118, %v3202
      %v3207 = vadd.f32 %v3119, %v3204
      %v3208 = vld [vmem:[%s2561] sm:$0xf]
      %v3209 = vld [vmem:[%s2561 + $0x4] sm:$0xf]
      %v3210 = vld [vmem:[%s2561 + $0x8] sm:$0x1]
      %v3211 = vld [vmem:[%s687] sm:$0xf]
      %v3212 = vld [vmem:[%s687 + $0x4] sm:$0xf]
      %v3213 = vld [vmem:[%s687 + $0x8] sm:$0xf]
      %v3214 = vld [vmem:[%s687 + $0xc] sm:$0xf]
      %v3215 = vld [vmem:[%s687 + $0x10] sm:$0xf]
      %v3216 = vld [vmem:[%s687 + $0x14] sm:$0xf]
      %v3217 = vld [vmem:[%s687 + $0x18] sm:$0xf]
      %v3218 = vld [vmem:[%s687 + $0x1c] sm:$0xf]
      %v3219 = vld [vmem:[%s687 + $0x20] sm:$0xf]
      %v3220 = vld [vmem:[%s687 + $0x24] sm:$0xf]
      %v3221 = vld [vmem:[%s687 + $0x28] sm:$0xf]
      %v3222 = vld [vmem:[%s687 + $0x2c] sm:$0xf]
      %v3223 = vld [vmem:[%s687 + $0x30] sm:$0xf]
      %v3224 = vld [vmem:[%s687 + $0x34] sm:$0xf]
      %v3225 = vld [vmem:[%s687 + $0x38] sm:$0xf]
      %v3226 = vld [vmem:[%s687 + $0x3c] sm:$0xf]
      %v3230 = vunpack.c.l.b16 %v3208
      %v3231 = vunpack.c.l.b16 %v3209
      %v3232 = vunpack.c.l.b16 %v3210
      %v3233 = vpack.c.b16 %v3231, %v3230
      %v3234 = vpack.c.b16 %v3232, %v3232
      %v3236 = vshrl.u32 %v3233, 16
      %v3238 = vshll.u32 %v3233, 16
      %v3240 = vrot.slane %v3238, 1
      %v3241 = vor.u32 %v3236, %v3240
      %v3243 = vshll.u32 %v3234, 16
      %v3245 = vrot.slane %v3243, 1
      %v3246 = vsel %vm365, %v3241, %v3245
      %v3264 = vunpack.c.l.b16 %v3211
      %v3265 = vunpack.c.l.b16 %v3212
      %v3266 = vunpack.c.l.b16 %v3213
      %v3267 = vunpack.c.l.b16 %v3214
      %v3268 = vunpack.c.l.b16 %v3215
      %v3269 = vunpack.c.l.b16 %v3216
      %v3270 = vunpack.c.l.b16 %v3217
      %v3271 = vunpack.c.l.b16 %v3218
      %v3272 = vunpack.c.l.b16 %v3219
      %v3273 = vunpack.c.l.b16 %v3220
      %v3274 = vunpack.c.l.b16 %v3221
      %v3275 = vunpack.c.l.b16 %v3222
      %v3276 = vunpack.c.l.b16 %v3223
      %v3277 = vunpack.c.l.b16 %v3224
      %v3278 = vunpack.c.l.b16 %v3225
      %v3279 = vunpack.c.l.b16 %v3226
      %v3280 = vpack.c.b16 %v3265, %v3264
      %v3281 = vpack.c.b16 %v3267, %v3266
      %v3282 = vpack.c.b16 %v3269, %v3268
      %v3283 = vpack.c.b16 %v3271, %v3270
      %v3284 = vpack.c.b16 %v3273, %v3272
      %v3285 = vpack.c.b16 %v3275, %v3274
      %v3286 = vpack.c.b16 %v3277, %v3276
      %v3287 = vpack.c.b16 %v3279, %v3278
      %3296 = vmatpush.bf16.msra.mxu0 %v3287
      %3297 = vmatpush.bf16.msra.mxu0 %v3286
      %3298 = vmatpush.bf16.msra.mxu0 %v3285
      %3299 = vmatpush.bf16.msra.mxu0 %v3284
      %3300 = vmatpush.bf16.msra.mxu0 %v3283
      %3301 = vmatpush.bf16.msra.mxu0 %v3282
      %3302 = vmatpush.bf16.msra.mxu0 %v3281
      %3303 = vmatpush.bf16.msra.mxu0 %v3280
      %3304 = vmatmul.bf16.gmra.mxu0 %v3246
      %v3305 = vpop.f32.mrf.mxu0
      %v3306 = vadd.f32 0.0, %v3305
      %v3307 = vpop.f32.mrf.mxu0
      %v3308 = vadd.f32 0.0, %v3307
      %3309 = vdwg.mxu0
      %v3310 = vadd.f32 %v3206, %v3306
      %v3311 = vadd.f32 %v3207, %v3308
      %v3312 = vld [vmem:[%s2561] sm:$0xe]
      %v3313 = vld [vmem:[%s790] sm:$0xf]
      %v3314 = vld [vmem:[%s790 + $0x4] sm:$0xf]
      %v3315 = vld [vmem:[%s790 + $0x8] sm:$0xf]
      %v3316 = vld [vmem:[%s790 + $0xc] sm:$0xf]
      %v3317 = vld [vmem:[%s790 + $0x10] sm:$0xf]
      %v3318 = vld [vmem:[%s790 + $0x14] sm:$0xf]
      %v3319 = vld [vmem:[%s790 + $0x18] sm:$0xf]
      %v3320 = vld [vmem:[%s790 + $0x1c] sm:$0xf]
      %v3321 = vld [vmem:[%s790 + $0x20] sm:$0xf]
      %v3322 = vld [vmem:[%s790 + $0x24] sm:$0xf]
      %v3323 = vld [vmem:[%s790 + $0x28] sm:$0xf]
      %v3324 = vld [vmem:[%s790 + $0x2c] sm:$0xf]
      %v3325 = vld [vmem:[%s790 + $0x30] sm:$0xf]
      %v3326 = vld [vmem:[%s790 + $0x34] sm:$0xf]
      %v3327 = vld [vmem:[%s790 + $0x38] sm:$0xf]
      %v3328 = vld [vmem:[%s790 + $0x3c] sm:$0xf]
      %v3330 = vunpack.c.l.b16 %v3312
      %v3331 = vpack.c.b16 %v3231, %v3330
      %v3332 = vrot.slane %v3331, 1
      %v3333 = vrot.slane %v3234, 1
      %v3334 = vsel %vm525, %v3332, %v3333
      %v3352 = vunpack.c.l.b16 %v3313
      %v3353 = vunpack.c.l.b16 %v3314
      %v3354 = vunpack.c.l.b16 %v3315
      %v3355 = vunpack.c.l.b16 %v3316
      %v3356 = vunpack.c.l.b16 %v3317
      %v3357 = vunpack.c.l.b16 %v3318
      %v3358 = vunpack.c.l.b16 %v3319
      %v3359 = vunpack.c.l.b16 %v3320
      %v3360 = vunpack.c.l.b16 %v3321
      %v3361 = vunpack.c.l.b16 %v3322
      %v3362 = vunpack.c.l.b16 %v3323
      %v3363 = vunpack.c.l.b16 %v3324
      %v3364 = vunpack.c.l.b16 %v3325
      %v3365 = vunpack.c.l.b16 %v3326
      %v3366 = vunpack.c.l.b16 %v3327
      %v3367 = vunpack.c.l.b16 %v3328
      %v3368 = vpack.c.b16 %v3353, %v3352
      %v3369 = vpack.c.b16 %v3355, %v3354
      %v3370 = vpack.c.b16 %v3357, %v3356
      %v3371 = vpack.c.b16 %v3359, %v3358
      %v3372 = vpack.c.b16 %v3361, %v3360
      %v3373 = vpack.c.b16 %v3363, %v3362
      %v3374 = vpack.c.b16 %v3365, %v3364
      %v3375 = vpack.c.b16 %v3367, %v3366
      %3384 = vmatpush.bf16.msra.mxu0 %v3375
      %3385 = vmatpush.bf16.msra.mxu0 %v3374
      %3386 = vmatpush.bf16.msra.mxu0 %v3373
      %3387 = vmatpush.bf16.msra.mxu0 %v3372
      %3388 = vmatpush.bf16.msra.mxu0 %v3371
      %3389 = vmatpush.bf16.msra.mxu0 %v3370
      %3390 = vmatpush.bf16.msra.mxu0 %v3369
      %3391 = vmatpush.bf16.msra.mxu0 %v3368
      %3392 = vmatmul.bf16.gmra.mxu0 %v3334
      %v3393 = vpop.f32.mrf.mxu0
      %v3394 = vadd.f32 0.0, %v3393
      %v3395 = vpop.f32.mrf.mxu0
      %v3396 = vadd.f32 0.0, %v3395
      %3397 = vdwg.mxu0
      %v3398 = vadd.f32 %v3310, %v3394
      %v3399 = vadd.f32 %v3311, %v3396
      %s3400 = scalar_lea.vmem %s287, 60
      %v3401 = vld [vmem:[%s3400] sm:$0xf]
      %v3402 = vld [vmem:[%s3400 + $0x4] sm:$0xf]
      %v3403 = vld [vmem:[%s881] sm:$0xf]
      %v3404 = vld [vmem:[%s881 + $0x4] sm:$0xf]
      %v3405 = vld [vmem:[%s881 + $0x8] sm:$0xf]
      %v3406 = vld [vmem:[%s881 + $0xc] sm:$0xf]
      %v3407 = vld [vmem:[%s881 + $0x10] sm:$0xf]
      %v3408 = vld [vmem:[%s881 + $0x14] sm:$0xf]
      %v3409 = vld [vmem:[%s881 + $0x18] sm:$0xf]
      %v3410 = vld [vmem:[%s881 + $0x1c] sm:$0xf]
      %v3411 = vld [vmem:[%s881 + $0x20] sm:$0xf]
      %v3412 = vld [vmem:[%s881 + $0x24] sm:$0xf]
      %v3413 = vld [vmem:[%s881 + $0x28] sm:$0xf]
      %v3414 = vld [vmem:[%s881 + $0x2c] sm:$0xf]
      %v3415 = vld [vmem:[%s881 + $0x30] sm:$0xf]
      %v3416 = vld [vmem:[%s881 + $0x34] sm:$0xf]
      %v3417 = vld [vmem:[%s881 + $0x38] sm:$0xf]
      %v3418 = vld [vmem:[%s881 + $0x3c] sm:$0xf]
      %v3421 = vunpack.c.l.b16 %v3401
      %v3422 = vunpack.c.l.b16 %v3402
      %v3423 = vpack.c.b16 %v3422, %v3421
      %v3441 = vunpack.c.l.b16 %v3403
      %v3442 = vunpack.c.l.b16 %v3404
      %v3443 = vunpack.c.l.b16 %v3405
      %v3444 = vunpack.c.l.b16 %v3406
      %v3445 = vunpack.c.l.b16 %v3407
      %v3446 = vunpack.c.l.b16 %v3408
      %v3447 = vunpack.c.l.b16 %v3409
      %v3448 = vunpack.c.l.b16 %v3410
      %v3449 = vunpack.c.l.b16 %v3411
      %v3450 = vunpack.c.l.b16 %v3412
      %v3451 = vunpack.c.l.b16 %v3413
      %v3452 = vunpack.c.l.b16 %v3414
      %v3453 = vunpack.c.l.b16 %v3415
      %v3454 = vunpack.c.l.b16 %v3416
      %v3455 = vunpack.c.l.b16 %v3417
      %v3456 = vunpack.c.l.b16 %v3418
      %v3457 = vpack.c.b16 %v3442, %v3441
      %v3458 = vpack.c.b16 %v3444, %v3443
      %v3459 = vpack.c.b16 %v3446, %v3445
      %v3460 = vpack.c.b16 %v3448, %v3447
      %v3461 = vpack.c.b16 %v3450, %v3449
      %v3462 = vpack.c.b16 %v3452, %v3451
      %v3463 = vpack.c.b16 %v3454, %v3453
      %v3464 = vpack.c.b16 %v3456, %v3455
      %3473 = vmatpush.bf16.msra.mxu0 %v3464
      %3474 = vmatpush.bf16.msra.mxu0 %v3463
      %3475 = vmatpush.bf16.msra.mxu0 %v3462
      %3476 = vmatpush.bf16.msra.mxu0 %v3461
      %3477 = vmatpush.bf16.msra.mxu0 %v3460
      %3478 = vmatpush.bf16.msra.mxu0 %v3459
      %3479 = vmatpush.bf16.msra.mxu0 %v3458
      %3480 = vmatpush.bf16.msra.mxu0 %v3457
      %3481 = vmatmul.bf16.gmra.mxu0 %v3423
      %v3482 = vpop.f32.mrf.mxu0
      %v3483 = vadd.f32 0.0, %v3482
      %v3484 = vpop.f32.mrf.mxu0
      %v3485 = vadd.f32 0.0, %v3484
      %3486 = vdwg.mxu0
      %v3487 = vadd.f32 %v3398, %v3483
      %v3488 = vadd.f32 %v3399, %v3485
      %v3489 = vld [vmem:[%s3400] sm:$0xf]
      %v3490 = vld [vmem:[%s3400 + $0x4] sm:$0xf]
      %v3491 = vld [vmem:[%s3400 + $0x8] sm:$0x1]
      %v3492 = vld [vmem:[%s971] sm:$0xf]
      %v3493 = vld [vmem:[%s971 + $0x4] sm:$0xf]
      %v3494 = vld [vmem:[%s971 + $0x8] sm:$0xf]
      %v3495 = vld [vmem:[%s971 + $0xc] sm:$0xf]
      %v3496 = vld [vmem:[%s971 + $0x10] sm:$0xf]
      %v3497 = vld [vmem:[%s971 + $0x14] sm:$0xf]
      %v3498 = vld [vmem:[%s971 + $0x18] sm:$0xf]
      %v3499 = vld [vmem:[%s971 + $0x1c] sm:$0xf]
      %v3500 = vld [vmem:[%s971 + $0x20] sm:$0xf]
      %v3501 = vld [vmem:[%s971 + $0x24] sm:$0xf]
      %v3502 = vld [vmem:[%s971 + $0x28] sm:$0xf]
      %v3503 = vld [vmem:[%s971 + $0x2c] sm:$0xf]
      %v3504 = vld [vmem:[%s971 + $0x30] sm:$0xf]
      %v3505 = vld [vmem:[%s971 + $0x34] sm:$0xf]
      %v3506 = vld [vmem:[%s971 + $0x38] sm:$0xf]
      %v3507 = vld [vmem:[%s971 + $0x3c] sm:$0xf]
      %v3511 = vunpack.c.l.b16 %v3489
      %v3512 = vunpack.c.l.b16 %v3490
      %v3513 = vunpack.c.l.b16 %v3491
      %v3514 = vpack.c.b16 %v3512, %v3511
      %v3515 = vpack.c.b16 %v3513, %v3513
      %v3517 = vshrl.u32 %v3514, 16
      %v3519 = vshll.u32 %v3514, 16
      %v3521 = vrot.slane %v3519, 1
      %v3522 = vor.u32 %v3517, %v3521
      %v3524 = vshll.u32 %v3515, 16
      %v3526 = vrot.slane %v3524, 1
      %v3527 = vsel %vm365, %v3522, %v3526
      %v3545 = vunpack.c.l.b16 %v3492
      %v3546 = vunpack.c.l.b16 %v3493
      %v3547 = vunpack.c.l.b16 %v3494
      %v3548 = vunpack.c.l.b16 %v3495
      %v3549 = vunpack.c.l.b16 %v3496
      %v3550 = vunpack.c.l.b16 %v3497
      %v3551 = vunpack.c.l.b16 %v3498
      %v3552 = vunpack.c.l.b16 %v3499
      %v3553 = vunpack.c.l.b16 %v3500
      %v3554 = vunpack.c.l.b16 %v3501
      %v3555 = vunpack.c.l.b16 %v3502
      %v3556 = vunpack.c.l.b16 %v3503
      %v3557 = vunpack.c.l.b16 %v3504
      %v3558 = vunpack.c.l.b16 %v3505
      %v3559 = vunpack.c.l.b16 %v3506
      %v3560 = vunpack.c.l.b16 %v3507
      %v3561 = vpack.c.b16 %v3546, %v3545
      %v3562 = vpack.c.b16 %v3548, %v3547
      %v3563 = vpack.c.b16 %v3550, %v3549
      %v3564 = vpack.c.b16 %v3552, %v3551
      %v3565 = vpack.c.b16 %v3554, %v3553
      %v3566 = vpack.c.b16 %v3556, %v3555
      %v3567 = vpack.c.b16 %v3558, %v3557
      %v3568 = vpack.c.b16 %v3560, %v3559
      %3577 = vmatpush.bf16.msra.mxu0 %v3568
      %3578 = vmatpush.bf16.msra.mxu0 %v3567
      %3579 = vmatpush.bf16.msra.mxu0 %v3566
      %3580 = vmatpush.bf16.msra.mxu0 %v3565
      %3581 = vmatpush.bf16.msra.mxu0 %v3564
      %3582 = vmatpush.bf16.msra.mxu0 %v3563
      %3583 = vmatpush.bf16.msra.mxu0 %v3562
      %3584 = vmatpush.bf16.msra.mxu0 %v3561
      %3585 = vmatmul.bf16.gmra.mxu0 %v3527
      %v3586 = vpop.f32.mrf.mxu0
      %v3587 = vadd.f32 0.0, %v3586
      %v3588 = vpop.f32.mrf.mxu0
      %v3589 = vadd.f32 0.0, %v3588
      %3590 = vdwg.mxu0
      %v3591 = vadd.f32 %v3487, %v3587
      %v3592 = vadd.f32 %v3488, %v3589
      %v3593 = vld [vmem:[%s3400] sm:$0xe]
      %v3594 = vld [vmem:[%s1074] sm:$0xf]
      %v3595 = vld [vmem:[%s1074 + $0x4] sm:$0xf]
      %v3596 = vld [vmem:[%s1074 + $0x8] sm:$0xf]
      %v3597 = vld [vmem:[%s1074 + $0xc] sm:$0xf]
      %v3598 = vld [vmem:[%s1074 + $0x10] sm:$0xf]
      %v3599 = vld [vmem:[%s1074 + $0x14] sm:$0xf]
      %v3600 = vld [vmem:[%s1074 + $0x18] sm:$0xf]
      %v3601 = vld [vmem:[%s1074 + $0x1c] sm:$0xf]
      %v3602 = vld [vmem:[%s1074 + $0x20] sm:$0xf]
      %v3603 = vld [vmem:[%s1074 + $0x24] sm:$0xf]
      %v3604 = vld [vmem:[%s1074 + $0x28] sm:$0xf]
      %v3605 = vld [vmem:[%s1074 + $0x2c] sm:$0xf]
      %v3606 = vld [vmem:[%s1074 + $0x30] sm:$0xf]
      %v3607 = vld [vmem:[%s1074 + $0x34] sm:$0xf]
      %v3608 = vld [vmem:[%s1074 + $0x38] sm:$0xf]
      %v3609 = vld [vmem:[%s1074 + $0x3c] sm:$0xf]
      %v3611 = vunpack.c.l.b16 %v3593
      %v3612 = vpack.c.b16 %v3512, %v3611
      %v3613 = vrot.slane %v3612, 1
      %v3614 = vrot.slane %v3515, 1
      %v3615 = vsel %vm525, %v3613, %v3614
      %v3633 = vunpack.c.l.b16 %v3594
      %v3634 = vunpack.c.l.b16 %v3595
      %v3635 = vunpack.c.l.b16 %v3596
      %v3636 = vunpack.c.l.b16 %v3597
      %v3637 = vunpack.c.l.b16 %v3598
      %v3638 = vunpack.c.l.b16 %v3599
      %v3639 = vunpack.c.l.b16 %v3600
      %v3640 = vunpack.c.l.b16 %v3601
      %v3641 = vunpack.c.l.b16 %v3602
      %v3642 = vunpack.c.l.b16 %v3603
      %v3643 = vunpack.c.l.b16 %v3604
      %v3644 = vunpack.c.l.b16 %v3605
      %v3645 = vunpack.c.l.b16 %v3606
      %v3646 = vunpack.c.l.b16 %v3607
      %v3647 = vunpack.c.l.b16 %v3608
      %v3648 = vunpack.c.l.b16 %v3609
      %v3649 = vpack.c.b16 %v3634, %v3633
      %v3650 = vpack.c.b16 %v3636, %v3635
      %v3651 = vpack.c.b16 %v3638, %v3637
      %v3652 = vpack.c.b16 %v3640, %v3639
      %v3653 = vpack.c.b16 %v3642, %v3641
      %v3654 = vpack.c.b16 %v3644, %v3643
      %v3655 = vpack.c.b16 %v3646, %v3645
      %v3656 = vpack.c.b16 %v3648, %v3647
      %3665 = vmatpush.bf16.msra.mxu0 %v3656
      %3666 = vmatpush.bf16.msra.mxu0 %v3655
      %3667 = vmatpush.bf16.msra.mxu0 %v3654
      %3668 = vmatpush.bf16.msra.mxu0 %v3653
      %3669 = vmatpush.bf16.msra.mxu0 %v3652
      %3670 = vmatpush.bf16.msra.mxu0 %v3651
      %3671 = vmatpush.bf16.msra.mxu0 %v3650
      %3672 = vmatpush.bf16.msra.mxu0 %v3649
      %3673 = vmatmul.bf16.gmra.mxu0 %v3615
      %v3674 = vpop.f32.mrf.mxu0
      %v3675 = vadd.f32 0.0, %v3674
      %v3676 = vpop.f32.mrf.mxu0
      %v3677 = vadd.f32 0.0, %v3676
      %3678 = vdwg.mxu0
      %v3679 = vadd.f32 %v3591, %v3675
      %v3680 = vadd.f32 %v3592, %v3677
      %v3681 = vadd.f32 %v3679, %v1163
      %v3682 = vadd.f32 %v3680, %v1163
      %v3683 = vmax.f32 %v3681, 0.0
      %v3684 = vmax.f32 %v3682, 0.0
      %v3685 = vpack.c.bf16 %v3683, %v3683
      %v3686 = vpack.c.bf16 %v3684, %v3684
      %s3687 = scalar_lea.vmem %s318, 24
      %3688 = vst [vmem:[%s3687] sm:$0xf] %v3685
      %3689 = vst [vmem:[%s3687 + $0x4] sm:$0xf] %v3686
      %v3690 = vld [vmem:[%s2561] sm:$0xf]
      %v3691 = vld [vmem:[%s2561 + $0x4] sm:$0xf]
      %v3692 = vld [vmem:[%s2] sm:$0xf]
      %v3693 = vld [vmem:[%s2 + $0x4] sm:$0xf]
      %v3694 = vld [vmem:[%s2 + $0x8] sm:$0xf]
      %v3695 = vld [vmem:[%s2 + $0xc] sm:$0xf]
      %v3696 = vld [vmem:[%s2 + $0x10] sm:$0xf]
      %v3697 = vld [vmem:[%s2 + $0x14] sm:$0xf]
      %v3698 = vld [vmem:[%s2 + $0x18] sm:$0xf]
      %v3699 = vld [vmem:[%s2 + $0x1c] sm:$0xf]
      %v3700 = vld [vmem:[%s2 + $0x20] sm:$0xf]
      %v3701 = vld [vmem:[%s2 + $0x24] sm:$0xf]
      %v3702 = vld [vmem:[%s2 + $0x28] sm:$0xf]
      %v3703 = vld [vmem:[%s2 + $0x2c] sm:$0xf]
      %v3704 = vld [vmem:[%s2 + $0x30] sm:$0xf]
      %v3705 = vld [vmem:[%s2 + $0x34] sm:$0xf]
      %v3706 = vld [vmem:[%s2 + $0x38] sm:$0xf]
      %v3707 = vld [vmem:[%s2 + $0x3c] sm:$0xf]
      %v3708 = vld [vmem:[%s2561 + $0x8] sm:$0x1]
      %v3709 = vld [vmem:[%s340] sm:$0xf]
      %v3710 = vld [vmem:[%s340 + $0x4] sm:$0xf]
      %v3711 = vld [vmem:[%s340 + $0x8] sm:$0xf]
      %v3712 = vld [vmem:[%s340 + $0xc] sm:$0xf]
      %v3713 = vld [vmem:[%s340 + $0x10] sm:$0xf]
      %v3714 = vld [vmem:[%s340 + $0x14] sm:$0xf]
      %v3715 = vld [vmem:[%s340 + $0x18] sm:$0xf]
      %v3716 = vld [vmem:[%s340 + $0x1c] sm:$0xf]
      %v3717 = vld [vmem:[%s340 + $0x20] sm:$0xf]
      %v3718 = vld [vmem:[%s340 + $0x24] sm:$0xf]
      %v3719 = vld [vmem:[%s340 + $0x28] sm:$0xf]
      %v3720 = vld [vmem:[%s340 + $0x2c] sm:$0xf]
      %v3721 = vld [vmem:[%s340 + $0x30] sm:$0xf]
      %v3722 = vld [vmem:[%s340 + $0x34] sm:$0xf]
      %v3723 = vld [vmem:[%s340 + $0x38] sm:$0xf]
      %v3724 = vld [vmem:[%s340 + $0x3c] sm:$0xf]
      %v3728 = vunpack.c.l.b16 %v3690
      %v3729 = vunpack.c.l.b16 %v3691
      %v3730 = vunpack.c.l.b16 %v3708
      %v3731 = vpack.c.b16 %v3729, %v3728
      %v3732 = vpack.c.b16 %v3730, %v3730
      %v3734 = vshrl.u32 %v3731, 16
      %v3736 = vshll.u32 %v3731, 16
      %v3738 = vrot.slane %v3736, 1
      %v3739 = vor.u32 %v3734, %v3738
      %v3741 = vshll.u32 %v3732, 16
      %v3743 = vrot.slane %v3741, 1
      %v3744 = vsel %vm365, %v3739, %v3743
      %v3762 = vunpack.c.l.b16 %v3709
      %v3763 = vunpack.c.l.b16 %v3710
      %v3764 = vunpack.c.l.b16 %v3711
      %v3765 = vunpack.c.l.b16 %v3712
      %v3766 = vunpack.c.l.b16 %v3713
      %v3767 = vunpack.c.l.b16 %v3714
      %v3768 = vunpack.c.l.b16 %v3715
      %v3769 = vunpack.c.l.b16 %v3716
      %v3770 = vunpack.c.l.b16 %v3717
      %v3771 = vunpack.c.l.b16 %v3718
      %v3772 = vunpack.c.l.b16 %v3719
      %v3773 = vunpack.c.l.b16 %v3720
      %v3774 = vunpack.c.l.b16 %v3721
      %v3775 = vunpack.c.l.b16 %v3722
      %v3776 = vunpack.c.l.b16 %v3723
      %v3777 = vunpack.c.l.b16 %v3724
      %v3778 = vpack.c.b16 %v3763, %v3762
      %v3779 = vpack.c.b16 %v3765, %v3764
      %v3780 = vpack.c.b16 %v3767, %v3766
      %v3781 = vpack.c.b16 %v3769, %v3768
      %v3782 = vpack.c.b16 %v3771, %v3770
      %v3783 = vpack.c.b16 %v3773, %v3772
      %v3784 = vpack.c.b16 %v3775, %v3774
      %v3785 = vpack.c.b16 %v3777, %v3776
      %3794 = vmatpush.bf16.msra.mxu0 %v3785
      %3795 = vmatpush.bf16.msra.mxu0 %v3784
      %3796 = vmatpush.bf16.msra.mxu0 %v3783
      %3797 = vmatpush.bf16.msra.mxu0 %v3782
      %3798 = vmatpush.bf16.msra.mxu0 %v3781
      %3799 = vmatpush.bf16.msra.mxu0 %v3780
      %3800 = vmatpush.bf16.msra.mxu0 %v3779
      %3801 = vmatpush.bf16.msra.mxu0 %v3778
      %3802 = vmatmul.bf16.gmra.mxu0 %v3744
      %v3803 = vpop.f32.mrf.mxu0
      %v3804 = vadd.f32 0.0, %v3803
      %v3805 = vpop.f32.mrf.mxu0
      %v3806 = vadd.f32 0.0, %v3805
      %3807 = vdwg.mxu0
      %v3825 = vunpack.c.l.b16 %v3692
      %v3826 = vunpack.c.l.b16 %v3693
      %v3827 = vunpack.c.l.b16 %v3694
      %v3828 = vunpack.c.l.b16 %v3695
      %v3829 = vunpack.c.l.b16 %v3696
      %v3830 = vunpack.c.l.b16 %v3697
      %v3831 = vunpack.c.l.b16 %v3698
      %v3832 = vunpack.c.l.b16 %v3699
      %v3833 = vunpack.c.l.b16 %v3700
      %v3834 = vunpack.c.l.b16 %v3701
      %v3835 = vunpack.c.l.b16 %v3702
      %v3836 = vunpack.c.l.b16 %v3703
      %v3837 = vunpack.c.l.b16 %v3704
      %v3838 = vunpack.c.l.b16 %v3705
      %v3839 = vunpack.c.l.b16 %v3706
      %v3840 = vunpack.c.l.b16 %v3707
      %v3841 = vpack.c.b16 %v3826, %v3825
      %v3842 = vpack.c.b16 %v3828, %v3827
      %v3843 = vpack.c.b16 %v3830, %v3829
      %v3844 = vpack.c.b16 %v3832, %v3831
      %v3845 = vpack.c.b16 %v3834, %v3833
      %v3846 = vpack.c.b16 %v3836, %v3835
      %v3847 = vpack.c.b16 %v3838, %v3837
      %v3848 = vpack.c.b16 %v3840, %v3839
      %3857 = vmatpush.bf16.msra.mxu0 %v3848
      %3858 = vmatpush.bf16.msra.mxu0 %v3847
      %3859 = vmatpush.bf16.msra.mxu0 %v3846
      %3860 = vmatpush.bf16.msra.mxu0 %v3845
      %3861 = vmatpush.bf16.msra.mxu0 %v3844
      %3862 = vmatpush.bf16.msra.mxu0 %v3843
      %3863 = vmatpush.bf16.msra.mxu0 %v3842
      %3864 = vmatpush.bf16.msra.mxu0 %v3841
      %3865 = vmatmul.bf16.gmra.mxu0 %v3731
      %v3866 = vpop.f32.mrf.mxu0
      %v3867 = vadd.f32 %v3804, %v3866
      %v3868 = vpop.f32.mrf.mxu0
      %v3869 = vadd.f32 %v3806, %v3868
      %3870 = vdwg.mxu0
      %v3871 = vld [vmem:[%s2561] sm:$0xe]
      %v3872 = vld [vmem:[%s505] sm:$0xf]
      %v3873 = vld [vmem:[%s505 + $0x4] sm:$0xf]
      %v3874 = vld [vmem:[%s505 + $0x8] sm:$0xf]
      %v3875 = vld [vmem:[%s505 + $0xc] sm:$0xf]
      %v3876 = vld [vmem:[%s505 + $0x10] sm:$0xf]
      %v3877 = vld [vmem:[%s505 + $0x14] sm:$0xf]
      %v3878 = vld [vmem:[%s505 + $0x18] sm:$0xf]
      %v3879 = vld [vmem:[%s505 + $0x1c] sm:$0xf]
      %v3880 = vld [vmem:[%s505 + $0x20] sm:$0xf]
      %v3881 = vld [vmem:[%s505 + $0x24] sm:$0xf]
      %v3882 = vld [vmem:[%s505 + $0x28] sm:$0xf]
      %v3883 = vld [vmem:[%s505 + $0x2c] sm:$0xf]
      %v3884 = vld [vmem:[%s505 + $0x30] sm:$0xf]
      %v3885 = vld [vmem:[%s505 + $0x34] sm:$0xf]
      %v3886 = vld [vmem:[%s505 + $0x38] sm:$0xf]
      %v3887 = vld [vmem:[%s505 + $0x3c] sm:$0xf]
      %v3889 = vunpack.c.l.b16 %v3871
      %v3890 = vpack.c.b16 %v3729, %v3889
      %v3891 = vrot.slane %v3890, 1
      %v3892 = vrot.slane %v3732, 1
      %v3893 = vsel %vm525, %v3891, %v3892
      %v3911 = vunpack.c.l.b16 %v3872
      %v3912 = vunpack.c.l.b16 %v3873
      %v3913 = vunpack.c.l.b16 %v3874
      %v3914 = vunpack.c.l.b16 %v3875
      %v3915 = vunpack.c.l.b16 %v3876
      %v3916 = vunpack.c.l.b16 %v3877
      %v3917 = vunpack.c.l.b16 %v3878
      %v3918 = vunpack.c.l.b16 %v3879
      %v3919 = vunpack.c.l.b16 %v3880
      %v3920 = vunpack.c.l.b16 %v3881
      %v3921 = vunpack.c.l.b16 %v3882
      %v3922 = vunpack.c.l.b16 %v3883
      %v3923 = vunpack.c.l.b16 %v3884
      %v3924 = vunpack.c.l.b16 %v3885
      %v3925 = vunpack.c.l.b16 %v3886
      %v3926 = vunpack.c.l.b16 %v3887
      %v3927 = vpack.c.b16 %v3912, %v3911
      %v3928 = vpack.c.b16 %v3914, %v3913
      %v3929 = vpack.c.b16 %v3916, %v3915
      %v3930 = vpack.c.b16 %v3918, %v3917
      %v3931 = vpack.c.b16 %v3920, %v3919
      %v3932 = vpack.c.b16 %v3922, %v3921
      %v3933 = vpack.c.b16 %v3924, %v3923
      %v3934 = vpack.c.b16 %v3926, %v3925
      %3943 = vmatpush.bf16.msra.mxu0 %v3934
      %3944 = vmatpush.bf16.msra.mxu0 %v3933
      %3945 = vmatpush.bf16.msra.mxu0 %v3932
      %3946 = vmatpush.bf16.msra.mxu0 %v3931
      %3947 = vmatpush.bf16.msra.mxu0 %v3930
      %3948 = vmatpush.bf16.msra.mxu0 %v3929
      %3949 = vmatpush.bf16.msra.mxu0 %v3928
      %3950 = vmatpush.bf16.msra.mxu0 %v3927
      %3951 = vmatmul.bf16.gmra.mxu0 %v3893
      %v3952 = vpop.f32.mrf.mxu0
      %v3953 = vadd.f32 0.0, %v3952
      %v3954 = vpop.f32.mrf.mxu0
      %v3955 = vadd.f32 0.0, %v3954
      %3956 = vdwg.mxu0
      %v3957 = vadd.f32 %v3867, %v3953
      %v3958 = vadd.f32 %v3869, %v3955
      %v3959 = vld [vmem:[%s3400] sm:$0xf]
      %v3960 = vld [vmem:[%s3400 + $0x4] sm:$0xf]
      %v3961 = vld [vmem:[%s597] sm:$0xf]
      %v3962 = vld [vmem:[%s597 + $0x4] sm:$0xf]
      %v3963 = vld [vmem:[%s597 + $0x8] sm:$0xf]
      %v3964 = vld [vmem:[%s597 + $0xc] sm:$0xf]
      %v3965 = vld [vmem:[%s597 + $0x10] sm:$0xf]
      %v3966 = vld [vmem:[%s597 + $0x14] sm:$0xf]
      %v3967 = vld [vmem:[%s597 + $0x18] sm:$0xf]
      %v3968 = vld [vmem:[%s597 + $0x1c] sm:$0xf]
      %v3969 = vld [vmem:[%s597 + $0x20] sm:$0xf]
      %v3970 = vld [vmem:[%s597 + $0x24] sm:$0xf]
      %v3971 = vld [vmem:[%s597 + $0x28] sm:$0xf]
      %v3972 = vld [vmem:[%s597 + $0x2c] sm:$0xf]
      %v3973 = vld [vmem:[%s597 + $0x30] sm:$0xf]
      %v3974 = vld [vmem:[%s597 + $0x34] sm:$0xf]
      %v3975 = vld [vmem:[%s597 + $0x38] sm:$0xf]
      %v3976 = vld [vmem:[%s597 + $0x3c] sm:$0xf]
      %v3979 = vunpack.c.l.b16 %v3959
      %v3980 = vunpack.c.l.b16 %v3960
      %v3981 = vpack.c.b16 %v3980, %v3979
      %v3999 = vunpack.c.l.b16 %v3961
      %v4000 = vunpack.c.l.b16 %v3962
      %v4001 = vunpack.c.l.b16 %v3963
      %v4002 = vunpack.c.l.b16 %v3964
      %v4003 = vunpack.c.l.b16 %v3965
      %v4004 = vunpack.c.l.b16 %v3966
      %v4005 = vunpack.c.l.b16 %v3967
      %v4006 = vunpack.c.l.b16 %v3968
      %v4007 = vunpack.c.l.b16 %v3969
      %v4008 = vunpack.c.l.b16 %v3970
      %v4009 = vunpack.c.l.b16 %v3971
      %v4010 = vunpack.c.l.b16 %v3972
      %v4011 = vunpack.c.l.b16 %v3973
      %v4012 = vunpack.c.l.b16 %v3974
      %v4013 = vunpack.c.l.b16 %v3975
      %v4014 = vunpack.c.l.b16 %v3976
      %v4015 = vpack.c.b16 %v4000, %v3999
      %v4016 = vpack.c.b16 %v4002, %v4001
      %v4017 = vpack.c.b16 %v4004, %v4003
      %v4018 = vpack.c.b16 %v4006, %v4005
      %v4019 = vpack.c.b16 %v4008, %v4007
      %v4020 = vpack.c.b16 %v4010, %v4009
      %v4021 = vpack.c.b16 %v4012, %v4011
      %v4022 = vpack.c.b16 %v4014, %v4013
      %4031 = vmatpush.bf16.msra.mxu0 %v4022
      %4032 = vmatpush.bf16.msra.mxu0 %v4021
      %4033 = vmatpush.bf16.msra.mxu0 %v4020
      %4034 = vmatpush.bf16.msra.mxu0 %v4019
      %4035 = vmatpush.bf16.msra.mxu0 %v4018
      %4036 = vmatpush.bf16.msra.mxu0 %v4017
      %4037 = vmatpush.bf16.msra.mxu0 %v4016
      %4038 = vmatpush.bf16.msra.mxu0 %v4015
      %4039 = vmatmul.bf16.gmra.mxu0 %v3981
      %v4040 = vpop.f32.mrf.mxu0
      %v4041 = vadd.f32 0.0, %v4040
      %v4042 = vpop.f32.mrf.mxu0
      %v4043 = vadd.f32 0.0, %v4042
      %4044 = vdwg.mxu0
      %v4045 = vadd.f32 %v3957, %v4041
      %v4046 = vadd.f32 %v3958, %v4043
      %v4047 = vld [vmem:[%s3400] sm:$0xf]
      %v4048 = vld [vmem:[%s3400 + $0x4] sm:$0xf]
      %v4049 = vld [vmem:[%s3400 + $0x8] sm:$0x1]
      %v4050 = vld [vmem:[%s687] sm:$0xf]
      %v4051 = vld [vmem:[%s687 + $0x4] sm:$0xf]
      %v4052 = vld [vmem:[%s687 + $0x8] sm:$0xf]
      %v4053 = vld [vmem:[%s687 + $0xc] sm:$0xf]
      %v4054 = vld [vmem:[%s687 + $0x10] sm:$0xf]
      %v4055 = vld [vmem:[%s687 + $0x14] sm:$0xf]
      %v4056 = vld [vmem:[%s687 + $0x18] sm:$0xf]
      %v4057 = vld [vmem:[%s687 + $0x1c] sm:$0xf]
      %v4058 = vld [vmem:[%s687 + $0x20] sm:$0xf]
      %v4059 = vld [vmem:[%s687 + $0x24] sm:$0xf]
      %v4060 = vld [vmem:[%s687 + $0x28] sm:$0xf]
      %v4061 = vld [vmem:[%s687 + $0x2c] sm:$0xf]
      %v4062 = vld [vmem:[%s687 + $0x30] sm:$0xf]
      %v4063 = vld [vmem:[%s687 + $0x34] sm:$0xf]
      %v4064 = vld [vmem:[%s687 + $0x38] sm:$0xf]
      %v4065 = vld [vmem:[%s687 + $0x3c] sm:$0xf]
      %v4069 = vunpack.c.l.b16 %v4047
      %v4070 = vunpack.c.l.b16 %v4048
      %v4071 = vunpack.c.l.b16 %v4049
      %v4072 = vpack.c.b16 %v4070, %v4069
      %v4073 = vpack.c.b16 %v4071, %v4071
      %v4075 = vshrl.u32 %v4072, 16
      %v4077 = vshll.u32 %v4072, 16
      %v4079 = vrot.slane %v4077, 1
      %v4080 = vor.u32 %v4075, %v4079
      %v4082 = vshll.u32 %v4073, 16
      %v4084 = vrot.slane %v4082, 1
      %v4085 = vsel %vm365, %v4080, %v4084
      %v4103 = vunpack.c.l.b16 %v4050
      %v4104 = vunpack.c.l.b16 %v4051
      %v4105 = vunpack.c.l.b16 %v4052
      %v4106 = vunpack.c.l.b16 %v4053
      %v4107 = vunpack.c.l.b16 %v4054
      %v4108 = vunpack.c.l.b16 %v4055
      %v4109 = vunpack.c.l.b16 %v4056
      %v4110 = vunpack.c.l.b16 %v4057
      %v4111 = vunpack.c.l.b16 %v4058
      %v4112 = vunpack.c.l.b16 %v4059
      %v4113 = vunpack.c.l.b16 %v4060
      %v4114 = vunpack.c.l.b16 %v4061
      %v4115 = vunpack.c.l.b16 %v4062
      %v4116 = vunpack.c.l.b16 %v4063
      %v4117 = vunpack.c.l.b16 %v4064
      %v4118 = vunpack.c.l.b16 %v4065
      %v4119 = vpack.c.b16 %v4104, %v4103
      %v4120 = vpack.c.b16 %v4106, %v4105
      %v4121 = vpack.c.b16 %v4108, %v4107
      %v4122 = vpack.c.b16 %v4110, %v4109
      %v4123 = vpack.c.b16 %v4112, %v4111
      %v4124 = vpack.c.b16 %v4114, %v4113
      %v4125 = vpack.c.b16 %v4116, %v4115
      %v4126 = vpack.c.b16 %v4118, %v4117
      %4135 = vmatpush.bf16.msra.mxu0 %v4126
      %4136 = vmatpush.bf16.msra.mxu0 %v4125
      %4137 = vmatpush.bf16.msra.mxu0 %v4124
      %4138 = vmatpush.bf16.msra.mxu0 %v4123
      %4139 = vmatpush.bf16.msra.mxu0 %v4122
      %4140 = vmatpush.bf16.msra.mxu0 %v4121
      %4141 = vmatpush.bf16.msra.mxu0 %v4120
      %4142 = vmatpush.bf16.msra.mxu0 %v4119
      %4143 = vmatmul.bf16.gmra.mxu0 %v4085
      %v4144 = vpop.f32.mrf.mxu0
      %v4145 = vadd.f32 0.0, %v4144
      %v4146 = vpop.f32.mrf.mxu0
      %v4147 = vadd.f32 0.0, %v4146
      %4148 = vdwg.mxu0
      %v4149 = vadd.f32 %v4045, %v4145
      %v4150 = vadd.f32 %v4046, %v4147
      %v4151 = vld [vmem:[%s3400] sm:$0xe]
      %v4152 = vld [vmem:[%s790] sm:$0xf]
      %v4153 = vld [vmem:[%s790 + $0x4] sm:$0xf]
      %v4154 = vld [vmem:[%s790 + $0x8] sm:$0xf]
      %v4155 = vld [vmem:[%s790 + $0xc] sm:$0xf]
      %v4156 = vld [vmem:[%s790 + $0x10] sm:$0xf]
      %v4157 = vld [vmem:[%s790 + $0x14] sm:$0xf]
      %v4158 = vld [vmem:[%s790 + $0x18] sm:$0xf]
      %v4159 = vld [vmem:[%s790 + $0x1c] sm:$0xf]
      %v4160 = vld [vmem:[%s790 + $0x20] sm:$0xf]
      %v4161 = vld [vmem:[%s790 + $0x24] sm:$0xf]
      %v4162 = vld [vmem:[%s790 + $0x28] sm:$0xf]
      %v4163 = vld [vmem:[%s790 + $0x2c] sm:$0xf]
      %v4164 = vld [vmem:[%s790 + $0x30] sm:$0xf]
      %v4165 = vld [vmem:[%s790 + $0x34] sm:$0xf]
      %v4166 = vld [vmem:[%s790 + $0x38] sm:$0xf]
      %v4167 = vld [vmem:[%s790 + $0x3c] sm:$0xf]
      %v4169 = vunpack.c.l.b16 %v4151
      %v4170 = vpack.c.b16 %v4070, %v4169
      %v4171 = vrot.slane %v4170, 1
      %v4172 = vrot.slane %v4073, 1
      %v4173 = vsel %vm525, %v4171, %v4172
      %v4191 = vunpack.c.l.b16 %v4152
      %v4192 = vunpack.c.l.b16 %v4153
      %v4193 = vunpack.c.l.b16 %v4154
      %v4194 = vunpack.c.l.b16 %v4155
      %v4195 = vunpack.c.l.b16 %v4156
      %v4196 = vunpack.c.l.b16 %v4157
      %v4197 = vunpack.c.l.b16 %v4158
      %v4198 = vunpack.c.l.b16 %v4159
      %v4199 = vunpack.c.l.b16 %v4160
      %v4200 = vunpack.c.l.b16 %v4161
      %v4201 = vunpack.c.l.b16 %v4162
      %v4202 = vunpack.c.l.b16 %v4163
      %v4203 = vunpack.c.l.b16 %v4164
      %v4204 = vunpack.c.l.b16 %v4165
      %v4205 = vunpack.c.l.b16 %v4166
      %v4206 = vunpack.c.l.b16 %v4167
      %v4207 = vpack.c.b16 %v4192, %v4191
      %v4208 = vpack.c.b16 %v4194, %v4193
      %v4209 = vpack.c.b16 %v4196, %v4195
      %v4210 = vpack.c.b16 %v4198, %v4197
      %v4211 = vpack.c.b16 %v4200, %v4199
      %v4212 = vpack.c.b16 %v4202, %v4201
      %v4213 = vpack.c.b16 %v4204, %v4203
      %v4214 = vpack.c.b16 %v4206, %v4205
      %4223 = vmatpush.bf16.msra.mxu0 %v4214
      %4224 = vmatpush.bf16.msra.mxu0 %v4213
      %4225 = vmatpush.bf16.msra.mxu0 %v4212
      %4226 = vmatpush.bf16.msra.mxu0 %v4211
      %4227 = vmatpush.bf16.msra.mxu0 %v4210
      %4228 = vmatpush.bf16.msra.mxu0 %v4209
      %4229 = vmatpush.bf16.msra.mxu0 %v4208
      %4230 = vmatpush.bf16.msra.mxu0 %v4207
      %4231 = vmatmul.bf16.gmra.mxu0 %v4173
      %v4232 = vpop.f32.mrf.mxu0
      %v4233 = vadd.f32 0.0, %v4232
      %v4234 = vpop.f32.mrf.mxu0
      %v4235 = vadd.f32 0.0, %v4234
      %4236 = vdwg.mxu0
      %v4237 = vadd.f32 %v4149, %v4233
      %v4238 = vadd.f32 %v4150, %v4235
      %s4239 = scalar_lea.vmem %s287, 72
      %v4240 = vld [vmem:[%s4239] sm:$0xf]
      %v4241 = vld [vmem:[%s4239 + $0x4] sm:$0xf]
      %v4242 = vld [vmem:[%s881] sm:$0xf]
      %v4243 = vld [vmem:[%s881 + $0x4] sm:$0xf]
      %v4244 = vld [vmem:[%s881 + $0x8] sm:$0xf]
      %v4245 = vld [vmem:[%s881 + $0xc] sm:$0xf]
      %v4246 = vld [vmem:[%s881 + $0x10] sm:$0xf]
      %v4247 = vld [vmem:[%s881 + $0x14] sm:$0xf]
      %v4248 = vld [vmem:[%s881 + $0x18] sm:$0xf]
      %v4249 = vld [vmem:[%s881 + $0x1c] sm:$0xf]
      %v4250 = vld [vmem:[%s881 + $0x20] sm:$0xf]
      %v4251 = vld [vmem:[%s881 + $0x24] sm:$0xf]
      %v4252 = vld [vmem:[%s881 + $0x28] sm:$0xf]
      %v4253 = vld [vmem:[%s881 + $0x2c] sm:$0xf]
      %v4254 = vld [vmem:[%s881 + $0x30] sm:$0xf]
      %v4255 = vld [vmem:[%s881 + $0x34] sm:$0xf]
      %v4256 = vld [vmem:[%s881 + $0x38] sm:$0xf]
      %v4257 = vld [vmem:[%s881 + $0x3c] sm:$0xf]
      %v4260 = vunpack.c.l.b16 %v4240
      %v4261 = vunpack.c.l.b16 %v4241
      %v4262 = vpack.c.b16 %v4261, %v4260
      %v4280 = vunpack.c.l.b16 %v4242
      %v4281 = vunpack.c.l.b16 %v4243
      %v4282 = vunpack.c.l.b16 %v4244
      %v4283 = vunpack.c.l.b16 %v4245
      %v4284 = vunpack.c.l.b16 %v4246
      %v4285 = vunpack.c.l.b16 %v4247
      %v4286 = vunpack.c.l.b16 %v4248
      %v4287 = vunpack.c.l.b16 %v4249
      %v4288 = vunpack.c.l.b16 %v4250
      %v4289 = vunpack.c.l.b16 %v4251
      %v4290 = vunpack.c.l.b16 %v4252
      %v4291 = vunpack.c.l.b16 %v4253
      %v4292 = vunpack.c.l.b16 %v4254
      %v4293 = vunpack.c.l.b16 %v4255
      %v4294 = vunpack.c.l.b16 %v4256
      %v4295 = vunpack.c.l.b16 %v4257
      %v4296 = vpack.c.b16 %v4281, %v4280
      %v4297 = vpack.c.b16 %v4283, %v4282
      %v4298 = vpack.c.b16 %v4285, %v4284
      %v4299 = vpack.c.b16 %v4287, %v4286
      %v4300 = vpack.c.b16 %v4289, %v4288
      %v4301 = vpack.c.b16 %v4291, %v4290
      %v4302 = vpack.c.b16 %v4293, %v4292
      %v4303 = vpack.c.b16 %v4295, %v4294
      %4312 = vmatpush.bf16.msra.mxu0 %v4303
      %4313 = vmatpush.bf16.msra.mxu0 %v4302
      %4314 = vmatpush.bf16.msra.mxu0 %v4301
      %4315 = vmatpush.bf16.msra.mxu0 %v4300
      %4316 = vmatpush.bf16.msra.mxu0 %v4299
      %4317 = vmatpush.bf16.msra.mxu0 %v4298
      %4318 = vmatpush.bf16.msra.mxu0 %v4297
      %4319 = vmatpush.bf16.msra.mxu0 %v4296
      %4320 = vmatmul.bf16.gmra.mxu0 %v4262
      %v4321 = vpop.f32.mrf.mxu0
      %v4322 = vadd.f32 0.0, %v4321
      %v4323 = vpop.f32.mrf.mxu0
      %v4324 = vadd.f32 0.0, %v4323
      %4325 = vdwg.mxu0
      %v4326 = vadd.f32 %v4237, %v4322
      %v4327 = vadd.f32 %v4238, %v4324
      %v4328 = vld [vmem:[%s4239] sm:$0xf]
      %v4329 = vld [vmem:[%s4239 + $0x4] sm:$0xf]
      %v4330 = vld [vmem:[%s4239 + $0x8] sm:$0x1]
      %v4331 = vld [vmem:[%s971] sm:$0xf]
      %v4332 = vld [vmem:[%s971 + $0x4] sm:$0xf]
      %v4333 = vld [vmem:[%s971 + $0x8] sm:$0xf]
      %v4334 = vld [vmem:[%s971 + $0xc] sm:$0xf]
      %v4335 = vld [vmem:[%s971 + $0x10] sm:$0xf]
      %v4336 = vld [vmem:[%s971 + $0x14] sm:$0xf]
      %v4337 = vld [vmem:[%s971 + $0x18] sm:$0xf]
      %v4338 = vld [vmem:[%s971 + $0x1c] sm:$0xf]
      %v4339 = vld [vmem:[%s971 + $0x20] sm:$0xf]
      %v4340 = vld [vmem:[%s971 + $0x24] sm:$0xf]
      %v4341 = vld [vmem:[%s971 + $0x28] sm:$0xf]
      %v4342 = vld [vmem:[%s971 + $0x2c] sm:$0xf]
      %v4343 = vld [vmem:[%s971 + $0x30] sm:$0xf]
      %v4344 = vld [vmem:[%s971 + $0x34] sm:$0xf]
      %v4345 = vld [vmem:[%s971 + $0x38] sm:$0xf]
      %v4346 = vld [vmem:[%s971 + $0x3c] sm:$0xf]
      %v4350 = vunpack.c.l.b16 %v4328
      %v4351 = vunpack.c.l.b16 %v4329
      %v4352 = vunpack.c.l.b16 %v4330
      %v4353 = vpack.c.b16 %v4351, %v4350
      %v4354 = vpack.c.b16 %v4352, %v4352
      %v4356 = vshrl.u32 %v4353, 16
      %v4358 = vshll.u32 %v4353, 16
      %v4360 = vrot.slane %v4358, 1
      %v4361 = vor.u32 %v4356, %v4360
      %v4363 = vshll.u32 %v4354, 16
      %v4365 = vrot.slane %v4363, 1
      %v4366 = vsel %vm365, %v4361, %v4365
      %v4384 = vunpack.c.l.b16 %v4331
      %v4385 = vunpack.c.l.b16 %v4332
      %v4386 = vunpack.c.l.b16 %v4333
      %v4387 = vunpack.c.l.b16 %v4334
      %v4388 = vunpack.c.l.b16 %v4335
      %v4389 = vunpack.c.l.b16 %v4336
      %v4390 = vunpack.c.l.b16 %v4337
      %v4391 = vunpack.c.l.b16 %v4338
      %v4392 = vunpack.c.l.b16 %v4339
      %v4393 = vunpack.c.l.b16 %v4340
      %v4394 = vunpack.c.l.b16 %v4341
      %v4395 = vunpack.c.l.b16 %v4342
      %v4396 = vunpack.c.l.b16 %v4343
      %v4397 = vunpack.c.l.b16 %v4344
      %v4398 = vunpack.c.l.b16 %v4345
      %v4399 = vunpack.c.l.b16 %v4346
      %v4400 = vpack.c.b16 %v4385, %v4384
      %v4401 = vpack.c.b16 %v4387, %v4386
      %v4402 = vpack.c.b16 %v4389, %v4388
      %v4403 = vpack.c.b16 %v4391, %v4390
      %v4404 = vpack.c.b16 %v4393, %v4392
      %v4405 = vpack.c.b16 %v4395, %v4394
      %v4406 = vpack.c.b16 %v4397, %v4396
      %v4407 = vpack.c.b16 %v4399, %v4398
      %4416 = vmatpush.bf16.msra.mxu0 %v4407
      %4417 = vmatpush.bf16.msra.mxu0 %v4406
      %4418 = vmatpush.bf16.msra.mxu0 %v4405
      %4419 = vmatpush.bf16.msra.mxu0 %v4404
      %4420 = vmatpush.bf16.msra.mxu0 %v4403
      %4421 = vmatpush.bf16.msra.mxu0 %v4402
      %4422 = vmatpush.bf16.msra.mxu0 %v4401
      %4423 = vmatpush.bf16.msra.mxu0 %v4400
      %4424 = vmatmul.bf16.gmra.mxu0 %v4366
      %v4425 = vpop.f32.mrf.mxu0
      %v4426 = vadd.f32 0.0, %v4425
      %v4427 = vpop.f32.mrf.mxu0
      %v4428 = vadd.f32 0.0, %v4427
      %4429 = vdwg.mxu0
      %v4430 = vadd.f32 %v4326, %v4426
      %v4431 = vadd.f32 %v4327, %v4428
      %v4432 = vld [vmem:[%s4239] sm:$0xe]
      %v4433 = vld [vmem:[%s1074] sm:$0xf]
      %v4434 = vld [vmem:[%s1074 + $0x4] sm:$0xf]
      %v4435 = vld [vmem:[%s1074 + $0x8] sm:$0xf]
      %v4436 = vld [vmem:[%s1074 + $0xc] sm:$0xf]
      %v4437 = vld [vmem:[%s1074 + $0x10] sm:$0xf]
      %v4438 = vld [vmem:[%s1074 + $0x14] sm:$0xf]
      %v4439 = vld [vmem:[%s1074 + $0x18] sm:$0xf]
      %v4440 = vld [vmem:[%s1074 + $0x1c] sm:$0xf]
      %v4441 = vld [vmem:[%s1074 + $0x20] sm:$0xf]
      %v4442 = vld [vmem:[%s1074 + $0x24] sm:$0xf]
      %v4443 = vld [vmem:[%s1074 + $0x28] sm:$0xf]
      %v4444 = vld [vmem:[%s1074 + $0x2c] sm:$0xf]
      %v4445 = vld [vmem:[%s1074 + $0x30] sm:$0xf]
      %v4446 = vld [vmem:[%s1074 + $0x34] sm:$0xf]
      %v4447 = vld [vmem:[%s1074 + $0x38] sm:$0xf]
      %v4448 = vld [vmem:[%s1074 + $0x3c] sm:$0xf]
      %v4450 = vunpack.c.l.b16 %v4432
      %v4451 = vpack.c.b16 %v4351, %v4450
      %v4452 = vrot.slane %v4451, 1
      %v4453 = vrot.slane %v4354, 1
      %v4454 = vsel %vm525, %v4452, %v4453
      %v4472 = vunpack.c.l.b16 %v4433
      %v4473 = vunpack.c.l.b16 %v4434
      %v4474 = vunpack.c.l.b16 %v4435
      %v4475 = vunpack.c.l.b16 %v4436
      %v4476 = vunpack.c.l.b16 %v4437
      %v4477 = vunpack.c.l.b16 %v4438
      %v4478 = vunpack.c.l.b16 %v4439
      %v4479 = vunpack.c.l.b16 %v4440
      %v4480 = vunpack.c.l.b16 %v4441
      %v4481 = vunpack.c.l.b16 %v4442
      %v4482 = vunpack.c.l.b16 %v4443
      %v4483 = vunpack.c.l.b16 %v4444
      %v4484 = vunpack.c.l.b16 %v4445
      %v4485 = vunpack.c.l.b16 %v4446
      %v4486 = vunpack.c.l.b16 %v4447
      %v4487 = vunpack.c.l.b16 %v4448
      %v4488 = vpack.c.b16 %v4473, %v4472
      %v4489 = vpack.c.b16 %v4475, %v4474
      %v4490 = vpack.c.b16 %v4477, %v4476
      %v4491 = vpack.c.b16 %v4479, %v4478
      %v4492 = vpack.c.b16 %v4481, %v4480
      %v4493 = vpack.c.b16 %v4483, %v4482
      %v4494 = vpack.c.b16 %v4485, %v4484
      %v4495 = vpack.c.b16 %v4487, %v4486
      %4504 = vmatpush.bf16.msra.mxu0 %v4495
      %4505 = vmatpush.bf16.msra.mxu0 %v4494
      %4506 = vmatpush.bf16.msra.mxu0 %v4493
      %4507 = vmatpush.bf16.msra.mxu0 %v4492
      %4508 = vmatpush.bf16.msra.mxu0 %v4491
      %4509 = vmatpush.bf16.msra.mxu0 %v4490
      %4510 = vmatpush.bf16.msra.mxu0 %v4489
      %4511 = vmatpush.bf16.msra.mxu0 %v4488
      %4512 = vmatmul.bf16.gmra.mxu0 %v4454
      %v4513 = vpop.f32.mrf.mxu0
      %v4514 = vadd.f32 0.0, %v4513
      %v4515 = vpop.f32.mrf.mxu0
      %v4516 = vadd.f32 0.0, %v4515
      %4517 = vdwg.mxu0
      %v4518 = vadd.f32 %v4430, %v4514
      %v4519 = vadd.f32 %v4431, %v4516
      %v4520 = vadd.f32 %v4518, %v1163
      %v4521 = vadd.f32 %v4519, %v1163
      %v4522 = vmax.f32 %v4520, 0.0
      %v4523 = vmax.f32 %v4521, 0.0
      %v4524 = vpack.c.bf16 %v4522, %v4522
      %v4525 = vpack.c.bf16 %v4523, %v4523
      %s4526 = scalar_lea.vmem %s318, 32
      %4527 = vst [vmem:[%s4526] sm:$0xf] %v4524
      %4528 = vst [vmem:[%s4526 + $0x4] sm:$0xf] %v4525
      %v4529 = vld [vmem:[%s3400] sm:$0xf]
      %v4530 = vld [vmem:[%s3400 + $0x4] sm:$0xf]
      %v4531 = vld [vmem:[%s2] sm:$0xf]
      %v4532 = vld [vmem:[%s2 + $0x4] sm:$0xf]
      %v4533 = vld [vmem:[%s2 + $0x8] sm:$0xf]
      %v4534 = vld [vmem:[%s2 + $0xc] sm:$0xf]
      %v4535 = vld [vmem:[%s2 + $0x10] sm:$0xf]
      %v4536 = vld [vmem:[%s2 + $0x14] sm:$0xf]
      %v4537 = vld [vmem:[%s2 + $0x18] sm:$0xf]
      %v4538 = vld [vmem:[%s2 + $0x1c] sm:$0xf]
      %v4539 = vld [vmem:[%s2 + $0x20] sm:$0xf]
      %v4540 = vld [vmem:[%s2 + $0x24] sm:$0xf]
      %v4541 = vld [vmem:[%s2 + $0x28] sm:$0xf]
      %v4542 = vld [vmem:[%s2 + $0x2c] sm:$0xf]
      %v4543 = vld [vmem:[%s2 + $0x30] sm:$0xf]
      %v4544 = vld [vmem:[%s2 + $0x34] sm:$0xf]
      %v4545 = vld [vmem:[%s2 + $0x38] sm:$0xf]
      %v4546 = vld [vmem:[%s2 + $0x3c] sm:$0xf]
      %v4547 = vld [vmem:[%s3400 + $0x8] sm:$0x1]
      %v4548 = vld [vmem:[%s340] sm:$0xf]
      %v4549 = vld [vmem:[%s340 + $0x4] sm:$0xf]
      %v4550 = vld [vmem:[%s340 + $0x8] sm:$0xf]
      %v4551 = vld [vmem:[%s340 + $0xc] sm:$0xf]
      %v4552 = vld [vmem:[%s340 + $0x10] sm:$0xf]
      %v4553 = vld [vmem:[%s340 + $0x14] sm:$0xf]
      %v4554 = vld [vmem:[%s340 + $0x18] sm:$0xf]
      %v4555 = vld [vmem:[%s340 + $0x1c] sm:$0xf]
      %v4556 = vld [vmem:[%s340 + $0x20] sm:$0xf]
      %v4557 = vld [vmem:[%s340 + $0x24] sm:$0xf]
      %v4558 = vld [vmem:[%s340 + $0x28] sm:$0xf]
      %v4559 = vld [vmem:[%s340 + $0x2c] sm:$0xf]
      %v4560 = vld [vmem:[%s340 + $0x30] sm:$0xf]
      %v4561 = vld [vmem:[%s340 + $0x34] sm:$0xf]
      %v4562 = vld [vmem:[%s340 + $0x38] sm:$0xf]
      %v4563 = vld [vmem:[%s340 + $0x3c] sm:$0xf]
      %v4567 = vunpack.c.l.b16 %v4529
      %v4568 = vunpack.c.l.b16 %v4530
      %v4569 = vunpack.c.l.b16 %v4547
      %v4570 = vpack.c.b16 %v4568, %v4567
      %v4571 = vpack.c.b16 %v4569, %v4569
      %v4573 = vshrl.u32 %v4570, 16
      %v4575 = vshll.u32 %v4570, 16
      %v4577 = vrot.slane %v4575, 1
      %v4578 = vor.u32 %v4573, %v4577
      %v4580 = vshll.u32 %v4571, 16
      %v4582 = vrot.slane %v4580, 1
      %v4583 = vsel %vm365, %v4578, %v4582
      %v4601 = vunpack.c.l.b16 %v4548
      %v4602 = vunpack.c.l.b16 %v4549
      %v4603 = vunpack.c.l.b16 %v4550
      %v4604 = vunpack.c.l.b16 %v4551
      %v4605 = vunpack.c.l.b16 %v4552
      %v4606 = vunpack.c.l.b16 %v4553
      %v4607 = vunpack.c.l.b16 %v4554
      %v4608 = vunpack.c.l.b16 %v4555
      %v4609 = vunpack.c.l.b16 %v4556
      %v4610 = vunpack.c.l.b16 %v4557
      %v4611 = vunpack.c.l.b16 %v4558
      %v4612 = vunpack.c.l.b16 %v4559
      %v4613 = vunpack.c.l.b16 %v4560
      %v4614 = vunpack.c.l.b16 %v4561
      %v4615 = vunpack.c.l.b16 %v4562
      %v4616 = vunpack.c.l.b16 %v4563
      %v4617 = vpack.c.b16 %v4602, %v4601
      %v4618 = vpack.c.b16 %v4604, %v4603
      %v4619 = vpack.c.b16 %v4606, %v4605
      %v4620 = vpack.c.b16 %v4608, %v4607
      %v4621 = vpack.c.b16 %v4610, %v4609
      %v4622 = vpack.c.b16 %v4612, %v4611
      %v4623 = vpack.c.b16 %v4614, %v4613
      %v4624 = vpack.c.b16 %v4616, %v4615
      %4633 = vmatpush.bf16.msra.mxu0 %v4624
      %4634 = vmatpush.bf16.msra.mxu0 %v4623
      %4635 = vmatpush.bf16.msra.mxu0 %v4622
      %4636 = vmatpush.bf16.msra.mxu0 %v4621
      %4637 = vmatpush.bf16.msra.mxu0 %v4620
      %4638 = vmatpush.bf16.msra.mxu0 %v4619
      %4639 = vmatpush.bf16.msra.mxu0 %v4618
      %4640 = vmatpush.bf16.msra.mxu0 %v4617
      %4641 = vmatmul.bf16.gmra.mxu0 %v4583
      %v4642 = vpop.f32.mrf.mxu0
      %v4643 = vadd.f32 0.0, %v4642
      %v4644 = vpop.f32.mrf.mxu0
      %v4645 = vadd.f32 0.0, %v4644
      %4646 = vdwg.mxu0
      %v4664 = vunpack.c.l.b16 %v4531
      %v4665 = vunpack.c.l.b16 %v4532
      %v4666 = vunpack.c.l.b16 %v4533
      %v4667 = vunpack.c.l.b16 %v4534
      %v4668 = vunpack.c.l.b16 %v4535
      %v4669 = vunpack.c.l.b16 %v4536
      %v4670 = vunpack.c.l.b16 %v4537
      %v4671 = vunpack.c.l.b16 %v4538
      %v4672 = vunpack.c.l.b16 %v4539
      %v4673 = vunpack.c.l.b16 %v4540
      %v4674 = vunpack.c.l.b16 %v4541
      %v4675 = vunpack.c.l.b16 %v4542
      %v4676 = vunpack.c.l.b16 %v4543
      %v4677 = vunpack.c.l.b16 %v4544
      %v4678 = vunpack.c.l.b16 %v4545
      %v4679 = vunpack.c.l.b16 %v4546
      %v4680 = vpack.c.b16 %v4665, %v4664
      %v4681 = vpack.c.b16 %v4667, %v4666
      %v4682 = vpack.c.b16 %v4669, %v4668
      %v4683 = vpack.c.b16 %v4671, %v4670
      %v4684 = vpack.c.b16 %v4673, %v4672
      %v4685 = vpack.c.b16 %v4675, %v4674
      %v4686 = vpack.c.b16 %v4677, %v4676
      %v4687 = vpack.c.b16 %v4679, %v4678
      %4696 = vmatpush.bf16.msra.mxu0 %v4687
      %4697 = vmatpush.bf16.msra.mxu0 %v4686
      %4698 = vmatpush.bf16.msra.mxu0 %v4685
      %4699 = vmatpush.bf16.msra.mxu0 %v4684
      %4700 = vmatpush.bf16.msra.mxu0 %v4683
      %4701 = vmatpush.bf16.msra.mxu0 %v4682
      %4702 = vmatpush.bf16.msra.mxu0 %v4681
      %4703 = vmatpush.bf16.msra.mxu0 %v4680
      %4704 = vmatmul.bf16.gmra.mxu0 %v4570
      %v4705 = vpop.f32.mrf.mxu0
      %v4706 = vadd.f32 %v4643, %v4705
      %v4707 = vpop.f32.mrf.mxu0
      %v4708 = vadd.f32 %v4645, %v4707
      %4709 = vdwg.mxu0
      %v4710 = vld [vmem:[%s3400] sm:$0xe]
      %v4711 = vld [vmem:[%s505] sm:$0xf]
      %v4712 = vld [vmem:[%s505 + $0x4] sm:$0xf]
      %v4713 = vld [vmem:[%s505 + $0x8] sm:$0xf]
      %v4714 = vld [vmem:[%s505 + $0xc] sm:$0xf]
      %v4715 = vld [vmem:[%s505 + $0x10] sm:$0xf]
      %v4716 = vld [vmem:[%s505 + $0x14] sm:$0xf]
      %v4717 = vld [vmem:[%s505 + $0x18] sm:$0xf]
      %v4718 = vld [vmem:[%s505 + $0x1c] sm:$0xf]
      %v4719 = vld [vmem:[%s505 + $0x20] sm:$0xf]
      %v4720 = vld [vmem:[%s505 + $0x24] sm:$0xf]
      %v4721 = vld [vmem:[%s505 + $0x28] sm:$0xf]
      %v4722 = vld [vmem:[%s505 + $0x2c] sm:$0xf]
      %v4723 = vld [vmem:[%s505 + $0x30] sm:$0xf]
      %v4724 = vld [vmem:[%s505 + $0x34] sm:$0xf]
      %v4725 = vld [vmem:[%s505 + $0x38] sm:$0xf]
      %v4726 = vld [vmem:[%s505 + $0x3c] sm:$0xf]
      %v4728 = vunpack.c.l.b16 %v4710
      %v4729 = vpack.c.b16 %v4568, %v4728
      %v4730 = vrot.slane %v4729, 1
      %v4731 = vrot.slane %v4571, 1
      %v4732 = vsel %vm525, %v4730, %v4731
      %v4750 = vunpack.c.l.b16 %v4711
      %v4751 = vunpack.c.l.b16 %v4712
      %v4752 = vunpack.c.l.b16 %v4713
      %v4753 = vunpack.c.l.b16 %v4714
      %v4754 = vunpack.c.l.b16 %v4715
      %v4755 = vunpack.c.l.b16 %v4716
      %v4756 = vunpack.c.l.b16 %v4717
      %v4757 = vunpack.c.l.b16 %v4718
      %v4758 = vunpack.c.l.b16 %v4719
      %v4759 = vunpack.c.l.b16 %v4720
      %v4760 = vunpack.c.l.b16 %v4721
      %v4761 = vunpack.c.l.b16 %v4722
      %v4762 = vunpack.c.l.b16 %v4723
      %v4763 = vunpack.c.l.b16 %v4724
      %v4764 = vunpack.c.l.b16 %v4725
      %v4765 = vunpack.c.l.b16 %v4726
      %v4766 = vpack.c.b16 %v4751, %v4750
      %v4767 = vpack.c.b16 %v4753, %v4752
      %v4768 = vpack.c.b16 %v4755, %v4754
      %v4769 = vpack.c.b16 %v4757, %v4756
      %v4770 = vpack.c.b16 %v4759, %v4758
      %v4771 = vpack.c.b16 %v4761, %v4760
      %v4772 = vpack.c.b16 %v4763, %v4762
      %v4773 = vpack.c.b16 %v4765, %v4764
      %4782 = vmatpush.bf16.msra.mxu0 %v4773
      %4783 = vmatpush.bf16.msra.mxu0 %v4772
      %4784 = vmatpush.bf16.msra.mxu0 %v4771
      %4785 = vmatpush.bf16.msra.mxu0 %v4770
      %4786 = vmatpush.bf16.msra.mxu0 %v4769
      %4787 = vmatpush.bf16.msra.mxu0 %v4768
      %4788 = vmatpush.bf16.msra.mxu0 %v4767
      %4789 = vmatpush.bf16.msra.mxu0 %v4766
      %4790 = vmatmul.bf16.gmra.mxu0 %v4732
      %v4791 = vpop.f32.mrf.mxu0
      %v4792 = vadd.f32 0.0, %v4791
      %v4793 = vpop.f32.mrf.mxu0
      %v4794 = vadd.f32 0.0, %v4793
      %4795 = vdwg.mxu0
      %v4796 = vadd.f32 %v4706, %v4792
      %v4797 = vadd.f32 %v4708, %v4794
      %v4798 = vld [vmem:[%s4239] sm:$0xf]
      %v4799 = vld [vmem:[%s4239 + $0x4] sm:$0xf]
      %v4800 = vld [vmem:[%s597] sm:$0xf]
      %v4801 = vld [vmem:[%s597 + $0x4] sm:$0xf]
      %v4802 = vld [vmem:[%s597 + $0x8] sm:$0xf]
      %v4803 = vld [vmem:[%s597 + $0xc] sm:$0xf]
      %v4804 = vld [vmem:[%s597 + $0x10] sm:$0xf]
      %v4805 = vld [vmem:[%s597 + $0x14] sm:$0xf]
      %v4806 = vld [vmem:[%s597 + $0x18] sm:$0xf]
      %v4807 = vld [vmem:[%s597 + $0x1c] sm:$0xf]
      %v4808 = vld [vmem:[%s597 + $0x20] sm:$0xf]
      %v4809 = vld [vmem:[%s597 + $0x24] sm:$0xf]
      %v4810 = vld [vmem:[%s597 + $0x28] sm:$0xf]
      %v4811 = vld [vmem:[%s597 + $0x2c] sm:$0xf]
      %v4812 = vld [vmem:[%s597 + $0x30] sm:$0xf]
      %v4813 = vld [vmem:[%s597 + $0x34] sm:$0xf]
      %v4814 = vld [vmem:[%s597 + $0x38] sm:$0xf]
      %v4815 = vld [vmem:[%s597 + $0x3c] sm:$0xf]
      %v4818 = vunpack.c.l.b16 %v4798
      %v4819 = vunpack.c.l.b16 %v4799
      %v4820 = vpack.c.b16 %v4819, %v4818
      %v4838 = vunpack.c.l.b16 %v4800
      %v4839 = vunpack.c.l.b16 %v4801
      %v4840 = vunpack.c.l.b16 %v4802
      %v4841 = vunpack.c.l.b16 %v4803
      %v4842 = vunpack.c.l.b16 %v4804
      %v4843 = vunpack.c.l.b16 %v4805
      %v4844 = vunpack.c.l.b16 %v4806
      %v4845 = vunpack.c.l.b16 %v4807
      %v4846 = vunpack.c.l.b16 %v4808
      %v4847 = vunpack.c.l.b16 %v4809
      %v4848 = vunpack.c.l.b16 %v4810
      %v4849 = vunpack.c.l.b16 %v4811
      %v4850 = vunpack.c.l.b16 %v4812
      %v4851 = vunpack.c.l.b16 %v4813
      %v4852 = vunpack.c.l.b16 %v4814
      %v4853 = vunpack.c.l.b16 %v4815
      %v4854 = vpack.c.b16 %v4839, %v4838
      %v4855 = vpack.c.b16 %v4841, %v4840
      %v4856 = vpack.c.b16 %v4843, %v4842
      %v4857 = vpack.c.b16 %v4845, %v4844
      %v4858 = vpack.c.b16 %v4847, %v4846
      %v4859 = vpack.c.b16 %v4849, %v4848
      %v4860 = vpack.c.b16 %v4851, %v4850
      %v4861 = vpack.c.b16 %v4853, %v4852
      %4870 = vmatpush.bf16.msra.mxu0 %v4861
      %4871 = vmatpush.bf16.msra.mxu0 %v4860
      %4872 = vmatpush.bf16.msra.mxu0 %v4859
      %4873 = vmatpush.bf16.msra.mxu0 %v4858
      %4874 = vmatpush.bf16.msra.mxu0 %v4857
      %4875 = vmatpush.bf16.msra.mxu0 %v4856
      %4876 = vmatpush.bf16.msra.mxu0 %v4855
      %4877 = vmatpush.bf16.msra.mxu0 %v4854
      %4878 = vmatmul.bf16.gmra.mxu0 %v4820
      %v4879 = vpop.f32.mrf.mxu0
      %v4880 = vadd.f32 0.0, %v4879
      %v4881 = vpop.f32.mrf.mxu0
      %v4882 = vadd.f32 0.0, %v4881
      %4883 = vdwg.mxu0
      %v4884 = vadd.f32 %v4796, %v4880
      %v4885 = vadd.f32 %v4797, %v4882
      %v4886 = vld [vmem:[%s4239] sm:$0xf]
      %v4887 = vld [vmem:[%s4239 + $0x4] sm:$0xf]
      %v4888 = vld [vmem:[%s4239 + $0x8] sm:$0x1]
      %v4889 = vld [vmem:[%s687] sm:$0xf]
      %v4890 = vld [vmem:[%s687 + $0x4] sm:$0xf]
      %v4891 = vld [vmem:[%s687 + $0x8] sm:$0xf]
      %v4892 = vld [vmem:[%s687 + $0xc] sm:$0xf]
      %v4893 = vld [vmem:[%s687 + $0x10] sm:$0xf]
      %v4894 = vld [vmem:[%s687 + $0x14] sm:$0xf]
      %v4895 = vld [vmem:[%s687 + $0x18] sm:$0xf]
      %v4896 = vld [vmem:[%s687 + $0x1c] sm:$0xf]
      %v4897 = vld [vmem:[%s687 + $0x20] sm:$0xf]
      %v4898 = vld [vmem:[%s687 + $0x24] sm:$0xf]
      %v4899 = vld [vmem:[%s687 + $0x28] sm:$0xf]
      %v4900 = vld [vmem:[%s687 + $0x2c] sm:$0xf]
      %v4901 = vld [vmem:[%s687 + $0x30] sm:$0xf]
      %v4902 = vld [vmem:[%s687 + $0x34] sm:$0xf]
      %v4903 = vld [vmem:[%s687 + $0x38] sm:$0xf]
      %v4904 = vld [vmem:[%s687 + $0x3c] sm:$0xf]
      %v4908 = vunpack.c.l.b16 %v4886
      %v4909 = vunpack.c.l.b16 %v4887
      %v4910 = vunpack.c.l.b16 %v4888
      %v4911 = vpack.c.b16 %v4909, %v4908
      %v4912 = vpack.c.b16 %v4910, %v4910
      %v4914 = vshrl.u32 %v4911, 16
      %v4916 = vshll.u32 %v4911, 16
      %v4918 = vrot.slane %v4916, 1
      %v4919 = vor.u32 %v4914, %v4918
      %v4921 = vshll.u32 %v4912, 16
      %v4923 = vrot.slane %v4921, 1
      %v4924 = vsel %vm365, %v4919, %v4923
      %v4942 = vunpack.c.l.b16 %v4889
      %v4943 = vunpack.c.l.b16 %v4890
      %v4944 = vunpack.c.l.b16 %v4891
      %v4945 = vunpack.c.l.b16 %v4892
      %v4946 = vunpack.c.l.b16 %v4893
      %v4947 = vunpack.c.l.b16 %v4894
      %v4948 = vunpack.c.l.b16 %v4895
      %v4949 = vunpack.c.l.b16 %v4896
      %v4950 = vunpack.c.l.b16 %v4897
      %v4951 = vunpack.c.l.b16 %v4898
      %v4952 = vunpack.c.l.b16 %v4899
      %v4953 = vunpack.c.l.b16 %v4900
      %v4954 = vunpack.c.l.b16 %v4901
      %v4955 = vunpack.c.l.b16 %v4902
      %v4956 = vunpack.c.l.b16 %v4903
      %v4957 = vunpack.c.l.b16 %v4904
      %v4958 = vpack.c.b16 %v4943, %v4942
      %v4959 = vpack.c.b16 %v4945, %v4944
      %v4960 = vpack.c.b16 %v4947, %v4946
      %v4961 = vpack.c.b16 %v4949, %v4948
      %v4962 = vpack.c.b16 %v4951, %v4950
      %v4963 = vpack.c.b16 %v4953, %v4952
      %v4964 = vpack.c.b16 %v4955, %v4954
      %v4965 = vpack.c.b16 %v4957, %v4956
      %4974 = vmatpush.bf16.msra.mxu0 %v4965
      %4975 = vmatpush.bf16.msra.mxu0 %v4964
      %4976 = vmatpush.bf16.msra.mxu0 %v4963
      %4977 = vmatpush.bf16.msra.mxu0 %v4962
      %4978 = vmatpush.bf16.msra.mxu0 %v4961
      %4979 = vmatpush.bf16.msra.mxu0 %v4960
      %4980 = vmatpush.bf16.msra.mxu0 %v4959
      %4981 = vmatpush.bf16.msra.mxu0 %v4958
      %4982 = vmatmul.bf16.gmra.mxu0 %v4924
      %v4983 = vpop.f32.mrf.mxu0
      %v4984 = vadd.f32 0.0, %v4983
      %v4985 = vpop.f32.mrf.mxu0
      %v4986 = vadd.f32 0.0, %v4985
      %4987 = vdwg.mxu0
      %v4988 = vadd.f32 %v4884, %v4984
      %v4989 = vadd.f32 %v4885, %v4986
      %v4990 = vld [vmem:[%s4239] sm:$0xe]
      %v4991 = vld [vmem:[%s790] sm:$0xf]
      %v4992 = vld [vmem:[%s790 + $0x4] sm:$0xf]
      %v4993 = vld [vmem:[%s790 + $0x8] sm:$0xf]
      %v4994 = vld [vmem:[%s790 + $0xc] sm:$0xf]
      %v4995 = vld [vmem:[%s790 + $0x10] sm:$0xf]
      %v4996 = vld [vmem:[%s790 + $0x14] sm:$0xf]
      %v4997 = vld [vmem:[%s790 + $0x18] sm:$0xf]
      %v4998 = vld [vmem:[%s790 + $0x1c] sm:$0xf]
      %v4999 = vld [vmem:[%s790 + $0x20] sm:$0xf]
      %v5000 = vld [vmem:[%s790 + $0x24] sm:$0xf]
      %v5001 = vld [vmem:[%s790 + $0x28] sm:$0xf]
      %v5002 = vld [vmem:[%s790 + $0x2c] sm:$0xf]
      %v5003 = vld [vmem:[%s790 + $0x30] sm:$0xf]
      %v5004 = vld [vmem:[%s790 + $0x34] sm:$0xf]
      %v5005 = vld [vmem:[%s790 + $0x38] sm:$0xf]
      %v5006 = vld [vmem:[%s790 + $0x3c] sm:$0xf]
      %v5008 = vunpack.c.l.b16 %v4990
      %v5009 = vpack.c.b16 %v4909, %v5008
      %v5010 = vrot.slane %v5009, 1
      %v5011 = vrot.slane %v4912, 1
      %v5012 = vsel %vm525, %v5010, %v5011
      %v5030 = vunpack.c.l.b16 %v4991
      %v5031 = vunpack.c.l.b16 %v4992
      %v5032 = vunpack.c.l.b16 %v4993
      %v5033 = vunpack.c.l.b16 %v4994
      %v5034 = vunpack.c.l.b16 %v4995
      %v5035 = vunpack.c.l.b16 %v4996
      %v5036 = vunpack.c.l.b16 %v4997
      %v5037 = vunpack.c.l.b16 %v4998
      %v5038 = vunpack.c.l.b16 %v4999
      %v5039 = vunpack.c.l.b16 %v5000
      %v5040 = vunpack.c.l.b16 %v5001
      %v5041 = vunpack.c.l.b16 %v5002
      %v5042 = vunpack.c.l.b16 %v5003
      %v5043 = vunpack.c.l.b16 %v5004
      %v5044 = vunpack.c.l.b16 %v5005
      %v5045 = vunpack.c.l.b16 %v5006
      %v5046 = vpack.c.b16 %v5031, %v5030
      %v5047 = vpack.c.b16 %v5033, %v5032
      %v5048 = vpack.c.b16 %v5035, %v5034
      %v5049 = vpack.c.b16 %v5037, %v5036
      %v5050 = vpack.c.b16 %v5039, %v5038
      %v5051 = vpack.c.b16 %v5041, %v5040
      %v5052 = vpack.c.b16 %v5043, %v5042
      %v5053 = vpack.c.b16 %v5045, %v5044
      %5062 = vmatpush.bf16.msra.mxu0 %v5053
      %5063 = vmatpush.bf16.msra.mxu0 %v5052
      %5064 = vmatpush.bf16.msra.mxu0 %v5051
      %5065 = vmatpush.bf16.msra.mxu0 %v5050
      %5066 = vmatpush.bf16.msra.mxu0 %v5049
      %5067 = vmatpush.bf16.msra.mxu0 %v5048
      %5068 = vmatpush.bf16.msra.mxu0 %v5047
      %5069 = vmatpush.bf16.msra.mxu0 %v5046
      %5070 = vmatmul.bf16.gmra.mxu0 %v5012
      %v5071 = vpop.f32.mrf.mxu0
      %v5072 = vadd.f32 0.0, %v5071
      %v5073 = vpop.f32.mrf.mxu0
      %v5074 = vadd.f32 0.0, %v5073
      %5075 = vdwg.mxu0
      %v5076 = vadd.f32 %v4988, %v5072
      %v5077 = vadd.f32 %v4989, %v5074
      %s5078 = scalar_lea.vmem %s287, 84
      %v5079 = vld [vmem:[%s5078] sm:$0xf]
      %v5080 = vld [vmem:[%s5078 + $0x4] sm:$0xf]
      %v5081 = vld [vmem:[%s881] sm:$0xf]
      %v5082 = vld [vmem:[%s881 + $0x4] sm:$0xf]
      %v5083 = vld [vmem:[%s881 + $0x8] sm:$0xf]
      %v5084 = vld [vmem:[%s881 + $0xc] sm:$0xf]
      %v5085 = vld [vmem:[%s881 + $0x10] sm:$0xf]
      %v5086 = vld [vmem:[%s881 + $0x14] sm:$0xf]
      %v5087 = vld [vmem:[%s881 + $0x18] sm:$0xf]
      %v5088 = vld [vmem:[%s881 + $0x1c] sm:$0xf]
      %v5089 = vld [vmem:[%s881 + $0x20] sm:$0xf]
      %v5090 = vld [vmem:[%s881 + $0x24] sm:$0xf]
      %v5091 = vld [vmem:[%s881 + $0x28] sm:$0xf]
      %v5092 = vld [vmem:[%s881 + $0x2c] sm:$0xf]
      %v5093 = vld [vmem:[%s881 + $0x30] sm:$0xf]
      %v5094 = vld [vmem:[%s881 + $0x34] sm:$0xf]
      %v5095 = vld [vmem:[%s881 + $0x38] sm:$0xf]
      %v5096 = vld [vmem:[%s881 + $0x3c] sm:$0xf]
      %v5099 = vunpack.c.l.b16 %v5079
      %v5100 = vunpack.c.l.b16 %v5080
      %v5101 = vpack.c.b16 %v5100, %v5099
      %v5119 = vunpack.c.l.b16 %v5081
      %v5120 = vunpack.c.l.b16 %v5082
      %v5121 = vunpack.c.l.b16 %v5083
      %v5122 = vunpack.c.l.b16 %v5084
      %v5123 = vunpack.c.l.b16 %v5085
      %v5124 = vunpack.c.l.b16 %v5086
      %v5125 = vunpack.c.l.b16 %v5087
      %v5126 = vunpack.c.l.b16 %v5088
      %v5127 = vunpack.c.l.b16 %v5089
      %v5128 = vunpack.c.l.b16 %v5090
      %v5129 = vunpack.c.l.b16 %v5091
      %v5130 = vunpack.c.l.b16 %v5092
      %v5131 = vunpack.c.l.b16 %v5093
      %v5132 = vunpack.c.l.b16 %v5094
      %v5133 = vunpack.c.l.b16 %v5095
      %v5134 = vunpack.c.l.b16 %v5096
      %v5135 = vpack.c.b16 %v5120, %v5119
      %v5136 = vpack.c.b16 %v5122, %v5121
      %v5137 = vpack.c.b16 %v5124, %v5123
      %v5138 = vpack.c.b16 %v5126, %v5125
      %v5139 = vpack.c.b16 %v5128, %v5127
      %v5140 = vpack.c.b16 %v5130, %v5129
      %v5141 = vpack.c.b16 %v5132, %v5131
      %v5142 = vpack.c.b16 %v5134, %v5133
      %5151 = vmatpush.bf16.msra.mxu0 %v5142
      %5152 = vmatpush.bf16.msra.mxu0 %v5141
      %5153 = vmatpush.bf16.msra.mxu0 %v5140
      %5154 = vmatpush.bf16.msra.mxu0 %v5139
      %5155 = vmatpush.bf16.msra.mxu0 %v5138
      %5156 = vmatpush.bf16.msra.mxu0 %v5137
      %5157 = vmatpush.bf16.msra.mxu0 %v5136
      %5158 = vmatpush.bf16.msra.mxu0 %v5135
      %5159 = vmatmul.bf16.gmra.mxu0 %v5101
      %v5160 = vpop.f32.mrf.mxu0
      %v5161 = vadd.f32 0.0, %v5160
      %v5162 = vpop.f32.mrf.mxu0
      %v5163 = vadd.f32 0.0, %v5162
      %5164 = vdwg.mxu0
      %v5165 = vadd.f32 %v5076, %v5161
      %v5166 = vadd.f32 %v5077, %v5163
      %v5167 = vld [vmem:[%s5078] sm:$0xf]
      %v5168 = vld [vmem:[%s5078 + $0x4] sm:$0xf]
      %v5169 = vld [vmem:[%s5078 + $0x8] sm:$0x1]
      %v5170 = vld [vmem:[%s971] sm:$0xf]
      %v5171 = vld [vmem:[%s971 + $0x4] sm:$0xf]
      %v5172 = vld [vmem:[%s971 + $0x8] sm:$0xf]
      %v5173 = vld [vmem:[%s971 + $0xc] sm:$0xf]
      %v5174 = vld [vmem:[%s971 + $0x10] sm:$0xf]
      %v5175 = vld [vmem:[%s971 + $0x14] sm:$0xf]
      %v5176 = vld [vmem:[%s971 + $0x18] sm:$0xf]
      %v5177 = vld [vmem:[%s971 + $0x1c] sm:$0xf]
      %v5178 = vld [vmem:[%s971 + $0x20] sm:$0xf]
      %v5179 = vld [vmem:[%s971 + $0x24] sm:$0xf]
      %v5180 = vld [vmem:[%s971 + $0x28] sm:$0xf]
      %v5181 = vld [vmem:[%s971 + $0x2c] sm:$0xf]
      %v5182 = vld [vmem:[%s971 + $0x30] sm:$0xf]
      %v5183 = vld [vmem:[%s971 + $0x34] sm:$0xf]
      %v5184 = vld [vmem:[%s971 + $0x38] sm:$0xf]
      %v5185 = vld [vmem:[%s971 + $0x3c] sm:$0xf]
      %v5189 = vunpack.c.l.b16 %v5167
      %v5190 = vunpack.c.l.b16 %v5168
      %v5191 = vunpack.c.l.b16 %v5169
      %v5192 = vpack.c.b16 %v5190, %v5189
      %v5193 = vpack.c.b16 %v5191, %v5191
      %v5195 = vshrl.u32 %v5192, 16
      %v5197 = vshll.u32 %v5192, 16
      %v5199 = vrot.slane %v5197, 1
      %v5200 = vor.u32 %v5195, %v5199
      %v5202 = vshll.u32 %v5193, 16
      %v5204 = vrot.slane %v5202, 1
      %v5205 = vsel %vm365, %v5200, %v5204
      %v5223 = vunpack.c.l.b16 %v5170
      %v5224 = vunpack.c.l.b16 %v5171
      %v5225 = vunpack.c.l.b16 %v5172
      %v5226 = vunpack.c.l.b16 %v5173
      %v5227 = vunpack.c.l.b16 %v5174
      %v5228 = vunpack.c.l.b16 %v5175
      %v5229 = vunpack.c.l.b16 %v5176
      %v5230 = vunpack.c.l.b16 %v5177
      %v5231 = vunpack.c.l.b16 %v5178
      %v5232 = vunpack.c.l.b16 %v5179
      %v5233 = vunpack.c.l.b16 %v5180
      %v5234 = vunpack.c.l.b16 %v5181
      %v5235 = vunpack.c.l.b16 %v5182
      %v5236 = vunpack.c.l.b16 %v5183
      %v5237 = vunpack.c.l.b16 %v5184
      %v5238 = vunpack.c.l.b16 %v5185
      %v5239 = vpack.c.b16 %v5224, %v5223
      %v5240 = vpack.c.b16 %v5226, %v5225
      %v5241 = vpack.c.b16 %v5228, %v5227
      %v5242 = vpack.c.b16 %v5230, %v5229
      %v5243 = vpack.c.b16 %v5232, %v5231
      %v5244 = vpack.c.b16 %v5234, %v5233
      %v5245 = vpack.c.b16 %v5236, %v5235
      %v5246 = vpack.c.b16 %v5238, %v5237
      %5255 = vmatpush.bf16.msra.mxu0 %v5246
      %5256 = vmatpush.bf16.msra.mxu0 %v5245
      %5257 = vmatpush.bf16.msra.mxu0 %v5244
      %5258 = vmatpush.bf16.msra.mxu0 %v5243
      %5259 = vmatpush.bf16.msra.mxu0 %v5242
      %5260 = vmatpush.bf16.msra.mxu0 %v5241
      %5261 = vmatpush.bf16.msra.mxu0 %v5240
      %5262 = vmatpush.bf16.msra.mxu0 %v5239
      %5263 = vmatmul.bf16.gmra.mxu0 %v5205
      %v5264 = vpop.f32.mrf.mxu0
      %v5265 = vadd.f32 0.0, %v5264
      %v5266 = vpop.f32.mrf.mxu0
      %v5267 = vadd.f32 0.0, %v5266
      %5268 = vdwg.mxu0
      %v5269 = vadd.f32 %v5165, %v5265
      %v5270 = vadd.f32 %v5166, %v5267
      %v5271 = vld [vmem:[%s5078] sm:$0xe]
      %v5272 = vld [vmem:[%s1074] sm:$0xf]
      %v5273 = vld [vmem:[%s1074 + $0x4] sm:$0xf]
      %v5274 = vld [vmem:[%s1074 + $0x8] sm:$0xf]
      %v5275 = vld [vmem:[%s1074 + $0xc] sm:$0xf]
      %v5276 = vld [vmem:[%s1074 + $0x10] sm:$0xf]
      %v5277 = vld [vmem:[%s1074 + $0x14] sm:$0xf]
      %v5278 = vld [vmem:[%s1074 + $0x18] sm:$0xf]
      %v5279 = vld [vmem:[%s1074 + $0x1c] sm:$0xf]
      %v5280 = vld [vmem:[%s1074 + $0x20] sm:$0xf]
      %v5281 = vld [vmem:[%s1074 + $0x24] sm:$0xf]
      %v5282 = vld [vmem:[%s1074 + $0x28] sm:$0xf]
      %v5283 = vld [vmem:[%s1074 + $0x2c] sm:$0xf]
      %v5284 = vld [vmem:[%s1074 + $0x30] sm:$0xf]
      %v5285 = vld [vmem:[%s1074 + $0x34] sm:$0xf]
      %v5286 = vld [vmem:[%s1074 + $0x38] sm:$0xf]
      %v5287 = vld [vmem:[%s1074 + $0x3c] sm:$0xf]
      %v5289 = vunpack.c.l.b16 %v5271
      %v5290 = vpack.c.b16 %v5190, %v5289
      %v5291 = vrot.slane %v5290, 1
      %v5292 = vrot.slane %v5193, 1
      %v5293 = vsel %vm525, %v5291, %v5292
      %v5311 = vunpack.c.l.b16 %v5272
      %v5312 = vunpack.c.l.b16 %v5273
      %v5313 = vunpack.c.l.b16 %v5274
      %v5314 = vunpack.c.l.b16 %v5275
      %v5315 = vunpack.c.l.b16 %v5276
      %v5316 = vunpack.c.l.b16 %v5277
      %v5317 = vunpack.c.l.b16 %v5278
      %v5318 = vunpack.c.l.b16 %v5279
      %v5319 = vunpack.c.l.b16 %v5280
      %v5320 = vunpack.c.l.b16 %v5281
      %v5321 = vunpack.c.l.b16 %v5282
      %v5322 = vunpack.c.l.b16 %v5283
      %v5323 = vunpack.c.l.b16 %v5284
      %v5324 = vunpack.c.l.b16 %v5285
      %v5325 = vunpack.c.l.b16 %v5286
      %v5326 = vunpack.c.l.b16 %v5287
      %v5327 = vpack.c.b16 %v5312, %v5311
      %v5328 = vpack.c.b16 %v5314, %v5313
      %v5329 = vpack.c.b16 %v5316, %v5315
      %v5330 = vpack.c.b16 %v5318, %v5317
      %v5331 = vpack.c.b16 %v5320, %v5319
      %v5332 = vpack.c.b16 %v5322, %v5321
      %v5333 = vpack.c.b16 %v5324, %v5323
      %v5334 = vpack.c.b16 %v5326, %v5325
      %5343 = vmatpush.bf16.msra.mxu0 %v5334
      %5344 = vmatpush.bf16.msra.mxu0 %v5333
      %5345 = vmatpush.bf16.msra.mxu0 %v5332
      %5346 = vmatpush.bf16.msra.mxu0 %v5331
      %5347 = vmatpush.bf16.msra.mxu0 %v5330
      %5348 = vmatpush.bf16.msra.mxu0 %v5329
      %5349 = vmatpush.bf16.msra.mxu0 %v5328
      %5350 = vmatpush.bf16.msra.mxu0 %v5327
      %5351 = vmatmul.bf16.gmra.mxu0 %v5293
      %v5352 = vpop.f32.mrf.mxu0
      %v5353 = vadd.f32 0.0, %v5352
      %v5354 = vpop.f32.mrf.mxu0
      %v5355 = vadd.f32 0.0, %v5354
      %5356 = vdwg.mxu0
      %v5357 = vadd.f32 %v5269, %v5353
      %v5358 = vadd.f32 %v5270, %v5355
      %v5359 = vadd.f32 %v5357, %v1163
      %v5360 = vadd.f32 %v5358, %v1163
      %v5361 = vmax.f32 %v5359, 0.0
      %v5362 = vmax.f32 %v5360, 0.0
      %v5363 = vpack.c.bf16 %v5361, %v5361
      %v5364 = vpack.c.bf16 %v5362, %v5362
      %s5365 = scalar_lea.vmem %s318, 40
      %5366 = vst [vmem:[%s5365] sm:$0xf] %v5363
      %5367 = vst [vmem:[%s5365 + $0x4] sm:$0xf] %v5364
      %v5368 = vld [vmem:[%s4239] sm:$0xf]
      %v5369 = vld [vmem:[%s4239 + $0x4] sm:$0xf]
      %v5370 = vld [vmem:[%s2] sm:$0xf]
      %v5371 = vld [vmem:[%s2 + $0x4] sm:$0xf]
      %v5372 = vld [vmem:[%s2 + $0x8] sm:$0xf]
      %v5373 = vld [vmem:[%s2 + $0xc] sm:$0xf]
      %v5374 = vld [vmem:[%s2 + $0x10] sm:$0xf]
      %v5375 = vld [vmem:[%s2 + $0x14] sm:$0xf]
      %v5376 = vld [vmem:[%s2 + $0x18] sm:$0xf]
      %v5377 = vld [vmem:[%s2 + $0x1c] sm:$0xf]
      %v5378 = vld [vmem:[%s2 + $0x20] sm:$0xf]
      %v5379 = vld [vmem:[%s2 + $0x24] sm:$0xf]
      %v5380 = vld [vmem:[%s2 + $0x28] sm:$0xf]
      %v5381 = vld [vmem:[%s2 + $0x2c] sm:$0xf]
      %v5382 = vld [vmem:[%s2 + $0x30] sm:$0xf]
      %v5383 = vld [vmem:[%s2 + $0x34] sm:$0xf]
      %v5384 = vld [vmem:[%s2 + $0x38] sm:$0xf]
      %v5385 = vld [vmem:[%s2 + $0x3c] sm:$0xf]
      %v5386 = vld [vmem:[%s4239 + $0x8] sm:$0x1]
      %v5387 = vld [vmem:[%s340] sm:$0xf]
      %v5388 = vld [vmem:[%s340 + $0x4] sm:$0xf]
      %v5389 = vld [vmem:[%s340 + $0x8] sm:$0xf]
      %v5390 = vld [vmem:[%s340 + $0xc] sm:$0xf]
      %v5391 = vld [vmem:[%s340 + $0x10] sm:$0xf]
      %v5392 = vld [vmem:[%s340 + $0x14] sm:$0xf]
      %v5393 = vld [vmem:[%s340 + $0x18] sm:$0xf]
      %v5394 = vld [vmem:[%s340 + $0x1c] sm:$0xf]
      %v5395 = vld [vmem:[%s340 + $0x20] sm:$0xf]
      %v5396 = vld [vmem:[%s340 + $0x24] sm:$0xf]
      %v5397 = vld [vmem:[%s340 + $0x28] sm:$0xf]
      %v5398 = vld [vmem:[%s340 + $0x2c] sm:$0xf]
      %v5399 = vld [vmem:[%s340 + $0x30] sm:$0xf]
      %v5400 = vld [vmem:[%s340 + $0x34] sm:$0xf]
      %v5401 = vld [vmem:[%s340 + $0x38] sm:$0xf]
      %v5402 = vld [vmem:[%s340 + $0x3c] sm:$0xf]
      %v5406 = vunpack.c.l.b16 %v5368
      %v5407 = vunpack.c.l.b16 %v5369
      %v5408 = vunpack.c.l.b16 %v5386
      %v5409 = vpack.c.b16 %v5407, %v5406
      %v5410 = vpack.c.b16 %v5408, %v5408
      %v5412 = vshrl.u32 %v5409, 16
      %v5414 = vshll.u32 %v5409, 16
      %v5416 = vrot.slane %v5414, 1
      %v5417 = vor.u32 %v5412, %v5416
      %v5419 = vshll.u32 %v5410, 16
      %v5421 = vrot.slane %v5419, 1
      %v5422 = vsel %vm365, %v5417, %v5421
      %v5440 = vunpack.c.l.b16 %v5387
      %v5441 = vunpack.c.l.b16 %v5388
      %v5442 = vunpack.c.l.b16 %v5389
      %v5443 = vunpack.c.l.b16 %v5390
      %v5444 = vunpack.c.l.b16 %v5391
      %v5445 = vunpack.c.l.b16 %v5392
      %v5446 = vunpack.c.l.b16 %v5393
      %v5447 = vunpack.c.l.b16 %v5394
      %v5448 = vunpack.c.l.b16 %v5395
      %v5449 = vunpack.c.l.b16 %v5396
      %v5450 = vunpack.c.l.b16 %v5397
      %v5451 = vunpack.c.l.b16 %v5398
      %v5452 = vunpack.c.l.b16 %v5399
      %v5453 = vunpack.c.l.b16 %v5400
      %v5454 = vunpack.c.l.b16 %v5401
      %v5455 = vunpack.c.l.b16 %v5402
      %v5456 = vpack.c.b16 %v5441, %v5440
      %v5457 = vpack.c.b16 %v5443, %v5442
      %v5458 = vpack.c.b16 %v5445, %v5444
      %v5459 = vpack.c.b16 %v5447, %v5446
      %v5460 = vpack.c.b16 %v5449, %v5448
      %v5461 = vpack.c.b16 %v5451, %v5450
      %v5462 = vpack.c.b16 %v5453, %v5452
      %v5463 = vpack.c.b16 %v5455, %v5454
      %5472 = vmatpush.bf16.msra.mxu0 %v5463
      %5473 = vmatpush.bf16.msra.mxu0 %v5462
      %5474 = vmatpush.bf16.msra.mxu0 %v5461
      %5475 = vmatpush.bf16.msra.mxu0 %v5460
      %5476 = vmatpush.bf16.msra.mxu0 %v5459
      %5477 = vmatpush.bf16.msra.mxu0 %v5458
      %5478 = vmatpush.bf16.msra.mxu0 %v5457
      %5479 = vmatpush.bf16.msra.mxu0 %v5456
      %5480 = vmatmul.bf16.gmra.mxu0 %v5422
      %v5481 = vpop.f32.mrf.mxu0
      %v5482 = vadd.f32 0.0, %v5481
      %v5483 = vpop.f32.mrf.mxu0
      %v5484 = vadd.f32 0.0, %v5483
      %5485 = vdwg.mxu0
      %v5503 = vunpack.c.l.b16 %v5370
      %v5504 = vunpack.c.l.b16 %v5371
      %v5505 = vunpack.c.l.b16 %v5372
      %v5506 = vunpack.c.l.b16 %v5373
      %v5507 = vunpack.c.l.b16 %v5374
      %v5508 = vunpack.c.l.b16 %v5375
      %v5509 = vunpack.c.l.b16 %v5376
      %v5510 = vunpack.c.l.b16 %v5377
      %v5511 = vunpack.c.l.b16 %v5378
      %v5512 = vunpack.c.l.b16 %v5379
      %v5513 = vunpack.c.l.b16 %v5380
      %v5514 = vunpack.c.l.b16 %v5381
      %v5515 = vunpack.c.l.b16 %v5382
      %v5516 = vunpack.c.l.b16 %v5383
      %v5517 = vunpack.c.l.b16 %v5384
      %v5518 = vunpack.c.l.b16 %v5385
      %v5519 = vpack.c.b16 %v5504, %v5503
      %v5520 = vpack.c.b16 %v5506, %v5505
      %v5521 = vpack.c.b16 %v5508, %v5507
      %v5522 = vpack.c.b16 %v5510, %v5509
      %v5523 = vpack.c.b16 %v5512, %v5511
      %v5524 = vpack.c.b16 %v5514, %v5513
      %v5525 = vpack.c.b16 %v5516, %v5515
      %v5526 = vpack.c.b16 %v5518, %v5517
      %5535 = vmatpush.bf16.msra.mxu0 %v5526
      %5536 = vmatpush.bf16.msra.mxu0 %v5525
      %5537 = vmatpush.bf16.msra.mxu0 %v5524
      %5538 = vmatpush.bf16.msra.mxu0 %v5523
      %5539 = vmatpush.bf16.msra.mxu0 %v5522
      %5540 = vmatpush.bf16.msra.mxu0 %v5521
      %5541 = vmatpush.bf16.msra.mxu0 %v5520
      %5542 = vmatpush.bf16.msra.mxu0 %v5519
      %5543 = vmatmul.bf16.gmra.mxu0 %v5409
      %v5544 = vpop.f32.mrf.mxu0
      %v5545 = vadd.f32 %v5482, %v5544
      %v5546 = vpop.f32.mrf.mxu0
      %v5547 = vadd.f32 %v5484, %v5546
      %5548 = vdwg.mxu0
      %v5549 = vld [vmem:[%s4239] sm:$0xe]
      %v5550 = vld [vmem:[%s505] sm:$0xf]
      %v5551 = vld [vmem:[%s505 + $0x4] sm:$0xf]
      %v5552 = vld [vmem:[%s505 + $0x8] sm:$0xf]
      %v5553 = vld [vmem:[%s505 + $0xc] sm:$0xf]
      %v5554 = vld [vmem:[%s505 + $0x10] sm:$0xf]
      %v5555 = vld [vmem:[%s505 + $0x14] sm:$0xf]
      %v5556 = vld [vmem:[%s505 + $0x18] sm:$0xf]
      %v5557 = vld [vmem:[%s505 + $0x1c] sm:$0xf]
      %v5558 = vld [vmem:[%s505 + $0x20] sm:$0xf]
      %v5559 = vld [vmem:[%s505 + $0x24] sm:$0xf]
      %v5560 = vld [vmem:[%s505 + $0x28] sm:$0xf]
      %v5561 = vld [vmem:[%s505 + $0x2c] sm:$0xf]
      %v5562 = vld [vmem:[%s505 + $0x30] sm:$0xf]
      %v5563 = vld [vmem:[%s505 + $0x34] sm:$0xf]
      %v5564 = vld [vmem:[%s505 + $0x38] sm:$0xf]
      %v5565 = vld [vmem:[%s505 + $0x3c] sm:$0xf]
      %v5567 = vunpack.c.l.b16 %v5549
      %v5568 = vpack.c.b16 %v5407, %v5567
      %v5569 = vrot.slane %v5568, 1
      %v5570 = vrot.slane %v5410, 1
      %v5571 = vsel %vm525, %v5569, %v5570
      %v5589 = vunpack.c.l.b16 %v5550
      %v5590 = vunpack.c.l.b16 %v5551
      %v5591 = vunpack.c.l.b16 %v5552
      %v5592 = vunpack.c.l.b16 %v5553
      %v5593 = vunpack.c.l.b16 %v5554
      %v5594 = vunpack.c.l.b16 %v5555
      %v5595 = vunpack.c.l.b16 %v5556
      %v5596 = vunpack.c.l.b16 %v5557
      %v5597 = vunpack.c.l.b16 %v5558
      %v5598 = vunpack.c.l.b16 %v5559
      %v5599 = vunpack.c.l.b16 %v5560
      %v5600 = vunpack.c.l.b16 %v5561
      %v5601 = vunpack.c.l.b16 %v5562
      %v5602 = vunpack.c.l.b16 %v5563
      %v5603 = vunpack.c.l.b16 %v5564
      %v5604 = vunpack.c.l.b16 %v5565
      %v5605 = vpack.c.b16 %v5590, %v5589
      %v5606 = vpack.c.b16 %v5592, %v5591
      %v5607 = vpack.c.b16 %v5594, %v5593
      %v5608 = vpack.c.b16 %v5596, %v5595
      %v5609 = vpack.c.b16 %v5598, %v5597
      %v5610 = vpack.c.b16 %v5600, %v5599
      %v5611 = vpack.c.b16 %v5602, %v5601
      %v5612 = vpack.c.b16 %v5604, %v5603
      %5621 = vmatpush.bf16.msra.mxu0 %v5612
      %5622 = vmatpush.bf16.msra.mxu0 %v5611
      %5623 = vmatpush.bf16.msra.mxu0 %v5610
      %5624 = vmatpush.bf16.msra.mxu0 %v5609
      %5625 = vmatpush.bf16.msra.mxu0 %v5608
      %5626 = vmatpush.bf16.msra.mxu0 %v5607
      %5627 = vmatpush.bf16.msra.mxu0 %v5606
      %5628 = vmatpush.bf16.msra.mxu0 %v5605
      %5629 = vmatmul.bf16.gmra.mxu0 %v5571
      %v5630 = vpop.f32.mrf.mxu0
      %v5631 = vadd.f32 0.0, %v5630
      %v5632 = vpop.f32.mrf.mxu0
      %v5633 = vadd.f32 0.0, %v5632
      %5634 = vdwg.mxu0
      %v5635 = vadd.f32 %v5545, %v5631
      %v5636 = vadd.f32 %v5547, %v5633
      %v5637 = vld [vmem:[%s5078] sm:$0xf]
      %v5638 = vld [vmem:[%s5078 + $0x4] sm:$0xf]
      %v5639 = vld [vmem:[%s597] sm:$0xf]
      %v5640 = vld [vmem:[%s597 + $0x4] sm:$0xf]
      %v5641 = vld [vmem:[%s597 + $0x8] sm:$0xf]
      %v5642 = vld [vmem:[%s597 + $0xc] sm:$0xf]
      %v5643 = vld [vmem:[%s597 + $0x10] sm:$0xf]
      %v5644 = vld [vmem:[%s597 + $0x14] sm:$0xf]
      %v5645 = vld [vmem:[%s597 + $0x18] sm:$0xf]
      %v5646 = vld [vmem:[%s597 + $0x1c] sm:$0xf]
      %v5647 = vld [vmem:[%s597 + $0x20] sm:$0xf]
      %v5648 = vld [vmem:[%s597 + $0x24] sm:$0xf]
      %v5649 = vld [vmem:[%s597 + $0x28] sm:$0xf]
      %v5650 = vld [vmem:[%s597 + $0x2c] sm:$0xf]
      %v5651 = vld [vmem:[%s597 + $0x30] sm:$0xf]
      %v5652 = vld [vmem:[%s597 + $0x34] sm:$0xf]
      %v5653 = vld [vmem:[%s597 + $0x38] sm:$0xf]
      %v5654 = vld [vmem:[%s597 + $0x3c] sm:$0xf]
      %v5657 = vunpack.c.l.b16 %v5637
      %v5658 = vunpack.c.l.b16 %v5638
      %v5659 = vpack.c.b16 %v5658, %v5657
      %v5677 = vunpack.c.l.b16 %v5639
      %v5678 = vunpack.c.l.b16 %v5640
      %v5679 = vunpack.c.l.b16 %v5641
      %v5680 = vunpack.c.l.b16 %v5642
      %v5681 = vunpack.c.l.b16 %v5643
      %v5682 = vunpack.c.l.b16 %v5644
      %v5683 = vunpack.c.l.b16 %v5645
      %v5684 = vunpack.c.l.b16 %v5646
      %v5685 = vunpack.c.l.b16 %v5647
      %v5686 = vunpack.c.l.b16 %v5648
      %v5687 = vunpack.c.l.b16 %v5649
      %v5688 = vunpack.c.l.b16 %v5650
      %v5689 = vunpack.c.l.b16 %v5651
      %v5690 = vunpack.c.l.b16 %v5652
      %v5691 = vunpack.c.l.b16 %v5653
      %v5692 = vunpack.c.l.b16 %v5654
      %v5693 = vpack.c.b16 %v5678, %v5677
      %v5694 = vpack.c.b16 %v5680, %v5679
      %v5695 = vpack.c.b16 %v5682, %v5681
      %v5696 = vpack.c.b16 %v5684, %v5683
      %v5697 = vpack.c.b16 %v5686, %v5685
      %v5698 = vpack.c.b16 %v5688, %v5687
      %v5699 = vpack.c.b16 %v5690, %v5689
      %v5700 = vpack.c.b16 %v5692, %v5691
      %5709 = vmatpush.bf16.msra.mxu0 %v5700
      %5710 = vmatpush.bf16.msra.mxu0 %v5699
      %5711 = vmatpush.bf16.msra.mxu0 %v5698
      %5712 = vmatpush.bf16.msra.mxu0 %v5697
      %5713 = vmatpush.bf16.msra.mxu0 %v5696
      %5714 = vmatpush.bf16.msra.mxu0 %v5695
      %5715 = vmatpush.bf16.msra.mxu0 %v5694
      %5716 = vmatpush.bf16.msra.mxu0 %v5693
      %5717 = vmatmul.bf16.gmra.mxu0 %v5659
      %v5718 = vpop.f32.mrf.mxu0
      %v5719 = vadd.f32 0.0, %v5718
      %v5720 = vpop.f32.mrf.mxu0
      %v5721 = vadd.f32 0.0, %v5720
      %5722 = vdwg.mxu0
      %v5723 = vadd.f32 %v5635, %v5719
      %v5724 = vadd.f32 %v5636, %v5721
      %v5725 = vld [vmem:[%s5078] sm:$0xf]
      %v5726 = vld [vmem:[%s5078 + $0x4] sm:$0xf]
      %v5727 = vld [vmem:[%s5078 + $0x8] sm:$0x1]
      %v5728 = vld [vmem:[%s687] sm:$0xf]
      %v5729 = vld [vmem:[%s687 + $0x4] sm:$0xf]
      %v5730 = vld [vmem:[%s687 + $0x8] sm:$0xf]
      %v5731 = vld [vmem:[%s687 + $0xc] sm:$0xf]
      %v5732 = vld [vmem:[%s687 + $0x10] sm:$0xf]
      %v5733 = vld [vmem:[%s687 + $0x14] sm:$0xf]
      %v5734 = vld [vmem:[%s687 + $0x18] sm:$0xf]
      %v5735 = vld [vmem:[%s687 + $0x1c] sm:$0xf]
      %v5736 = vld [vmem:[%s687 + $0x20] sm:$0xf]
      %v5737 = vld [vmem:[%s687 + $0x24] sm:$0xf]
      %v5738 = vld [vmem:[%s687 + $0x28] sm:$0xf]
      %v5739 = vld [vmem:[%s687 + $0x2c] sm:$0xf]
      %v5740 = vld [vmem:[%s687 + $0x30] sm:$0xf]
      %v5741 = vld [vmem:[%s687 + $0x34] sm:$0xf]
      %v5742 = vld [vmem:[%s687 + $0x38] sm:$0xf]
      %v5743 = vld [vmem:[%s687 + $0x3c] sm:$0xf]
      %v5747 = vunpack.c.l.b16 %v5725
      %v5748 = vunpack.c.l.b16 %v5726
      %v5749 = vunpack.c.l.b16 %v5727
      %v5750 = vpack.c.b16 %v5748, %v5747
      %v5751 = vpack.c.b16 %v5749, %v5749
      %v5753 = vshrl.u32 %v5750, 16
      %v5755 = vshll.u32 %v5750, 16
      %v5757 = vrot.slane %v5755, 1
      %v5758 = vor.u32 %v5753, %v5757
      %v5760 = vshll.u32 %v5751, 16
      %v5762 = vrot.slane %v5760, 1
      %v5763 = vsel %vm365, %v5758, %v5762
      %v5781 = vunpack.c.l.b16 %v5728
      %v5782 = vunpack.c.l.b16 %v5729
      %v5783 = vunpack.c.l.b16 %v5730
      %v5784 = vunpack.c.l.b16 %v5731
      %v5785 = vunpack.c.l.b16 %v5732
      %v5786 = vunpack.c.l.b16 %v5733
      %v5787 = vunpack.c.l.b16 %v5734
      %v5788 = vunpack.c.l.b16 %v5735
      %v5789 = vunpack.c.l.b16 %v5736
      %v5790 = vunpack.c.l.b16 %v5737
      %v5791 = vunpack.c.l.b16 %v5738
      %v5792 = vunpack.c.l.b16 %v5739
      %v5793 = vunpack.c.l.b16 %v5740
      %v5794 = vunpack.c.l.b16 %v5741
      %v5795 = vunpack.c.l.b16 %v5742
      %v5796 = vunpack.c.l.b16 %v5743
      %v5797 = vpack.c.b16 %v5782, %v5781
      %v5798 = vpack.c.b16 %v5784, %v5783
      %v5799 = vpack.c.b16 %v5786, %v5785
      %v5800 = vpack.c.b16 %v5788, %v5787
      %v5801 = vpack.c.b16 %v5790, %v5789
      %v5802 = vpack.c.b16 %v5792, %v5791
      %v5803 = vpack.c.b16 %v5794, %v5793
      %v5804 = vpack.c.b16 %v5796, %v5795
      %5813 = vmatpush.bf16.msra.mxu0 %v5804
      %5814 = vmatpush.bf16.msra.mxu0 %v5803
      %5815 = vmatpush.bf16.msra.mxu0 %v5802
      %5816 = vmatpush.bf16.msra.mxu0 %v5801
      %5817 = vmatpush.bf16.msra.mxu0 %v5800
      %5818 = vmatpush.bf16.msra.mxu0 %v5799
      %5819 = vmatpush.bf16.msra.mxu0 %v5798
      %5820 = vmatpush.bf16.msra.mxu0 %v5797
      %5821 = vmatmul.bf16.gmra.mxu0 %v5763
      %v5822 = vpop.f32.mrf.mxu0
      %v5823 = vadd.f32 0.0, %v5822
      %v5824 = vpop.f32.mrf.mxu0
      %v5825 = vadd.f32 0.0, %v5824
      %5826 = vdwg.mxu0
      %v5827 = vadd.f32 %v5723, %v5823
      %v5828 = vadd.f32 %v5724, %v5825
      %v5829 = vld [vmem:[%s5078] sm:$0xe]
      %v5830 = vld [vmem:[%s790] sm:$0xf]
      %v5831 = vld [vmem:[%s790 + $0x4] sm:$0xf]
      %v5832 = vld [vmem:[%s790 + $0x8] sm:$0xf]
      %v5833 = vld [vmem:[%s790 + $0xc] sm:$0xf]
      %v5834 = vld [vmem:[%s790 + $0x10] sm:$0xf]
      %v5835 = vld [vmem:[%s790 + $0x14] sm:$0xf]
      %v5836 = vld [vmem:[%s790 + $0x18] sm:$0xf]
      %v5837 = vld [vmem:[%s790 + $0x1c] sm:$0xf]
      %v5838 = vld [vmem:[%s790 + $0x20] sm:$0xf]
      %v5839 = vld [vmem:[%s790 + $0x24] sm:$0xf]
      %v5840 = vld [vmem:[%s790 + $0x28] sm:$0xf]
      %v5841 = vld [vmem:[%s790 + $0x2c] sm:$0xf]
      %v5842 = vld [vmem:[%s790 + $0x30] sm:$0xf]
      %v5843 = vld [vmem:[%s790 + $0x34] sm:$0xf]
      %v5844 = vld [vmem:[%s790 + $0x38] sm:$0xf]
      %v5845 = vld [vmem:[%s790 + $0x3c] sm:$0xf]
      %v5847 = vunpack.c.l.b16 %v5829
      %v5848 = vpack.c.b16 %v5748, %v5847
      %v5849 = vrot.slane %v5848, 1
      %v5850 = vrot.slane %v5751, 1
      %v5851 = vsel %vm525, %v5849, %v5850
      %v5869 = vunpack.c.l.b16 %v5830
      %v5870 = vunpack.c.l.b16 %v5831
      %v5871 = vunpack.c.l.b16 %v5832
      %v5872 = vunpack.c.l.b16 %v5833
      %v5873 = vunpack.c.l.b16 %v5834
      %v5874 = vunpack.c.l.b16 %v5835
      %v5875 = vunpack.c.l.b16 %v5836
      %v5876 = vunpack.c.l.b16 %v5837
      %v5877 = vunpack.c.l.b16 %v5838
      %v5878 = vunpack.c.l.b16 %v5839
      %v5879 = vunpack.c.l.b16 %v5840
      %v5880 = vunpack.c.l.b16 %v5841
      %v5881 = vunpack.c.l.b16 %v5842
      %v5882 = vunpack.c.l.b16 %v5843
      %v5883 = vunpack.c.l.b16 %v5844
      %v5884 = vunpack.c.l.b16 %v5845
      %v5885 = vpack.c.b16 %v5870, %v5869
      %v5886 = vpack.c.b16 %v5872, %v5871
      %v5887 = vpack.c.b16 %v5874, %v5873
      %v5888 = vpack.c.b16 %v5876, %v5875
      %v5889 = vpack.c.b16 %v5878, %v5877
      %v5890 = vpack.c.b16 %v5880, %v5879
      %v5891 = vpack.c.b16 %v5882, %v5881
      %v5892 = vpack.c.b16 %v5884, %v5883
      %5901 = vmatpush.bf16.msra.mxu0 %v5892
      %5902 = vmatpush.bf16.msra.mxu0 %v5891
      %5903 = vmatpush.bf16.msra.mxu0 %v5890
      %5904 = vmatpush.bf16.msra.mxu0 %v5889
      %5905 = vmatpush.bf16.msra.mxu0 %v5888
      %5906 = vmatpush.bf16.msra.mxu0 %v5887
      %5907 = vmatpush.bf16.msra.mxu0 %v5886
      %5908 = vmatpush.bf16.msra.mxu0 %v5885
      %5909 = vmatmul.bf16.gmra.mxu0 %v5851
      %v5910 = vpop.f32.mrf.mxu0
      %v5911 = vadd.f32 0.0, %v5910
      %v5912 = vpop.f32.mrf.mxu0
      %v5913 = vadd.f32 0.0, %v5912
      %5914 = vdwg.mxu0
      %v5915 = vadd.f32 %v5827, %v5911
      %v5916 = vadd.f32 %v5828, %v5913
      %v5917 = vld [vmem:[%s305] sm:$0xf]
      %v5918 = vld [vmem:[%s305 + $0x4] sm:$0xf]
      %v5919 = vld [vmem:[%s881] sm:$0xf]
      %v5920 = vld [vmem:[%s881 + $0x4] sm:$0xf]
      %v5921 = vld [vmem:[%s881 + $0x8] sm:$0xf]
      %v5922 = vld [vmem:[%s881 + $0xc] sm:$0xf]
      %v5923 = vld [vmem:[%s881 + $0x10] sm:$0xf]
      %v5924 = vld [vmem:[%s881 + $0x14] sm:$0xf]
      %v5925 = vld [vmem:[%s881 + $0x18] sm:$0xf]
      %v5926 = vld [vmem:[%s881 + $0x1c] sm:$0xf]
      %v5927 = vld [vmem:[%s881 + $0x20] sm:$0xf]
      %v5928 = vld [vmem:[%s881 + $0x24] sm:$0xf]
      %v5929 = vld [vmem:[%s881 + $0x28] sm:$0xf]
      %v5930 = vld [vmem:[%s881 + $0x2c] sm:$0xf]
      %v5931 = vld [vmem:[%s881 + $0x30] sm:$0xf]
      %v5932 = vld [vmem:[%s881 + $0x34] sm:$0xf]
      %v5933 = vld [vmem:[%s881 + $0x38] sm:$0xf]
      %v5934 = vld [vmem:[%s881 + $0x3c] sm:$0xf]
      %v5937 = vunpack.c.l.b16 %v5917
      %v5938 = vunpack.c.l.b16 %v5918
      %v5939 = vpack.c.b16 %v5938, %v5937
      %v5957 = vunpack.c.l.b16 %v5919
      %v5958 = vunpack.c.l.b16 %v5920
      %v5959 = vunpack.c.l.b16 %v5921
      %v5960 = vunpack.c.l.b16 %v5922
      %v5961 = vunpack.c.l.b16 %v5923
      %v5962 = vunpack.c.l.b16 %v5924
      %v5963 = vunpack.c.l.b16 %v5925
      %v5964 = vunpack.c.l.b16 %v5926
      %v5965 = vunpack.c.l.b16 %v5927
      %v5966 = vunpack.c.l.b16 %v5928
      %v5967 = vunpack.c.l.b16 %v5929
      %v5968 = vunpack.c.l.b16 %v5930
      %v5969 = vunpack.c.l.b16 %v5931
      %v5970 = vunpack.c.l.b16 %v5932
      %v5971 = vunpack.c.l.b16 %v5933
      %v5972 = vunpack.c.l.b16 %v5934
      %v5973 = vpack.c.b16 %v5958, %v5957
      %v5974 = vpack.c.b16 %v5960, %v5959
      %v5975 = vpack.c.b16 %v5962, %v5961
      %v5976 = vpack.c.b16 %v5964, %v5963
      %v5977 = vpack.c.b16 %v5966, %v5965
      %v5978 = vpack.c.b16 %v5968, %v5967
      %v5979 = vpack.c.b16 %v5970, %v5969
      %v5980 = vpack.c.b16 %v5972, %v5971
      %5989 = vmatpush.bf16.msra.mxu0 %v5980
      %5990 = vmatpush.bf16.msra.mxu0 %v5979
      %5991 = vmatpush.bf16.msra.mxu0 %v5978
      %5992 = vmatpush.bf16.msra.mxu0 %v5977
      %5993 = vmatpush.bf16.msra.mxu0 %v5976
      %5994 = vmatpush.bf16.msra.mxu0 %v5975
      %5995 = vmatpush.bf16.msra.mxu0 %v5974
      %5996 = vmatpush.bf16.msra.mxu0 %v5973
      %5997 = vmatmul.bf16.gmra.mxu0 %v5939
      %v5998 = vpop.f32.mrf.mxu0
      %v5999 = vadd.f32 0.0, %v5998
      %v6000 = vpop.f32.mrf.mxu0
      %v6001 = vadd.f32 0.0, %v6000
      %6002 = vdwg.mxu0
      %v6003 = vadd.f32 %v5915, %v5999
      %v6004 = vadd.f32 %v5916, %v6001
      %v6005 = vld [vmem:[%s305] sm:$0xf]
      %v6006 = vld [vmem:[%s305 + $0x4] sm:$0xf]
      %v6007 = vld [vmem:[%s305 + $0x8] sm:$0x1]
      %v6008 = vld [vmem:[%s971] sm:$0xf]
      %v6009 = vld [vmem:[%s971 + $0x4] sm:$0xf]
      %v6010 = vld [vmem:[%s971 + $0x8] sm:$0xf]
      %v6011 = vld [vmem:[%s971 + $0xc] sm:$0xf]
      %v6012 = vld [vmem:[%s971 + $0x10] sm:$0xf]
      %v6013 = vld [vmem:[%s971 + $0x14] sm:$0xf]
      %v6014 = vld [vmem:[%s971 + $0x18] sm:$0xf]
      %v6015 = vld [vmem:[%s971 + $0x1c] sm:$0xf]
      %v6016 = vld [vmem:[%s971 + $0x20] sm:$0xf]
      %v6017 = vld [vmem:[%s971 + $0x24] sm:$0xf]
      %v6018 = vld [vmem:[%s971 + $0x28] sm:$0xf]
      %v6019 = vld [vmem:[%s971 + $0x2c] sm:$0xf]
      %v6020 = vld [vmem:[%s971 + $0x30] sm:$0xf]
      %v6021 = vld [vmem:[%s971 + $0x34] sm:$0xf]
      %v6022 = vld [vmem:[%s971 + $0x38] sm:$0xf]
      %v6023 = vld [vmem:[%s971 + $0x3c] sm:$0xf]
      %v6027 = vunpack.c.l.b16 %v6005
      %v6028 = vunpack.c.l.b16 %v6006
      %v6029 = vunpack.c.l.b16 %v6007
      %v6030 = vpack.c.b16 %v6028, %v6027
      %v6031 = vpack.c.b16 %v6029, %v6029
      %v6033 = vshrl.u32 %v6030, 16
      %v6035 = vshll.u32 %v6030, 16
      %v6037 = vrot.slane %v6035, 1
      %v6038 = vor.u32 %v6033, %v6037
      %v6040 = vshll.u32 %v6031, 16
      %v6042 = vrot.slane %v6040, 1
      %v6043 = vsel %vm365, %v6038, %v6042
      %v6061 = vunpack.c.l.b16 %v6008
      %v6062 = vunpack.c.l.b16 %v6009
      %v6063 = vunpack.c.l.b16 %v6010
      %v6064 = vunpack.c.l.b16 %v6011
      %v6065 = vunpack.c.l.b16 %v6012
      %v6066 = vunpack.c.l.b16 %v6013
      %v6067 = vunpack.c.l.b16 %v6014
      %v6068 = vunpack.c.l.b16 %v6015
      %v6069 = vunpack.c.l.b16 %v6016
      %v6070 = vunpack.c.l.b16 %v6017
      %v6071 = vunpack.c.l.b16 %v6018
      %v6072 = vunpack.c.l.b16 %v6019
      %v6073 = vunpack.c.l.b16 %v6020
      %v6074 = vunpack.c.l.b16 %v6021
      %v6075 = vunpack.c.l.b16 %v6022
      %v6076 = vunpack.c.l.b16 %v6023
      %v6077 = vpack.c.b16 %v6062, %v6061
      %v6078 = vpack.c.b16 %v6064, %v6063
      %v6079 = vpack.c.b16 %v6066, %v6065
      %v6080 = vpack.c.b16 %v6068, %v6067
      %v6081 = vpack.c.b16 %v6070, %v6069
      %v6082 = vpack.c.b16 %v6072, %v6071
      %v6083 = vpack.c.b16 %v6074, %v6073
      %v6084 = vpack.c.b16 %v6076, %v6075
      %6093 = vmatpush.bf16.msra.mxu0 %v6084
      %6094 = vmatpush.bf16.msra.mxu0 %v6083
      %6095 = vmatpush.bf16.msra.mxu0 %v6082
      %6096 = vmatpush.bf16.msra.mxu0 %v6081
      %6097 = vmatpush.bf16.msra.mxu0 %v6080
      %6098 = vmatpush.bf16.msra.mxu0 %v6079
      %6099 = vmatpush.bf16.msra.mxu0 %v6078
      %6100 = vmatpush.bf16.msra.mxu0 %v6077
      %6101 = vmatmul.bf16.gmra.mxu0 %v6043
      %v6102 = vpop.f32.mrf.mxu0
      %v6103 = vadd.f32 0.0, %v6102
      %v6104 = vpop.f32.mrf.mxu0
      %v6105 = vadd.f32 0.0, %v6104
      %6106 = vdwg.mxu0
      %v6107 = vadd.f32 %v6003, %v6103
      %v6108 = vadd.f32 %v6004, %v6105
      %v6109 = vld [vmem:[%s305] sm:$0xe]
      %v6110 = vld [vmem:[%s1074] sm:$0xf]
      %v6111 = vld [vmem:[%s1074 + $0x4] sm:$0xf]
      %v6112 = vld [vmem:[%s1074 + $0x8] sm:$0xf]
      %v6113 = vld [vmem:[%s1074 + $0xc] sm:$0xf]
      %v6114 = vld [vmem:[%s1074 + $0x10] sm:$0xf]
      %v6115 = vld [vmem:[%s1074 + $0x14] sm:$0xf]
      %v6116 = vld [vmem:[%s1074 + $0x18] sm:$0xf]
      %v6117 = vld [vmem:[%s1074 + $0x1c] sm:$0xf]
      %v6118 = vld [vmem:[%s1074 + $0x20] sm:$0xf]
      %v6119 = vld [vmem:[%s1074 + $0x24] sm:$0xf]
      %v6120 = vld [vmem:[%s1074 + $0x28] sm:$0xf]
      %v6121 = vld [vmem:[%s1074 + $0x2c] sm:$0xf]
      %v6122 = vld [vmem:[%s1074 + $0x30] sm:$0xf]
      %v6123 = vld [vmem:[%s1074 + $0x34] sm:$0xf]
      %v6124 = vld [vmem:[%s1074 + $0x38] sm:$0xf]
      %v6125 = vld [vmem:[%s1074 + $0x3c] sm:$0xf]
      %v6127 = vunpack.c.l.b16 %v6109
      %v6128 = vpack.c.b16 %v6028, %v6127
      %v6129 = vrot.slane %v6128, 1
      %v6130 = vrot.slane %v6031, 1
      %v6131 = vsel %vm525, %v6129, %v6130
      %v6149 = vunpack.c.l.b16 %v6110
      %v6150 = vunpack.c.l.b16 %v6111
      %v6151 = vunpack.c.l.b16 %v6112
      %v6152 = vunpack.c.l.b16 %v6113
      %v6153 = vunpack.c.l.b16 %v6114
      %v6154 = vunpack.c.l.b16 %v6115
      %v6155 = vunpack.c.l.b16 %v6116
      %v6156 = vunpack.c.l.b16 %v6117
      %v6157 = vunpack.c.l.b16 %v6118
      %v6158 = vunpack.c.l.b16 %v6119
      %v6159 = vunpack.c.l.b16 %v6120
      %v6160 = vunpack.c.l.b16 %v6121
      %v6161 = vunpack.c.l.b16 %v6122
      %v6162 = vunpack.c.l.b16 %v6123
      %v6163 = vunpack.c.l.b16 %v6124
      %v6164 = vunpack.c.l.b16 %v6125
      %v6165 = vpack.c.b16 %v6150, %v6149
      %v6166 = vpack.c.b16 %v6152, %v6151
      %v6167 = vpack.c.b16 %v6154, %v6153
      %v6168 = vpack.c.b16 %v6156, %v6155
      %v6169 = vpack.c.b16 %v6158, %v6157
      %v6170 = vpack.c.b16 %v6160, %v6159
      %v6171 = vpack.c.b16 %v6162, %v6161
      %v6172 = vpack.c.b16 %v6164, %v6163
      %6181 = vmatpush.bf16.msra.mxu0 %v6172
      %6182 = vmatpush.bf16.msra.mxu0 %v6171
      %6183 = vmatpush.bf16.msra.mxu0 %v6170
      %6184 = vmatpush.bf16.msra.mxu0 %v6169
      %6185 = vmatpush.bf16.msra.mxu0 %v6168
      %6186 = vmatpush.bf16.msra.mxu0 %v6167
      %6187 = vmatpush.bf16.msra.mxu0 %v6166
      %6188 = vmatpush.bf16.msra.mxu0 %v6165
      %6189 = vmatmul.bf16.gmra.mxu0 %v6131
      %v6190 = vpop.f32.mrf.mxu0
      %v6191 = vadd.f32 0.0, %v6190
      %v6192 = vpop.f32.mrf.mxu0
      %v6193 = vadd.f32 0.0, %v6192
      %6194 = vdwg.mxu0
      %v6195 = vadd.f32 %v6107, %v6191
      %v6196 = vadd.f32 %v6108, %v6193
      %v6197 = vadd.f32 %v6195, %v1163
      %v6198 = vadd.f32 %v6196, %v1163
      %v6199 = vmax.f32 %v6197, 0.0
      %v6200 = vmax.f32 %v6198, 0.0
      %v6201 = vpack.c.bf16 %v6199, %v6199
      %v6202 = vpack.c.bf16 %v6200, %v6200
      %s6203 = scalar_lea.vmem %s318, 48
      %6204 = vst [vmem:[%s6203] sm:$0xf] %v6201
      %6205 = vst [vmem:[%s6203 + $0x4] sm:$0xf] %v6202
      %v6206 = vld [vmem:[%s5078] sm:$0xf]
      %v6207 = vld [vmem:[%s5078 + $0x4] sm:$0xf]
      %v6208 = vld [vmem:[%s2] sm:$0xf]
      %v6209 = vld [vmem:[%s2 + $0x4] sm:$0xf]
      %v6210 = vld [vmem:[%s2 + $0x8] sm:$0xf]
      %v6211 = vld [vmem:[%s2 + $0xc] sm:$0xf]
      %v6212 = vld [vmem:[%s2 + $0x10] sm:$0xf]
      %v6213 = vld [vmem:[%s2 + $0x14] sm:$0xf]
      %v6214 = vld [vmem:[%s2 + $0x18] sm:$0xf]
      %v6215 = vld [vmem:[%s2 + $0x1c] sm:$0xf]
      %v6216 = vld [vmem:[%s2 + $0x20] sm:$0xf]
      %v6217 = vld [vmem:[%s2 + $0x24] sm:$0xf]
      %v6218 = vld [vmem:[%s2 + $0x28] sm:$0xf]
      %v6219 = vld [vmem:[%s2 + $0x2c] sm:$0xf]
      %v6220 = vld [vmem:[%s2 + $0x30] sm:$0xf]
      %v6221 = vld [vmem:[%s2 + $0x34] sm:$0xf]
      %v6222 = vld [vmem:[%s2 + $0x38] sm:$0xf]
      %v6223 = vld [vmem:[%s2 + $0x3c] sm:$0xf]
      %v6224 = vld [vmem:[%s5078 + $0x8] sm:$0x1]
      %v6225 = vld [vmem:[%s340] sm:$0xf]
      %v6226 = vld [vmem:[%s340 + $0x4] sm:$0xf]
      %v6227 = vld [vmem:[%s340 + $0x8] sm:$0xf]
      %v6228 = vld [vmem:[%s340 + $0xc] sm:$0xf]
      %v6229 = vld [vmem:[%s340 + $0x10] sm:$0xf]
      %v6230 = vld [vmem:[%s340 + $0x14] sm:$0xf]
      %v6231 = vld [vmem:[%s340 + $0x18] sm:$0xf]
      %v6232 = vld [vmem:[%s340 + $0x1c] sm:$0xf]
      %v6233 = vld [vmem:[%s340 + $0x20] sm:$0xf]
      %v6234 = vld [vmem:[%s340 + $0x24] sm:$0xf]
      %v6235 = vld [vmem:[%s340 + $0x28] sm:$0xf]
      %v6236 = vld [vmem:[%s340 + $0x2c] sm:$0xf]
      %v6237 = vld [vmem:[%s340 + $0x30] sm:$0xf]
      %v6238 = vld [vmem:[%s340 + $0x34] sm:$0xf]
      %v6239 = vld [vmem:[%s340 + $0x38] sm:$0xf]
      %v6240 = vld [vmem:[%s340 + $0x3c] sm:$0xf]
      %v6244 = vunpack.c.l.b16 %v6206
      %v6245 = vunpack.c.l.b16 %v6207
      %v6246 = vunpack.c.l.b16 %v6224
      %v6247 = vpack.c.b16 %v6245, %v6244
      %v6248 = vpack.c.b16 %v6246, %v6246
      %v6250 = vshrl.u32 %v6247, 16
      %v6252 = vshll.u32 %v6247, 16
      %v6254 = vrot.slane %v6252, 1
      %v6255 = vor.u32 %v6250, %v6254
      %v6257 = vshll.u32 %v6248, 16
      %v6259 = vrot.slane %v6257, 1
      %v6260 = vsel %vm365, %v6255, %v6259
      %v6278 = vunpack.c.l.b16 %v6225
      %v6279 = vunpack.c.l.b16 %v6226
      %v6280 = vunpack.c.l.b16 %v6227
      %v6281 = vunpack.c.l.b16 %v6228
      %v6282 = vunpack.c.l.b16 %v6229
      %v6283 = vunpack.c.l.b16 %v6230
      %v6284 = vunpack.c.l.b16 %v6231
      %v6285 = vunpack.c.l.b16 %v6232
      %v6286 = vunpack.c.l.b16 %v6233
      %v6287 = vunpack.c.l.b16 %v6234
      %v6288 = vunpack.c.l.b16 %v6235
      %v6289 = vunpack.c.l.b16 %v6236
      %v6290 = vunpack.c.l.b16 %v6237
      %v6291 = vunpack.c.l.b16 %v6238
      %v6292 = vunpack.c.l.b16 %v6239
      %v6293 = vunpack.c.l.b16 %v6240
      %v6294 = vpack.c.b16 %v6279, %v6278
      %v6295 = vpack.c.b16 %v6281, %v6280
      %v6296 = vpack.c.b16 %v6283, %v6282
      %v6297 = vpack.c.b16 %v6285, %v6284
      %v6298 = vpack.c.b16 %v6287, %v6286
      %v6299 = vpack.c.b16 %v6289, %v6288
      %v6300 = vpack.c.b16 %v6291, %v6290
      %v6301 = vpack.c.b16 %v6293, %v6292
      %6310 = vmatpush.bf16.msra.mxu0 %v6301
      %6311 = vmatpush.bf16.msra.mxu0 %v6300
      %6312 = vmatpush.bf16.msra.mxu0 %v6299
      %6313 = vmatpush.bf16.msra.mxu0 %v6298
      %6314 = vmatpush.bf16.msra.mxu0 %v6297
      %6315 = vmatpush.bf16.msra.mxu0 %v6296
      %6316 = vmatpush.bf16.msra.mxu0 %v6295
      %6317 = vmatpush.bf16.msra.mxu0 %v6294
      %6318 = vmatmul.bf16.gmra.mxu0 %v6260
      %v6319 = vpop.f32.mrf.mxu0
      %v6320 = vadd.f32 0.0, %v6319
      %v6321 = vpop.f32.mrf.mxu0
      %v6322 = vadd.f32 0.0, %v6321
      %6323 = vdwg.mxu0
      %v6341 = vunpack.c.l.b16 %v6208
      %v6342 = vunpack.c.l.b16 %v6209
      %v6343 = vunpack.c.l.b16 %v6210
      %v6344 = vunpack.c.l.b16 %v6211
      %v6345 = vunpack.c.l.b16 %v6212
      %v6346 = vunpack.c.l.b16 %v6213
      %v6347 = vunpack.c.l.b16 %v6214
      %v6348 = vunpack.c.l.b16 %v6215
      %v6349 = vunpack.c.l.b16 %v6216
      %v6350 = vunpack.c.l.b16 %v6217
      %v6351 = vunpack.c.l.b16 %v6218
      %v6352 = vunpack.c.l.b16 %v6219
      %v6353 = vunpack.c.l.b16 %v6220
      %v6354 = vunpack.c.l.b16 %v6221
      %v6355 = vunpack.c.l.b16 %v6222
      %v6356 = vunpack.c.l.b16 %v6223
      %v6357 = vpack.c.b16 %v6342, %v6341
      %v6358 = vpack.c.b16 %v6344, %v6343
      %v6359 = vpack.c.b16 %v6346, %v6345
      %v6360 = vpack.c.b16 %v6348, %v6347
      %v6361 = vpack.c.b16 %v6350, %v6349
      %v6362 = vpack.c.b16 %v6352, %v6351
      %v6363 = vpack.c.b16 %v6354, %v6353
      %v6364 = vpack.c.b16 %v6356, %v6355
      %6373 = vmatpush.bf16.msra.mxu0 %v6364
      %6374 = vmatpush.bf16.msra.mxu0 %v6363
      %6375 = vmatpush.bf16.msra.mxu0 %v6362
      %6376 = vmatpush.bf16.msra.mxu0 %v6361
      %6377 = vmatpush.bf16.msra.mxu0 %v6360
      %6378 = vmatpush.bf16.msra.mxu0 %v6359
      %6379 = vmatpush.bf16.msra.mxu0 %v6358
      %6380 = vmatpush.bf16.msra.mxu0 %v6357
      %6381 = vmatmul.bf16.gmra.mxu0 %v6247
      %v6382 = vpop.f32.mrf.mxu0
      %v6383 = vadd.f32 %v6320, %v6382
      %v6384 = vpop.f32.mrf.mxu0
      %v6385 = vadd.f32 %v6322, %v6384
      %6386 = vdwg.mxu0
      %v6387 = vld [vmem:[%s5078] sm:$0xe]
      %v6388 = vld [vmem:[%s505] sm:$0xf]
      %v6389 = vld [vmem:[%s505 + $0x4] sm:$0xf]
      %v6390 = vld [vmem:[%s505 + $0x8] sm:$0xf]
      %v6391 = vld [vmem:[%s505 + $0xc] sm:$0xf]
      %v6392 = vld [vmem:[%s505 + $0x10] sm:$0xf]
      %v6393 = vld [vmem:[%s505 + $0x14] sm:$0xf]
      %v6394 = vld [vmem:[%s505 + $0x18] sm:$0xf]
      %v6395 = vld [vmem:[%s505 + $0x1c] sm:$0xf]
      %v6396 = vld [vmem:[%s505 + $0x20] sm:$0xf]
      %v6397 = vld [vmem:[%s505 + $0x24] sm:$0xf]
      %v6398 = vld [vmem:[%s505 + $0x28] sm:$0xf]
      %v6399 = vld [vmem:[%s505 + $0x2c] sm:$0xf]
      %v6400 = vld [vmem:[%s505 + $0x30] sm:$0xf]
      %v6401 = vld [vmem:[%s505 + $0x34] sm:$0xf]
      %v6402 = vld [vmem:[%s505 + $0x38] sm:$0xf]
      %v6403 = vld [vmem:[%s505 + $0x3c] sm:$0xf]
      %v6405 = vunpack.c.l.b16 %v6387
      %v6406 = vpack.c.b16 %v6245, %v6405
      %v6407 = vrot.slane %v6406, 1
      %v6408 = vrot.slane %v6248, 1
      %v6409 = vsel %vm525, %v6407, %v6408
      %v6427 = vunpack.c.l.b16 %v6388
      %v6428 = vunpack.c.l.b16 %v6389
      %v6429 = vunpack.c.l.b16 %v6390
      %v6430 = vunpack.c.l.b16 %v6391
      %v6431 = vunpack.c.l.b16 %v6392
      %v6432 = vunpack.c.l.b16 %v6393
      %v6433 = vunpack.c.l.b16 %v6394
      %v6434 = vunpack.c.l.b16 %v6395
      %v6435 = vunpack.c.l.b16 %v6396
      %v6436 = vunpack.c.l.b16 %v6397
      %v6437 = vunpack.c.l.b16 %v6398
      %v6438 = vunpack.c.l.b16 %v6399
      %v6439 = vunpack.c.l.b16 %v6400
      %v6440 = vunpack.c.l.b16 %v6401
      %v6441 = vunpack.c.l.b16 %v6402
      %v6442 = vunpack.c.l.b16 %v6403
      %v6443 = vpack.c.b16 %v6428, %v6427
      %v6444 = vpack.c.b16 %v6430, %v6429
      %v6445 = vpack.c.b16 %v6432, %v6431
      %v6446 = vpack.c.b16 %v6434, %v6433
      %v6447 = vpack.c.b16 %v6436, %v6435
      %v6448 = vpack.c.b16 %v6438, %v6437
      %v6449 = vpack.c.b16 %v6440, %v6439
      %v6450 = vpack.c.b16 %v6442, %v6441
      %6459 = vmatpush.bf16.msra.mxu0 %v6450
      %6460 = vmatpush.bf16.msra.mxu0 %v6449
      %6461 = vmatpush.bf16.msra.mxu0 %v6448
      %6462 = vmatpush.bf16.msra.mxu0 %v6447
      %6463 = vmatpush.bf16.msra.mxu0 %v6446
      %6464 = vmatpush.bf16.msra.mxu0 %v6445
      %6465 = vmatpush.bf16.msra.mxu0 %v6444
      %6466 = vmatpush.bf16.msra.mxu0 %v6443
      %6467 = vmatmul.bf16.gmra.mxu0 %v6409
      %v6468 = vpop.f32.mrf.mxu0
      %v6469 = vadd.f32 0.0, %v6468
      %v6470 = vpop.f32.mrf.mxu0
      %v6471 = vadd.f32 0.0, %v6470
      %6472 = vdwg.mxu0
      %v6473 = vadd.f32 %v6383, %v6469
      %v6474 = vadd.f32 %v6385, %v6471
      %v6475 = vld [vmem:[%s305] sm:$0xf]
      %v6476 = vld [vmem:[%s305 + $0x4] sm:$0xf]
      %v6477 = vld [vmem:[%s597] sm:$0xf]
      %v6478 = vld [vmem:[%s597 + $0x4] sm:$0xf]
      %v6479 = vld [vmem:[%s597 + $0x8] sm:$0xf]
      %v6480 = vld [vmem:[%s597 + $0xc] sm:$0xf]
      %v6481 = vld [vmem:[%s597 + $0x10] sm:$0xf]
      %v6482 = vld [vmem:[%s597 + $0x14] sm:$0xf]
      %v6483 = vld [vmem:[%s597 + $0x18] sm:$0xf]
      %v6484 = vld [vmem:[%s597 + $0x1c] sm:$0xf]
      %v6485 = vld [vmem:[%s597 + $0x20] sm:$0xf]
      %v6486 = vld [vmem:[%s597 + $0x24] sm:$0xf]
      %v6487 = vld [vmem:[%s597 + $0x28] sm:$0xf]
      %v6488 = vld [vmem:[%s597 + $0x2c] sm:$0xf]
      %v6489 = vld [vmem:[%s597 + $0x30] sm:$0xf]
      %v6490 = vld [vmem:[%s597 + $0x34] sm:$0xf]
      %v6491 = vld [vmem:[%s597 + $0x38] sm:$0xf]
      %v6492 = vld [vmem:[%s597 + $0x3c] sm:$0xf]
      %v6495 = vunpack.c.l.b16 %v6475
      %v6496 = vunpack.c.l.b16 %v6476
      %v6497 = vpack.c.b16 %v6496, %v6495
      %v6515 = vunpack.c.l.b16 %v6477
      %v6516 = vunpack.c.l.b16 %v6478
      %v6517 = vunpack.c.l.b16 %v6479
      %v6518 = vunpack.c.l.b16 %v6480
      %v6519 = vunpack.c.l.b16 %v6481
      %v6520 = vunpack.c.l.b16 %v6482
      %v6521 = vunpack.c.l.b16 %v6483
      %v6522 = vunpack.c.l.b16 %v6484
      %v6523 = vunpack.c.l.b16 %v6485
      %v6524 = vunpack.c.l.b16 %v6486
      %v6525 = vunpack.c.l.b16 %v6487
      %v6526 = vunpack.c.l.b16 %v6488
      %v6527 = vunpack.c.l.b16 %v6489
      %v6528 = vunpack.c.l.b16 %v6490
      %v6529 = vunpack.c.l.b16 %v6491
      %v6530 = vunpack.c.l.b16 %v6492
      %v6531 = vpack.c.b16 %v6516, %v6515
      %v6532 = vpack.c.b16 %v6518, %v6517
      %v6533 = vpack.c.b16 %v6520, %v6519
      %v6534 = vpack.c.b16 %v6522, %v6521
      %v6535 = vpack.c.b16 %v6524, %v6523
      %v6536 = vpack.c.b16 %v6526, %v6525
      %v6537 = vpack.c.b16 %v6528, %v6527
      %v6538 = vpack.c.b16 %v6530, %v6529
      %6547 = vmatpush.bf16.msra.mxu0 %v6538
      %6548 = vmatpush.bf16.msra.mxu0 %v6537
      %6549 = vmatpush.bf16.msra.mxu0 %v6536
      %6550 = vmatpush.bf16.msra.mxu0 %v6535
      %6551 = vmatpush.bf16.msra.mxu0 %v6534
      %6552 = vmatpush.bf16.msra.mxu0 %v6533
      %6553 = vmatpush.bf16.msra.mxu0 %v6532
      %6554 = vmatpush.bf16.msra.mxu0 %v6531
      %6555 = vmatmul.bf16.gmra.mxu0 %v6497
      %v6556 = vpop.f32.mrf.mxu0
      %v6557 = vadd.f32 0.0, %v6556
      %v6558 = vpop.f32.mrf.mxu0
      %v6559 = vadd.f32 0.0, %v6558
      %6560 = vdwg.mxu0
      %v6561 = vadd.f32 %v6473, %v6557
      %v6562 = vadd.f32 %v6474, %v6559
      %v6563 = vld [vmem:[%s305] sm:$0xf]
      %v6564 = vld [vmem:[%s305 + $0x4] sm:$0xf]
      %v6565 = vld [vmem:[%s305 + $0x8] sm:$0x1]
      %v6566 = vld [vmem:[%s687] sm:$0xf]
      %v6567 = vld [vmem:[%s687 + $0x4] sm:$0xf]
      %v6568 = vld [vmem:[%s687 + $0x8] sm:$0xf]
      %v6569 = vld [vmem:[%s687 + $0xc] sm:$0xf]
      %v6570 = vld [vmem:[%s687 + $0x10] sm:$0xf]
      %v6571 = vld [vmem:[%s687 + $0x14] sm:$0xf]
      %v6572 = vld [vmem:[%s687 + $0x18] sm:$0xf]
      %v6573 = vld [vmem:[%s687 + $0x1c] sm:$0xf]
      %v6574 = vld [vmem:[%s687 + $0x20] sm:$0xf]
      %v6575 = vld [vmem:[%s687 + $0x24] sm:$0xf]
      %v6576 = vld [vmem:[%s687 + $0x28] sm:$0xf]
      %v6577 = vld [vmem:[%s687 + $0x2c] sm:$0xf]
      %v6578 = vld [vmem:[%s687 + $0x30] sm:$0xf]
      %v6579 = vld [vmem:[%s687 + $0x34] sm:$0xf]
      %v6580 = vld [vmem:[%s687 + $0x38] sm:$0xf]
      %v6581 = vld [vmem:[%s687 + $0x3c] sm:$0xf]
      %v6585 = vunpack.c.l.b16 %v6563
      %v6586 = vunpack.c.l.b16 %v6564
      %v6587 = vunpack.c.l.b16 %v6565
      %v6588 = vpack.c.b16 %v6586, %v6585
      %v6589 = vpack.c.b16 %v6587, %v6587
      %v6591 = vshrl.u32 %v6588, 16
      %v6593 = vshll.u32 %v6588, 16
      %v6595 = vrot.slane %v6593, 1
      %v6596 = vor.u32 %v6591, %v6595
      %v6598 = vshll.u32 %v6589, 16
      %v6600 = vrot.slane %v6598, 1
      %v6601 = vsel %vm365, %v6596, %v6600
      %v6619 = vunpack.c.l.b16 %v6566
      %v6620 = vunpack.c.l.b16 %v6567
      %v6621 = vunpack.c.l.b16 %v6568
      %v6622 = vunpack.c.l.b16 %v6569
      %v6623 = vunpack.c.l.b16 %v6570
      %v6624 = vunpack.c.l.b16 %v6571
      %v6625 = vunpack.c.l.b16 %v6572
      %v6626 = vunpack.c.l.b16 %v6573
      %v6627 = vunpack.c.l.b16 %v6574
      %v6628 = vunpack.c.l.b16 %v6575
      %v6629 = vunpack.c.l.b16 %v6576
      %v6630 = vunpack.c.l.b16 %v6577
      %v6631 = vunpack.c.l.b16 %v6578
      %v6632 = vunpack.c.l.b16 %v6579
      %v6633 = vunpack.c.l.b16 %v6580
      %v6634 = vunpack.c.l.b16 %v6581
      %v6635 = vpack.c.b16 %v6620, %v6619
      %v6636 = vpack.c.b16 %v6622, %v6621
      %v6637 = vpack.c.b16 %v6624, %v6623
      %v6638 = vpack.c.b16 %v6626, %v6625
      %v6639 = vpack.c.b16 %v6628, %v6627
      %v6640 = vpack.c.b16 %v6630, %v6629
      %v6641 = vpack.c.b16 %v6632, %v6631
      %v6642 = vpack.c.b16 %v6634, %v6633
      %6651 = vmatpush.bf16.msra.mxu0 %v6642
      %6652 = vmatpush.bf16.msra.mxu0 %v6641
      %6653 = vmatpush.bf16.msra.mxu0 %v6640
      %6654 = vmatpush.bf16.msra.mxu0 %v6639
      %6655 = vmatpush.bf16.msra.mxu0 %v6638
      %6656 = vmatpush.bf16.msra.mxu0 %v6637
      %6657 = vmatpush.bf16.msra.mxu0 %v6636
      %6658 = vmatpush.bf16.msra.mxu0 %v6635
      %6659 = vmatmul.bf16.gmra.mxu0 %v6601
      %v6660 = vpop.f32.mrf.mxu0
      %v6661 = vadd.f32 0.0, %v6660
      %v6662 = vpop.f32.mrf.mxu0
      %v6663 = vadd.f32 0.0, %v6662
      %6664 = vdwg.mxu0
      %v6665 = vadd.f32 %v6561, %v6661
      %v6666 = vadd.f32 %v6562, %v6663
      %v6667 = vld [vmem:[%s305] sm:$0xe]
      %v6668 = vld [vmem:[%s790] sm:$0xf]
      %v6669 = vld [vmem:[%s790 + $0x4] sm:$0xf]
      %v6670 = vld [vmem:[%s790 + $0x8] sm:$0xf]
      %v6671 = vld [vmem:[%s790 + $0xc] sm:$0xf]
      %v6672 = vld [vmem:[%s790 + $0x10] sm:$0xf]
      %v6673 = vld [vmem:[%s790 + $0x14] sm:$0xf]
      %v6674 = vld [vmem:[%s790 + $0x18] sm:$0xf]
      %v6675 = vld [vmem:[%s790 + $0x1c] sm:$0xf]
      %v6676 = vld [vmem:[%s790 + $0x20] sm:$0xf]
      %v6677 = vld [vmem:[%s790 + $0x24] sm:$0xf]
      %v6678 = vld [vmem:[%s790 + $0x28] sm:$0xf]
      %v6679 = vld [vmem:[%s790 + $0x2c] sm:$0xf]
      %v6680 = vld [vmem:[%s790 + $0x30] sm:$0xf]
      %v6681 = vld [vmem:[%s790 + $0x34] sm:$0xf]
      %v6682 = vld [vmem:[%s790 + $0x38] sm:$0xf]
      %v6683 = vld [vmem:[%s790 + $0x3c] sm:$0xf]
      %v6685 = vunpack.c.l.b16 %v6667
      %v6686 = vpack.c.b16 %v6586, %v6685
      %v6687 = vrot.slane %v6686, 1
      %v6688 = vrot.slane %v6589, 1
      %v6689 = vsel %vm525, %v6687, %v6688
      %v6707 = vunpack.c.l.b16 %v6668
      %v6708 = vunpack.c.l.b16 %v6669
      %v6709 = vunpack.c.l.b16 %v6670
      %v6710 = vunpack.c.l.b16 %v6671
      %v6711 = vunpack.c.l.b16 %v6672
      %v6712 = vunpack.c.l.b16 %v6673
      %v6713 = vunpack.c.l.b16 %v6674
      %v6714 = vunpack.c.l.b16 %v6675
      %v6715 = vunpack.c.l.b16 %v6676
      %v6716 = vunpack.c.l.b16 %v6677
      %v6717 = vunpack.c.l.b16 %v6678
      %v6718 = vunpack.c.l.b16 %v6679
      %v6719 = vunpack.c.l.b16 %v6680
      %v6720 = vunpack.c.l.b16 %v6681
      %v6721 = vunpack.c.l.b16 %v6682
      %v6722 = vunpack.c.l.b16 %v6683
      %v6723 = vpack.c.b16 %v6708, %v6707
      %v6724 = vpack.c.b16 %v6710, %v6709
      %v6725 = vpack.c.b16 %v6712, %v6711
      %v6726 = vpack.c.b16 %v6714, %v6713
      %v6727 = vpack.c.b16 %v6716, %v6715
      %v6728 = vpack.c.b16 %v6718, %v6717
      %v6729 = vpack.c.b16 %v6720, %v6719
      %v6730 = vpack.c.b16 %v6722, %v6721
      %6739 = vmatpush.bf16.msra.mxu0 %v6730
      %6740 = vmatpush.bf16.msra.mxu0 %v6729
      %6741 = vmatpush.bf16.msra.mxu0 %v6728
      %6742 = vmatpush.bf16.msra.mxu0 %v6727
      %6743 = vmatpush.bf16.msra.mxu0 %v6726
      %6744 = vmatpush.bf16.msra.mxu0 %v6725
      %6745 = vmatpush.bf16.msra.mxu0 %v6724
      %6746 = vmatpush.bf16.msra.mxu0 %v6723
      %6747 = vmatmul.bf16.gmra.mxu0 %v6689
      %v6748 = vpop.f32.mrf.mxu0
      %v6749 = vadd.f32 0.0, %v6748
      %v6750 = vpop.f32.mrf.mxu0
      %v6751 = vadd.f32 0.0, %v6750
      %6752 = vdwg.mxu0
      %v6753 = vadd.f32 %v6665, %v6749
      %v6754 = vadd.f32 %v6666, %v6751
      %s6755 = scalar_lea.vmem %s305, 12
      %v6756 = vld [vmem:[%s6755] sm:$0xf]
      %v6757 = vld [vmem:[%s6755 + $0x4] sm:$0xf]
      %v6758 = vld [vmem:[%s881] sm:$0xf]
      %v6759 = vld [vmem:[%s881 + $0x4] sm:$0xf]
      %v6760 = vld [vmem:[%s881 + $0x8] sm:$0xf]
      %v6761 = vld [vmem:[%s881 + $0xc] sm:$0xf]
      %v6762 = vld [vmem:[%s881 + $0x10] sm:$0xf]
      %v6763 = vld [vmem:[%s881 + $0x14] sm:$0xf]
      %v6764 = vld [vmem:[%s881 + $0x18] sm:$0xf]
      %v6765 = vld [vmem:[%s881 + $0x1c] sm:$0xf]
      %v6766 = vld [vmem:[%s881 + $0x20] sm:$0xf]
      %v6767 = vld [vmem:[%s881 + $0x24] sm:$0xf]
      %v6768 = vld [vmem:[%s881 + $0x28] sm:$0xf]
      %v6769 = vld [vmem:[%s881 + $0x2c] sm:$0xf]
      %v6770 = vld [vmem:[%s881 + $0x30] sm:$0xf]
      %v6771 = vld [vmem:[%s881 + $0x34] sm:$0xf]
      %v6772 = vld [vmem:[%s881 + $0x38] sm:$0xf]
      %v6773 = vld [vmem:[%s881 + $0x3c] sm:$0xf]
      %v6776 = vunpack.c.l.b16 %v6756
      %v6777 = vunpack.c.l.b16 %v6757
      %v6778 = vpack.c.b16 %v6777, %v6776
      %v6796 = vunpack.c.l.b16 %v6758
      %v6797 = vunpack.c.l.b16 %v6759
      %v6798 = vunpack.c.l.b16 %v6760
      %v6799 = vunpack.c.l.b16 %v6761
      %v6800 = vunpack.c.l.b16 %v6762
      %v6801 = vunpack.c.l.b16 %v6763
      %v6802 = vunpack.c.l.b16 %v6764
      %v6803 = vunpack.c.l.b16 %v6765
      %v6804 = vunpack.c.l.b16 %v6766
      %v6805 = vunpack.c.l.b16 %v6767
      %v6806 = vunpack.c.l.b16 %v6768
      %v6807 = vunpack.c.l.b16 %v6769
      %v6808 = vunpack.c.l.b16 %v6770
      %v6809 = vunpack.c.l.b16 %v6771
      %v6810 = vunpack.c.l.b16 %v6772
      %v6811 = vunpack.c.l.b16 %v6773
      %v6812 = vpack.c.b16 %v6797, %v6796
      %v6813 = vpack.c.b16 %v6799, %v6798
      %v6814 = vpack.c.b16 %v6801, %v6800
      %v6815 = vpack.c.b16 %v6803, %v6802
      %v6816 = vpack.c.b16 %v6805, %v6804
      %v6817 = vpack.c.b16 %v6807, %v6806
      %v6818 = vpack.c.b16 %v6809, %v6808
      %v6819 = vpack.c.b16 %v6811, %v6810
      %6828 = vmatpush.bf16.msra.mxu0 %v6819
      %6829 = vmatpush.bf16.msra.mxu0 %v6818
      %6830 = vmatpush.bf16.msra.mxu0 %v6817
      %6831 = vmatpush.bf16.msra.mxu0 %v6816
      %6832 = vmatpush.bf16.msra.mxu0 %v6815
      %6833 = vmatpush.bf16.msra.mxu0 %v6814
      %6834 = vmatpush.bf16.msra.mxu0 %v6813
      %6835 = vmatpush.bf16.msra.mxu0 %v6812
      %6836 = vmatmul.bf16.gmra.mxu0 %v6778
      %v6837 = vpop.f32.mrf.mxu0
      %v6838 = vadd.f32 0.0, %v6837
      %v6839 = vpop.f32.mrf.mxu0
      %v6840 = vadd.f32 0.0, %v6839
      %6841 = vdwg.mxu0
      %v6842 = vadd.f32 %v6753, %v6838
      %v6843 = vadd.f32 %v6754, %v6840
      %v6844 = vld [vmem:[%s6755] sm:$0xf]
      %v6845 = vld [vmem:[%s6755 + $0x4] sm:$0xf]
      %v6846 = vld [vmem:[%s6755 + $0x8] sm:$0x1]
      %v6847 = vld [vmem:[%s971] sm:$0xf]
      %v6848 = vld [vmem:[%s971 + $0x4] sm:$0xf]
      %v6849 = vld [vmem:[%s971 + $0x8] sm:$0xf]
      %v6850 = vld [vmem:[%s971 + $0xc] sm:$0xf]
      %v6851 = vld [vmem:[%s971 + $0x10] sm:$0xf]
      %v6852 = vld [vmem:[%s971 + $0x14] sm:$0xf]
      %v6853 = vld [vmem:[%s971 + $0x18] sm:$0xf]
      %v6854 = vld [vmem:[%s971 + $0x1c] sm:$0xf]
      %v6855 = vld [vmem:[%s971 + $0x20] sm:$0xf]
      %v6856 = vld [vmem:[%s971 + $0x24] sm:$0xf]
      %v6857 = vld [vmem:[%s971 + $0x28] sm:$0xf]
      %v6858 = vld [vmem:[%s971 + $0x2c] sm:$0xf]
      %v6859 = vld [vmem:[%s971 + $0x30] sm:$0xf]
      %v6860 = vld [vmem:[%s971 + $0x34] sm:$0xf]
      %v6861 = vld [vmem:[%s971 + $0x38] sm:$0xf]
      %v6862 = vld [vmem:[%s971 + $0x3c] sm:$0xf]
      %v6866 = vunpack.c.l.b16 %v6844
      %v6867 = vunpack.c.l.b16 %v6845
      %v6868 = vunpack.c.l.b16 %v6846
      %v6869 = vpack.c.b16 %v6867, %v6866
      %v6870 = vpack.c.b16 %v6868, %v6868
      %v6872 = vshrl.u32 %v6869, 16
      %v6874 = vshll.u32 %v6869, 16
      %v6876 = vrot.slane %v6874, 1
      %v6877 = vor.u32 %v6872, %v6876
      %v6879 = vshll.u32 %v6870, 16
      %v6881 = vrot.slane %v6879, 1
      %v6882 = vsel %vm365, %v6877, %v6881
      %v6900 = vunpack.c.l.b16 %v6847
      %v6901 = vunpack.c.l.b16 %v6848
      %v6902 = vunpack.c.l.b16 %v6849
      %v6903 = vunpack.c.l.b16 %v6850
      %v6904 = vunpack.c.l.b16 %v6851
      %v6905 = vunpack.c.l.b16 %v6852
      %v6906 = vunpack.c.l.b16 %v6853
      %v6907 = vunpack.c.l.b16 %v6854
      %v6908 = vunpack.c.l.b16 %v6855
      %v6909 = vunpack.c.l.b16 %v6856
      %v6910 = vunpack.c.l.b16 %v6857
      %v6911 = vunpack.c.l.b16 %v6858
      %v6912 = vunpack.c.l.b16 %v6859
      %v6913 = vunpack.c.l.b16 %v6860
      %v6914 = vunpack.c.l.b16 %v6861
      %v6915 = vunpack.c.l.b16 %v6862
      %v6916 = vpack.c.b16 %v6901, %v6900
      %v6917 = vpack.c.b16 %v6903, %v6902
      %v6918 = vpack.c.b16 %v6905, %v6904
      %v6919 = vpack.c.b16 %v6907, %v6906
      %v6920 = vpack.c.b16 %v6909, %v6908
      %v6921 = vpack.c.b16 %v6911, %v6910
      %v6922 = vpack.c.b16 %v6913, %v6912
      %v6923 = vpack.c.b16 %v6915, %v6914
      %6932 = vmatpush.bf16.msra.mxu0 %v6923
      %6933 = vmatpush.bf16.msra.mxu0 %v6922
      %6934 = vmatpush.bf16.msra.mxu0 %v6921
      %6935 = vmatpush.bf16.msra.mxu0 %v6920
      %6936 = vmatpush.bf16.msra.mxu0 %v6919
      %6937 = vmatpush.bf16.msra.mxu0 %v6918
      %6938 = vmatpush.bf16.msra.mxu0 %v6917
      %6939 = vmatpush.bf16.msra.mxu0 %v6916
      %6940 = vmatmul.bf16.gmra.mxu0 %v6882
      %v6941 = vpop.f32.mrf.mxu0
      %v6942 = vadd.f32 0.0, %v6941
      %v6943 = vpop.f32.mrf.mxu0
      %v6944 = vadd.f32 0.0, %v6943
      %6945 = vdwg.mxu0
      %v6946 = vadd.f32 %v6842, %v6942
      %v6947 = vadd.f32 %v6843, %v6944
      %v6948 = vld [vmem:[%s6755] sm:$0xe]
      %v6949 = vld [vmem:[%s1074] sm:$0xf]
      %v6950 = vld [vmem:[%s1074 + $0x4] sm:$0xf]
      %v6951 = vld [vmem:[%s1074 + $0x8] sm:$0xf]
      %v6952 = vld [vmem:[%s1074 + $0xc] sm:$0xf]
      %v6953 = vld [vmem:[%s1074 + $0x10] sm:$0xf]
      %v6954 = vld [vmem:[%s1074 + $0x14] sm:$0xf]
      %v6955 = vld [vmem:[%s1074 + $0x18] sm:$0xf]
      %v6956 = vld [vmem:[%s1074 + $0x1c] sm:$0xf]
      %v6957 = vld [vmem:[%s1074 + $0x20] sm:$0xf]
      %v6958 = vld [vmem:[%s1074 + $0x24] sm:$0xf]
      %v6959 = vld [vmem:[%s1074 + $0x28] sm:$0xf]
      %v6960 = vld [vmem:[%s1074 + $0x2c] sm:$0xf]
      %v6961 = vld [vmem:[%s1074 + $0x30] sm:$0xf]
      %v6962 = vld [vmem:[%s1074 + $0x34] sm:$0xf]
      %v6963 = vld [vmem:[%s1074 + $0x38] sm:$0xf]
      %v6964 = vld [vmem:[%s1074 + $0x3c] sm:$0xf]
      %v6966 = vunpack.c.l.b16 %v6948
      %v6967 = vpack.c.b16 %v6867, %v6966
      %v6968 = vrot.slane %v6967, 1
      %v6969 = vrot.slane %v6870, 1
      %v6970 = vsel %vm525, %v6968, %v6969
      %v6988 = vunpack.c.l.b16 %v6949
      %v6989 = vunpack.c.l.b16 %v6950
      %v6990 = vunpack.c.l.b16 %v6951
      %v6991 = vunpack.c.l.b16 %v6952
      %v6992 = vunpack.c.l.b16 %v6953
      %v6993 = vunpack.c.l.b16 %v6954
      %v6994 = vunpack.c.l.b16 %v6955
      %v6995 = vunpack.c.l.b16 %v6956
      %v6996 = vunpack.c.l.b16 %v6957
      %v6997 = vunpack.c.l.b16 %v6958
      %v6998 = vunpack.c.l.b16 %v6959
      %v6999 = vunpack.c.l.b16 %v6960
      %v7000 = vunpack.c.l.b16 %v6961
      %v7001 = vunpack.c.l.b16 %v6962
      %v7002 = vunpack.c.l.b16 %v6963
      %v7003 = vunpack.c.l.b16 %v6964
      %v7004 = vpack.c.b16 %v6989, %v6988
      %v7005 = vpack.c.b16 %v6991, %v6990
      %v7006 = vpack.c.b16 %v6993, %v6992
      %v7007 = vpack.c.b16 %v6995, %v6994
      %v7008 = vpack.c.b16 %v6997, %v6996
      %v7009 = vpack.c.b16 %v6999, %v6998
      %v7010 = vpack.c.b16 %v7001, %v7000
      %v7011 = vpack.c.b16 %v7003, %v7002
      %7020 = vmatpush.bf16.msra.mxu0 %v7011
      %7021 = vmatpush.bf16.msra.mxu0 %v7010
      %7022 = vmatpush.bf16.msra.mxu0 %v7009
      %7023 = vmatpush.bf16.msra.mxu0 %v7008
      %7024 = vmatpush.bf16.msra.mxu0 %v7007
      %7025 = vmatpush.bf16.msra.mxu0 %v7006
      %7026 = vmatpush.bf16.msra.mxu0 %v7005
      %7027 = vmatpush.bf16.msra.mxu0 %v7004
      %7028 = vmatmul.bf16.gmra.mxu0 %v6970
      %v7029 = vpop.f32.mrf.mxu0
      %v7030 = vadd.f32 0.0, %v7029
      %v7031 = vpop.f32.mrf.mxu0
      %v7032 = vadd.f32 0.0, %v7031
      %7033 = vdwg.mxu0
      %v7034 = vadd.f32 %v6946, %v7030
      %v7035 = vadd.f32 %v6947, %v7032
      %v7036 = vadd.f32 %v7034, %v1163
      %v7037 = vadd.f32 %v7035, %v1163
      %v7038 = vmax.f32 %v7036, 0.0
      %v7039 = vmax.f32 %v7037, 0.0
      %v7040 = vpack.c.bf16 %v7038, %v7038
      %v7041 = vpack.c.bf16 %v7039, %v7039
      %s7042 = scalar_lea.vmem %s318, 56
      %7043 = vst [vmem:[%s7042] sm:$0xf] %v7040
      %7044 = vst [vmem:[%s7042 + $0x4] sm:$0xf] %v7041
      %s7045 = smul.u32 8, %s20
      %p7046 = scmp.lt.s32.totalorder %s19, 1
      %s7047 = scalar_select %p7046, %s19, 1
      %p7048 = scmp.lt.s32.totalorder %s7045, 15
      %s7049 = scalar_select %p7048, %s7045, 15
      %s7050 = smul.addr %s7049, 2
      %s7051 = smul.addr %s7047, 32
      %s7052 = sadd.s32 %s7050, %s7051
      %s7053 = smul.addr %s7052, 4
      %s7054 = scalar_lea.vmem %s4, %s7053
      // Predicated region
      $region37: #{basic_convolution_block.1} parent=35 // pred_check
        %p7055 = pneg %p149
      $region38: #{basic_convolution_block.1} parent=35 // pred_check_branch
        %7057 = sbr.rel (%p7055) target = $region40
      $region39: #{basic_convolution_block.1} parent=35 // pred_region
        %s7058 = smul.u32 8, %s20
      $region40: #{basic_convolution_block.1} parent=35 // pred_fallthru
        _
    $region36: #{basic_convolution_block.1} parent=5 // pred_fallthru
      _
    %p7059 = scmp.le.s32.totalorder 2, %s10
    // Predicated region
    $region41: #{basic_convolution_block.1} parent=5 // pred_check
      %p7060 = pneg %p7059
    $region42: #{basic_convolution_block.1} parent=5 // pred_check_branch
      %7062 = sbr.rel (%p7060) target = $region44
    $region43: #{basic_convolution_block.1} parent=5 // pred_region
      %s7063 = ssub.s32 %s10, 2
      // Predicated region
      $region45: #{basic_convolution_block.1} parent=43 // pred_check
        %p7064 = pneg %p155
      $region46: #{basic_convolution_block.1} parent=43 // pred_check_branch
        %7066 = sbr.rel (%p7064) target = $region48
      $region47: #{basic_convolution_block.1} parent=43 // pred_region
        %s7067 = smul.u32 8, %s22
        %p7068 = scmp.lt.s32.totalorder %s21, 1
        %s7069 = scalar_select %p7068, %s21, 1
        %p7070 = scmp.lt.s32.totalorder %s7067, 15
        %s7071 = scalar_select %p7070, %s7067, 15
        %s7072 = smul.addr %s7071, 2
        %s7073 = smul.addr %s7069, 32
        %s7074 = sadd.s32 %s7072, %s7073
        %s7075 = smul.addr %s7074, 4
        %s7076 = scalar_lea.vmem %s4, %s7075
      $region48: #{basic_convolution_block.1} parent=43 // pred_fallthru
        _
    $region44: #{basic_convolution_block.1} parent=5 // pred_fallthru
      _
  $region6: #{basic_convolution_block.1} parent=0 // loop_footer
    %s14 = sadd.s32 1, %s10
  $region7: #{basic_convolution_block.1} parent=0 // loop_footer_branch
    %9 = sbr.rel target = $region3
  $region8: #{basic_convolution_block.1} parent=0 // loop_exit
    _

</llo_original>
